<compile_context>
chip_gen: v7x
topology: tpu7x:2x2x1
jax: 0.10.0
libtpu: 0.0.40
codegen_flags: <defaults>
</compile_context>

<pallas_src>
import math
import functools

import jax
import jax.numpy as jnp
from jax import lax
from jax.experimental import pallas as pl
from jax.experimental.pallas import tpu as pltpu

LN_EPS = 1e-5

# Row layout of the packed per-layer "small vector" operand (width = d_ff,
# D-wide rows occupy lanes [0:D], rest zero-padded).
ROW_BQ, ROW_BK, ROW_BV, ROW_BO = 0, 1, 2, 3
ROW_B1, ROW_B2 = 4, 5
ROW_G1, ROW_BE1, ROW_G2, ROW_BE2 = 6, 7, 8, 9
N_VEC = 10


def _layer_norm(x, gamma, beta):
    mu = jnp.mean(x, axis=-1, keepdims=True)
    var = jnp.mean(jnp.square(x - mu), axis=-1, keepdims=True)
    return (x - mu) * lax.rsqrt(var + LN_EPS) * gamma + beta


def fused_encoder_kernel(
    x_ref, pe_ref,
    wq_ref, wk_ref, wv_ref, wo_ref,
    w1_ref, w2_ref, vec_ref,
    o_ref,
    *, d_model, d_ff, n_layers,
):
    inv_sqrt_d = 1.0 / math.sqrt(d_model)

    # Embedding scale + positional encoding folded into the first (only) step.
    x = x_ref[...] * math.sqrt(d_model) + pe_ref[...]          # (S, D)

    # All layers in one grid step.  Weights are fully VMEM-resident (constant
    # index_map => fetched once), so the static loop is pure compute with no
    # per-layer DMA or grid-step overhead; full unroll gives the LLO scheduler
    # complete visibility.
    for li in range(n_layers):
        wq = wq_ref[li]
        wk = wk_ref[li]
        wv = wv_ref[li]
        wo = wo_ref[li]
        w1 = w1_ref[li]
        w2 = w2_ref[li]

        bq  = vec_ref[li, ROW_BQ:ROW_BQ + 1, :d_model]
        bk  = vec_ref[li, ROW_BK:ROW_BK + 1, :d_model]
        bv  = vec_ref[li, ROW_BV:ROW_BV + 1, :d_model]
        bo  = vec_ref[li, ROW_BO:ROW_BO + 1, :d_model]
        b1  = vec_ref[li, ROW_B1:ROW_B1 + 1, :]
        b2  = vec_ref[li, ROW_B2:ROW_B2 + 1, :d_model]
        g1  = vec_ref[li, ROW_G1:ROW_G1 + 1, :d_model]
        be1 = vec_ref[li, ROW_BE1:ROW_BE1 + 1, :d_model]
        g2  = vec_ref[li, ROW_G2:ROW_G2 + 1, :d_model]
        be2 = vec_ref[li, ROW_BE2:ROW_BE2 + 1, :d_model]

        # --- self attention (single head).  Separate Q/K/V projections so each
        # result occupies its own tile (no lane-offset sub-vreg slicing). ---
        q = jnp.dot(x, wq, preferred_element_type=jnp.float32) + bq
        k = jnp.dot(x, wk, preferred_element_type=jnp.float32) + bk
        v = jnp.dot(x, wv, preferred_element_type=jnp.float32) + bv

        # Q.K^T contraction; at S=16 the implicit K transpose (XLU) is
        # negligible — pre-transpose K if S grows large.
        scores = lax.dot_general(
            q, k, (((1,), (1,)), ((), ())),
            preferred_element_type=jnp.float32) * inv_sqrt_d
        # NOTE: the module's scalar additive src_mask is a uniform constant and
        # cancels exactly in softmax, so it is intentionally omitted here.

        m = jnp.max(scores, axis=-1, keepdims=True)
        p = jnp.exp(scores - m)
        attn = p * pl.reciprocal(jnp.sum(p, axis=-1, keepdims=True), approx=True)

        ctx = jnp.dot(attn, v, preferred_element_type=jnp.float32)
        attn_out = jnp.dot(ctx, wo, preferred_element_type=jnp.float32) + bo

        # --- residual + LayerNorm 1 (post-norm, PyTorch default) ---
        y = _layer_norm(x + attn_out, g1, be1)

        # --- feed-forward (ReLU) ---
        h = jnp.maximum(
            jnp.dot(y, w1, preferred_element_type=jnp.float32) + b1, 0.0)
        ff = jnp.dot(h, w2, preferred_element_type=jnp.float32) + b2

        # --- residual + LayerNorm 2 ---
        x = _layer_norm(y + ff, g2, be2)

    o_ref[...] = x


def pack_small_vectors(params, d_ff):
    """Pack all per-layer bias / LN vectors into one (n_layers, N_VEC, d_ff)."""
    def pad(v):                                   # (L, 1, w) -> (L, 1, d_ff)
        return jnp.pad(v, ((0, 0), (0, 0), (0, d_ff - v.shape[-1])))
    return jnp.concatenate(
        [pad(params[k]) for k in
         ("bq", "bk", "bv", "bo", "b1", "b2", "g1", "be1", "g2", "be2")],
        axis=1)


def fused_encoder(x_emb, pe, params):
    """Embedding-scale + PE + all encoder layers in one Pallas call."""
    B, S, D = x_emb.shape
    n_layers = params["wq"].shape[0]
    d_ff = params["w1"].shape[-1]
    vecs = pack_small_vectors(params, d_ff)

    def resident(shape):
        # full-array block, constant index_map -> DMA'd once, VMEM-resident
        nd = len(shape)
        return pl.BlockSpec(shape, lambda b: (0,) * nd)

    grid_spec = pltpu.PrefetchScalarGridSpec(
        num_scalar_prefetch=0,
        grid=(B,),
        in_specs=[
            pl.BlockSpec((None, S, D), lambda b: (b, 0, 0)),   # embedded tokens
            pl.BlockSpec((S, D), lambda b: (0, 0)),            # positional encoding
            resident((n_layers, D, D)),                        # wq
            resident((n_layers, D, D)),                        # wk
            resident((n_layers, D, D)),                        # wv
            resident((n_layers, D, D)),                        # wo
            resident((n_layers, D, d_ff)),                     # w1
            resident((n_layers, d_ff, D)),                     # w2
            resident((n_layers, N_VEC, d_ff)),                 # packed vectors
        ],
        out_specs=pl.BlockSpec((None, S, D), lambda b: (b, 0, 0)),
    )

    # Advisory cost so XLA overlaps the embedding gather / PE with this call.
    flops_layer = 8 * S * D * D + 4 * S * S * D + 4 * S * D * d_ff
    weight_bytes = 4 * n_layers * (4 * D * D + 2 * D * d_ff + N_VEC * d_ff)
    cost = pl.CostEstimate(
        flops=B * n_layers * flops_layer,
        transcendentals=B * n_layers * (S * S + 2 * S),
        bytes_accessed=int(3 * B * S * D * 4 + weight_bytes),
    )

    kernel = functools.partial(fused_encoder_kernel,
                               d_model=D, d_ff=d_ff, n_layers=n_layers)
    return pl.pallas_call(
        kernel,
        out_shape=jax.ShapeDtypeStruct((B, S, D), jnp.float32),
        grid_spec=grid_spec,
        compiler_params=pltpu.CompilerParams(
            dimension_semantics=("parallel",)),
        cost_estimate=cost,
    )(x_emb, pe,
      params["wq"], params["wk"], params["wv"], params["wo"],
      params["w1"], params["w2"], vecs)


def sinusoidal_pe(seq_len, d_model):
    pos = jnp.arange(seq_len, dtype=jnp.float32)[:, None]
    i = jnp.arange(0, d_model, 2, dtype=jnp.float32)[None, :]
    div = jnp.exp(-math.log(10000.0) * i / d_model)
    pe = jnp.zeros((seq_len, d_model), dtype=jnp.float32)
    pe = pe.at[:, 0::2].set(jnp.sin(pos * div))
    pe = pe.at[:, 1::2].set(jnp.cos(pos * div))
    return pe


def init_params(key, vocab, d_model, d_ff, n_layers):
    keys = jax.random.split(key, 1 + n_layers)
    emb = jax.random.normal(keys[0], (vocab, d_model), jnp.float32) * 0.02
    s = 1.0 / math.sqrt(d_model)
    sf = 1.0 / math.sqrt(d_ff)
    layers = []
    for li in range(n_layers):
        ks = jax.random.split(keys[1 + li], 12)
        u = lambda k, shape, b: jax.random.uniform(k, shape, jnp.float32, -b, b)
        layers.append(dict(
            wq=u(ks[0], (d_model, d_model), s),
            wk=u(ks[1], (d_model, d_model), s),
            wv=u(ks[2], (d_model, d_model), s),
            wo=u(ks[3], (d_model, d_model), s),
            w1=u(ks[4], (d_model, d_ff), s),
            w2=u(ks[5], (d_ff, d_model), sf),
            bq=u(ks[6], (1, d_model), s),
            bk=u(ks[7], (1, d_model), s),
            bv=u(ks[8], (1, d_model), s),
            bo=u(ks[9], (1, d_model), s),
            b1=u(ks[10], (1, d_ff), s),
            b2=u(ks[11], (1, d_model), sf),
            g1=jnp.ones((1, d_model), jnp.float32),
            be1=jnp.zeros((1, d_model), jnp.float32),
            g2=jnp.ones((1, d_model), jnp.float32),
            be2=jnp.zeros((1, d_model), jnp.float32),
        ))
    stacked = {k: jnp.stack([l[k] for l in layers]) for k in layers[0]}
    return emb, stacked


@jax.jit
def transformer_forward(src_tokens, emb_table, params):
    b, s = src_tokens.shape
    d_model = emb_table.shape[1]
    # TODO(synk): embedding gather kept as plain-JAX glue (could be folded into
    # the kernel via scalar prefetch + pl.Element row gather at larger sizes).
    x_emb = emb_table[src_tokens]
    pe = sinusoidal_pe(s, d_model)
    return fused_encoder(x_emb, pe, params)


def reference_forward(src_tokens, emb_table, params, src_mask):
    """Pure-JAX reference of the same forward pass (sanity check)."""
    b, s = src_tokens.shape
    d = emb_table.shape[1]
    x = emb_table[src_tokens] * math.sqrt(d) + sinusoidal_pe(s, d)[None]
    n_layers = params["wq"].shape[0]
    for li in range(n_layers):
        p = {kk: vv[li] for kk, vv in params.items()}
        q = x @ p["wq"] + p["bq"]
        k = x @ p["wk"] + p["bk"]
        v = x @ p["wv"] + p["bv"]
        sc = jnp.einsum("bqd,bkd->bqk", q, k) / math.sqrt(d) + src_mask
        attn = jax.nn.softmax(sc, axis=-1)
        ctx = jnp.einsum("bqk,bkd->bqd", attn, v)
        ao = ctx @ p["wo"] + p["bo"]
        y = _layer_norm(x + ao, p["g1"], p["be1"])
        h = jax.nn.relu(y @ p["w1"] + p["b1"])
        ff = h @ p["w2"] + p["b2"]
        x = _layer_norm(y + ff, p["g2"], p["be2"])
    return x


if __name__ == "__main__":
    VOCAB = 2003
    D_MODEL = 32     # embed_dim (module uses 1; kept small-but-nondegenerate)
    N_HEADS = 1
    D_FF = 64
    N_LAYERS = 10
    B, S = 2, 16

    key = jax.random.PRNGKey(0)
    k_tok, k_par = jax.random.split(key)

    src = jax.random.randint(k_tok, (B, S), 0, VOCAB, dtype=jnp.int32)
    SRC_MASK = 1.0   # scalar additive attention mask (src_mask = 1 in the module)

    emb_table, params = init_params(k_par, VOCAB, D_MODEL, D_FF, N_LAYERS)

    encoder_out = transformer_forward(src, emb_table, params)
    jax.block_until_ready(encoder_out)

    ref = reference_forward(src, emb_table, params, SRC_MASK)
    max_diff = float(jnp.max(jnp.abs(encoder_out - ref)))

    assert encoder_out.shape == (B, S, D_MODEL)
    assert bool(jnp.all(jnp.isfinite(encoder_out)))
    assert max_diff < 1e-1, f"max |kernel - reference| too large: {max_diff}"
    print("KERNEL_OK")
</pallas_src>

<mosaic_0001>
module attributes {stable_mosaic.version = 11 : i64} {
  func.func @fused_encoder_kernel(%arg0: i32, %arg1: memref<1x16x32xf32, #tpu.memory_space<vmem>>, %arg2: memref<16x32xf32, #tpu.memory_space<vmem>>, %arg3: memref<10x32x32xf32, #tpu.memory_space<vmem>>, %arg4: memref<10x32x32xf32, #tpu.memory_space<vmem>>, %arg5: memref<10x32x32xf32, #tpu.memory_space<vmem>>, %arg6: memref<10x32x32xf32, #tpu.memory_space<vmem>>, %arg7: memref<10x32x64xf32, #tpu.memory_space<vmem>>, %arg8: memref<10x64x32xf32, #tpu.memory_space<vmem>>, %arg9: memref<10x10x64xf32, #tpu.memory_space<vmem>>, %arg10: memref<1x16x32xf32, #tpu.memory_space<vmem>>) attributes {dimension_semantics = [#tpu.dimension_semantics<parallel>], iteration_bounds = array<i64: 2>, scalar_prefetch = 0 : i64, scratch_operands = 0 : i64, tpu.core_type = #tpu.core_type<tc>, window_params = [{transform_indices = @transform_0, window_bounds = array<i64: 1, 16, 32>}, {pipeline_mode = #tpu.pipeline_mode<synchronous>, transform_indices = @transform_1, window_bounds = array<i64: 16, 32>}, {pipeline_mode = #tpu.pipeline_mode<synchronous>, transform_indices = @transform_2, window_bounds = array<i64: 10, 32, 32>}, {pipeline_mode = #tpu.pipeline_mode<synchronous>, transform_indices = @transform_3, window_bounds = array<i64: 10, 32, 32>}, {pipeline_mode = #tpu.pipeline_mode<synchronous>, transform_indices = @transform_4, window_bounds = array<i64: 10, 32, 32>}, {pipeline_mode = #tpu.pipeline_mode<synchronous>, transform_indices = @transform_5, window_bounds = array<i64: 10, 32, 32>}, {pipeline_mode = #tpu.pipeline_mode<synchronous>, transform_indices = @transform_6, window_bounds = array<i64: 10, 32, 64>}, {pipeline_mode = #tpu.pipeline_mode<synchronous>, transform_indices = @transform_7, window_bounds = array<i64: 10, 64, 32>}, {pipeline_mode = #tpu.pipeline_mode<synchronous>, transform_indices = @transform_8, window_bounds = array<i64: 10, 10, 64>}, {transform_indices = @transform_9, window_bounds = array<i64: 1, 16, 32>}]} {
    %c0 = arith.constant 0 : index
    %c0_0 = arith.constant 0 : index
    %c0_1 = arith.constant 0 : index
    %0 = vector.load %arg1[%c0, %c0_0, %c0_1] : memref<1x16x32xf32, #tpu.memory_space<vmem>>, vector<1x16x32xf32>
    %1 = vector.shape_cast %0 : vector<1x16x32xf32> to vector<16x32xf32>
    %cst = arith.constant 5.65685415 : f32
    %2 = vector.broadcast %cst : f32 to vector<16x32xf32>
    %3 = arith.mulf %1, %2 : vector<16x32xf32>
    %c0_2 = arith.constant 0 : index
    %c0_3 = arith.constant 0 : index
    %4 = vector.load %arg2[%c0_2, %c0_3] : memref<16x32xf32, #tpu.memory_space<vmem>>, vector<16x32xf32>
    %5 = arith.addf %3, %4 : vector<16x32xf32>
    %c0_4 = arith.constant 0 : index
    %c0_5 = arith.constant 0 : index
    %c0_6 = arith.constant 0 : index
    %6 = vector.load %arg3[%c0_4, %c0_5, %c0_6] : memref<10x32x32xf32, #tpu.memory_space<vmem>>, vector<1x32x32xf32>
    %7 = vector.shape_cast %6 : vector<1x32x32xf32> to vector<32x32xf32>
    %c0_7 = arith.constant 0 : index
    %c0_8 = arith.constant 0 : index
    %c0_9 = arith.constant 0 : index
    %8 = vector.load %arg4[%c0_7, %c0_8, %c0_9] : memref<10x32x32xf32, #tpu.memory_space<vmem>>, vector<1x32x32xf32>
    %9 = vector.shape_cast %8 : vector<1x32x32xf32> to vector<32x32xf32>
    %c0_10 = arith.constant 0 : index
    %c0_11 = arith.constant 0 : index
    %c0_12 = arith.constant 0 : index
    %10 = vector.load %arg5[%c0_10, %c0_11, %c0_12] : memref<10x32x32xf32, #tpu.memory_space<vmem>>, vector<1x32x32xf32>
    %11 = vector.shape_cast %10 : vector<1x32x32xf32> to vector<32x32xf32>
    %c0_13 = arith.constant 0 : index
    %c0_14 = arith.constant 0 : index
    %c0_15 = arith.constant 0 : index
    %12 = vector.load %arg6[%c0_13, %c0_14, %c0_15] : memref<10x32x32xf32, #tpu.memory_space<vmem>>, vector<1x32x32xf32>
    %13 = vector.shape_cast %12 : vector<1x32x32xf32> to vector<32x32xf32>
    %c0_16 = arith.constant 0 : index
    %c0_17 = arith.constant 0 : index
    %c0_18 = arith.constant 0 : index
    %14 = vector.load %arg7[%c0_16, %c0_17, %c0_18] : memref<10x32x64xf32, #tpu.memory_space<vmem>>, vector<1x32x64xf32>
    %15 = vector.shape_cast %14 : vector<1x32x64xf32> to vector<32x64xf32>
    %c0_19 = arith.constant 0 : index
    %c0_20 = arith.constant 0 : index
    %c0_21 = arith.constant 0 : index
    %16 = vector.load %arg8[%c0_19, %c0_20, %c0_21] : memref<10x64x32xf32, #tpu.memory_space<vmem>>, vector<1x64x32xf32>
    %17 = vector.shape_cast %16 : vector<1x64x32xf32> to vector<64x32xf32>
    %c0_22 = arith.constant 0 : index
    %c0_23 = arith.constant 0 : index
    %c0_24 = arith.constant 0 : index
    %18 = vector.load %arg9[%c0_22, %c0_23, %c0_24] : memref<10x10x64xf32, #tpu.memory_space<vmem>>, vector<1x1x32xf32>
    %19 = vector.shape_cast %18 : vector<1x1x32xf32> to vector<1x32xf32>
    %c0_25 = arith.constant 0 : index
    %c1 = arith.constant 1 : index
    %c0_26 = arith.constant 0 : index
    %20 = vector.load %arg9[%c0_25, %c1, %c0_26] : memref<10x10x64xf32, #tpu.memory_space<vmem>>, vector<1x1x32xf32>
    %21 = vector.shape_cast %20 : vector<1x1x32xf32> to vector<1x32xf32>
    %c0_27 = arith.constant 0 : index
    %c2 = arith.constant 2 : index
    %c0_28 = arith.constant 0 : index
    %22 = vector.load %arg9[%c0_27, %c2, %c0_28] : memref<10x10x64xf32, #tpu.memory_space<vmem>>, vector<1x1x32xf32>
    %23 = vector.shape_cast %22 : vector<1x1x32xf32> to vector<1x32xf32>
    %c0_29 = arith.constant 0 : index
    %c3 = arith.constant 3 : index
    %c0_30 = arith.constant 0 : index
    %24 = vector.load %arg9[%c0_29, %c3, %c0_30] : memref<10x10x64xf32, #tpu.memory_space<vmem>>, vector<1x1x32xf32>
    %25 = vector.shape_cast %24 : vector<1x1x32xf32> to vector<1x32xf32>
    %c0_31 = arith.constant 0 : index
    %c4 = arith.constant 4 : index
    %c0_32 = arith.constant 0 : index
    %26 = vector.load %arg9[%c0_31, %c4, %c0_32] : memref<10x10x64xf32, #tpu.memory_space<vmem>>, vector<1x1x64xf32>
    %27 = vector.shape_cast %26 : vector<1x1x64xf32> to vector<1x64xf32>
    %c0_33 = arith.constant 0 : index
    %c5 = arith.constant 5 : index
    %c0_34 = arith.constant 0 : index
    %28 = vector.load %arg9[%c0_33, %c5, %c0_34] : memref<10x10x64xf32, #tpu.memory_space<vmem>>, vector<1x1x32xf32>
    %29 = vector.shape_cast %28 : vector<1x1x32xf32> to vector<1x32xf32>
    %c0_35 = arith.constant 0 : index
    %c6 = arith.constant 6 : index
    %c0_36 = arith.constant 0 : index
    %30 = vector.load %arg9[%c0_35, %c6, %c0_36] : memref<10x10x64xf32, #tpu.memory_space<vmem>>, vector<1x1x32xf32>
    %31 = vector.shape_cast %30 : vector<1x1x32xf32> to vector<1x32xf32>
    %c0_37 = arith.constant 0 : index
    %c7 = arith.constant 7 : index
    %c0_38 = arith.constant 0 : index
    %32 = vector.load %arg9[%c0_37, %c7, %c0_38] : memref<10x10x64xf32, #tpu.memory_space<vmem>>, vector<1x1x32xf32>
    %33 = vector.shape_cast %32 : vector<1x1x32xf32> to vector<1x32xf32>
    %c0_39 = arith.constant 0 : index
    %c8 = arith.constant 8 : index
    %c0_40 = arith.constant 0 : index
    %34 = vector.load %arg9[%c0_39, %c8, %c0_40] : memref<10x10x64xf32, #tpu.memory_space<vmem>>, vector<1x1x32xf32>
    %35 = vector.shape_cast %34 : vector<1x1x32xf32> to vector<1x32xf32>
    %c0_41 = arith.constant 0 : index
    %c9 = arith.constant 9 : index
    %c0_42 = arith.constant 0 : index
    %36 = vector.load %arg9[%c0_41, %c9, %c0_42] : memref<10x10x64xf32, #tpu.memory_space<vmem>>, vector<1x1x32xf32>
    %37 = vector.shape_cast %36 : vector<1x1x32xf32> to vector<1x32xf32>
    %cst_43 = arith.constant dense<0.000000e+00> : vector<16x32xf32>
    %38 = tpu.matmul %5, %7, %cst_43 {dimension_numbers = #tpu.dot_dimension_numbers<[1], [0], [0], [1], [0, 0, 1, 1], [], []>} : vector<16x32xf32>, vector<32x32xf32>, vector<16x32xf32> -> vector<16x32xf32>
    %39 = vector.broadcast %19 : vector<1x32xf32> to vector<16x32xf32>
    %40 = arith.addf %38, %39 : vector<16x32xf32>
    %cst_44 = arith.constant dense<0.000000e+00> : vector<16x32xf32>
    %41 = tpu.matmul %5, %9, %cst_44 {dimension_numbers = #tpu.dot_dimension_numbers<[1], [0], [0], [1], [0, 0, 1, 1], [], []>} : vector<16x32xf32>, vector<32x32xf32>, vector<16x32xf32> -> vector<16x32xf32>
    %42 = vector.broadcast %21 : vector<1x32xf32> to vector<16x32xf32>
    %43 = arith.addf %41, %42 : vector<16x32xf32>
    %cst_45 = arith.constant dense<0.000000e+00> : vector<16x32xf32>
    %44 = tpu.matmul %5, %11, %cst_45 {dimension_numbers = #tpu.dot_dimension_numbers<[1], [0], [0], [1], [0, 0, 1, 1], [], []>} : vector<16x32xf32>, vector<32x32xf32>, vector<16x32xf32> -> vector<16x32xf32>
    %45 = vector.broadcast %23 : vector<1x32xf32> to vector<16x32xf32>
    %46 = arith.addf %44, %45 : vector<16x32xf32>
    %cst_46 = arith.constant dense<0.000000e+00> : vector<16x16xf32>
    %47 = tpu.matmul %40, %43, %cst_46 {dimension_numbers = #tpu.dot_dimension_numbers<[1], [1], [0], [0], [0, 0, 1, 0], [], []>} : vector<16x32xf32>, vector<16x32xf32>, vector<16x16xf32> -> vector<16x16xf32>
    %cst_47 = arith.constant 0.176776692 : f32
    %48 = vector.broadcast %cst_47 : f32 to vector<16x16xf32>
    %49 = arith.mulf %47, %48 : vector<16x16xf32>
    %cst_48 = arith.constant dense<0xFF800000> : vector<16xf32>
    %50 = vector.multi_reduction <maximumf>, %49, %cst_48 [1] : vector<16x16xf32> to vector<16xf32>
    %51 = vector.shape_cast %50 : vector<16xf32> to vector<16x1xf32>
    %52 = vector.broadcast %51 : vector<16x1xf32> to vector<16x16xf32>
    %53 = arith.subf %49, %52 : vector<16x16xf32>
    %54 = math.exp %53 : vector<16x16xf32>
    %cst_49 = arith.constant dense<0.000000e+00> : vector<16xf32>
    %55 = vector.multi_reduction <add>, %54, %cst_49 [1] : vector<16x16xf32> to vector<16xf32>
    %56 = vector.shape_cast %55 : vector<16xf32> to vector<16x1xf32>
    %57 = tpu.reciprocal %56 {approx = true} : vector<16x1xf32> -> vector<16x1xf32>
    %58 = vector.broadcast %57 : vector<16x1xf32> to vector<16x16xf32>
    %59 = arith.mulf %54, %58 : vector<16x16xf32>
    %cst_50 = arith.constant dense<0.000000e+00> : vector<16x32xf32>
    %60 = tpu.matmul %59, %46, %cst_50 {dimension_numbers = #tpu.dot_dimension_numbers<[1], [0], [0], [1], [0, 0, 1, 1], [], []>} : vector<16x16xf32>, vector<16x32xf32>, vector<16x32xf32> -> vector<16x32xf32>
    %cst_51 = arith.constant dense<0.000000e+00> : vector<16x32xf32>
    %61 = tpu.matmul %60, %13, %cst_51 {dimension_numbers = #tpu.dot_dimension_numbers<[1], [0], [0], [1], [0, 0, 1, 1], [], []>} : vector<16x32xf32>, vector<32x32xf32>, vector<16x32xf32> -> vector<16x32xf32>
    %62 = vector.broadcast %25 : vector<1x32xf32> to vector<16x32xf32>
    %63 = arith.addf %61, %62 : vector<16x32xf32>
    %64 = arith.addf %5, %63 : vector<16x32xf32>
    %cst_52 = arith.constant dense<0.000000e+00> : vector<16xf32>
    %65 = vector.multi_reduction <add>, %64, %cst_52 [1] : vector<16x32xf32> to vector<16xf32>
    %66 = vector.shape_cast %65 : vector<16xf32> to vector<16x1xf32>
    %cst_53 = arith.constant 3.200000e+01 : f32
    %67 = vector.broadcast %cst_53 : f32 to vector<16x1xf32>
    %68 = arith.divf %66, %67 : vector<16x1xf32>
    %69 = vector.broadcast %68 : vector<16x1xf32> to vector<16x32xf32>
    %70 = arith.subf %64, %69 : vector<16x32xf32>
    %71 = arith.mulf %70, %70 : vector<16x32xf32>
    %cst_54 = arith.constant dense<0.000000e+00> : vector<16xf32>
    %72 = vector.multi_reduction <add>, %71, %cst_54 [1] : vector<16x32xf32> to vector<16xf32>
    %73 = vector.shape_cast %72 : vector<16xf32> to vector<16x1xf32>
    %cst_55 = arith.constant 3.200000e+01 : f32
    %74 = vector.broadcast %cst_55 : f32 to vector<16x1xf32>
    %75 = arith.divf %73, %74 : vector<16x1xf32>
    %76 = vector.broadcast %68 : vector<16x1xf32> to vector<16x32xf32>
    %77 = arith.subf %64, %76 : vector<16x32xf32>
    %cst_56 = arith.constant 9.99999974E-6 : f32
    %78 = vector.broadcast %cst_56 : f32 to vector<16x1xf32>
    %79 = arith.addf %75, %78 : vector<16x1xf32>
    %80 = math.rsqrt %79 : vector<16x1xf32>
    %81 = vector.broadcast %80 : vector<16x1xf32> to vector<16x32xf32>
    %82 = arith.mulf %77, %81 : vector<16x32xf32>
    %83 = vector.broadcast %31 : vector<1x32xf32> to vector<16x32xf32>
    %84 = arith.mulf %82, %83 : vector<16x32xf32>
    %85 = vector.broadcast %33 : vector<1x32xf32> to vector<16x32xf32>
    %86 = arith.addf %84, %85 : vector<16x32xf32>
    %cst_57 = arith.constant dense<0.000000e+00> : vector<16x64xf32>
    %87 = tpu.matmul %86, %15, %cst_57 {dimension_numbers = #tpu.dot_dimension_numbers<[1], [0], [0], [1], [0, 0, 1, 1], [], []>} : vector<16x32xf32>, vector<32x64xf32>, vector<16x64xf32> -> vector<16x64xf32>
    %88 = vector.broadcast %27 : vector<1x64xf32> to vector<16x64xf32>
    %89 = arith.addf %87, %88 : vector<16x64xf32>
    %cst_58 = arith.constant 0.000000e+00 : f32
    %90 = vector.broadcast %cst_58 : f32 to vector<16x64xf32>
    %91 = arith.maximumf %89, %90 : vector<16x64xf32>
    %cst_59 = arith.constant dense<0.000000e+00> : vector<16x32xf32>
    %92 = tpu.matmul %91, %17, %cst_59 {dimension_numbers = #tpu.dot_dimension_numbers<[1], [0], [0], [1], [0, 0, 1, 1], [], []>} : vector<16x64xf32>, vector<64x32xf32>, vector<16x32xf32> -> vector<16x32xf32>
    %93 = vector.broadcast %29 : vector<1x32xf32> to vector<16x32xf32>
    %94 = arith.addf %92, %93 : vector<16x32xf32>
    %95 = arith.addf %86, %94 : vector<16x32xf32>
    %cst_60 = arith.constant dense<0.000000e+00> : vector<16xf32>
    %96 = vector.multi_reduction <add>, %95, %cst_60 [1] : vector<16x32xf32> to vector<16xf32>
    %97 = vector.shape_cast %96 : vector<16xf32> to vector<16x1xf32>
    %cst_61 = arith.constant 3.200000e+01 : f32
    %98 = vector.broadcast %cst_61 : f32 to vector<16x1xf32>
    %99 = arith.divf %97, %98 : vector<16x1xf32>
    %100 = vector.broadcast %99 : vector<16x1xf32> to vector<16x32xf32>
    %101 = arith.subf %95, %100 : vector<16x32xf32>
    %102 = arith.mulf %101, %101 : vector<16x32xf32>
    %cst_62 = arith.constant dense<0.000000e+00> : vector<16xf32>
    %103 = vector.multi_reduction <add>, %102, %cst_62 [1] : vector<16x32xf32> to vector<16xf32>
    %104 = vector.shape_cast %103 : vector<16xf32> to vector<16x1xf32>
    %cst_63 = arith.constant 3.200000e+01 : f32
    %105 = vector.broadcast %cst_63 : f32 to vector<16x1xf32>
    %106 = arith.divf %104, %105 : vector<16x1xf32>
    %107 = vector.broadcast %99 : vector<16x1xf32> to vector<16x32xf32>
    %108 = arith.subf %95, %107 : vector<16x32xf32>
    %cst_64 = arith.constant 9.99999974E-6 : f32
    %109 = vector.broadcast %cst_64 : f32 to vector<16x1xf32>
    %110 = arith.addf %106, %109 : vector<16x1xf32>
    %111 = math.rsqrt %110 : vector<16x1xf32>
    %112 = vector.broadcast %111 : vector<16x1xf32> to vector<16x32xf32>
    %113 = arith.mulf %108, %112 : vector<16x32xf32>
    %114 = vector.broadcast %35 : vector<1x32xf32> to vector<16x32xf32>
    %115 = arith.mulf %113, %114 : vector<16x32xf32>
    %116 = vector.broadcast %37 : vector<1x32xf32> to vector<16x32xf32>
    %117 = arith.addf %115, %116 : vector<16x32xf32>
    %c1_65 = arith.constant 1 : index
    %c0_66 = arith.constant 0 : index
    %c0_67 = arith.constant 0 : index
    %118 = vector.load %arg3[%c1_65, %c0_66, %c0_67] : memref<10x32x32xf32, #tpu.memory_space<vmem>>, vector<1x32x32xf32>
    %119 = vector.shape_cast %118 : vector<1x32x32xf32> to vector<32x32xf32>
    %c1_68 = arith.constant 1 : index
    %c0_69 = arith.constant 0 : index
    %c0_70 = arith.constant 0 : index
    %120 = vector.load %arg4[%c1_68, %c0_69, %c0_70] : memref<10x32x32xf32, #tpu.memory_space<vmem>>, vector<1x32x32xf32>
    %121 = vector.shape_cast %120 : vector<1x32x32xf32> to vector<32x32xf32>
    %c1_71 = arith.constant 1 : index
    %c0_72 = arith.constant 0 : index
    %c0_73 = arith.constant 0 : index
    %122 = vector.load %arg5[%c1_71, %c0_72, %c0_73] : memref<10x32x32xf32, #tpu.memory_space<vmem>>, vector<1x32x32xf32>
    %123 = vector.shape_cast %122 : vector<1x32x32xf32> to vector<32x32xf32>
    %c1_74 = arith.constant 1 : index
    %c0_75 = arith.constant 0 : index
    %c0_76 = arith.constant 0 : index
    %124 = vector.load %arg6[%c1_74, %c0_75, %c0_76] : memref<10x32x32xf32, #tpu.memory_space<vmem>>, vector<1x32x32xf32>
    %125 = vector.shape_cast %124 : vector<1x32x32xf32> to vector<32x32xf32>
    %c1_77 = arith.constant 1 : index
    %c0_78 = arith.constant 0 : index
    %c0_79 = arith.constant 0 : index
    %126 = vector.load %arg7[%c1_77, %c0_78, %c0_79] : memref<10x32x64xf32, #tpu.memory_space<vmem>>, vector<1x32x64xf32>
    %127 = vector.shape_cast %126 : vector<1x32x64xf32> to vector<32x64xf32>
    %c1_80 = arith.constant 1 : index
    %c0_81 = arith.constant 0 : index
    %c0_82 = arith.constant 0 : index
    %128 = vector.load %arg8[%c1_80, %c0_81, %c0_82] : memref<10x64x32xf32, #tpu.memory_space<vmem>>, vector<1x64x32xf32>
    %129 = vector.shape_cast %128 : vector<1x64x32xf32> to vector<64x32xf32>
    %c1_83 = arith.constant 1 : index
    %c0_84 = arith.constant 0 : index
    %c0_85 = arith.constant 0 : index
    %130 = vector.load %arg9[%c1_83, %c0_84, %c0_85] : memref<10x10x64xf32, #tpu.memory_space<vmem>>, vector<1x1x32xf32>
    %131 = vector.shape_cast %130 : vector<1x1x32xf32> to vector<1x32xf32>
    %c1_86 = arith.constant 1 : index
    %c1_87 = arith.constant 1 : index
    %c0_88 = arith.constant 0 : index
    %132 = vector.load %arg9[%c1_86, %c1_87, %c0_88] : memref<10x10x64xf32, #tpu.memory_space<vmem>>, vector<1x1x32xf32>
    %133 = vector.shape_cast %132 : vector<1x1x32xf32> to vector<1x32xf32>
    %c1_89 = arith.constant 1 : index
    %c2_90 = arith.constant 2 : index
    %c0_91 = arith.constant 0 : index
    %134 = vector.load %arg9[%c1_89, %c2_90, %c0_91] : memref<10x10x64xf32, #tpu.memory_space<vmem>>, vector<1x1x32xf32>
    %135 = vector.shape_cast %134 : vector<1x1x32xf32> to vector<1x32xf32>
    %c1_92 = arith.constant 1 : index
    %c3_93 = arith.constant 3 : index
    %c0_94 = arith.constant 0 : index
    %136 = vector.load %arg9[%c1_92, %c3_93, %c0_94] : memref<10x10x64xf32, #tpu.memory_space<vmem>>, vector<1x1x32xf32>
    %137 = vector.shape_cast %136 : vector<1x1x32xf32> to vector<1x32xf32>
    %c1_95 = arith.constant 1 : index
    %c4_96 = arith.constant 4 : index
    %c0_97 = arith.constant 0 : index
    %138 = vector.load %arg9[%c1_95, %c4_96, %c0_97] : memref<10x10x64xf32, #tpu.memory_space<vmem>>, vector<1x1x64xf32>
    %139 = vector.shape_cast %138 : vector<1x1x64xf32> to vector<1x64xf32>
    %c1_98 = arith.constant 1 : index
    %c5_99 = arith.constant 5 : index
    %c0_100 = arith.constant 0 : index
    %140 = vector.load %arg9[%c1_98, %c5_99, %c0_100] : memref<10x10x64xf32, #tpu.memory_space<vmem>>, vector<1x1x32xf32>
    %141 = vector.shape_cast %140 : vector<1x1x32xf32> to vector<1x32xf32>
    %c1_101 = arith.constant 1 : index
    %c6_102 = arith.constant 6 : index
    %c0_103 = arith.constant 0 : index
    %142 = vector.load %arg9[%c1_101, %c6_102, %c0_103] : memref<10x10x64xf32, #tpu.memory_space<vmem>>, vector<1x1x32xf32>
    %143 = vector.shape_cast %142 : vector<1x1x32xf32> to vector<1x32xf32>
    %c1_104 = arith.constant 1 : index
    %c7_105 = arith.constant 7 : index
    %c0_106 = arith.constant 0 : index
    %144 = vector.load %arg9[%c1_104, %c7_105, %c0_106] : memref<10x10x64xf32, #tpu.memory_space<vmem>>, vector<1x1x32xf32>
    %145 = vector.shape_cast %144 : vector<1x1x32xf32> to vector<1x32xf32>
    %c1_107 = arith.constant 1 : index
    %c8_108 = arith.constant 8 : index
    %c0_109 = arith.constant 0 : index
    %146 = vector.load %arg9[%c1_107, %c8_108, %c0_109] : memref<10x10x64xf32, #tpu.memory_space<vmem>>, vector<1x1x32xf32>
    %147 = vector.shape_cast %146 : vector<1x1x32xf32> to vector<1x32xf32>
    %c1_110 = arith.constant 1 : index
    %c9_111 = arith.constant 9 : index
    %c0_112 = arith.constant 0 : index
    %148 = vector.load %arg9[%c1_110, %c9_111, %c0_112] : memref<10x10x64xf32, #tpu.memory_space<vmem>>, vector<1x1x32xf32>
    %149 = vector.shape_cast %148 : vector<1x1x32xf32> to vector<1x32xf32>
    %cst_113 = arith.constant dense<0.000000e+00> : vector<16x32xf32>
    %150 = tpu.matmul %117, %119, %cst_113 {dimension_numbers = #tpu.dot_dimension_numbers<[1], [0], [0], [1], [0, 0, 1, 1], [], []>} : vector<16x32xf32>, vector<32x32xf32>, vector<16x32xf32> -> vector<16x32xf32>
    %151 = vector.broadcast %131 : vector<1x32xf32> to vector<16x32xf32>
    %152 = arith.addf %150, %151 : vector<16x32xf32>
    %cst_114 = arith.constant dense<0.000000e+00> : vector<16x32xf32>
    %153 = tpu.matmul %117, %121, %cst_114 {dimension_numbers = #tpu.dot_dimension_numbers<[1], [0], [0], [1], [0, 0, 1, 1], [], []>} : vector<16x32xf32>, vector<32x32xf32>, vector<16x32xf32> -> vector<16x32xf32>
    %154 = vector.broadcast %133 : vector<1x32xf32> to vector<16x32xf32>
    %155 = arith.addf %153, %154 : vector<16x32xf32>
    %cst_115 = arith.constant dense<0.000000e+00> : vector<16x32xf32>
    %156 = tpu.matmul %117, %123, %cst_115 {dimension_numbers = #tpu.dot_dimension_numbers<[1], [0], [0], [1], [0, 0, 1, 1], [], []>} : vector<16x32xf32>, vector<32x32xf32>, vector<16x32xf32> -> vector<16x32xf32>
    %157 = vector.broadcast %135 : vector<1x32xf32> to vector<16x32xf32>
    %158 = arith.addf %156, %157 : vector<16x32xf32>
    %cst_116 = arith.constant dense<0.000000e+00> : vector<16x16xf32>
    %159 = tpu.matmul %152, %155, %cst_116 {dimension_numbers = #tpu.dot_dimension_numbers<[1], [1], [0], [0], [0, 0, 1, 0], [], []>} : vector<16x32xf32>, vector<16x32xf32>, vector<16x16xf32> -> vector<16x16xf32>
    %cst_117 = arith.constant 0.176776692 : f32
    %160 = vector.broadcast %cst_117 : f32 to vector<16x16xf32>
    %161 = arith.mulf %159, %160 : vector<16x16xf32>
    %cst_118 = arith.constant dense<0xFF800000> : vector<16xf32>
    %162 = vector.multi_reduction <maximumf>, %161, %cst_118 [1] : vector<16x16xf32> to vector<16xf32>
    %163 = vector.shape_cast %162 : vector<16xf32> to vector<16x1xf32>
    %164 = vector.broadcast %163 : vector<16x1xf32> to vector<16x16xf32>
    %165 = arith.subf %161, %164 : vector<16x16xf32>
    %166 = math.exp %165 : vector<16x16xf32>
    %cst_119 = arith.constant dense<0.000000e+00> : vector<16xf32>
    %167 = vector.multi_reduction <add>, %166, %cst_119 [1] : vector<16x16xf32> to vector<16xf32>
    %168 = vector.shape_cast %167 : vector<16xf32> to vector<16x1xf32>
    %169 = tpu.reciprocal %168 {approx = true} : vector<16x1xf32> -> vector<16x1xf32>
    %170 = vector.broadcast %169 : vector<16x1xf32> to vector<16x16xf32>
    %171 = arith.mulf %166, %170 : vector<16x16xf32>
    %cst_120 = arith.constant dense<0.000000e+00> : vector<16x32xf32>
    %172 = tpu.matmul %171, %158, %cst_120 {dimension_numbers = #tpu.dot_dimension_numbers<[1], [0], [0], [1], [0, 0, 1, 1], [], []>} : vector<16x16xf32>, vector<16x32xf32>, vector<16x32xf32> -> vector<16x32xf32>
    %cst_121 = arith.constant dense<0.000000e+00> : vector<16x32xf32>
    %173 = tpu.matmul %172, %125, %cst_121 {dimension_numbers = #tpu.dot_dimension_numbers<[1], [0], [0], [1], [0, 0, 1, 1], [], []>} : vector<16x32xf32>, vector<32x32xf32>, vector<16x32xf32> -> vector<16x32xf32>
    %174 = vector.broadcast %137 : vector<1x32xf32> to vector<16x32xf32>
    %175 = arith.addf %173, %174 : vector<16x32xf32>
    %176 = arith.addf %117, %175 : vector<16x32xf32>
    %cst_122 = arith.constant dense<0.000000e+00> : vector<16xf32>
    %177 = vector.multi_reduction <add>, %176, %cst_122 [1] : vector<16x32xf32> to vector<16xf32>
    %178 = vector.shape_cast %177 : vector<16xf32> to vector<16x1xf32>
    %cst_123 = arith.constant 3.200000e+01 : f32
    %179 = vector.broadcast %cst_123 : f32 to vector<16x1xf32>
    %180 = arith.divf %178, %179 : vector<16x1xf32>
    %181 = vector.broadcast %180 : vector<16x1xf32> to vector<16x32xf32>
    %182 = arith.subf %176, %181 : vector<16x32xf32>
    %183 = arith.mulf %182, %182 : vector<16x32xf32>
    %cst_124 = arith.constant dense<0.000000e+00> : vector<16xf32>
    %184 = vector.multi_reduction <add>, %183, %cst_124 [1] : vector<16x32xf32> to vector<16xf32>
    %185 = vector.shape_cast %184 : vector<16xf32> to vector<16x1xf32>
    %cst_125 = arith.constant 3.200000e+01 : f32
    %186 = vector.broadcast %cst_125 : f32 to vector<16x1xf32>
    %187 = arith.divf %185, %186 : vector<16x1xf32>
    %188 = vector.broadcast %180 : vector<16x1xf32> to vector<16x32xf32>
    %189 = arith.subf %176, %188 : vector<16x32xf32>
    %cst_126 = arith.constant 9.99999974E-6 : f32
    %190 = vector.broadcast %cst_126 : f32 to vector<16x1xf32>
    %191 = arith.addf %187, %190 : vector<16x1xf32>
    %192 = math.rsqrt %191 : vector<16x1xf32>
    %193 = vector.broadcast %192 : vector<16x1xf32> to vector<16x32xf32>
    %194 = arith.mulf %189, %193 : vector<16x32xf32>
    %195 = vector.broadcast %143 : vector<1x32xf32> to vector<16x32xf32>
    %196 = arith.mulf %194, %195 : vector<16x32xf32>
    %197 = vector.broadcast %145 : vector<1x32xf32> to vector<16x32xf32>
    %198 = arith.addf %196, %197 : vector<16x32xf32>
    %cst_127 = arith.constant dense<0.000000e+00> : vector<16x64xf32>
    %199 = tpu.matmul %198, %127, %cst_127 {dimension_numbers = #tpu.dot_dimension_numbers<[1], [0], [0], [1], [0, 0, 1, 1], [], []>} : vector<16x32xf32>, vector<32x64xf32>, vector<16x64xf32> -> vector<16x64xf32>
    %200 = vector.broadcast %139 : vector<1x64xf32> to vector<16x64xf32>
    %201 = arith.addf %199, %200 : vector<16x64xf32>
    %cst_128 = arith.constant 0.000000e+00 : f32
    %202 = vector.broadcast %cst_128 : f32 to vector<16x64xf32>
    %203 = arith.maximumf %201, %202 : vector<16x64xf32>
    %cst_129 = arith.constant dense<0.000000e+00> : vector<16x32xf32>
    %204 = tpu.matmul %203, %129, %cst_129 {dimension_numbers = #tpu.dot_dimension_numbers<[1], [0], [0], [1], [0, 0, 1, 1], [], []>} : vector<16x64xf32>, vector<64x32xf32>, vector<16x32xf32> -> vector<16x32xf32>
    %205 = vector.broadcast %141 : vector<1x32xf32> to vector<16x32xf32>
    %206 = arith.addf %204, %205 : vector<16x32xf32>
    %207 = arith.addf %198, %206 : vector<16x32xf32>
    %cst_130 = arith.constant dense<0.000000e+00> : vector<16xf32>
    %208 = vector.multi_reduction <add>, %207, %cst_130 [1] : vector<16x32xf32> to vector<16xf32>
    %209 = vector.shape_cast %208 : vector<16xf32> to vector<16x1xf32>
    %cst_131 = arith.constant 3.200000e+01 : f32
    %210 = vector.broadcast %cst_131 : f32 to vector<16x1xf32>
    %211 = arith.divf %209, %210 : vector<16x1xf32>
    %212 = vector.broadcast %211 : vector<16x1xf32> to vector<16x32xf32>
    %213 = arith.subf %207, %212 : vector<16x32xf32>
    %214 = arith.mulf %213, %213 : vector<16x32xf32>
    %cst_132 = arith.constant dense<0.000000e+00> : vector<16xf32>
    %215 = vector.multi_reduction <add>, %214, %cst_132 [1] : vector<16x32xf32> to vector<16xf32>
    %216 = vector.shape_cast %215 : vector<16xf32> to vector<16x1xf32>
    %cst_133 = arith.constant 3.200000e+01 : f32
    %217 = vector.broadcast %cst_133 : f32 to vector<16x1xf32>
    %218 = arith.divf %216, %217 : vector<16x1xf32>
    %219 = vector.broadcast %211 : vector<16x1xf32> to vector<16x32xf32>
    %220 = arith.subf %207, %219 : vector<16x32xf32>
    %cst_134 = arith.constant 9.99999974E-6 : f32
    %221 = vector.broadcast %cst_134 : f32 to vector<16x1xf32>
    %222 = arith.addf %218, %221 : vector<16x1xf32>
    %223 = math.rsqrt %222 : vector<16x1xf32>
    %224 = vector.broadcast %223 : vector<16x1xf32> to vector<16x32xf32>
    %225 = arith.mulf %220, %224 : vector<16x32xf32>
    %226 = vector.broadcast %147 : vector<1x32xf32> to vector<16x32xf32>
    %227 = arith.mulf %225, %226 : vector<16x32xf32>
    %228 = vector.broadcast %149 : vector<1x32xf32> to vector<16x32xf32>
    %229 = arith.addf %227, %228 : vector<16x32xf32>
    %c2_135 = arith.constant 2 : index
    %c0_136 = arith.constant 0 : index
    %c0_137 = arith.constant 0 : index
    %230 = vector.load %arg3[%c2_135, %c0_136, %c0_137] : memref<10x32x32xf32, #tpu.memory_space<vmem>>, vector<1x32x32xf32>
    %231 = vector.shape_cast %230 : vector<1x32x32xf32> to vector<32x32xf32>
    %c2_138 = arith.constant 2 : index
    %c0_139 = arith.constant 0 : index
    %c0_140 = arith.constant 0 : index
    %232 = vector.load %arg4[%c2_138, %c0_139, %c0_140] : memref<10x32x32xf32, #tpu.memory_space<vmem>>, vector<1x32x32xf32>
    %233 = vector.shape_cast %232 : vector<1x32x32xf32> to vector<32x32xf32>
    %c2_141 = arith.constant 2 : index
    %c0_142 = arith.constant 0 : index
    %c0_143 = arith.constant 0 : index
    %234 = vector.load %arg5[%c2_141, %c0_142, %c0_143] : memref<10x32x32xf32, #tpu.memory_space<vmem>>, vector<1x32x32xf32>
    %235 = vector.shape_cast %234 : vector<1x32x32xf32> to vector<32x32xf32>
    %c2_144 = arith.constant 2 : index
    %c0_145 = arith.constant 0 : index
    %c0_146 = arith.constant 0 : index
    %236 = vector.load %arg6[%c2_144, %c0_145, %c0_146] : memref<10x32x32xf32, #tpu.memory_space<vmem>>, vector<1x32x32xf32>
    %237 = vector.shape_cast %236 : vector<1x32x32xf32> to vector<32x32xf32>
    %c2_147 = arith.constant 2 : index
    %c0_148 = arith.constant 0 : index
    %c0_149 = arith.constant 0 : index
    %238 = vector.load %arg7[%c2_147, %c0_148, %c0_149] : memref<10x32x64xf32, #tpu.memory_space<vmem>>, vector<1x32x64xf32>
    %239 = vector.shape_cast %238 : vector<1x32x64xf32> to vector<32x64xf32>
    %c2_150 = arith.constant 2 : index
    %c0_151 = arith.constant 0 : index
    %c0_152 = arith.constant 0 : index
    %240 = vector.load %arg8[%c2_150, %c0_151, %c0_152] : memref<10x64x32xf32, #tpu.memory_space<vmem>>, vector<1x64x32xf32>
    %241 = vector.shape_cast %240 : vector<1x64x32xf32> to vector<64x32xf32>
    %c2_153 = arith.constant 2 : index
    %c0_154 = arith.constant 0 : index
    %c0_155 = arith.constant 0 : index
    %242 = vector.load %arg9[%c2_153, %c0_154, %c0_155] : memref<10x10x64xf32, #tpu.memory_space<vmem>>, vector<1x1x32xf32>
    %243 = vector.shape_cast %242 : vector<1x1x32xf32> to vector<1x32xf32>
    %c2_156 = arith.constant 2 : index
    %c1_157 = arith.constant 1 : index
    %c0_158 = arith.constant 0 : index
    %244 = vector.load %arg9[%c2_156, %c1_157, %c0_158] : memref<10x10x64xf32, #tpu.memory_space<vmem>>, vector<1x1x32xf32>
    %245 = vector.shape_cast %244 : vector<1x1x32xf32> to vector<1x32xf32>
    %c2_159 = arith.constant 2 : index
    %c2_160 = arith.constant 2 : index
    %c0_161 = arith.constant 0 : index
    %246 = vector.load %arg9[%c2_159, %c2_160, %c0_161] : memref<10x10x64xf32, #tpu.memory_space<vmem>>, vector<1x1x32xf32>
    %247 = vector.shape_cast %246 : vector<1x1x32xf32> to vector<1x32xf32>
    %c2_162 = arith.constant 2 : index
    %c3_163 = arith.constant 3 : index
    %c0_164 = arith.constant 0 : index
    %248 = vector.load %arg9[%c2_162, %c3_163, %c0_164] : memref<10x10x64xf32, #tpu.memory_space<vmem>>, vector<1x1x32xf32>
    %249 = vector.shape_cast %248 : vector<1x1x32xf32> to vector<1x32xf32>
    %c2_165 = arith.constant 2 : index
    %c4_166 = arith.constant 4 : index
    %c0_167 = arith.constant 0 : index
    %250 = vector.load %arg9[%c2_165, %c4_166, %c0_167] : memref<10x10x64xf32, #tpu.memory_space<vmem>>, vector<1x1x64xf32>
    %251 = vector.shape_cast %250 : vector<1x1x64xf32> to vector<1x64xf32>
    %c2_168 = arith.constant 2 : index
    %c5_169 = arith.constant 5 : index
    %c0_170 = arith.constant 0 : index
    %252 = vector.load %arg9[%c2_168, %c5_169, %c0_170] : memref<10x10x64xf32, #tpu.memory_space<vmem>>, vector<1x1x32xf32>
    %253 = vector.shape_cast %252 : vector<1x1x32xf32> to vector<1x32xf32>
    %c2_171 = arith.constant 2 : index
    %c6_172 = arith.constant 6 : index
    %c0_173 = arith.constant 0 : index
    %254 = vector.load %arg9[%c2_171, %c6_172, %c0_173] : memref<10x10x64xf32, #tpu.memory_space<vmem>>, vector<1x1x32xf32>
    %255 = vector.shape_cast %254 : vector<1x1x32xf32> to vector<1x32xf32>
    %c2_174 = arith.constant 2 : index
    %c7_175 = arith.constant 7 : index
    %c0_176 = arith.constant 0 : index
    %256 = vector.load %arg9[%c2_174, %c7_175, %c0_176] : memref<10x10x64xf32, #tpu.memory_space<vmem>>, vector<1x1x32xf32>
    %257 = vector.shape_cast %256 : vector<1x1x32xf32> to vector<1x32xf32>
    %c2_177 = arith.constant 2 : index
    %c8_178 = arith.constant 8 : index
    %c0_179 = arith.constant 0 : index
    %258 = vector.load %arg9[%c2_177, %c8_178, %c0_179] : memref<10x10x64xf32, #tpu.memory_space<vmem>>, vector<1x1x32xf32>
    %259 = vector.shape_cast %258 : vector<1x1x32xf32> to vector<1x32xf32>
    %c2_180 = arith.constant 2 : index
    %c9_181 = arith.constant 9 : index
    %c0_182 = arith.constant 0 : index
    %260 = vector.load %arg9[%c2_180, %c9_181, %c0_182] : memref<10x10x64xf32, #tpu.memory_space<vmem>>, vector<1x1x32xf32>
    %261 = vector.shape_cast %260 : vector<1x1x32xf32> to vector<1x32xf32>
    %cst_183 = arith.constant dense<0.000000e+00> : vector<16x32xf32>
    %262 = tpu.matmul %229, %231, %cst_183 {dimension_numbers = #tpu.dot_dimension_numbers<[1], [0], [0], [1], [0, 0, 1, 1], [], []>} : vector<16x32xf32>, vector<32x32xf32>, vector<16x32xf32> -> vector<16x32xf32>
    %263 = vector.broadcast %243 : vector<1x32xf32> to vector<16x32xf32>
    %264 = arith.addf %262, %263 : vector<16x32xf32>
    %cst_184 = arith.constant dense<0.000000e+00> : vector<16x32xf32>
    %265 = tpu.matmul %229, %233, %cst_184 {dimension_numbers = #tpu.dot_dimension_numbers<[1], [0], [0], [1], [0, 0, 1, 1], [], []>} : vector<16x32xf32>, vector<32x32xf32>, vector<16x32xf32> -> vector<16x32xf32>
    %266 = vector.broadcast %245 : vector<1x32xf32> to vector<16x32xf32>
    %267 = arith.addf %265, %266 : vector<16x32xf32>
    %cst_185 = arith.constant dense<0.000000e+00> : vector<16x32xf32>
    %268 = tpu.matmul %229, %235, %cst_185 {dimension_numbers = #tpu.dot_dimension_numbers<[1], [0], [0], [1], [0, 0, 1, 1], [], []>} : vector<16x32xf32>, vector<32x32xf32>, vector<16x32xf32> -> vector<16x32xf32>
    %269 = vector.broadcast %247 : vector<1x32xf32> to vector<16x32xf32>
    %270 = arith.addf %268, %269 : vector<16x32xf32>
    %cst_186 = arith.constant dense<0.000000e+00> : vector<16x16xf32>
    %271 = tpu.matmul %264, %267, %cst_186 {dimension_numbers = #tpu.dot_dimension_numbers<[1], [1], [0], [0], [0, 0, 1, 0], [], []>} : vector<16x32xf32>, vector<16x32xf32>, vector<16x16xf32> -> vector<16x16xf32>
    %cst_187 = arith.constant 0.176776692 : f32
    %272 = vector.broadcast %cst_187 : f32 to vector<16x16xf32>
    %273 = arith.mulf %271, %272 : vector<16x16xf32>
    %cst_188 = arith.constant dense<0xFF800000> : vector<16xf32>
    %274 = vector.multi_reduction <maximumf>, %273, %cst_188 [1] : vector<16x16xf32> to vector<16xf32>
    %275 = vector.shape_cast %274 : vector<16xf32> to vector<16x1xf32>
    %276 = vector.broadcast %275 : vector<16x1xf32> to vector<16x16xf32>
    %277 = arith.subf %273, %276 : vector<16x16xf32>
    %278 = math.exp %277 : vector<16x16xf32>
    %cst_189 = arith.constant dense<0.000000e+00> : vector<16xf32>
    %279 = vector.multi_reduction <add>, %278, %cst_189 [1] : vector<16x16xf32> to vector<16xf32>
    %280 = vector.shape_cast %279 : vector<16xf32> to vector<16x1xf32>
    %281 = tpu.reciprocal %280 {approx = true} : vector<16x1xf32> -> vector<16x1xf32>
    %282 = vector.broadcast %281 : vector<16x1xf32> to vector<16x16xf32>
    %283 = arith.mulf %278, %282 : vector<16x16xf32>
    %cst_190 = arith.constant dense<0.000000e+00> : vector<16x32xf32>
    %284 = tpu.matmul %283, %270, %cst_190 {dimension_numbers = #tpu.dot_dimension_numbers<[1], [0], [0], [1], [0, 0, 1, 1], [], []>} : vector<16x16xf32>, vector<16x32xf32>, vector<16x32xf32> -> vector<16x32xf32>
    %cst_191 = arith.constant dense<0.000000e+00> : vector<16x32xf32>
    %285 = tpu.matmul %284, %237, %cst_191 {dimension_numbers = #tpu.dot_dimension_numbers<[1], [0], [0], [1], [0, 0, 1, 1], [], []>} : vector<16x32xf32>, vector<32x32xf32>, vector<16x32xf32> -> vector<16x32xf32>
    %286 = vector.broadcast %249 : vector<1x32xf32> to vector<16x32xf32>
    %287 = arith.addf %285, %286 : vector<16x32xf32>
    %288 = arith.addf %229, %287 : vector<16x32xf32>
    %cst_192 = arith.constant dense<0.000000e+00> : vector<16xf32>
    %289 = vector.multi_reduction <add>, %288, %cst_192 [1] : vector<16x32xf32> to vector<16xf32>
    %290 = vector.shape_cast %289 : vector<16xf32> to vector<16x1xf32>
    %cst_193 = arith.constant 3.200000e+01 : f32
    %291 = vector.broadcast %cst_193 : f32 to vector<16x1xf32>
    %292 = arith.divf %290, %291 : vector<16x1xf32>
    %293 = vector.broadcast %292 : vector<16x1xf32> to vector<16x32xf32>
    %294 = arith.subf %288, %293 : vector<16x32xf32>
    %295 = arith.mulf %294, %294 : vector<16x32xf32>
    %cst_194 = arith.constant dense<0.000000e+00> : vector<16xf32>
    %296 = vector.multi_reduction <add>, %295, %cst_194 [1] : vector<16x32xf32> to vector<16xf32>
    %297 = vector.shape_cast %296 : vector<16xf32> to vector<16x1xf32>
    %cst_195 = arith.constant 3.200000e+01 : f32
    %298 = vector.broadcast %cst_195 : f32 to vector<16x1xf32>
    %299 = arith.divf %297, %298 : vector<16x1xf32>
    %300 = vector.broadcast %292 : vector<16x1xf32> to vector<16x32xf32>
    %301 = arith.subf %288, %300 : vector<16x32xf32>
    %cst_196 = arith.constant 9.99999974E-6 : f32
    %302 = vector.broadcast %cst_196 : f32 to vector<16x1xf32>
    %303 = arith.addf %299, %302 : vector<16x1xf32>
    %304 = math.rsqrt %303 : vector<16x1xf32>
    %305 = vector.broadcast %304 : vector<16x1xf32> to vector<16x32xf32>
    %306 = arith.mulf %301, %305 : vector<16x32xf32>
    %307 = vector.broadcast %255 : vector<1x32xf32> to vector<16x32xf32>
    %308 = arith.mulf %306, %307 : vector<16x32xf32>
    %309 = vector.broadcast %257 : vector<1x32xf32> to vector<16x32xf32>
    %310 = arith.addf %308, %309 : vector<16x32xf32>
    %cst_197 = arith.constant dense<0.000000e+00> : vector<16x64xf32>
    %311 = tpu.matmul %310, %239, %cst_197 {dimension_numbers = #tpu.dot_dimension_numbers<[1], [0], [0], [1], [0, 0, 1, 1], [], []>} : vector<16x32xf32>, vector<32x64xf32>, vector<16x64xf32> -> vector<16x64xf32>
    %312 = vector.broadcast %251 : vector<1x64xf32> to vector<16x64xf32>
    %313 = arith.addf %311, %312 : vector<16x64xf32>
    %cst_198 = arith.constant 0.000000e+00 : f32
    %314 = vector.broadcast %cst_198 : f32 to vector<16x64xf32>
    %315 = arith.maximumf %313, %314 : vector<16x64xf32>
    %cst_199 = arith.constant dense<0.000000e+00> : vector<16x32xf32>
    %316 = tpu.matmul %315, %241, %cst_199 {dimension_numbers = #tpu.dot_dimension_numbers<[1], [0], [0], [1], [0, 0, 1, 1], [], []>} : vector<16x64xf32>, vector<64x32xf32>, vector<16x32xf32> -> vector<16x32xf32>
    %317 = vector.broadcast %253 : vector<1x32xf32> to vector<16x32xf32>
    %318 = arith.addf %316, %317 : vector<16x32xf32>
    %319 = arith.addf %310, %318 : vector<16x32xf32>
    %cst_200 = arith.constant dense<0.000000e+00> : vector<16xf32>
    %320 = vector.multi_reduction <add>, %319, %cst_200 [1] : vector<16x32xf32> to vector<16xf32>
    %321 = vector.shape_cast %320 : vector<16xf32> to vector<16x1xf32>
    %cst_201 = arith.constant 3.200000e+01 : f32
    %322 = vector.broadcast %cst_201 : f32 to vector<16x1xf32>
    %323 = arith.divf %321, %322 : vector<16x1xf32>
    %324 = vector.broadcast %323 : vector<16x1xf32> to vector<16x32xf32>
    %325 = arith.subf %319, %324 : vector<16x32xf32>
    %326 = arith.mulf %325, %325 : vector<16x32xf32>
    %cst_202 = arith.constant dense<0.000000e+00> : vector<16xf32>
    %327 = vector.multi_reduction <add>, %326, %cst_202 [1] : vector<16x32xf32> to vector<16xf32>
    %328 = vector.shape_cast %327 : vector<16xf32> to vector<16x1xf32>
    %cst_203 = arith.constant 3.200000e+01 : f32
    %329 = vector.broadcast %cst_203 : f32 to vector<16x1xf32>
    %330 = arith.divf %328, %329 : vector<16x1xf32>
    %331 = vector.broadcast %323 : vector<16x1xf32> to vector<16x32xf32>
    %332 = arith.subf %319, %331 : vector<16x32xf32>
    %cst_204 = arith.constant 9.99999974E-6 : f32
    %333 = vector.broadcast %cst_204 : f32 to vector<16x1xf32>
    %334 = arith.addf %330, %333 : vector<16x1xf32>
    %335 = math.rsqrt %334 : vector<16x1xf32>
    %336 = vector.broadcast %335 : vector<16x1xf32> to vector<16x32xf32>
    %337 = arith.mulf %332, %336 : vector<16x32xf32>
    %338 = vector.broadcast %259 : vector<1x32xf32> to vector<16x32xf32>
    %339 = arith.mulf %337, %338 : vector<16x32xf32>
    %340 = vector.broadcast %261 : vector<1x32xf32> to vector<16x32xf32>
    %341 = arith.addf %339, %340 : vector<16x32xf32>
    %c3_205 = arith.constant 3 : index
    %c0_206 = arith.constant 0 : index
    %c0_207 = arith.constant 0 : index
    %342 = vector.load %arg3[%c3_205, %c0_206, %c0_207] : memref<10x32x32xf32, #tpu.memory_space<vmem>>, vector<1x32x32xf32>
    %343 = vector.shape_cast %342 : vector<1x32x32xf32> to vector<32x32xf32>
    %c3_208 = arith.constant 3 : index
    %c0_209 = arith.constant 0 : index
    %c0_210 = arith.constant 0 : index
    %344 = vector.load %arg4[%c3_208, %c0_209, %c0_210] : memref<10x32x32xf32, #tpu.memory_space<vmem>>, vector<1x32x32xf32>
    %345 = vector.shape_cast %344 : vector<1x32x32xf32> to vector<32x32xf32>
    %c3_211 = arith.constant 3 : index
    %c0_212 = arith.constant 0 : index
    %c0_213 = arith.constant 0 : index
    %346 = vector.load %arg5[%c3_211, %c0_212, %c0_213] : memref<10x32x32xf32, #tpu.memory_space<vmem>>, vector<1x32x32xf32>
    %347 = vector.shape_cast %346 : vector<1x32x32xf32> to vector<32x32xf32>
    %c3_214 = arith.constant 3 : index
    %c0_215 = arith.constant 0 : index
    %c0_216 = arith.constant 0 : index
    %348 = vector.load %arg6[%c3_214, %c0_215, %c0_216] : memref<10x32x32xf32, #tpu.memory_space<vmem>>, vector<1x32x32xf32>
    %349 = vector.shape_cast %348 : vector<1x32x32xf32> to vector<32x32xf32>
    %c3_217 = arith.constant 3 : index
    %c0_218 = arith.constant 0 : index
    %c0_219 = arith.constant 0 : index
    %350 = vector.load %arg7[%c3_217, %c0_218, %c0_219] : memref<10x32x64xf32, #tpu.memory_space<vmem>>, vector<1x32x64xf32>
    %351 = vector.shape_cast %350 : vector<1x32x64xf32> to vector<32x64xf32>
    %c3_220 = arith.constant 3 : index
    %c0_221 = arith.constant 0 : index
    %c0_222 = arith.constant 0 : index
    %352 = vector.load %arg8[%c3_220, %c0_221, %c0_222] : memref<10x64x32xf32, #tpu.memory_space<vmem>>, vector<1x64x32xf32>
    %353 = vector.shape_cast %352 : vector<1x64x32xf32> to vector<64x32xf32>
    %c3_223 = arith.constant 3 : index
    %c0_224 = arith.constant 0 : index
    %c0_225 = arith.constant 0 : index
    %354 = vector.load %arg9[%c3_223, %c0_224, %c0_225] : memref<10x10x64xf32, #tpu.memory_space<vmem>>, vector<1x1x32xf32>
    %355 = vector.shape_cast %354 : vector<1x1x32xf32> to vector<1x32xf32>
    %c3_226 = arith.constant 3 : index
    %c1_227 = arith.constant 1 : index
    %c0_228 = arith.constant 0 : index
    %356 = vector.load %arg9[%c3_226, %c1_227, %c0_228] : memref<10x10x64xf32, #tpu.memory_space<vmem>>, vector<1x1x32xf32>
    %357 = vector.shape_cast %356 : vector<1x1x32xf32> to vector<1x32xf32>
    %c3_229 = arith.constant 3 : index
    %c2_230 = arith.constant 2 : index
    %c0_231 = arith.constant 0 : index
    %358 = vector.load %arg9[%c3_229, %c2_230, %c0_231] : memref<10x10x64xf32, #tpu.memory_space<vmem>>, vector<1x1x32xf32>
    %359 = vector.shape_cast %358 : vector<1x1x32xf32> to vector<1x32xf32>
    %c3_232 = arith.constant 3 : index
    %c3_233 = arith.constant 3 : index
    %c0_234 = arith.constant 0 : index
    %360 = vector.load %arg9[%c3_232, %c3_233, %c0_234] : memref<10x10x64xf32, #tpu.memory_space<vmem>>, vector<1x1x32xf32>
    %361 = vector.shape_cast %360 : vector<1x1x32xf32> to vector<1x32xf32>
    %c3_235 = arith.constant 3 : index
    %c4_236 = arith.constant 4 : index
    %c0_237 = arith.constant 0 : index
    %362 = vector.load %arg9[%c3_235, %c4_236, %c0_237] : memref<10x10x64xf32, #tpu.memory_space<vmem>>, vector<1x1x64xf32>
    %363 = vector.shape_cast %362 : vector<1x1x64xf32> to vector<1x64xf32>
    %c3_238 = arith.constant 3 : index
    %c5_239 = arith.constant 5 : index
    %c0_240 = arith.constant 0 : index
    %364 = vector.load %arg9[%c3_238, %c5_239, %c0_240] : memref<10x10x64xf32, #tpu.memory_space<vmem>>, vector<1x1x32xf32>
    %365 = vector.shape_cast %364 : vector<1x1x32xf32> to vector<1x32xf32>
    %c3_241 = arith.constant 3 : index
    %c6_242 = arith.constant 6 : index
    %c0_243 = arith.constant 0 : index
    %366 = vector.load %arg9[%c3_241, %c6_242, %c0_243] : memref<10x10x64xf32, #tpu.memory_space<vmem>>, vector<1x1x32xf32>
    %367 = vector.shape_cast %366 : vector<1x1x32xf32> to vector<1x32xf32>
    %c3_244 = arith.constant 3 : index
    %c7_245 = arith.constant 7 : index
    %c0_246 = arith.constant 0 : index
    %368 = vector.load %arg9[%c3_244, %c7_245, %c0_246] : memref<10x10x64xf32, #tpu.memory_space<vmem>>, vector<1x1x32xf32>
    %369 = vector.shape_cast %368 : vector<1x1x32xf32> to vector<1x32xf32>
    %c3_247 = arith.constant 3 : index
    %c8_248 = arith.constant 8 : index
    %c0_249 = arith.constant 0 : index
    %370 = vector.load %arg9[%c3_247, %c8_248, %c0_249] : memref<10x10x64xf32, #tpu.memory_space<vmem>>, vector<1x1x32xf32>
    %371 = vector.shape_cast %370 : vector<1x1x32xf32> to vector<1x32xf32>
    %c3_250 = arith.constant 3 : index
    %c9_251 = arith.constant 9 : index
    %c0_252 = arith.constant 0 : index
    %372 = vector.load %arg9[%c3_250, %c9_251, %c0_252] : memref<10x10x64xf32, #tpu.memory_space<vmem>>, vector<1x1x32xf32>
    %373 = vector.shape_cast %372 : vector<1x1x32xf32> to vector<1x32xf32>
    %cst_253 = arith.constant dense<0.000000e+00> : vector<16x32xf32>
    %374 = tpu.matmul %341, %343, %cst_253 {dimension_numbers = #tpu.dot_dimension_numbers<[1], [0], [0], [1], [0, 0, 1, 1], [], []>} : vector<16x32xf32>, vector<32x32xf32>, vector<16x32xf32> -> vector<16x32xf32>
    %375 = vector.broadcast %355 : vector<1x32xf32> to vector<16x32xf32>
    %376 = arith.addf %374, %375 : vector<16x32xf32>
    %cst_254 = arith.constant dense<0.000000e+00> : vector<16x32xf32>
    %377 = tpu.matmul %341, %345, %cst_254 {dimension_numbers = #tpu.dot_dimension_numbers<[1], [0], [0], [1], [0, 0, 1, 1], [], []>} : vector<16x32xf32>, vector<32x32xf32>, vector<16x32xf32> -> vector<16x32xf32>
    %378 = vector.broadcast %357 : vector<1x32xf32> to vector<16x32xf32>
    %379 = arith.addf %377, %378 : vector<16x32xf32>
    %cst_255 = arith.constant dense<0.000000e+00> : vector<16x32xf32>
    %380 = tpu.matmul %341, %347, %cst_255 {dimension_numbers = #tpu.dot_dimension_numbers<[1], [0], [0], [1], [0, 0, 1, 1], [], []>} : vector<16x32xf32>, vector<32x32xf32>, vector<16x32xf32> -> vector<16x32xf32>
    %381 = vector.broadcast %359 : vector<1x32xf32> to vector<16x32xf32>
    %382 = arith.addf %380, %381 : vector<16x32xf32>
    %cst_256 = arith.constant dense<0.000000e+00> : vector<16x16xf32>
    %383 = tpu.matmul %376, %379, %cst_256 {dimension_numbers = #tpu.dot_dimension_numbers<[1], [1], [0], [0], [0, 0, 1, 0], [], []>} : vector<16x32xf32>, vector<16x32xf32>, vector<16x16xf32> -> vector<16x16xf32>
    %cst_257 = arith.constant 0.176776692 : f32
    %384 = vector.broadcast %cst_257 : f32 to vector<16x16xf32>
    %385 = arith.mulf %383, %384 : vector<16x16xf32>
    %cst_258 = arith.constant dense<0xFF800000> : vector<16xf32>
    %386 = vector.multi_reduction <maximumf>, %385, %cst_258 [1] : vector<16x16xf32> to vector<16xf32>
    %387 = vector.shape_cast %386 : vector<16xf32> to vector<16x1xf32>
    %388 = vector.broadcast %387 : vector<16x1xf32> to vector<16x16xf32>
    %389 = arith.subf %385, %388 : vector<16x16xf32>
    %390 = math.exp %389 : vector<16x16xf32>
    %cst_259 = arith.constant dense<0.000000e+00> : vector<16xf32>
    %391 = vector.multi_reduction <add>, %390, %cst_259 [1] : vector<16x16xf32> to vector<16xf32>
    %392 = vector.shape_cast %391 : vector<16xf32> to vector<16x1xf32>
    %393 = tpu.reciprocal %392 {approx = true} : vector<16x1xf32> -> vector<16x1xf32>
    %394 = vector.broadcast %393 : vector<16x1xf32> to vector<16x16xf32>
    %395 = arith.mulf %390, %394 : vector<16x16xf32>
    %cst_260 = arith.constant dense<0.000000e+00> : vector<16x32xf32>
    %396 = tpu.matmul %395, %382, %cst_260 {dimension_numbers = #tpu.dot_dimension_numbers<[1], [0], [0], [1], [0, 0, 1, 1], [], []>} : vector<16x16xf32>, vector<16x32xf32>, vector<16x32xf32> -> vector<16x32xf32>
    %cst_261 = arith.constant dense<0.000000e+00> : vector<16x32xf32>
    %397 = tpu.matmul %396, %349, %cst_261 {dimension_numbers = #tpu.dot_dimension_numbers<[1], [0], [0], [1], [0, 0, 1, 1], [], []>} : vector<16x32xf32>, vector<32x32xf32>, vector<16x32xf32> -> vector<16x32xf32>
    %398 = vector.broadcast %361 : vector<1x32xf32> to vector<16x32xf32>
    %399 = arith.addf %397, %398 : vector<16x32xf32>
    %400 = arith.addf %341, %399 : vector<16x32xf32>
    %cst_262 = arith.constant dense<0.000000e+00> : vector<16xf32>
    %401 = vector.multi_reduction <add>, %400, %cst_262 [1] : vector<16x32xf32> to vector<16xf32>
    %402 = vector.shape_cast %401 : vector<16xf32> to vector<16x1xf32>
    %cst_263 = arith.constant 3.200000e+01 : f32
    %403 = vector.broadcast %cst_263 : f32 to vector<16x1xf32>
    %404 = arith.divf %402, %403 : vector<16x1xf32>
    %405 = vector.broadcast %404 : vector<16x1xf32> to vector<16x32xf32>
    %406 = arith.subf %400, %405 : vector<16x32xf32>
    %407 = arith.mulf %406, %406 : vector<16x32xf32>
    %cst_264 = arith.constant dense<0.000000e+00> : vector<16xf32>
    %408 = vector.multi_reduction <add>, %407, %cst_264 [1] : vector<16x32xf32> to vector<16xf32>
    %409 = vector.shape_cast %408 : vector<16xf32> to vector<16x1xf32>
    %cst_265 = arith.constant 3.200000e+01 : f32
    %410 = vector.broadcast %cst_265 : f32 to vector<16x1xf32>
    %411 = arith.divf %409, %410 : vector<16x1xf32>
    %412 = vector.broadcast %404 : vector<16x1xf32> to vector<16x32xf32>
    %413 = arith.subf %400, %412 : vector<16x32xf32>
    %cst_266 = arith.constant 9.99999974E-6 : f32
    %414 = vector.broadcast %cst_266 : f32 to vector<16x1xf32>
    %415 = arith.addf %411, %414 : vector<16x1xf32>
    %416 = math.rsqrt %415 : vector<16x1xf32>
    %417 = vector.broadcast %416 : vector<16x1xf32> to vector<16x32xf32>
    %418 = arith.mulf %413, %417 : vector<16x32xf32>
    %419 = vector.broadcast %367 : vector<1x32xf32> to vector<16x32xf32>
    %420 = arith.mulf %418, %419 : vector<16x32xf32>
    %421 = vector.broadcast %369 : vector<1x32xf32> to vector<16x32xf32>
    %422 = arith.addf %420, %421 : vector<16x32xf32>
    %cst_267 = arith.constant dense<0.000000e+00> : vector<16x64xf32>
    %423 = tpu.matmul %422, %351, %cst_267 {dimension_numbers = #tpu.dot_dimension_numbers<[1], [0], [0], [1], [0, 0, 1, 1], [], []>} : vector<16x32xf32>, vector<32x64xf32>, vector<16x64xf32> -> vector<16x64xf32>
    %424 = vector.broadcast %363 : vector<1x64xf32> to vector<16x64xf32>
    %425 = arith.addf %423, %424 : vector<16x64xf32>
    %cst_268 = arith.constant 0.000000e+00 : f32
    %426 = vector.broadcast %cst_268 : f32 to vector<16x64xf32>
    %427 = arith.maximumf %425, %426 : vector<16x64xf32>
    %cst_269 = arith.constant dense<0.000000e+00> : vector<16x32xf32>
    %428 = tpu.matmul %427, %353, %cst_269 {dimension_numbers = #tpu.dot_dimension_numbers<[1], [0], [0], [1], [0, 0, 1, 1], [], []>} : vector<16x64xf32>, vector<64x32xf32>, vector<16x32xf32> -> vector<16x32xf32>
    %429 = vector.broadcast %365 : vector<1x32xf32> to vector<16x32xf32>
    %430 = arith.addf %428, %429 : vector<16x32xf32>
    %431 = arith.addf %422, %430 : vector<16x32xf32>
    %cst_270 = arith.constant dense<0.000000e+00> : vector<16xf32>
    %432 = vector.multi_reduction <add>, %431, %cst_270 [1] : vector<16x32xf32> to vector<16xf32>
    %433 = vector.shape_cast %432 : vector<16xf32> to vector<16x1xf32>
    %cst_271 = arith.constant 3.200000e+01 : f32
    %434 = vector.broadcast %cst_271 : f32 to vector<16x1xf32>
    %435 = arith.divf %433, %434 : vector<16x1xf32>
    %436 = vector.broadcast %435 : vector<16x1xf32> to vector<16x32xf32>
    %437 = arith.subf %431, %436 : vector<16x32xf32>
    %438 = arith.mulf %437, %437 : vector<16x32xf32>
    %cst_272 = arith.constant dense<0.000000e+00> : vector<16xf32>
    %439 = vector.multi_reduction <add>, %438, %cst_272 [1] : vector<16x32xf32> to vector<16xf32>
    %440 = vector.shape_cast %439 : vector<16xf32> to vector<16x1xf32>
    %cst_273 = arith.constant 3.200000e+01 : f32
    %441 = vector.broadcast %cst_273 : f32 to vector<16x1xf32>
    %442 = arith.divf %440, %441 : vector<16x1xf32>
    %443 = vector.broadcast %435 : vector<16x1xf32> to vector<16x32xf32>
    %444 = arith.subf %431, %443 : vector<16x32xf32>
    %cst_274 = arith.constant 9.99999974E-6 : f32
    %445 = vector.broadcast %cst_274 : f32 to vector<16x1xf32>
    %446 = arith.addf %442, %445 : vector<16x1xf32>
    %447 = math.rsqrt %446 : vector<16x1xf32>
    %448 = vector.broadcast %447 : vector<16x1xf32> to vector<16x32xf32>
    %449 = arith.mulf %444, %448 : vector<16x32xf32>
    %450 = vector.broadcast %371 : vector<1x32xf32> to vector<16x32xf32>
    %451 = arith.mulf %449, %450 : vector<16x32xf32>
    %452 = vector.broadcast %373 : vector<1x32xf32> to vector<16x32xf32>
    %453 = arith.addf %451, %452 : vector<16x32xf32>
    %c4_275 = arith.constant 4 : index
    %c0_276 = arith.constant 0 : index
    %c0_277 = arith.constant 0 : index
    %454 = vector.load %arg3[%c4_275, %c0_276, %c0_277] : memref<10x32x32xf32, #tpu.memory_space<vmem>>, vector<1x32x32xf32>
    %455 = vector.shape_cast %454 : vector<1x32x32xf32> to vector<32x32xf32>
    %c4_278 = arith.constant 4 : index
    %c0_279 = arith.constant 0 : index
    %c0_280 = arith.constant 0 : index
    %456 = vector.load %arg4[%c4_278, %c0_279, %c0_280] : memref<10x32x32xf32, #tpu.memory_space<vmem>>, vector<1x32x32xf32>
    %457 = vector.shape_cast %456 : vector<1x32x32xf32> to vector<32x32xf32>
    %c4_281 = arith.constant 4 : index
    %c0_282 = arith.constant 0 : index
    %c0_283 = arith.constant 0 : index
    %458 = vector.load %arg5[%c4_281, %c0_282, %c0_283] : memref<10x32x32xf32, #tpu.memory_space<vmem>>, vector<1x32x32xf32>
    %459 = vector.shape_cast %458 : vector<1x32x32xf32> to vector<32x32xf32>
    %c4_284 = arith.constant 4 : index
    %c0_285 = arith.constant 0 : index
    %c0_286 = arith.constant 0 : index
    %460 = vector.load %arg6[%c4_284, %c0_285, %c0_286] : memref<10x32x32xf32, #tpu.memory_space<vmem>>, vector<1x32x32xf32>
    %461 = vector.shape_cast %460 : vector<1x32x32xf32> to vector<32x32xf32>
    %c4_287 = arith.constant 4 : index
    %c0_288 = arith.constant 0 : index
    %c0_289 = arith.constant 0 : index
    %462 = vector.load %arg7[%c4_287, %c0_288, %c0_289] : memref<10x32x64xf32, #tpu.memory_space<vmem>>, vector<1x32x64xf32>
    %463 = vector.shape_cast %462 : vector<1x32x64xf32> to vector<32x64xf32>
    %c4_290 = arith.constant 4 : index
    %c0_291 = arith.constant 0 : index
    %c0_292 = arith.constant 0 : index
    %464 = vector.load %arg8[%c4_290, %c0_291, %c0_292] : memref<10x64x32xf32, #tpu.memory_space<vmem>>, vector<1x64x32xf32>
    %465 = vector.shape_cast %464 : vector<1x64x32xf32> to vector<64x32xf32>
    %c4_293 = arith.constant 4 : index
    %c0_294 = arith.constant 0 : index
    %c0_295 = arith.constant 0 : index
    %466 = vector.load %arg9[%c4_293, %c0_294, %c0_295] : memref<10x10x64xf32, #tpu.memory_space<vmem>>, vector<1x1x32xf32>
    %467 = vector.shape_cast %466 : vector<1x1x32xf32> to vector<1x32xf32>
    %c4_296 = arith.constant 4 : index
    %c1_297 = arith.constant 1 : index
    %c0_298 = arith.constant 0 : index
    %468 = vector.load %arg9[%c4_296, %c1_297, %c0_298] : memref<10x10x64xf32, #tpu.memory_space<vmem>>, vector<1x1x32xf32>
    %469 = vector.shape_cast %468 : vector<1x1x32xf32> to vector<1x32xf32>
    %c4_299 = arith.constant 4 : index
    %c2_300 = arith.constant 2 : index
    %c0_301 = arith.constant 0 : index
    %470 = vector.load %arg9[%c4_299, %c2_300, %c0_301] : memref<10x10x64xf32, #tpu.memory_space<vmem>>, vector<1x1x32xf32>
    %471 = vector.shape_cast %470 : vector<1x1x32xf32> to vector<1x32xf32>
    %c4_302 = arith.constant 4 : index
    %c3_303 = arith.constant 3 : index
    %c0_304 = arith.constant 0 : index
    %472 = vector.load %arg9[%c4_302, %c3_303, %c0_304] : memref<10x10x64xf32, #tpu.memory_space<vmem>>, vector<1x1x32xf32>
    %473 = vector.shape_cast %472 : vector<1x1x32xf32> to vector<1x32xf32>
    %c4_305 = arith.constant 4 : index
    %c4_306 = arith.constant 4 : index
    %c0_307 = arith.constant 0 : index
    %474 = vector.load %arg9[%c4_305, %c4_306, %c0_307] : memref<10x10x64xf32, #tpu.memory_space<vmem>>, vector<1x1x64xf32>
    %475 = vector.shape_cast %474 : vector<1x1x64xf32> to vector<1x64xf32>
    %c4_308 = arith.constant 4 : index
    %c5_309 = arith.constant 5 : index
    %c0_310 = arith.constant 0 : index
    %476 = vector.load %arg9[%c4_308, %c5_309, %c0_310] : memref<10x10x64xf32, #tpu.memory_space<vmem>>, vector<1x1x32xf32>
    %477 = vector.shape_cast %476 : vector<1x1x32xf32> to vector<1x32xf32>
    %c4_311 = arith.constant 4 : index
    %c6_312 = arith.constant 6 : index
    %c0_313 = arith.constant 0 : index
    %478 = vector.load %arg9[%c4_311, %c6_312, %c0_313] : memref<10x10x64xf32, #tpu.memory_space<vmem>>, vector<1x1x32xf32>
    %479 = vector.shape_cast %478 : vector<1x1x32xf32> to vector<1x32xf32>
    %c4_314 = arith.constant 4 : index
    %c7_315 = arith.constant 7 : index
    %c0_316 = arith.constant 0 : index
    %480 = vector.load %arg9[%c4_314, %c7_315, %c0_316] : memref<10x10x64xf32, #tpu.memory_space<vmem>>, vector<1x1x32xf32>
    %481 = vector.shape_cast %480 : vector<1x1x32xf32> to vector<1x32xf32>
    %c4_317 = arith.constant 4 : index
    %c8_318 = arith.constant 8 : index
    %c0_319 = arith.constant 0 : index
    %482 = vector.load %arg9[%c4_317, %c8_318, %c0_319] : memref<10x10x64xf32, #tpu.memory_space<vmem>>, vector<1x1x32xf32>
    %483 = vector.shape_cast %482 : vector<1x1x32xf32> to vector<1x32xf32>
    %c4_320 = arith.constant 4 : index
    %c9_321 = arith.constant 9 : index
    %c0_322 = arith.constant 0 : index
    %484 = vector.load %arg9[%c4_320, %c9_321, %c0_322] : memref<10x10x64xf32, #tpu.memory_space<vmem>>, vector<1x1x32xf32>
    %485 = vector.shape_cast %484 : vector<1x1x32xf32> to vector<1x32xf32>
    %cst_323 = arith.constant dense<0.000000e+00> : vector<16x32xf32>
    %486 = tpu.matmul %453, %455, %cst_323 {dimension_numbers = #tpu.dot_dimension_numbers<[1], [0], [0], [1], [0, 0, 1, 1], [], []>} : vector<16x32xf32>, vector<32x32xf32>, vector<16x32xf32> -> vector<16x32xf32>
    %487 = vector.broadcast %467 : vector<1x32xf32> to vector<16x32xf32>
    %488 = arith.addf %486, %487 : vector<16x32xf32>
    %cst_324 = arith.constant dense<0.000000e+00> : vector<16x32xf32>
    %489 = tpu.matmul %453, %457, %cst_324 {dimension_numbers = #tpu.dot_dimension_numbers<[1], [0], [0], [1], [0, 0, 1, 1], [], []>} : vector<16x32xf32>, vector<32x32xf32>, vector<16x32xf32> -> vector<16x32xf32>
    %490 = vector.broadcast %469 : vector<1x32xf32> to vector<16x32xf32>
    %491 = arith.addf %489, %490 : vector<16x32xf32>
    %cst_325 = arith.constant dense<0.000000e+00> : vector<16x32xf32>
    %492 = tpu.matmul %453, %459, %cst_325 {dimension_numbers = #tpu.dot_dimension_numbers<[1], [0], [0], [1], [0, 0, 1, 1], [], []>} : vector<16x32xf32>, vector<32x32xf32>, vector<16x32xf32> -> vector<16x32xf32>
    %493 = vector.broadcast %471 : vector<1x32xf32> to vector<16x32xf32>
    %494 = arith.addf %492, %493 : vector<16x32xf32>
    %cst_326 = arith.constant dense<0.000000e+00> : vector<16x16xf32>
    %495 = tpu.matmul %488, %491, %cst_326 {dimension_numbers = #tpu.dot_dimension_numbers<[1], [1], [0], [0], [0, 0, 1, 0], [], []>} : vector<16x32xf32>, vector<16x32xf32>, vector<16x16xf32> -> vector<16x16xf32>
    %cst_327 = arith.constant 0.176776692 : f32
    %496 = vector.broadcast %cst_327 : f32 to vector<16x16xf32>
    %497 = arith.mulf %495, %496 : vector<16x16xf32>
    %cst_328 = arith.constant dense<0xFF800000> : vector<16xf32>
    %498 = vector.multi_reduction <maximumf>, %497, %cst_328 [1] : vector<16x16xf32> to vector<16xf32>
    %499 = vector.shape_cast %498 : vector<16xf32> to vector<16x1xf32>
    %500 = vector.broadcast %499 : vector<16x1xf32> to vector<16x16xf32>
    %501 = arith.subf %497, %500 : vector<16x16xf32>
    %502 = math.exp %501 : vector<16x16xf32>
    %cst_329 = arith.constant dense<0.000000e+00> : vector<16xf32>
    %503 = vector.multi_reduction <add>, %502, %cst_329 [1] : vector<16x16xf32> to vector<16xf32>
    %504 = vector.shape_cast %503 : vector<16xf32> to vector<16x1xf32>
    %505 = tpu.reciprocal %504 {approx = true} : vector<16x1xf32> -> vector<16x1xf32>
    %506 = vector.broadcast %505 : vector<16x1xf32> to vector<16x16xf32>
    %507 = arith.mulf %502, %506 : vector<16x16xf32>
    %cst_330 = arith.constant dense<0.000000e+00> : vector<16x32xf32>
    %508 = tpu.matmul %507, %494, %cst_330 {dimension_numbers = #tpu.dot_dimension_numbers<[1], [0], [0], [1], [0, 0, 1, 1], [], []>} : vector<16x16xf32>, vector<16x32xf32>, vector<16x32xf32> -> vector<16x32xf32>
    %cst_331 = arith.constant dense<0.000000e+00> : vector<16x32xf32>
    %509 = tpu.matmul %508, %461, %cst_331 {dimension_numbers = #tpu.dot_dimension_numbers<[1], [0], [0], [1], [0, 0, 1, 1], [], []>} : vector<16x32xf32>, vector<32x32xf32>, vector<16x32xf32> -> vector<16x32xf32>
    %510 = vector.broadcast %473 : vector<1x32xf32> to vector<16x32xf32>
    %511 = arith.addf %509, %510 : vector<16x32xf32>
    %512 = arith.addf %453, %511 : vector<16x32xf32>
    %cst_332 = arith.constant dense<0.000000e+00> : vector<16xf32>
    %513 = vector.multi_reduction <add>, %512, %cst_332 [1] : vector<16x32xf32> to vector<16xf32>
    %514 = vector.shape_cast %513 : vector<16xf32> to vector<16x1xf32>
    %cst_333 = arith.constant 3.200000e+01 : f32
    %515 = vector.broadcast %cst_333 : f32 to vector<16x1xf32>
    %516 = arith.divf %514, %515 : vector<16x1xf32>
    %517 = vector.broadcast %516 : vector<16x1xf32> to vector<16x32xf32>
    %518 = arith.subf %512, %517 : vector<16x32xf32>
    %519 = arith.mulf %518, %518 : vector<16x32xf32>
    %cst_334 = arith.constant dense<0.000000e+00> : vector<16xf32>
    %520 = vector.multi_reduction <add>, %519, %cst_334 [1] : vector<16x32xf32> to vector<16xf32>
    %521 = vector.shape_cast %520 : vector<16xf32> to vector<16x1xf32>
    %cst_335 = arith.constant 3.200000e+01 : f32
    %522 = vector.broadcast %cst_335 : f32 to vector<16x1xf32>
    %523 = arith.divf %521, %522 : vector<16x1xf32>
    %524 = vector.broadcast %516 : vector<16x1xf32> to vector<16x32xf32>
    %525 = arith.subf %512, %524 : vector<16x32xf32>
    %cst_336 = arith.constant 9.99999974E-6 : f32
    %526 = vector.broadcast %cst_336 : f32 to vector<16x1xf32>
    %527 = arith.addf %523, %526 : vector<16x1xf32>
    %528 = math.rsqrt %527 : vector<16x1xf32>
    %529 = vector.broadcast %528 : vector<16x1xf32> to vector<16x32xf32>
    %530 = arith.mulf %525, %529 : vector<16x32xf32>
    %531 = vector.broadcast %479 : vector<1x32xf32> to vector<16x32xf32>
    %532 = arith.mulf %530, %531 : vector<16x32xf32>
    %533 = vector.broadcast %481 : vector<1x32xf32> to vector<16x32xf32>
    %534 = arith.addf %532, %533 : vector<16x32xf32>
    %cst_337 = arith.constant dense<0.000000e+00> : vector<16x64xf32>
    %535 = tpu.matmul %534, %463, %cst_337 {dimension_numbers = #tpu.dot_dimension_numbers<[1], [0], [0], [1], [0, 0, 1, 1], [], []>} : vector<16x32xf32>, vector<32x64xf32>, vector<16x64xf32> -> vector<16x64xf32>
    %536 = vector.broadcast %475 : vector<1x64xf32> to vector<16x64xf32>
    %537 = arith.addf %535, %536 : vector<16x64xf32>
    %cst_338 = arith.constant 0.000000e+00 : f32
    %538 = vector.broadcast %cst_338 : f32 to vector<16x64xf32>
    %539 = arith.maximumf %537, %538 : vector<16x64xf32>
    %cst_339 = arith.constant dense<0.000000e+00> : vector<16x32xf32>
    %540 = tpu.matmul %539, %465, %cst_339 {dimension_numbers = #tpu.dot_dimension_numbers<[1], [0], [0], [1], [0, 0, 1, 1], [], []>} : vector<16x64xf32>, vector<64x32xf32>, vector<16x32xf32> -> vector<16x32xf32>
    %541 = vector.broadcast %477 : vector<1x32xf32> to vector<16x32xf32>
    %542 = arith.addf %540, %541 : vector<16x32xf32>
    %543 = arith.addf %534, %542 : vector<16x32xf32>
    %cst_340 = arith.constant dense<0.000000e+00> : vector<16xf32>
    %544 = vector.multi_reduction <add>, %543, %cst_340 [1] : vector<16x32xf32> to vector<16xf32>
    %545 = vector.shape_cast %544 : vector<16xf32> to vector<16x1xf32>
    %cst_341 = arith.constant 3.200000e+01 : f32
    %546 = vector.broadcast %cst_341 : f32 to vector<16x1xf32>
    %547 = arith.divf %545, %546 : vector<16x1xf32>
    %548 = vector.broadcast %547 : vector<16x1xf32> to vector<16x32xf32>
    %549 = arith.subf %543, %548 : vector<16x32xf32>
    %550 = arith.mulf %549, %549 : vector<16x32xf32>
    %cst_342 = arith.constant dense<0.000000e+00> : vector<16xf32>
    %551 = vector.multi_reduction <add>, %550, %cst_342 [1] : vector<16x32xf32> to vector<16xf32>
    %552 = vector.shape_cast %551 : vector<16xf32> to vector<16x1xf32>
    %cst_343 = arith.constant 3.200000e+01 : f32
    %553 = vector.broadcast %cst_343 : f32 to vector<16x1xf32>
    %554 = arith.divf %552, %553 : vector<16x1xf32>
    %555 = vector.broadcast %547 : vector<16x1xf32> to vector<16x32xf32>
    %556 = arith.subf %543, %555 : vector<16x32xf32>
    %cst_344 = arith.constant 9.99999974E-6 : f32
    %557 = vector.broadcast %cst_344 : f32 to vector<16x1xf32>
    %558 = arith.addf %554, %557 : vector<16x1xf32>
    %559 = math.rsqrt %558 : vector<16x1xf32>
    %560 = vector.broadcast %559 : vector<16x1xf32> to vector<16x32xf32>
    %561 = arith.mulf %556, %560 : vector<16x32xf32>
    %562 = vector.broadcast %483 : vector<1x32xf32> to vector<16x32xf32>
    %563 = arith.mulf %561, %562 : vector<16x32xf32>
    %564 = vector.broadcast %485 : vector<1x32xf32> to vector<16x32xf32>
    %565 = arith.addf %563, %564 : vector<16x32xf32>
    %c5_345 = arith.constant 5 : index
    %c0_346 = arith.constant 0 : index
    %c0_347 = arith.constant 0 : index
    %566 = vector.load %arg3[%c5_345, %c0_346, %c0_347] : memref<10x32x32xf32, #tpu.memory_space<vmem>>, vector<1x32x32xf32>
    %567 = vector.shape_cast %566 : vector<1x32x32xf32> to vector<32x32xf32>
    %c5_348 = arith.constant 5 : index
    %c0_349 = arith.constant 0 : index
    %c0_350 = arith.constant 0 : index
    %568 = vector.load %arg4[%c5_348, %c0_349, %c0_350] : memref<10x32x32xf32, #tpu.memory_space<vmem>>, vector<1x32x32xf32>
    %569 = vector.shape_cast %568 : vector<1x32x32xf32> to vector<32x32xf32>
    %c5_351 = arith.constant 5 : index
    %c0_352 = arith.constant 0 : index
    %c0_353 = arith.constant 0 : index
    %570 = vector.load %arg5[%c5_351, %c0_352, %c0_353] : memref<10x32x32xf32, #tpu.memory_space<vmem>>, vector<1x32x32xf32>
    %571 = vector.shape_cast %570 : vector<1x32x32xf32> to vector<32x32xf32>
    %c5_354 = arith.constant 5 : index
    %c0_355 = arith.constant 0 : index
    %c0_356 = arith.constant 0 : index
    %572 = vector.load %arg6[%c5_354, %c0_355, %c0_356] : memref<10x32x32xf32, #tpu.memory_space<vmem>>, vector<1x32x32xf32>
    %573 = vector.shape_cast %572 : vector<1x32x32xf32> to vector<32x32xf32>
    %c5_357 = arith.constant 5 : index
    %c0_358 = arith.constant 0 : index
    %c0_359 = arith.constant 0 : index
    %574 = vector.load %arg7[%c5_357, %c0_358, %c0_359] : memref<10x32x64xf32, #tpu.memory_space<vmem>>, vector<1x32x64xf32>
    %575 = vector.shape_cast %574 : vector<1x32x64xf32> to vector<32x64xf32>
    %c5_360 = arith.constant 5 : index
    %c0_361 = arith.constant 0 : index
    %c0_362 = arith.constant 0 : index
    %576 = vector.load %arg8[%c5_360, %c0_361, %c0_362] : memref<10x64x32xf32, #tpu.memory_space<vmem>>, vector<1x64x32xf32>
    %577 = vector.shape_cast %576 : vector<1x64x32xf32> to vector<64x32xf32>
    %c5_363 = arith.constant 5 : index
    %c0_364 = arith.constant 0 : index
    %c0_365 = arith.constant 0 : index
    %578 = vector.load %arg9[%c5_363, %c0_364, %c0_365] : memref<10x10x64xf32, #tpu.memory_space<vmem>>, vector<1x1x32xf32>
    %579 = vector.shape_cast %578 : vector<1x1x32xf32> to vector<1x32xf32>
    %c5_366 = arith.constant 5 : index
    %c1_367 = arith.constant 1 : index
    %c0_368 = arith.constant 0 : index
    %580 = vector.load %arg9[%c5_366, %c1_367, %c0_368] : memref<10x10x64xf32, #tpu.memory_space<vmem>>, vector<1x1x32xf32>
    %581 = vector.shape_cast %580 : vector<1x1x32xf32> to vector<1x32xf32>
    %c5_369 = arith.constant 5 : index
    %c2_370 = arith.constant 2 : index
    %c0_371 = arith.constant 0 : index
    %582 = vector.load %arg9[%c5_369, %c2_370, %c0_371] : memref<10x10x64xf32, #tpu.memory_space<vmem>>, vector<1x1x32xf32>
    %583 = vector.shape_cast %582 : vector<1x1x32xf32> to vector<1x32xf32>
    %c5_372 = arith.constant 5 : index
    %c3_373 = arith.constant 3 : index
    %c0_374 = arith.constant 0 : index
    %584 = vector.load %arg9[%c5_372, %c3_373, %c0_374] : memref<10x10x64xf32, #tpu.memory_space<vmem>>, vector<1x1x32xf32>
    %585 = vector.shape_cast %584 : vector<1x1x32xf32> to vector<1x32xf32>
    %c5_375 = arith.constant 5 : index
    %c4_376 = arith.constant 4 : index
    %c0_377 = arith.constant 0 : index
    %586 = vector.load %arg9[%c5_375, %c4_376, %c0_377] : memref<10x10x64xf32, #tpu.memory_space<vmem>>, vector<1x1x64xf32>
    %587 = vector.shape_cast %586 : vector<1x1x64xf32> to vector<1x64xf32>
    %c5_378 = arith.constant 5 : index
    %c5_379 = arith.constant 5 : index
    %c0_380 = arith.constant 0 : index
    %588 = vector.load %arg9[%c5_378, %c5_379, %c0_380] : memref<10x10x64xf32, #tpu.memory_space<vmem>>, vector<1x1x32xf32>
    %589 = vector.shape_cast %588 : vector<1x1x32xf32> to vector<1x32xf32>
    %c5_381 = arith.constant 5 : index
    %c6_382 = arith.constant 6 : index
    %c0_383 = arith.constant 0 : index
    %590 = vector.load %arg9[%c5_381, %c6_382, %c0_383] : memref<10x10x64xf32, #tpu.memory_space<vmem>>, vector<1x1x32xf32>
    %591 = vector.shape_cast %590 : vector<1x1x32xf32> to vector<1x32xf32>
    %c5_384 = arith.constant 5 : index
    %c7_385 = arith.constant 7 : index
    %c0_386 = arith.constant 0 : index
    %592 = vector.load %arg9[%c5_384, %c7_385, %c0_386] : memref<10x10x64xf32, #tpu.memory_space<vmem>>, vector<1x1x32xf32>
    %593 = vector.shape_cast %592 : vector<1x1x32xf32> to vector<1x32xf32>
    %c5_387 = arith.constant 5 : index
    %c8_388 = arith.constant 8 : index
    %c0_389 = arith.constant 0 : index
    %594 = vector.load %arg9[%c5_387, %c8_388, %c0_389] : memref<10x10x64xf32, #tpu.memory_space<vmem>>, vector<1x1x32xf32>
    %595 = vector.shape_cast %594 : vector<1x1x32xf32> to vector<1x32xf32>
    %c5_390 = arith.constant 5 : index
    %c9_391 = arith.constant 9 : index
    %c0_392 = arith.constant 0 : index
    %596 = vector.load %arg9[%c5_390, %c9_391, %c0_392] : memref<10x10x64xf32, #tpu.memory_space<vmem>>, vector<1x1x32xf32>
    %597 = vector.shape_cast %596 : vector<1x1x32xf32> to vector<1x32xf32>
    %cst_393 = arith.constant dense<0.000000e+00> : vector<16x32xf32>
    %598 = tpu.matmul %565, %567, %cst_393 {dimension_numbers = #tpu.dot_dimension_numbers<[1], [0], [0], [1], [0, 0, 1, 1], [], []>} : vector<16x32xf32>, vector<32x32xf32>, vector<16x32xf32> -> vector<16x32xf32>
    %599 = vector.broadcast %579 : vector<1x32xf32> to vector<16x32xf32>
    %600 = arith.addf %598, %599 : vector<16x32xf32>
    %cst_394 = arith.constant dense<0.000000e+00> : vector<16x32xf32>
    %601 = tpu.matmul %565, %569, %cst_394 {dimension_numbers = #tpu.dot_dimension_numbers<[1], [0], [0], [1], [0, 0, 1, 1], [], []>} : vector<16x32xf32>, vector<32x32xf32>, vector<16x32xf32> -> vector<16x32xf32>
    %602 = vector.broadcast %581 : vector<1x32xf32> to vector<16x32xf32>
    %603 = arith.addf %601, %602 : vector<16x32xf32>
    %cst_395 = arith.constant dense<0.000000e+00> : vector<16x32xf32>
    %604 = tpu.matmul %565, %571, %cst_395 {dimension_numbers = #tpu.dot_dimension_numbers<[1], [0], [0], [1], [0, 0, 1, 1], [], []>} : vector<16x32xf32>, vector<32x32xf32>, vector<16x32xf32> -> vector<16x32xf32>
    %605 = vector.broadcast %583 : vector<1x32xf32> to vector<16x32xf32>
    %606 = arith.addf %604, %605 : vector<16x32xf32>
    %cst_396 = arith.constant dense<0.000000e+00> : vector<16x16xf32>
    %607 = tpu.matmul %600, %603, %cst_396 {dimension_numbers = #tpu.dot_dimension_numbers<[1], [1], [0], [0], [0, 0, 1, 0], [], []>} : vector<16x32xf32>, vector<16x32xf32>, vector<16x16xf32> -> vector<16x16xf32>
    %cst_397 = arith.constant 0.176776692 : f32
    %608 = vector.broadcast %cst_397 : f32 to vector<16x16xf32>
    %609 = arith.mulf %607, %608 : vector<16x16xf32>
    %cst_398 = arith.constant dense<0xFF800000> : vector<16xf32>
    %610 = vector.multi_reduction <maximumf>, %609, %cst_398 [1] : vector<16x16xf32> to vector<16xf32>
    %611 = vector.shape_cast %610 : vector<16xf32> to vector<16x1xf32>
    %612 = vector.broadcast %611 : vector<16x1xf32> to vector<16x16xf32>
    %613 = arith.subf %609, %612 : vector<16x16xf32>
    %614 = math.exp %613 : vector<16x16xf32>
    %cst_399 = arith.constant dense<0.000000e+00> : vector<16xf32>
    %615 = vector.multi_reduction <add>, %614, %cst_399 [1] : vector<16x16xf32> to vector<16xf32>
    %616 = vector.shape_cast %615 : vector<16xf32> to vector<16x1xf32>
    %617 = tpu.reciprocal %616 {approx = true} : vector<16x1xf32> -> vector<16x1xf32>
    %618 = vector.broadcast %617 : vector<16x1xf32> to vector<16x16xf32>
    %619 = arith.mulf %614, %618 : vector<16x16xf32>
    %cst_400 = arith.constant dense<0.000000e+00> : vector<16x32xf32>
    %620 = tpu.matmul %619, %606, %cst_400 {dimension_numbers = #tpu.dot_dimension_numbers<[1], [0], [0], [1], [0, 0, 1, 1], [], []>} : vector<16x16xf32>, vector<16x32xf32>, vector<16x32xf32> -> vector<16x32xf32>
    %cst_401 = arith.constant dense<0.000000e+00> : vector<16x32xf32>
    %621 = tpu.matmul %620, %573, %cst_401 {dimension_numbers = #tpu.dot_dimension_numbers<[1], [0], [0], [1], [0, 0, 1, 1], [], []>} : vector<16x32xf32>, vector<32x32xf32>, vector<16x32xf32> -> vector<16x32xf32>
    %622 = vector.broadcast %585 : vector<1x32xf32> to vector<16x32xf32>
    %623 = arith.addf %621, %622 : vector<16x32xf32>
    %624 = arith.addf %565, %623 : vector<16x32xf32>
    %cst_402 = arith.constant dense<0.000000e+00> : vector<16xf32>
    %625 = vector.multi_reduction <add>, %624, %cst_402 [1] : vector<16x32xf32> to vector<16xf32>
    %626 = vector.shape_cast %625 : vector<16xf32> to vector<16x1xf32>
    %cst_403 = arith.constant 3.200000e+01 : f32
    %627 = vector.broadcast %cst_403 : f32 to vector<16x1xf32>
    %628 = arith.divf %626, %627 : vector<16x1xf32>
    %629 = vector.broadcast %628 : vector<16x1xf32> to vector<16x32xf32>
    %630 = arith.subf %624, %629 : vector<16x32xf32>
    %631 = arith.mulf %630, %630 : vector<16x32xf32>
    %cst_404 = arith.constant dense<0.000000e+00> : vector<16xf32>
    %632 = vector.multi_reduction <add>, %631, %cst_404 [1] : vector<16x32xf32> to vector<16xf32>
    %633 = vector.shape_cast %632 : vector<16xf32> to vector<16x1xf32>
    %cst_405 = arith.constant 3.200000e+01 : f32
    %634 = vector.broadcast %cst_405 : f32 to vector<16x1xf32>
    %635 = arith.divf %633, %634 : vector<16x1xf32>
    %636 = vector.broadcast %628 : vector<16x1xf32> to vector<16x32xf32>
    %637 = arith.subf %624, %636 : vector<16x32xf32>
    %cst_406 = arith.constant 9.99999974E-6 : f32
    %638 = vector.broadcast %cst_406 : f32 to vector<16x1xf32>
    %639 = arith.addf %635, %638 : vector<16x1xf32>
    %640 = math.rsqrt %639 : vector<16x1xf32>
    %641 = vector.broadcast %640 : vector<16x1xf32> to vector<16x32xf32>
    %642 = arith.mulf %637, %641 : vector<16x32xf32>
    %643 = vector.broadcast %591 : vector<1x32xf32> to vector<16x32xf32>
    %644 = arith.mulf %642, %643 : vector<16x32xf32>
    %645 = vector.broadcast %593 : vector<1x32xf32> to vector<16x32xf32>
    %646 = arith.addf %644, %645 : vector<16x32xf32>
    %cst_407 = arith.constant dense<0.000000e+00> : vector<16x64xf32>
    %647 = tpu.matmul %646, %575, %cst_407 {dimension_numbers = #tpu.dot_dimension_numbers<[1], [0], [0], [1], [0, 0, 1, 1], [], []>} : vector<16x32xf32>, vector<32x64xf32>, vector<16x64xf32> -> vector<16x64xf32>
    %648 = vector.broadcast %587 : vector<1x64xf32> to vector<16x64xf32>
    %649 = arith.addf %647, %648 : vector<16x64xf32>
    %cst_408 = arith.constant 0.000000e+00 : f32
    %650 = vector.broadcast %cst_408 : f32 to vector<16x64xf32>
    %651 = arith.maximumf %649, %650 : vector<16x64xf32>
    %cst_409 = arith.constant dense<0.000000e+00> : vector<16x32xf32>
    %652 = tpu.matmul %651, %577, %cst_409 {dimension_numbers = #tpu.dot_dimension_numbers<[1], [0], [0], [1], [0, 0, 1, 1], [], []>} : vector<16x64xf32>, vector<64x32xf32>, vector<16x32xf32> -> vector<16x32xf32>
    %653 = vector.broadcast %589 : vector<1x32xf32> to vector<16x32xf32>
    %654 = arith.addf %652, %653 : vector<16x32xf32>
    %655 = arith.addf %646, %654 : vector<16x32xf32>
    %cst_410 = arith.constant dense<0.000000e+00> : vector<16xf32>
    %656 = vector.multi_reduction <add>, %655, %cst_410 [1] : vector<16x32xf32> to vector<16xf32>
    %657 = vector.shape_cast %656 : vector<16xf32> to vector<16x1xf32>
    %cst_411 = arith.constant 3.200000e+01 : f32
    %658 = vector.broadcast %cst_411 : f32 to vector<16x1xf32>
    %659 = arith.divf %657, %658 : vector<16x1xf32>
    %660 = vector.broadcast %659 : vector<16x1xf32> to vector<16x32xf32>
    %661 = arith.subf %655, %660 : vector<16x32xf32>
    %662 = arith.mulf %661, %661 : vector<16x32xf32>
    %cst_412 = arith.constant dense<0.000000e+00> : vector<16xf32>
    %663 = vector.multi_reduction <add>, %662, %cst_412 [1] : vector<16x32xf32> to vector<16xf32>
    %664 = vector.shape_cast %663 : vector<16xf32> to vector<16x1xf32>
    %cst_413 = arith.constant 3.200000e+01 : f32
    %665 = vector.broadcast %cst_413 : f32 to vector<16x1xf32>
    %666 = arith.divf %664, %665 : vector<16x1xf32>
    %667 = vector.broadcast %659 : vector<16x1xf32> to vector<16x32xf32>
    %668 = arith.subf %655, %667 : vector<16x32xf32>
    %cst_414 = arith.constant 9.99999974E-6 : f32
    %669 = vector.broadcast %cst_414 : f32 to vector<16x1xf32>
    %670 = arith.addf %666, %669 : vector<16x1xf32>
    %671 = math.rsqrt %670 : vector<16x1xf32>
    %672 = vector.broadcast %671 : vector<16x1xf32> to vector<16x32xf32>
    %673 = arith.mulf %668, %672 : vector<16x32xf32>
    %674 = vector.broadcast %595 : vector<1x32xf32> to vector<16x32xf32>
    %675 = arith.mulf %673, %674 : vector<16x32xf32>
    %676 = vector.broadcast %597 : vector<1x32xf32> to vector<16x32xf32>
    %677 = arith.addf %675, %676 : vector<16x32xf32>
    %c6_415 = arith.constant 6 : index
    %c0_416 = arith.constant 0 : index
    %c0_417 = arith.constant 0 : index
    %678 = vector.load %arg3[%c6_415, %c0_416, %c0_417] : memref<10x32x32xf32, #tpu.memory_space<vmem>>, vector<1x32x32xf32>
    %679 = vector.shape_cast %678 : vector<1x32x32xf32> to vector<32x32xf32>
    %c6_418 = arith.constant 6 : index
    %c0_419 = arith.constant 0 : index
    %c0_420 = arith.constant 0 : index
    %680 = vector.load %arg4[%c6_418, %c0_419, %c0_420] : memref<10x32x32xf32, #tpu.memory_space<vmem>>, vector<1x32x32xf32>
    %681 = vector.shape_cast %680 : vector<1x32x32xf32> to vector<32x32xf32>
    %c6_421 = arith.constant 6 : index
    %c0_422 = arith.constant 0 : index
    %c0_423 = arith.constant 0 : index
    %682 = vector.load %arg5[%c6_421, %c0_422, %c0_423] : memref<10x32x32xf32, #tpu.memory_space<vmem>>, vector<1x32x32xf32>
    %683 = vector.shape_cast %682 : vector<1x32x32xf32> to vector<32x32xf32>
    %c6_424 = arith.constant 6 : index
    %c0_425 = arith.constant 0 : index
    %c0_426 = arith.constant 0 : index
    %684 = vector.load %arg6[%c6_424, %c0_425, %c0_426] : memref<10x32x32xf32, #tpu.memory_space<vmem>>, vector<1x32x32xf32>
    %685 = vector.shape_cast %684 : vector<1x32x32xf32> to vector<32x32xf32>
    %c6_427 = arith.constant 6 : index
    %c0_428 = arith.constant 0 : index
    %c0_429 = arith.constant 0 : index
    %686 = vector.load %arg7[%c6_427, %c0_428, %c0_429] : memref<10x32x64xf32, #tpu.memory_space<vmem>>, vector<1x32x64xf32>
    %687 = vector.shape_cast %686 : vector<1x32x64xf32> to vector<32x64xf32>
    %c6_430 = arith.constant 6 : index
    %c0_431 = arith.constant 0 : index
    %c0_432 = arith.constant 0 : index
    %688 = vector.load %arg8[%c6_430, %c0_431, %c0_432] : memref<10x64x32xf32, #tpu.memory_space<vmem>>, vector<1x64x32xf32>
    %689 = vector.shape_cast %688 : vector<1x64x32xf32> to vector<64x32xf32>
    %c6_433 = arith.constant 6 : index
    %c0_434 = arith.constant 0 : index
    %c0_435 = arith.constant 0 : index
    %690 = vector.load %arg9[%c6_433, %c0_434, %c0_435] : memref<10x10x64xf32, #tpu.memory_space<vmem>>, vector<1x1x32xf32>
    %691 = vector.shape_cast %690 : vector<1x1x32xf32> to vector<1x32xf32>
    %c6_436 = arith.constant 6 : index
    %c1_437 = arith.constant 1 : index
    %c0_438 = arith.constant 0 : index
    %692 = vector.load %arg9[%c6_436, %c1_437, %c0_438] : memref<10x10x64xf32, #tpu.memory_space<vmem>>, vector<1x1x32xf32>
    %693 = vector.shape_cast %692 : vector<1x1x32xf32> to vector<1x32xf32>
    %c6_439 = arith.constant 6 : index
    %c2_440 = arith.constant 2 : index
    %c0_441 = arith.constant 0 : index
    %694 = vector.load %arg9[%c6_439, %c2_440, %c0_441] : memref<10x10x64xf32, #tpu.memory_space<vmem>>, vector<1x1x32xf32>
    %695 = vector.shape_cast %694 : vector<1x1x32xf32> to vector<1x32xf32>
    %c6_442 = arith.constant 6 : index
    %c3_443 = arith.constant 3 : index
    %c0_444 = arith.constant 0 : index
    %696 = vector.load %arg9[%c6_442, %c3_443, %c0_444] : memref<10x10x64xf32, #tpu.memory_space<vmem>>, vector<1x1x32xf32>
    %697 = vector.shape_cast %696 : vector<1x1x32xf32> to vector<1x32xf32>
    %c6_445 = arith.constant 6 : index
    %c4_446 = arith.constant 4 : index
    %c0_447 = arith.constant 0 : index
    %698 = vector.load %arg9[%c6_445, %c4_446, %c0_447] : memref<10x10x64xf32, #tpu.memory_space<vmem>>, vector<1x1x64xf32>
    %699 = vector.shape_cast %698 : vector<1x1x64xf32> to vector<1x64xf32>
    %c6_448 = arith.constant 6 : index
    %c5_449 = arith.constant 5 : index
    %c0_450 = arith.constant 0 : index
    %700 = vector.load %arg9[%c6_448, %c5_449, %c0_450] : memref<10x10x64xf32, #tpu.memory_space<vmem>>, vector<1x1x32xf32>
    %701 = vector.shape_cast %700 : vector<1x1x32xf32> to vector<1x32xf32>
    %c6_451 = arith.constant 6 : index
    %c6_452 = arith.constant 6 : index
    %c0_453 = arith.constant 0 : index
    %702 = vector.load %arg9[%c6_451, %c6_452, %c0_453] : memref<10x10x64xf32, #tpu.memory_space<vmem>>, vector<1x1x32xf32>
    %703 = vector.shape_cast %702 : vector<1x1x32xf32> to vector<1x32xf32>
    %c6_454 = arith.constant 6 : index
    %c7_455 = arith.constant 7 : index
    %c0_456 = arith.constant 0 : index
    %704 = vector.load %arg9[%c6_454, %c7_455, %c0_456] : memref<10x10x64xf32, #tpu.memory_space<vmem>>, vector<1x1x32xf32>
    %705 = vector.shape_cast %704 : vector<1x1x32xf32> to vector<1x32xf32>
    %c6_457 = arith.constant 6 : index
    %c8_458 = arith.constant 8 : index
    %c0_459 = arith.constant 0 : index
    %706 = vector.load %arg9[%c6_457, %c8_458, %c0_459] : memref<10x10x64xf32, #tpu.memory_space<vmem>>, vector<1x1x32xf32>
    %707 = vector.shape_cast %706 : vector<1x1x32xf32> to vector<1x32xf32>
    %c6_460 = arith.constant 6 : index
    %c9_461 = arith.constant 9 : index
    %c0_462 = arith.constant 0 : index
    %708 = vector.load %arg9[%c6_460, %c9_461, %c0_462] : memref<10x10x64xf32, #tpu.memory_space<vmem>>, vector<1x1x32xf32>
    %709 = vector.shape_cast %708 : vector<1x1x32xf32> to vector<1x32xf32>
    %cst_463 = arith.constant dense<0.000000e+00> : vector<16x32xf32>
    %710 = tpu.matmul %677, %679, %cst_463 {dimension_numbers = #tpu.dot_dimension_numbers<[1], [0], [0], [1], [0, 0, 1, 1], [], []>} : vector<16x32xf32>, vector<32x32xf32>, vector<16x32xf32> -> vector<16x32xf32>
    %711 = vector.broadcast %691 : vector<1x32xf32> to vector<16x32xf32>
    %712 = arith.addf %710, %711 : vector<16x32xf32>
    %cst_464 = arith.constant dense<0.000000e+00> : vector<16x32xf32>
    %713 = tpu.matmul %677, %681, %cst_464 {dimension_numbers = #tpu.dot_dimension_numbers<[1], [0], [0], [1], [0, 0, 1, 1], [], []>} : vector<16x32xf32>, vector<32x32xf32>, vector<16x32xf32> -> vector<16x32xf32>
    %714 = vector.broadcast %693 : vector<1x32xf32> to vector<16x32xf32>
    %715 = arith.addf %713, %714 : vector<16x32xf32>
    %cst_465 = arith.constant dense<0.000000e+00> : vector<16x32xf32>
    %716 = tpu.matmul %677, %683, %cst_465 {dimension_numbers = #tpu.dot_dimension_numbers<[1], [0], [0], [1], [0, 0, 1, 1], [], []>} : vector<16x32xf32>, vector<32x32xf32>, vector<16x32xf32> -> vector<16x32xf32>
    %717 = vector.broadcast %695 : vector<1x32xf32> to vector<16x32xf32>
    %718 = arith.addf %716, %717 : vector<16x32xf32>
    %cst_466 = arith.constant dense<0.000000e+00> : vector<16x16xf32>
    %719 = tpu.matmul %712, %715, %cst_466 {dimension_numbers = #tpu.dot_dimension_numbers<[1], [1], [0], [0], [0, 0, 1, 0], [], []>} : vector<16x32xf32>, vector<16x32xf32>, vector<16x16xf32> -> vector<16x16xf32>
    %cst_467 = arith.constant 0.176776692 : f32
    %720 = vector.broadcast %cst_467 : f32 to vector<16x16xf32>
    %721 = arith.mulf %719, %720 : vector<16x16xf32>
    %cst_468 = arith.constant dense<0xFF800000> : vector<16xf32>
    %722 = vector.multi_reduction <maximumf>, %721, %cst_468 [1] : vector<16x16xf32> to vector<16xf32>
    %723 = vector.shape_cast %722 : vector<16xf32> to vector<16x1xf32>
    %724 = vector.broadcast %723 : vector<16x1xf32> to vector<16x16xf32>
    %725 = arith.subf %721, %724 : vector<16x16xf32>
    %726 = math.exp %725 : vector<16x16xf32>
    %cst_469 = arith.constant dense<0.000000e+00> : vector<16xf32>
    %727 = vector.multi_reduction <add>, %726, %cst_469 [1] : vector<16x16xf32> to vector<16xf32>
    %728 = vector.shape_cast %727 : vector<16xf32> to vector<16x1xf32>
    %729 = tpu.reciprocal %728 {approx = true} : vector<16x1xf32> -> vector<16x1xf32>
    %730 = vector.broadcast %729 : vector<16x1xf32> to vector<16x16xf32>
    %731 = arith.mulf %726, %730 : vector<16x16xf32>
    %cst_470 = arith.constant dense<0.000000e+00> : vector<16x32xf32>
    %732 = tpu.matmul %731, %718, %cst_470 {dimension_numbers = #tpu.dot_dimension_numbers<[1], [0], [0], [1], [0, 0, 1, 1], [], []>} : vector<16x16xf32>, vector<16x32xf32>, vector<16x32xf32> -> vector<16x32xf32>
    %cst_471 = arith.constant dense<0.000000e+00> : vector<16x32xf32>
    %733 = tpu.matmul %732, %685, %cst_471 {dimension_numbers = #tpu.dot_dimension_numbers<[1], [0], [0], [1], [0, 0, 1, 1], [], []>} : vector<16x32xf32>, vector<32x32xf32>, vector<16x32xf32> -> vector<16x32xf32>
    %734 = vector.broadcast %697 : vector<1x32xf32> to vector<16x32xf32>
    %735 = arith.addf %733, %734 : vector<16x32xf32>
    %736 = arith.addf %677, %735 : vector<16x32xf32>
    %cst_472 = arith.constant dense<0.000000e+00> : vector<16xf32>
    %737 = vector.multi_reduction <add>, %736, %cst_472 [1] : vector<16x32xf32> to vector<16xf32>
    %738 = vector.shape_cast %737 : vector<16xf32> to vector<16x1xf32>
    %cst_473 = arith.constant 3.200000e+01 : f32
    %739 = vector.broadcast %cst_473 : f32 to vector<16x1xf32>
    %740 = arith.divf %738, %739 : vector<16x1xf32>
    %741 = vector.broadcast %740 : vector<16x1xf32> to vector<16x32xf32>
    %742 = arith.subf %736, %741 : vector<16x32xf32>
    %743 = arith.mulf %742, %742 : vector<16x32xf32>
    %cst_474 = arith.constant dense<0.000000e+00> : vector<16xf32>
    %744 = vector.multi_reduction <add>, %743, %cst_474 [1] : vector<16x32xf32> to vector<16xf32>
    %745 = vector.shape_cast %744 : vector<16xf32> to vector<16x1xf32>
    %cst_475 = arith.constant 3.200000e+01 : f32
    %746 = vector.broadcast %cst_475 : f32 to vector<16x1xf32>
    %747 = arith.divf %745, %746 : vector<16x1xf32>
    %748 = vector.broadcast %740 : vector<16x1xf32> to vector<16x32xf32>
    %749 = arith.subf %736, %748 : vector<16x32xf32>
    %cst_476 = arith.constant 9.99999974E-6 : f32
    %750 = vector.broadcast %cst_476 : f32 to vector<16x1xf32>
    %751 = arith.addf %747, %750 : vector<16x1xf32>
    %752 = math.rsqrt %751 : vector<16x1xf32>
    %753 = vector.broadcast %752 : vector<16x1xf32> to vector<16x32xf32>
    %754 = arith.mulf %749, %753 : vector<16x32xf32>
    %755 = vector.broadcast %703 : vector<1x32xf32> to vector<16x32xf32>
    %756 = arith.mulf %754, %755 : vector<16x32xf32>
    %757 = vector.broadcast %705 : vector<1x32xf32> to vector<16x32xf32>
    %758 = arith.addf %756, %757 : vector<16x32xf32>
    %cst_477 = arith.constant dense<0.000000e+00> : vector<16x64xf32>
    %759 = tpu.matmul %758, %687, %cst_477 {dimension_numbers = #tpu.dot_dimension_numbers<[1], [0], [0], [1], [0, 0, 1, 1], [], []>} : vector<16x32xf32>, vector<32x64xf32>, vector<16x64xf32> -> vector<16x64xf32>
    %760 = vector.broadcast %699 : vector<1x64xf32> to vector<16x64xf32>
    %761 = arith.addf %759, %760 : vector<16x64xf32>
    %cst_478 = arith.constant 0.000000e+00 : f32
    %762 = vector.broadcast %cst_478 : f32 to vector<16x64xf32>
    %763 = arith.maximumf %761, %762 : vector<16x64xf32>
    %cst_479 = arith.constant dense<0.000000e+00> : vector<16x32xf32>
    %764 = tpu.matmul %763, %689, %cst_479 {dimension_numbers = #tpu.dot_dimension_numbers<[1], [0], [0], [1], [0, 0, 1, 1], [], []>} : vector<16x64xf32>, vector<64x32xf32>, vector<16x32xf32> -> vector<16x32xf32>
    %765 = vector.broadcast %701 : vector<1x32xf32> to vector<16x32xf32>
    %766 = arith.addf %764, %765 : vector<16x32xf32>
    %767 = arith.addf %758, %766 : vector<16x32xf32>
    %cst_480 = arith.constant dense<0.000000e+00> : vector<16xf32>
    %768 = vector.multi_reduction <add>, %767, %cst_480 [1] : vector<16x32xf32> to vector<16xf32>
    %769 = vector.shape_cast %768 : vector<16xf32> to vector<16x1xf32>
    %cst_481 = arith.constant 3.200000e+01 : f32
    %770 = vector.broadcast %cst_481 : f32 to vector<16x1xf32>
    %771 = arith.divf %769, %770 : vector<16x1xf32>
    %772 = vector.broadcast %771 : vector<16x1xf32> to vector<16x32xf32>
    %773 = arith.subf %767, %772 : vector<16x32xf32>
    %774 = arith.mulf %773, %773 : vector<16x32xf32>
    %cst_482 = arith.constant dense<0.000000e+00> : vector<16xf32>
    %775 = vector.multi_reduction <add>, %774, %cst_482 [1] : vector<16x32xf32> to vector<16xf32>
    %776 = vector.shape_cast %775 : vector<16xf32> to vector<16x1xf32>
    %cst_483 = arith.constant 3.200000e+01 : f32
    %777 = vector.broadcast %cst_483 : f32 to vector<16x1xf32>
    %778 = arith.divf %776, %777 : vector<16x1xf32>
    %779 = vector.broadcast %771 : vector<16x1xf32> to vector<16x32xf32>
    %780 = arith.subf %767, %779 : vector<16x32xf32>
    %cst_484 = arith.constant 9.99999974E-6 : f32
    %781 = vector.broadcast %cst_484 : f32 to vector<16x1xf32>
    %782 = arith.addf %778, %781 : vector<16x1xf32>
    %783 = math.rsqrt %782 : vector<16x1xf32>
    %784 = vector.broadcast %783 : vector<16x1xf32> to vector<16x32xf32>
    %785 = arith.mulf %780, %784 : vector<16x32xf32>
    %786 = vector.broadcast %707 : vector<1x32xf32> to vector<16x32xf32>
    %787 = arith.mulf %785, %786 : vector<16x32xf32>
    %788 = vector.broadcast %709 : vector<1x32xf32> to vector<16x32xf32>
    %789 = arith.addf %787, %788 : vector<16x32xf32>
    %c7_485 = arith.constant 7 : index
    %c0_486 = arith.constant 0 : index
    %c0_487 = arith.constant 0 : index
    %790 = vector.load %arg3[%c7_485, %c0_486, %c0_487] : memref<10x32x32xf32, #tpu.memory_space<vmem>>, vector<1x32x32xf32>
    %791 = vector.shape_cast %790 : vector<1x32x32xf32> to vector<32x32xf32>
    %c7_488 = arith.constant 7 : index
    %c0_489 = arith.constant 0 : index
    %c0_490 = arith.constant 0 : index
    %792 = vector.load %arg4[%c7_488, %c0_489, %c0_490] : memref<10x32x32xf32, #tpu.memory_space<vmem>>, vector<1x32x32xf32>
    %793 = vector.shape_cast %792 : vector<1x32x32xf32> to vector<32x32xf32>
    %c7_491 = arith.constant 7 : index
    %c0_492 = arith.constant 0 : index
    %c0_493 = arith.constant 0 : index
    %794 = vector.load %arg5[%c7_491, %c0_492, %c0_493] : memref<10x32x32xf32, #tpu.memory_space<vmem>>, vector<1x32x32xf32>
    %795 = vector.shape_cast %794 : vector<1x32x32xf32> to vector<32x32xf32>
    %c7_494 = arith.constant 7 : index
    %c0_495 = arith.constant 0 : index
    %c0_496 = arith.constant 0 : index
    %796 = vector.load %arg6[%c7_494, %c0_495, %c0_496] : memref<10x32x32xf32, #tpu.memory_space<vmem>>, vector<1x32x32xf32>
    %797 = vector.shape_cast %796 : vector<1x32x32xf32> to vector<32x32xf32>
    %c7_497 = arith.constant 7 : index
    %c0_498 = arith.constant 0 : index
    %c0_499 = arith.constant 0 : index
    %798 = vector.load %arg7[%c7_497, %c0_498, %c0_499] : memref<10x32x64xf32, #tpu.memory_space<vmem>>, vector<1x32x64xf32>
    %799 = vector.shape_cast %798 : vector<1x32x64xf32> to vector<32x64xf32>
    %c7_500 = arith.constant 7 : index
    %c0_501 = arith.constant 0 : index
    %c0_502 = arith.constant 0 : index
    %800 = vector.load %arg8[%c7_500, %c0_501, %c0_502] : memref<10x64x32xf32, #tpu.memory_space<vmem>>, vector<1x64x32xf32>
    %801 = vector.shape_cast %800 : vector<1x64x32xf32> to vector<64x32xf32>
    %c7_503 = arith.constant 7 : index
    %c0_504 = arith.constant 0 : index
    %c0_505 = arith.constant 0 : index
    %802 = vector.load %arg9[%c7_503, %c0_504, %c0_505] : memref<10x10x64xf32, #tpu.memory_space<vmem>>, vector<1x1x32xf32>
    %803 = vector.shape_cast %802 : vector<1x1x32xf32> to vector<1x32xf32>
    %c7_506 = arith.constant 7 : index
    %c1_507 = arith.constant 1 : index
    %c0_508 = arith.constant 0 : index
    %804 = vector.load %arg9[%c7_506, %c1_507, %c0_508] : memref<10x10x64xf32, #tpu.memory_space<vmem>>, vector<1x1x32xf32>
    %805 = vector.shape_cast %804 : vector<1x1x32xf32> to vector<1x32xf32>
    %c7_509 = arith.constant 7 : index
    %c2_510 = arith.constant 2 : index
    %c0_511 = arith.constant 0 : index
    %806 = vector.load %arg9[%c7_509, %c2_510, %c0_511] : memref<10x10x64xf32, #tpu.memory_space<vmem>>, vector<1x1x32xf32>
    %807 = vector.shape_cast %806 : vector<1x1x32xf32> to vector<1x32xf32>
    %c7_512 = arith.constant 7 : index
    %c3_513 = arith.constant 3 : index
    %c0_514 = arith.constant 0 : index
    %808 = vector.load %arg9[%c7_512, %c3_513, %c0_514] : memref<10x10x64xf32, #tpu.memory_space<vmem>>, vector<1x1x32xf32>
    %809 = vector.shape_cast %808 : vector<1x1x32xf32> to vector<1x32xf32>
    %c7_515 = arith.constant 7 : index
    %c4_516 = arith.constant 4 : index
    %c0_517 = arith.constant 0 : index
    %810 = vector.load %arg9[%c7_515, %c4_516, %c0_517] : memref<10x10x64xf32, #tpu.memory_space<vmem>>, vector<1x1x64xf32>
    %811 = vector.shape_cast %810 : vector<1x1x64xf32> to vector<1x64xf32>
    %c7_518 = arith.constant 7 : index
    %c5_519 = arith.constant 5 : index
    %c0_520 = arith.constant 0 : index
    %812 = vector.load %arg9[%c7_518, %c5_519, %c0_520] : memref<10x10x64xf32, #tpu.memory_space<vmem>>, vector<1x1x32xf32>
    %813 = vector.shape_cast %812 : vector<1x1x32xf32> to vector<1x32xf32>
    %c7_521 = arith.constant 7 : index
    %c6_522 = arith.constant 6 : index
    %c0_523 = arith.constant 0 : index
    %814 = vector.load %arg9[%c7_521, %c6_522, %c0_523] : memref<10x10x64xf32, #tpu.memory_space<vmem>>, vector<1x1x32xf32>
    %815 = vector.shape_cast %814 : vector<1x1x32xf32> to vector<1x32xf32>
    %c7_524 = arith.constant 7 : index
    %c7_525 = arith.constant 7 : index
    %c0_526 = arith.constant 0 : index
    %816 = vector.load %arg9[%c7_524, %c7_525, %c0_526] : memref<10x10x64xf32, #tpu.memory_space<vmem>>, vector<1x1x32xf32>
    %817 = vector.shape_cast %816 : vector<1x1x32xf32> to vector<1x32xf32>
    %c7_527 = arith.constant 7 : index
    %c8_528 = arith.constant 8 : index
    %c0_529 = arith.constant 0 : index
    %818 = vector.load %arg9[%c7_527, %c8_528, %c0_529] : memref<10x10x64xf32, #tpu.memory_space<vmem>>, vector<1x1x32xf32>
    %819 = vector.shape_cast %818 : vector<1x1x32xf32> to vector<1x32xf32>
    %c7_530 = arith.constant 7 : index
    %c9_531 = arith.constant 9 : index
    %c0_532 = arith.constant 0 : index
    %820 = vector.load %arg9[%c7_530, %c9_531, %c0_532] : memref<10x10x64xf32, #tpu.memory_space<vmem>>, vector<1x1x32xf32>
    %821 = vector.shape_cast %820 : vector<1x1x32xf32> to vector<1x32xf32>
    %cst_533 = arith.constant dense<0.000000e+00> : vector<16x32xf32>
    %822 = tpu.matmul %789, %791, %cst_533 {dimension_numbers = #tpu.dot_dimension_numbers<[1], [0], [0], [1], [0, 0, 1, 1], [], []>} : vector<16x32xf32>, vector<32x32xf32>, vector<16x32xf32> -> vector<16x32xf32>
    %823 = vector.broadcast %803 : vector<1x32xf32> to vector<16x32xf32>
    %824 = arith.addf %822, %823 : vector<16x32xf32>
    %cst_534 = arith.constant dense<0.000000e+00> : vector<16x32xf32>
    %825 = tpu.matmul %789, %793, %cst_534 {dimension_numbers = #tpu.dot_dimension_numbers<[1], [0], [0], [1], [0, 0, 1, 1], [], []>} : vector<16x32xf32>, vector<32x32xf32>, vector<16x32xf32> -> vector<16x32xf32>
    %826 = vector.broadcast %805 : vector<1x32xf32> to vector<16x32xf32>
    %827 = arith.addf %825, %826 : vector<16x32xf32>
    %cst_535 = arith.constant dense<0.000000e+00> : vector<16x32xf32>
    %828 = tpu.matmul %789, %795, %cst_535 {dimension_numbers = #tpu.dot_dimension_numbers<[1], [0], [0], [1], [0, 0, 1, 1], [], []>} : vector<16x32xf32>, vector<32x32xf32>, vector<16x32xf32> -> vector<16x32xf32>
    %829 = vector.broadcast %807 : vector<1x32xf32> to vector<16x32xf32>
    %830 = arith.addf %828, %829 : vector<16x32xf32>
    %cst_536 = arith.constant dense<0.000000e+00> : vector<16x16xf32>
    %831 = tpu.matmul %824, %827, %cst_536 {dimension_numbers = #tpu.dot_dimension_numbers<[1], [1], [0], [0], [0, 0, 1, 0], [], []>} : vector<16x32xf32>, vector<16x32xf32>, vector<16x16xf32> -> vector<16x16xf32>
    %cst_537 = arith.constant 0.176776692 : f32
    %832 = vector.broadcast %cst_537 : f32 to vector<16x16xf32>
    %833 = arith.mulf %831, %832 : vector<16x16xf32>
    %cst_538 = arith.constant dense<0xFF800000> : vector<16xf32>
    %834 = vector.multi_reduction <maximumf>, %833, %cst_538 [1] : vector<16x16xf32> to vector<16xf32>
    %835 = vector.shape_cast %834 : vector<16xf32> to vector<16x1xf32>
    %836 = vector.broadcast %835 : vector<16x1xf32> to vector<16x16xf32>
    %837 = arith.subf %833, %836 : vector<16x16xf32>
    %838 = math.exp %837 : vector<16x16xf32>
    %cst_539 = arith.constant dense<0.000000e+00> : vector<16xf32>
    %839 = vector.multi_reduction <add>, %838, %cst_539 [1] : vector<16x16xf32> to vector<16xf32>
    %840 = vector.shape_cast %839 : vector<16xf32> to vector<16x1xf32>
    %841 = tpu.reciprocal %840 {approx = true} : vector<16x1xf32> -> vector<16x1xf32>
    %842 = vector.broadcast %841 : vector<16x1xf32> to vector<16x16xf32>
    %843 = arith.mulf %838, %842 : vector<16x16xf32>
    %cst_540 = arith.constant dense<0.000000e+00> : vector<16x32xf32>
    %844 = tpu.matmul %843, %830, %cst_540 {dimension_numbers = #tpu.dot_dimension_numbers<[1], [0], [0], [1], [0, 0, 1, 1], [], []>} : vector<16x16xf32>, vector<16x32xf32>, vector<16x32xf32> -> vector<16x32xf32>
    %cst_541 = arith.constant dense<0.000000e+00> : vector<16x32xf32>
    %845 = tpu.matmul %844, %797, %cst_541 {dimension_numbers = #tpu.dot_dimension_numbers<[1], [0], [0], [1], [0, 0, 1, 1], [], []>} : vector<16x32xf32>, vector<32x32xf32>, vector<16x32xf32> -> vector<16x32xf32>
    %846 = vector.broadcast %809 : vector<1x32xf32> to vector<16x32xf32>
    %847 = arith.addf %845, %846 : vector<16x32xf32>
    %848 = arith.addf %789, %847 : vector<16x32xf32>
    %cst_542 = arith.constant dense<0.000000e+00> : vector<16xf32>
    %849 = vector.multi_reduction <add>, %848, %cst_542 [1] : vector<16x32xf32> to vector<16xf32>
    %850 = vector.shape_cast %849 : vector<16xf32> to vector<16x1xf32>
    %cst_543 = arith.constant 3.200000e+01 : f32
    %851 = vector.broadcast %cst_543 : f32 to vector<16x1xf32>
    %852 = arith.divf %850, %851 : vector<16x1xf32>
    %853 = vector.broadcast %852 : vector<16x1xf32> to vector<16x32xf32>
    %854 = arith.subf %848, %853 : vector<16x32xf32>
    %855 = arith.mulf %854, %854 : vector<16x32xf32>
    %cst_544 = arith.constant dense<0.000000e+00> : vector<16xf32>
    %856 = vector.multi_reduction <add>, %855, %cst_544 [1] : vector<16x32xf32> to vector<16xf32>
    %857 = vector.shape_cast %856 : vector<16xf32> to vector<16x1xf32>
    %cst_545 = arith.constant 3.200000e+01 : f32
    %858 = vector.broadcast %cst_545 : f32 to vector<16x1xf32>
    %859 = arith.divf %857, %858 : vector<16x1xf32>
    %860 = vector.broadcast %852 : vector<16x1xf32> to vector<16x32xf32>
    %861 = arith.subf %848, %860 : vector<16x32xf32>
    %cst_546 = arith.constant 9.99999974E-6 : f32
    %862 = vector.broadcast %cst_546 : f32 to vector<16x1xf32>
    %863 = arith.addf %859, %862 : vector<16x1xf32>
    %864 = math.rsqrt %863 : vector<16x1xf32>
    %865 = vector.broadcast %864 : vector<16x1xf32> to vector<16x32xf32>
    %866 = arith.mulf %861, %865 : vector<16x32xf32>
    %867 = vector.broadcast %815 : vector<1x32xf32> to vector<16x32xf32>
    %868 = arith.mulf %866, %867 : vector<16x32xf32>
    %869 = vector.broadcast %817 : vector<1x32xf32> to vector<16x32xf32>
    %870 = arith.addf %868, %869 : vector<16x32xf32>
    %cst_547 = arith.constant dense<0.000000e+00> : vector<16x64xf32>
    %871 = tpu.matmul %870, %799, %cst_547 {dimension_numbers = #tpu.dot_dimension_numbers<[1], [0], [0], [1], [0, 0, 1, 1], [], []>} : vector<16x32xf32>, vector<32x64xf32>, vector<16x64xf32> -> vector<16x64xf32>
    %872 = vector.broadcast %811 : vector<1x64xf32> to vector<16x64xf32>
    %873 = arith.addf %871, %872 : vector<16x64xf32>
    %cst_548 = arith.constant 0.000000e+00 : f32
    %874 = vector.broadcast %cst_548 : f32 to vector<16x64xf32>
    %875 = arith.maximumf %873, %874 : vector<16x64xf32>
    %cst_549 = arith.constant dense<0.000000e+00> : vector<16x32xf32>
    %876 = tpu.matmul %875, %801, %cst_549 {dimension_numbers = #tpu.dot_dimension_numbers<[1], [0], [0], [1], [0, 0, 1, 1], [], []>} : vector<16x64xf32>, vector<64x32xf32>, vector<16x32xf32> -> vector<16x32xf32>
    %877 = vector.broadcast %813 : vector<1x32xf32> to vector<16x32xf32>
    %878 = arith.addf %876, %877 : vector<16x32xf32>
    %879 = arith.addf %870, %878 : vector<16x32xf32>
    %cst_550 = arith.constant dense<0.000000e+00> : vector<16xf32>
    %880 = vector.multi_reduction <add>, %879, %cst_550 [1] : vector<16x32xf32> to vector<16xf32>
    %881 = vector.shape_cast %880 : vector<16xf32> to vector<16x1xf32>
    %cst_551 = arith.constant 3.200000e+01 : f32
    %882 = vector.broadcast %cst_551 : f32 to vector<16x1xf32>
    %883 = arith.divf %881, %882 : vector<16x1xf32>
    %884 = vector.broadcast %883 : vector<16x1xf32> to vector<16x32xf32>
    %885 = arith.subf %879, %884 : vector<16x32xf32>
    %886 = arith.mulf %885, %885 : vector<16x32xf32>
    %cst_552 = arith.constant dense<0.000000e+00> : vector<16xf32>
    %887 = vector.multi_reduction <add>, %886, %cst_552 [1] : vector<16x32xf32> to vector<16xf32>
    %888 = vector.shape_cast %887 : vector<16xf32> to vector<16x1xf32>
    %cst_553 = arith.constant 3.200000e+01 : f32
    %889 = vector.broadcast %cst_553 : f32 to vector<16x1xf32>
    %890 = arith.divf %888, %889 : vector<16x1xf32>
    %891 = vector.broadcast %883 : vector<16x1xf32> to vector<16x32xf32>
    %892 = arith.subf %879, %891 : vector<16x32xf32>
    %cst_554 = arith.constant 9.99999974E-6 : f32
    %893 = vector.broadcast %cst_554 : f32 to vector<16x1xf32>
    %894 = arith.addf %890, %893 : vector<16x1xf32>
    %895 = math.rsqrt %894 : vector<16x1xf32>
    %896 = vector.broadcast %895 : vector<16x1xf32> to vector<16x32xf32>
    %897 = arith.mulf %892, %896 : vector<16x32xf32>
    %898 = vector.broadcast %819 : vector<1x32xf32> to vector<16x32xf32>
    %899 = arith.mulf %897, %898 : vector<16x32xf32>
    %900 = vector.broadcast %821 : vector<1x32xf32> to vector<16x32xf32>
    %901 = arith.addf %899, %900 : vector<16x32xf32>
    %c8_555 = arith.constant 8 : index
    %c0_556 = arith.constant 0 : index
    %c0_557 = arith.constant 0 : index
    %902 = vector.load %arg3[%c8_555, %c0_556, %c0_557] : memref<10x32x32xf32, #tpu.memory_space<vmem>>, vector<1x32x32xf32>
    %903 = vector.shape_cast %902 : vector<1x32x32xf32> to vector<32x32xf32>
    %c8_558 = arith.constant 8 : index
    %c0_559 = arith.constant 0 : index
    %c0_560 = arith.constant 0 : index
    %904 = vector.load %arg4[%c8_558, %c0_559, %c0_560] : memref<10x32x32xf32, #tpu.memory_space<vmem>>, vector<1x32x32xf32>
    %905 = vector.shape_cast %904 : vector<1x32x32xf32> to vector<32x32xf32>
    %c8_561 = arith.constant 8 : index
    %c0_562 = arith.constant 0 : index
    %c0_563 = arith.constant 0 : index
    %906 = vector.load %arg5[%c8_561, %c0_562, %c0_563] : memref<10x32x32xf32, #tpu.memory_space<vmem>>, vector<1x32x32xf32>
    %907 = vector.shape_cast %906 : vector<1x32x32xf32> to vector<32x32xf32>
    %c8_564 = arith.constant 8 : index
    %c0_565 = arith.constant 0 : index
    %c0_566 = arith.constant 0 : index
    %908 = vector.load %arg6[%c8_564, %c0_565, %c0_566] : memref<10x32x32xf32, #tpu.memory_space<vmem>>, vector<1x32x32xf32>
    %909 = vector.shape_cast %908 : vector<1x32x32xf32> to vector<32x32xf32>
    %c8_567 = arith.constant 8 : index
    %c0_568 = arith.constant 0 : index
    %c0_569 = arith.constant 0 : index
    %910 = vector.load %arg7[%c8_567, %c0_568, %c0_569] : memref<10x32x64xf32, #tpu.memory_space<vmem>>, vector<1x32x64xf32>
    %911 = vector.shape_cast %910 : vector<1x32x64xf32> to vector<32x64xf32>
    %c8_570 = arith.constant 8 : index
    %c0_571 = arith.constant 0 : index
    %c0_572 = arith.constant 0 : index
    %912 = vector.load %arg8[%c8_570, %c0_571, %c0_572] : memref<10x64x32xf32, #tpu.memory_space<vmem>>, vector<1x64x32xf32>
    %913 = vector.shape_cast %912 : vector<1x64x32xf32> to vector<64x32xf32>
    %c8_573 = arith.constant 8 : index
    %c0_574 = arith.constant 0 : index
    %c0_575 = arith.constant 0 : index
    %914 = vector.load %arg9[%c8_573, %c0_574, %c0_575] : memref<10x10x64xf32, #tpu.memory_space<vmem>>, vector<1x1x32xf32>
    %915 = vector.shape_cast %914 : vector<1x1x32xf32> to vector<1x32xf32>
    %c8_576 = arith.constant 8 : index
    %c1_577 = arith.constant 1 : index
    %c0_578 = arith.constant 0 : index
    %916 = vector.load %arg9[%c8_576, %c1_577, %c0_578] : memref<10x10x64xf32, #tpu.memory_space<vmem>>, vector<1x1x32xf32>
    %917 = vector.shape_cast %916 : vector<1x1x32xf32> to vector<1x32xf32>
    %c8_579 = arith.constant 8 : index
    %c2_580 = arith.constant 2 : index
    %c0_581 = arith.constant 0 : index
    %918 = vector.load %arg9[%c8_579, %c2_580, %c0_581] : memref<10x10x64xf32, #tpu.memory_space<vmem>>, vector<1x1x32xf32>
    %919 = vector.shape_cast %918 : vector<1x1x32xf32> to vector<1x32xf32>
    %c8_582 = arith.constant 8 : index
    %c3_583 = arith.constant 3 : index
    %c0_584 = arith.constant 0 : index
    %920 = vector.load %arg9[%c8_582, %c3_583, %c0_584] : memref<10x10x64xf32, #tpu.memory_space<vmem>>, vector<1x1x32xf32>
    %921 = vector.shape_cast %920 : vector<1x1x32xf32> to vector<1x32xf32>
    %c8_585 = arith.constant 8 : index
    %c4_586 = arith.constant 4 : index
    %c0_587 = arith.constant 0 : index
    %922 = vector.load %arg9[%c8_585, %c4_586, %c0_587] : memref<10x10x64xf32, #tpu.memory_space<vmem>>, vector<1x1x64xf32>
    %923 = vector.shape_cast %922 : vector<1x1x64xf32> to vector<1x64xf32>
    %c8_588 = arith.constant 8 : index
    %c5_589 = arith.constant 5 : index
    %c0_590 = arith.constant 0 : index
    %924 = vector.load %arg9[%c8_588, %c5_589, %c0_590] : memref<10x10x64xf32, #tpu.memory_space<vmem>>, vector<1x1x32xf32>
    %925 = vector.shape_cast %924 : vector<1x1x32xf32> to vector<1x32xf32>
    %c8_591 = arith.constant 8 : index
    %c6_592 = arith.constant 6 : index
    %c0_593 = arith.constant 0 : index
    %926 = vector.load %arg9[%c8_591, %c6_592, %c0_593] : memref<10x10x64xf32, #tpu.memory_space<vmem>>, vector<1x1x32xf32>
    %927 = vector.shape_cast %926 : vector<1x1x32xf32> to vector<1x32xf32>
    %c8_594 = arith.constant 8 : index
    %c7_595 = arith.constant 7 : index
    %c0_596 = arith.constant 0 : index
    %928 = vector.load %arg9[%c8_594, %c7_595, %c0_596] : memref<10x10x64xf32, #tpu.memory_space<vmem>>, vector<1x1x32xf32>
    %929 = vector.shape_cast %928 : vector<1x1x32xf32> to vector<1x32xf32>
    %c8_597 = arith.constant 8 : index
    %c8_598 = arith.constant 8 : index
    %c0_599 = arith.constant 0 : index
    %930 = vector.load %arg9[%c8_597, %c8_598, %c0_599] : memref<10x10x64xf32, #tpu.memory_space<vmem>>, vector<1x1x32xf32>
    %931 = vector.shape_cast %930 : vector<1x1x32xf32> to vector<1x32xf32>
    %c8_600 = arith.constant 8 : index
    %c9_601 = arith.constant 9 : index
    %c0_602 = arith.constant 0 : index
    %932 = vector.load %arg9[%c8_600, %c9_601, %c0_602] : memref<10x10x64xf32, #tpu.memory_space<vmem>>, vector<1x1x32xf32>
    %933 = vector.shape_cast %932 : vector<1x1x32xf32> to vector<1x32xf32>
    %cst_603 = arith.constant dense<0.000000e+00> : vector<16x32xf32>
    %934 = tpu.matmul %901, %903, %cst_603 {dimension_numbers = #tpu.dot_dimension_numbers<[1], [0], [0], [1], [0, 0, 1, 1], [], []>} : vector<16x32xf32>, vector<32x32xf32>, vector<16x32xf32> -> vector<16x32xf32>
    %935 = vector.broadcast %915 : vector<1x32xf32> to vector<16x32xf32>
    %936 = arith.addf %934, %935 : vector<16x32xf32>
    %cst_604 = arith.constant dense<0.000000e+00> : vector<16x32xf32>
    %937 = tpu.matmul %901, %905, %cst_604 {dimension_numbers = #tpu.dot_dimension_numbers<[1], [0], [0], [1], [0, 0, 1, 1], [], []>} : vector<16x32xf32>, vector<32x32xf32>, vector<16x32xf32> -> vector<16x32xf32>
    %938 = vector.broadcast %917 : vector<1x32xf32> to vector<16x32xf32>
    %939 = arith.addf %937, %938 : vector<16x32xf32>
    %cst_605 = arith.constant dense<0.000000e+00> : vector<16x32xf32>
    %940 = tpu.matmul %901, %907, %cst_605 {dimension_numbers = #tpu.dot_dimension_numbers<[1], [0], [0], [1], [0, 0, 1, 1], [], []>} : vector<16x32xf32>, vector<32x32xf32>, vector<16x32xf32> -> vector<16x32xf32>
    %941 = vector.broadcast %919 : vector<1x32xf32> to vector<16x32xf32>
    %942 = arith.addf %940, %941 : vector<16x32xf32>
    %cst_606 = arith.constant dense<0.000000e+00> : vector<16x16xf32>
    %943 = tpu.matmul %936, %939, %cst_606 {dimension_numbers = #tpu.dot_dimension_numbers<[1], [1], [0], [0], [0, 0, 1, 0], [], []>} : vector<16x32xf32>, vector<16x32xf32>, vector<16x16xf32> -> vector<16x16xf32>
    %cst_607 = arith.constant 0.176776692 : f32
    %944 = vector.broadcast %cst_607 : f32 to vector<16x16xf32>
    %945 = arith.mulf %943, %944 : vector<16x16xf32>
    %cst_608 = arith.constant dense<0xFF800000> : vector<16xf32>
    %946 = vector.multi_reduction <maximumf>, %945, %cst_608 [1] : vector<16x16xf32> to vector<16xf32>
    %947 = vector.shape_cast %946 : vector<16xf32> to vector<16x1xf32>
    %948 = vector.broadcast %947 : vector<16x1xf32> to vector<16x16xf32>
    %949 = arith.subf %945, %948 : vector<16x16xf32>
    %950 = math.exp %949 : vector<16x16xf32>
    %cst_609 = arith.constant dense<0.000000e+00> : vector<16xf32>
    %951 = vector.multi_reduction <add>, %950, %cst_609 [1] : vector<16x16xf32> to vector<16xf32>
    %952 = vector.shape_cast %951 : vector<16xf32> to vector<16x1xf32>
    %953 = tpu.reciprocal %952 {approx = true} : vector<16x1xf32> -> vector<16x1xf32>
    %954 = vector.broadcast %953 : vector<16x1xf32> to vector<16x16xf32>
    %955 = arith.mulf %950, %954 : vector<16x16xf32>
    %cst_610 = arith.constant dense<0.000000e+00> : vector<16x32xf32>
    %956 = tpu.matmul %955, %942, %cst_610 {dimension_numbers = #tpu.dot_dimension_numbers<[1], [0], [0], [1], [0, 0, 1, 1], [], []>} : vector<16x16xf32>, vector<16x32xf32>, vector<16x32xf32> -> vector<16x32xf32>
    %cst_611 = arith.constant dense<0.000000e+00> : vector<16x32xf32>
    %957 = tpu.matmul %956, %909, %cst_611 {dimension_numbers = #tpu.dot_dimension_numbers<[1], [0], [0], [1], [0, 0, 1, 1], [], []>} : vector<16x32xf32>, vector<32x32xf32>, vector<16x32xf32> -> vector<16x32xf32>
    %958 = vector.broadcast %921 : vector<1x32xf32> to vector<16x32xf32>
    %959 = arith.addf %957, %958 : vector<16x32xf32>
    %960 = arith.addf %901, %959 : vector<16x32xf32>
    %cst_612 = arith.constant dense<0.000000e+00> : vector<16xf32>
    %961 = vector.multi_reduction <add>, %960, %cst_612 [1] : vector<16x32xf32> to vector<16xf32>
    %962 = vector.shape_cast %961 : vector<16xf32> to vector<16x1xf32>
    %cst_613 = arith.constant 3.200000e+01 : f32
    %963 = vector.broadcast %cst_613 : f32 to vector<16x1xf32>
    %964 = arith.divf %962, %963 : vector<16x1xf32>
    %965 = vector.broadcast %964 : vector<16x1xf32> to vector<16x32xf32>
    %966 = arith.subf %960, %965 : vector<16x32xf32>
    %967 = arith.mulf %966, %966 : vector<16x32xf32>
    %cst_614 = arith.constant dense<0.000000e+00> : vector<16xf32>
    %968 = vector.multi_reduction <add>, %967, %cst_614 [1] : vector<16x32xf32> to vector<16xf32>
    %969 = vector.shape_cast %968 : vector<16xf32> to vector<16x1xf32>
    %cst_615 = arith.constant 3.200000e+01 : f32
    %970 = vector.broadcast %cst_615 : f32 to vector<16x1xf32>
    %971 = arith.divf %969, %970 : vector<16x1xf32>
    %972 = vector.broadcast %964 : vector<16x1xf32> to vector<16x32xf32>
    %973 = arith.subf %960, %972 : vector<16x32xf32>
    %cst_616 = arith.constant 9.99999974E-6 : f32
    %974 = vector.broadcast %cst_616 : f32 to vector<16x1xf32>
    %975 = arith.addf %971, %974 : vector<16x1xf32>
    %976 = math.rsqrt %975 : vector<16x1xf32>
    %977 = vector.broadcast %976 : vector<16x1xf32> to vector<16x32xf32>
    %978 = arith.mulf %973, %977 : vector<16x32xf32>
    %979 = vector.broadcast %927 : vector<1x32xf32> to vector<16x32xf32>
    %980 = arith.mulf %978, %979 : vector<16x32xf32>
    %981 = vector.broadcast %929 : vector<1x32xf32> to vector<16x32xf32>
    %982 = arith.addf %980, %981 : vector<16x32xf32>
    %cst_617 = arith.constant dense<0.000000e+00> : vector<16x64xf32>
    %983 = tpu.matmul %982, %911, %cst_617 {dimension_numbers = #tpu.dot_dimension_numbers<[1], [0], [0], [1], [0, 0, 1, 1], [], []>} : vector<16x32xf32>, vector<32x64xf32>, vector<16x64xf32> -> vector<16x64xf32>
    %984 = vector.broadcast %923 : vector<1x64xf32> to vector<16x64xf32>
    %985 = arith.addf %983, %984 : vector<16x64xf32>
    %cst_618 = arith.constant 0.000000e+00 : f32
    %986 = vector.broadcast %cst_618 : f32 to vector<16x64xf32>
    %987 = arith.maximumf %985, %986 : vector<16x64xf32>
    %cst_619 = arith.constant dense<0.000000e+00> : vector<16x32xf32>
    %988 = tpu.matmul %987, %913, %cst_619 {dimension_numbers = #tpu.dot_dimension_numbers<[1], [0], [0], [1], [0, 0, 1, 1], [], []>} : vector<16x64xf32>, vector<64x32xf32>, vector<16x32xf32> -> vector<16x32xf32>
    %989 = vector.broadcast %925 : vector<1x32xf32> to vector<16x32xf32>
    %990 = arith.addf %988, %989 : vector<16x32xf32>
    %991 = arith.addf %982, %990 : vector<16x32xf32>
    %cst_620 = arith.constant dense<0.000000e+00> : vector<16xf32>
    %992 = vector.multi_reduction <add>, %991, %cst_620 [1] : vector<16x32xf32> to vector<16xf32>
    %993 = vector.shape_cast %992 : vector<16xf32> to vector<16x1xf32>
    %cst_621 = arith.constant 3.200000e+01 : f32
    %994 = vector.broadcast %cst_621 : f32 to vector<16x1xf32>
    %995 = arith.divf %993, %994 : vector<16x1xf32>
    %996 = vector.broadcast %995 : vector<16x1xf32> to vector<16x32xf32>
    %997 = arith.subf %991, %996 : vector<16x32xf32>
    %998 = arith.mulf %997, %997 : vector<16x32xf32>
    %cst_622 = arith.constant dense<0.000000e+00> : vector<16xf32>
    %999 = vector.multi_reduction <add>, %998, %cst_622 [1] : vector<16x32xf32> to vector<16xf32>
    %1000 = vector.shape_cast %999 : vector<16xf32> to vector<16x1xf32>
    %cst_623 = arith.constant 3.200000e+01 : f32
    %1001 = vector.broadcast %cst_623 : f32 to vector<16x1xf32>
    %1002 = arith.divf %1000, %1001 : vector<16x1xf32>
    %1003 = vector.broadcast %995 : vector<16x1xf32> to vector<16x32xf32>
    %1004 = arith.subf %991, %1003 : vector<16x32xf32>
    %cst_624 = arith.constant 9.99999974E-6 : f32
    %1005 = vector.broadcast %cst_624 : f32 to vector<16x1xf32>
    %1006 = arith.addf %1002, %1005 : vector<16x1xf32>
    %1007 = math.rsqrt %1006 : vector<16x1xf32>
    %1008 = vector.broadcast %1007 : vector<16x1xf32> to vector<16x32xf32>
    %1009 = arith.mulf %1004, %1008 : vector<16x32xf32>
    %1010 = vector.broadcast %931 : vector<1x32xf32> to vector<16x32xf32>
    %1011 = arith.mulf %1009, %1010 : vector<16x32xf32>
    %1012 = vector.broadcast %933 : vector<1x32xf32> to vector<16x32xf32>
    %1013 = arith.addf %1011, %1012 : vector<16x32xf32>
    %c9_625 = arith.constant 9 : index
    %c0_626 = arith.constant 0 : index
    %c0_627 = arith.constant 0 : index
    %1014 = vector.load %arg3[%c9_625, %c0_626, %c0_627] : memref<10x32x32xf32, #tpu.memory_space<vmem>>, vector<1x32x32xf32>
    %1015 = vector.shape_cast %1014 : vector<1x32x32xf32> to vector<32x32xf32>
    %c9_628 = arith.constant 9 : index
    %c0_629 = arith.constant 0 : index
    %c0_630 = arith.constant 0 : index
    %1016 = vector.load %arg4[%c9_628, %c0_629, %c0_630] : memref<10x32x32xf32, #tpu.memory_space<vmem>>, vector<1x32x32xf32>
    %1017 = vector.shape_cast %1016 : vector<1x32x32xf32> to vector<32x32xf32>
    %c9_631 = arith.constant 9 : index
    %c0_632 = arith.constant 0 : index
    %c0_633 = arith.constant 0 : index
    %1018 = vector.load %arg5[%c9_631, %c0_632, %c0_633] : memref<10x32x32xf32, #tpu.memory_space<vmem>>, vector<1x32x32xf32>
    %1019 = vector.shape_cast %1018 : vector<1x32x32xf32> to vector<32x32xf32>
    %c9_634 = arith.constant 9 : index
    %c0_635 = arith.constant 0 : index
    %c0_636 = arith.constant 0 : index
    %1020 = vector.load %arg6[%c9_634, %c0_635, %c0_636] : memref<10x32x32xf32, #tpu.memory_space<vmem>>, vector<1x32x32xf32>
    %1021 = vector.shape_cast %1020 : vector<1x32x32xf32> to vector<32x32xf32>
    %c9_637 = arith.constant 9 : index
    %c0_638 = arith.constant 0 : index
    %c0_639 = arith.constant 0 : index
    %1022 = vector.load %arg7[%c9_637, %c0_638, %c0_639] : memref<10x32x64xf32, #tpu.memory_space<vmem>>, vector<1x32x64xf32>
    %1023 = vector.shape_cast %1022 : vector<1x32x64xf32> to vector<32x64xf32>
    %c9_640 = arith.constant 9 : index
    %c0_641 = arith.constant 0 : index
    %c0_642 = arith.constant 0 : index
    %1024 = vector.load %arg8[%c9_640, %c0_641, %c0_642] : memref<10x64x32xf32, #tpu.memory_space<vmem>>, vector<1x64x32xf32>
    %1025 = vector.shape_cast %1024 : vector<1x64x32xf32> to vector<64x32xf32>
    %c9_643 = arith.constant 9 : index
    %c0_644 = arith.constant 0 : index
    %c0_645 = arith.constant 0 : index
    %1026 = vector.load %arg9[%c9_643, %c0_644, %c0_645] : memref<10x10x64xf32, #tpu.memory_space<vmem>>, vector<1x1x32xf32>
    %1027 = vector.shape_cast %1026 : vector<1x1x32xf32> to vector<1x32xf32>
    %c9_646 = arith.constant 9 : index
    %c1_647 = arith.constant 1 : index
    %c0_648 = arith.constant 0 : index
    %1028 = vector.load %arg9[%c9_646, %c1_647, %c0_648] : memref<10x10x64xf32, #tpu.memory_space<vmem>>, vector<1x1x32xf32>
    %1029 = vector.shape_cast %1028 : vector<1x1x32xf32> to vector<1x32xf32>
    %c9_649 = arith.constant 9 : index
    %c2_650 = arith.constant 2 : index
    %c0_651 = arith.constant 0 : index
    %1030 = vector.load %arg9[%c9_649, %c2_650, %c0_651] : memref<10x10x64xf32, #tpu.memory_space<vmem>>, vector<1x1x32xf32>
    %1031 = vector.shape_cast %1030 : vector<1x1x32xf32> to vector<1x32xf32>
    %c9_652 = arith.constant 9 : index
    %c3_653 = arith.constant 3 : index
    %c0_654 = arith.constant 0 : index
    %1032 = vector.load %arg9[%c9_652, %c3_653, %c0_654] : memref<10x10x64xf32, #tpu.memory_space<vmem>>, vector<1x1x32xf32>
    %1033 = vector.shape_cast %1032 : vector<1x1x32xf32> to vector<1x32xf32>
    %c9_655 = arith.constant 9 : index
    %c4_656 = arith.constant 4 : index
    %c0_657 = arith.constant 0 : index
    %1034 = vector.load %arg9[%c9_655, %c4_656, %c0_657] : memref<10x10x64xf32, #tpu.memory_space<vmem>>, vector<1x1x64xf32>
    %1035 = vector.shape_cast %1034 : vector<1x1x64xf32> to vector<1x64xf32>
    %c9_658 = arith.constant 9 : index
    %c5_659 = arith.constant 5 : index
    %c0_660 = arith.constant 0 : index
    %1036 = vector.load %arg9[%c9_658, %c5_659, %c0_660] : memref<10x10x64xf32, #tpu.memory_space<vmem>>, vector<1x1x32xf32>
    %1037 = vector.shape_cast %1036 : vector<1x1x32xf32> to vector<1x32xf32>
    %c9_661 = arith.constant 9 : index
    %c6_662 = arith.constant 6 : index
    %c0_663 = arith.constant 0 : index
    %1038 = vector.load %arg9[%c9_661, %c6_662, %c0_663] : memref<10x10x64xf32, #tpu.memory_space<vmem>>, vector<1x1x32xf32>
    %1039 = vector.shape_cast %1038 : vector<1x1x32xf32> to vector<1x32xf32>
    %c9_664 = arith.constant 9 : index
    %c7_665 = arith.constant 7 : index
    %c0_666 = arith.constant 0 : index
    %1040 = vector.load %arg9[%c9_664, %c7_665, %c0_666] : memref<10x10x64xf32, #tpu.memory_space<vmem>>, vector<1x1x32xf32>
    %1041 = vector.shape_cast %1040 : vector<1x1x32xf32> to vector<1x32xf32>
    %c9_667 = arith.constant 9 : index
    %c8_668 = arith.constant 8 : index
    %c0_669 = arith.constant 0 : index
    %1042 = vector.load %arg9[%c9_667, %c8_668, %c0_669] : memref<10x10x64xf32, #tpu.memory_space<vmem>>, vector<1x1x32xf32>
    %1043 = vector.shape_cast %1042 : vector<1x1x32xf32> to vector<1x32xf32>
    %c9_670 = arith.constant 9 : index
    %c9_671 = arith.constant 9 : index
    %c0_672 = arith.constant 0 : index
    %1044 = vector.load %arg9[%c9_670, %c9_671, %c0_672] : memref<10x10x64xf32, #tpu.memory_space<vmem>>, vector<1x1x32xf32>
    %1045 = vector.shape_cast %1044 : vector<1x1x32xf32> to vector<1x32xf32>
    %cst_673 = arith.constant dense<0.000000e+00> : vector<16x32xf32>
    %1046 = tpu.matmul %1013, %1015, %cst_673 {dimension_numbers = #tpu.dot_dimension_numbers<[1], [0], [0], [1], [0, 0, 1, 1], [], []>} : vector<16x32xf32>, vector<32x32xf32>, vector<16x32xf32> -> vector<16x32xf32>
    %1047 = vector.broadcast %1027 : vector<1x32xf32> to vector<16x32xf32>
    %1048 = arith.addf %1046, %1047 : vector<16x32xf32>
    %cst_674 = arith.constant dense<0.000000e+00> : vector<16x32xf32>
    %1049 = tpu.matmul %1013, %1017, %cst_674 {dimension_numbers = #tpu.dot_dimension_numbers<[1], [0], [0], [1], [0, 0, 1, 1], [], []>} : vector<16x32xf32>, vector<32x32xf32>, vector<16x32xf32> -> vector<16x32xf32>
    %1050 = vector.broadcast %1029 : vector<1x32xf32> to vector<16x32xf32>
    %1051 = arith.addf %1049, %1050 : vector<16x32xf32>
    %cst_675 = arith.constant dense<0.000000e+00> : vector<16x32xf32>
    %1052 = tpu.matmul %1013, %1019, %cst_675 {dimension_numbers = #tpu.dot_dimension_numbers<[1], [0], [0], [1], [0, 0, 1, 1], [], []>} : vector<16x32xf32>, vector<32x32xf32>, vector<16x32xf32> -> vector<16x32xf32>
    %1053 = vector.broadcast %1031 : vector<1x32xf32> to vector<16x32xf32>
    %1054 = arith.addf %1052, %1053 : vector<16x32xf32>
    %cst_676 = arith.constant dense<0.000000e+00> : vector<16x16xf32>
    %1055 = tpu.matmul %1048, %1051, %cst_676 {dimension_numbers = #tpu.dot_dimension_numbers<[1], [1], [0], [0], [0, 0, 1, 0], [], []>} : vector<16x32xf32>, vector<16x32xf32>, vector<16x16xf32> -> vector<16x16xf32>
    %cst_677 = arith.constant 0.176776692 : f32
    %1056 = vector.broadcast %cst_677 : f32 to vector<16x16xf32>
    %1057 = arith.mulf %1055, %1056 : vector<16x16xf32>
    %cst_678 = arith.constant dense<0xFF800000> : vector<16xf32>
    %1058 = vector.multi_reduction <maximumf>, %1057, %cst_678 [1] : vector<16x16xf32> to vector<16xf32>
    %1059 = vector.shape_cast %1058 : vector<16xf32> to vector<16x1xf32>
    %1060 = vector.broadcast %1059 : vector<16x1xf32> to vector<16x16xf32>
    %1061 = arith.subf %1057, %1060 : vector<16x16xf32>
    %1062 = math.exp %1061 : vector<16x16xf32>
    %cst_679 = arith.constant dense<0.000000e+00> : vector<16xf32>
    %1063 = vector.multi_reduction <add>, %1062, %cst_679 [1] : vector<16x16xf32> to vector<16xf32>
    %1064 = vector.shape_cast %1063 : vector<16xf32> to vector<16x1xf32>
    %1065 = tpu.reciprocal %1064 {approx = true} : vector<16x1xf32> -> vector<16x1xf32>
    %1066 = vector.broadcast %1065 : vector<16x1xf32> to vector<16x16xf32>
    %1067 = arith.mulf %1062, %1066 : vector<16x16xf32>
    %cst_680 = arith.constant dense<0.000000e+00> : vector<16x32xf32>
    %1068 = tpu.matmul %1067, %1054, %cst_680 {dimension_numbers = #tpu.dot_dimension_numbers<[1], [0], [0], [1], [0, 0, 1, 1], [], []>} : vector<16x16xf32>, vector<16x32xf32>, vector<16x32xf32> -> vector<16x32xf32>
    %cst_681 = arith.constant dense<0.000000e+00> : vector<16x32xf32>
    %1069 = tpu.matmul %1068, %1021, %cst_681 {dimension_numbers = #tpu.dot_dimension_numbers<[1], [0], [0], [1], [0, 0, 1, 1], [], []>} : vector<16x32xf32>, vector<32x32xf32>, vector<16x32xf32> -> vector<16x32xf32>
    %1070 = vector.broadcast %1033 : vector<1x32xf32> to vector<16x32xf32>
    %1071 = arith.addf %1069, %1070 : vector<16x32xf32>
    %1072 = arith.addf %1013, %1071 : vector<16x32xf32>
    %cst_682 = arith.constant dense<0.000000e+00> : vector<16xf32>
    %1073 = vector.multi_reduction <add>, %1072, %cst_682 [1] : vector<16x32xf32> to vector<16xf32>
    %1074 = vector.shape_cast %1073 : vector<16xf32> to vector<16x1xf32>
    %cst_683 = arith.constant 3.200000e+01 : f32
    %1075 = vector.broadcast %cst_683 : f32 to vector<16x1xf32>
    %1076 = arith.divf %1074, %1075 : vector<16x1xf32>
    %1077 = vector.broadcast %1076 : vector<16x1xf32> to vector<16x32xf32>
    %1078 = arith.subf %1072, %1077 : vector<16x32xf32>
    %1079 = arith.mulf %1078, %1078 : vector<16x32xf32>
    %cst_684 = arith.constant dense<0.000000e+00> : vector<16xf32>
    %1080 = vector.multi_reduction <add>, %1079, %cst_684 [1] : vector<16x32xf32> to vector<16xf32>
    %1081 = vector.shape_cast %1080 : vector<16xf32> to vector<16x1xf32>
    %cst_685 = arith.constant 3.200000e+01 : f32
    %1082 = vector.broadcast %cst_685 : f32 to vector<16x1xf32>
    %1083 = arith.divf %1081, %1082 : vector<16x1xf32>
    %1084 = vector.broadcast %1076 : vector<16x1xf32> to vector<16x32xf32>
    %1085 = arith.subf %1072, %1084 : vector<16x32xf32>
    %cst_686 = arith.constant 9.99999974E-6 : f32
    %1086 = vector.broadcast %cst_686 : f32 to vector<16x1xf32>
    %1087 = arith.addf %1083, %1086 : vector<16x1xf32>
    %1088 = math.rsqrt %1087 : vector<16x1xf32>
    %1089 = vector.broadcast %1088 : vector<16x1xf32> to vector<16x32xf32>
    %1090 = arith.mulf %1085, %1089 : vector<16x32xf32>
    %1091 = vector.broadcast %1039 : vector<1x32xf32> to vector<16x32xf32>
    %1092 = arith.mulf %1090, %1091 : vector<16x32xf32>
    %1093 = vector.broadcast %1041 : vector<1x32xf32> to vector<16x32xf32>
    %1094 = arith.addf %1092, %1093 : vector<16x32xf32>
    %cst_687 = arith.constant dense<0.000000e+00> : vector<16x64xf32>
    %1095 = tpu.matmul %1094, %1023, %cst_687 {dimension_numbers = #tpu.dot_dimension_numbers<[1], [0], [0], [1], [0, 0, 1, 1], [], []>} : vector<16x32xf32>, vector<32x64xf32>, vector<16x64xf32> -> vector<16x64xf32>
    %1096 = vector.broadcast %1035 : vector<1x64xf32> to vector<16x64xf32>
    %1097 = arith.addf %1095, %1096 : vector<16x64xf32>
    %cst_688 = arith.constant 0.000000e+00 : f32
    %1098 = vector.broadcast %cst_688 : f32 to vector<16x64xf32>
    %1099 = arith.maximumf %1097, %1098 : vector<16x64xf32>
    %cst_689 = arith.constant dense<0.000000e+00> : vector<16x32xf32>
    %1100 = tpu.matmul %1099, %1025, %cst_689 {dimension_numbers = #tpu.dot_dimension_numbers<[1], [0], [0], [1], [0, 0, 1, 1], [], []>} : vector<16x64xf32>, vector<64x32xf32>, vector<16x32xf32> -> vector<16x32xf32>
    %1101 = vector.broadcast %1037 : vector<1x32xf32> to vector<16x32xf32>
    %1102 = arith.addf %1100, %1101 : vector<16x32xf32>
    %1103 = arith.addf %1094, %1102 : vector<16x32xf32>
    %cst_690 = arith.constant dense<0.000000e+00> : vector<16xf32>
    %1104 = vector.multi_reduction <add>, %1103, %cst_690 [1] : vector<16x32xf32> to vector<16xf32>
    %1105 = vector.shape_cast %1104 : vector<16xf32> to vector<16x1xf32>
    %cst_691 = arith.constant 3.200000e+01 : f32
    %1106 = vector.broadcast %cst_691 : f32 to vector<16x1xf32>
    %1107 = arith.divf %1105, %1106 : vector<16x1xf32>
    %1108 = vector.broadcast %1107 : vector<16x1xf32> to vector<16x32xf32>
    %1109 = arith.subf %1103, %1108 : vector<16x32xf32>
    %1110 = arith.mulf %1109, %1109 : vector<16x32xf32>
    %cst_692 = arith.constant dense<0.000000e+00> : vector<16xf32>
    %1111 = vector.multi_reduction <add>, %1110, %cst_692 [1] : vector<16x32xf32> to vector<16xf32>
    %1112 = vector.shape_cast %1111 : vector<16xf32> to vector<16x1xf32>
    %cst_693 = arith.constant 3.200000e+01 : f32
    %1113 = vector.broadcast %cst_693 : f32 to vector<16x1xf32>
    %1114 = arith.divf %1112, %1113 : vector<16x1xf32>
    %1115 = vector.broadcast %1107 : vector<16x1xf32> to vector<16x32xf32>
    %1116 = arith.subf %1103, %1115 : vector<16x32xf32>
    %cst_694 = arith.constant 9.99999974E-6 : f32
    %1117 = vector.broadcast %cst_694 : f32 to vector<16x1xf32>
    %1118 = arith.addf %1114, %1117 : vector<16x1xf32>
    %1119 = math.rsqrt %1118 : vector<16x1xf32>
    %1120 = vector.broadcast %1119 : vector<16x1xf32> to vector<16x32xf32>
    %1121 = arith.mulf %1116, %1120 : vector<16x32xf32>
    %1122 = vector.broadcast %1043 : vector<1x32xf32> to vector<16x32xf32>
    %1123 = arith.mulf %1121, %1122 : vector<16x32xf32>
    %1124 = vector.broadcast %1045 : vector<1x32xf32> to vector<16x32xf32>
    %1125 = arith.addf %1123, %1124 : vector<16x32xf32>
    %c0_695 = arith.constant 0 : index
    %c0_696 = arith.constant 0 : index
    %c0_697 = arith.constant 0 : index
    %1126 = vector.load %arg10[%c0_695, %c0_696, %c0_697] : memref<1x16x32xf32, #tpu.memory_space<vmem>>, vector<1x16x32xf32>
    %1127 = vector.shape_cast %1126 : vector<1x16x32xf32> to vector<16x32xf32>
    %1128 = vector.shape_cast %1125 : vector<16x32xf32> to vector<1x16x32xf32>
    tpu.vector_store %arg10[%c0_695, %c0_696, %c0_697], %1128 {strides = array<i32>} : memref<1x16x32xf32, #tpu.memory_space<vmem>>, vector<1x16x32xf32>,
    return
  }
  func.func @transform_0(%arg0: i32) -> (i32, i32, i32) {
    %c0_i32 = arith.constant 0 : i32
    %c0_i32_0 = arith.constant 0 : i32
    %c0_i32_1 = arith.constant 0 : i32
    return %arg0, %c0_i32, %c0_i32_0 : i32, i32, i32
  }
  func.func @transform_1(%arg0: i32) -> (i32, i32) {
    %c0_i32 = arith.constant 0 : i32
    %c0_i32_0 = arith.constant 0 : i32
    %c0_i32_1 = arith.constant 0 : i32
    return %c0_i32, %c0_i32_0 : i32, i32
  }
  func.func @transform_2(%arg0: i32) -> (i32, i32, i32) {
    %c0_i32 = arith.constant 0 : i32
    %c0_i32_0 = arith.constant 0 : i32
    %c0_i32_1 = arith.constant 0 : i32
    %c0_i32_2 = arith.constant 0 : i32
    return %c0_i32, %c0_i32_0, %c0_i32_1 : i32, i32, i32
  }
  func.func @transform_3(%arg0: i32) -> (i32, i32, i32) {
    %c0_i32 = arith.constant 0 : i32
    %c0_i32_0 = arith.constant 0 : i32
    %c0_i32_1 = arith.constant 0 : i32
    %c0_i32_2 = arith.constant 0 : i32
    return %c0_i32, %c0_i32_0, %c0_i32_1 : i32, i32, i32
  }
  func.func @transform_4(%arg0: i32) -> (i32, i32, i32) {
    %c0_i32 = arith.constant 0 : i32
    %c0_i32_0 = arith.constant 0 : i32
    %c0_i32_1 = arith.constant 0 : i32
    %c0_i32_2 = arith.constant 0 : i32
    return %c0_i32, %c0_i32_0, %c0_i32_1 : i32, i32, i32
  }
  func.func @transform_5(%arg0: i32) -> (i32, i32, i32) {
    %c0_i32 = arith.constant 0 : i32
    %c0_i32_0 = arith.constant 0 : i32
    %c0_i32_1 = arith.constant 0 : i32
    %c0_i32_2 = arith.constant 0 : i32
    return %c0_i32, %c0_i32_0, %c0_i32_1 : i32, i32, i32
  }
  func.func @transform_6(%arg0: i32) -> (i32, i32, i32) {
    %c0_i32 = arith.constant 0 : i32
    %c0_i32_0 = arith.constant 0 : i32
    %c0_i32_1 = arith.constant 0 : i32
    %c0_i32_2 = arith.constant 0 : i32
    return %c0_i32, %c0_i32_0, %c0_i32_1 : i32, i32, i32
  }
  func.func @transform_7(%arg0: i32) -> (i32, i32, i32) {
    %c0_i32 = arith.constant 0 : i32
    %c0_i32_0 = arith.constant 0 : i32
    %c0_i32_1 = arith.constant 0 : i32
    %c0_i32_2 = arith.constant 0 : i32
    return %c0_i32, %c0_i32_0, %c0_i32_1 : i32, i32, i32
  }
  func.func @transform_8(%arg0: i32) -> (i32, i32, i32) {
    %c0_i32 = arith.constant 0 : i32
    %c0_i32_0 = arith.constant 0 : i32
    %c0_i32_1 = arith.constant 0 : i32
    %c0_i32_2 = arith.constant 0 : i32
    return %c0_i32, %c0_i32_0, %c0_i32_1 : i32, i32, i32
  }
  func.func @transform_9(%arg0: i32) -> (i32, i32, i32) {
    %c0_i32 = arith.constant 0 : i32
    %c0_i32_0 = arith.constant 0 : i32
    %c0_i32_1 = arith.constant 0 : i32
    return %arg0, %c0_i32, %c0_i32_0 : i32, i32, i32
  }
}

</mosaic_0001>

<llo_original>
// kernel: transformer_forward.1
$region0: #{transformer_forward.1}
  #allocation0 [shape = 'u32[]', space=smem, size = 0x4, offset = 0x4, fixed_abs, tag = 'smem constant byte address 0x4 - core index']
  #allocation1 [shape = 'u32[144,128]{1,0:T(1,128)}', space=vmem, size = 0x12000, scoped, tag = 'internal scratch']
  %s0 = inlined_call_operand.vmem [shape: f32[2,16,32], index: 0, kind: input, shape index: {}]
  %s1 = inlined_call_operand.vmem [shape: f32[16,32], index: 1, kind: input, shape index: {}]
  %s2 = inlined_call_operand.vmem [shape: f32[10,32,32], index: 2, kind: input, shape index: {}]
  %s3 = inlined_call_operand.vmem [shape: f32[10,32,32], index: 3, kind: input, shape index: {}]
  %s4 = inlined_call_operand.vmem [shape: f32[10,32,32], index: 4, kind: input, shape index: {}]
  %s5 = inlined_call_operand.vmem [shape: f32[10,32,32], index: 5, kind: input, shape index: {}]
  %s6 = inlined_call_operand.vmem [shape: f32[10,32,64], index: 6, kind: input, shape index: {}]
  %s7 = inlined_call_operand.vmem [shape: f32[10,64,32], index: 7, kind: input, shape index: {}]
  %s8 = inlined_call_operand.vmem [shape: f32[10,10,64], index: 8, kind: input, shape index: {}]
  %s9 = inlined_call_operand.hbm [shape: f32[2,16,32], index: 9, kind: output, shape index: {}]
  %s10 = sld [smem:[#allocation0]]
  $region69: #{transformer_forward.1} parent=0
    _
  %s12 = ssub.s32 1, %s10
  %s13 = scalar_select 0, %s12, %s10
  $region1: #{transformer_forward.1} parent=0
    #allocation2 [shape = 'u8[16384]{0}', space=vmem, size = 0x4000, scoped, tag = 'output window, operand 0']
    #allocation3 [shape = 's32[2]{0}', space=sflag, size = 0x8, scoped, tag = 'scoped memory for transformer_forward.1']
    %14 = vsyncpa [#allocation3], 0
    %s15 = scalar_lea.sflag [#allocation3], 1
    %16 = vsyncpa %s15, 0
    loop: start=0, step=1, limit=4
    $region2: #{transformer_forward.1} parent=1 // loop_pre_header
      _
    $region3: #{transformer_forward.1} parent=1 // loop_header
      %s18 = sphi 0, %s22
      %p19 = scmp.ge.s32.totalorder %s18, 4
      %s28 = sphi 0, %s30
      %s31 = sphi 0, %s28
      %s32 = sphi 0, %s31
      %s48 = sphi 0, %s32
      %s52 = sphi 0, %s52
      %s54 = sphi 0, %s52
      %s55 = sphi 0, %s54
      %s69 = sphi 0, %s55
      %s73 = sphi 0, %s73
      %s75 = sphi 0, %s73
      %s76 = sphi 0, %s75
      %s90 = sphi 0, %s76
      %s94 = sphi 0, %s94
      %s96 = sphi 0, %s94
      %s97 = sphi 0, %s96
      %s111 = sphi 0, %s97
      %s115 = sphi 0, %s115
      %s117 = sphi 0, %s115
      %s118 = sphi 0, %s117
      %s132 = sphi 0, %s118
      %s136 = sphi 0, %s136
      %s138 = sphi 0, %s136
      %s139 = sphi 0, %s138
      %s153 = sphi 0, %s139
      %s157 = sphi 0, %s157
      %s159 = sphi 0, %s157
      %s160 = sphi 0, %s159
      %s174 = sphi 0, %s160
      %s178 = sphi 0, %s178
      %s180 = sphi 0, %s178
      %s181 = sphi 0, %s180
      %s195 = sphi 0, %s181
      %s199 = sphi 0, %s199
      %s201 = sphi 0, %s199
      %s202 = sphi 0, %s201
      %s216 = sphi 0, %s202
      %s222 = sphi 0, %s224
      %s225 = sphi 0, %s222
      %s226 = sphi 0, %s225
      %s242 = sphi 0, %s226
    $region4: #{transformer_forward.1} parent=1 // loop_header_branch
      %21 = sbr.rel (%p19) target = $region8
    $region5: #{transformer_forward.1} parent=1 // loop_body
      %s23 = ssub.s32 %s18, 1
      %s24 = ssub.s32 %s18, 2
      %s25 = sadd.s32 %s18, 1
      %s26 = ssub.s32 %s18, %s25
      %p27 = scmp.eq.s32.totalorder %s26, 0
      %s29 = sadd.s32 %s28, 1
      %s30 = scalar_select %p27, %s28, %s29
      %p33 = pneg %p27
      %p34 = scmp.eq.s32.totalorder %s18, 1
      %p35 = por %p33, %p34
      %p36 = scmp.ne.s32.totalorder %s28, %s31
      %p37 = scmp.eq.s32.totalorder %s18, 0
      %p38 = por %p36, %p37
      %p39 = scmp.ne.s32.totalorder %s28, %s31
      %p40 = scmp.eq.s32.totalorder %s23, 1
      %p41 = por %p39, %p40
      %p42 = scmp.ne.s32.totalorder %s31, %s32
      %p43 = scmp.eq.s32.totalorder %s23, 0
      %p44 = por %p42, %p43
      %p45 = scmp.ne.s32.totalorder %s31, %s32
      %p46 = scmp.eq.s32.totalorder %s24, 1
      %p47 = por %p45, %p46
      %p49 = scmp.ne.s32.totalorder %s32, %s48
      %p50 = scmp.eq.s32.totalorder %s24, 0
      %p51 = por %p49, %p50
      %s53 = sadd.s32 %s52, 1
      %p56 = scmp.eq.s32.totalorder %s18, 1
      %p57 = scmp.ne.s32.totalorder %s52, %s54
      %p58 = scmp.eq.s32.totalorder %s18, 0
      %p59 = por %p57, %p58
      %p60 = scmp.ne.s32.totalorder %s52, %s54
      %p61 = scmp.eq.s32.totalorder %s23, 1
      %p62 = por %p60, %p61
      %p63 = scmp.ne.s32.totalorder %s54, %s55
      %p64 = scmp.eq.s32.totalorder %s23, 0
      %p65 = por %p63, %p64
      %p66 = scmp.ne.s32.totalorder %s54, %s55
      %p67 = scmp.eq.s32.totalorder %s24, 1
      %p68 = por %p66, %p67
      %p70 = scmp.ne.s32.totalorder %s55, %s69
      %p71 = scmp.eq.s32.totalorder %s24, 0
      %p72 = por %p70, %p71
      %s74 = sadd.s32 %s73, 1
      %p77 = scmp.eq.s32.totalorder %s18, 1
      %p78 = scmp.ne.s32.totalorder %s73, %s75
      %p79 = scmp.eq.s32.totalorder %s18, 0
      %p80 = por %p78, %p79
      %p81 = scmp.ne.s32.totalorder %s73, %s75
      %p82 = scmp.eq.s32.totalorder %s23, 1
      %p83 = por %p81, %p82
      %p84 = scmp.ne.s32.totalorder %s75, %s76
      %p85 = scmp.eq.s32.totalorder %s23, 0
      %p86 = por %p84, %p85
      %p87 = scmp.ne.s32.totalorder %s75, %s76
      %p88 = scmp.eq.s32.totalorder %s24, 1
      %p89 = por %p87, %p88
      %p91 = scmp.ne.s32.totalorder %s76, %s90
      %p92 = scmp.eq.s32.totalorder %s24, 0
      %p93 = por %p91, %p92
      %s95 = sadd.s32 %s94, 1
      %p98 = scmp.eq.s32.totalorder %s18, 1
      %p99 = scmp.ne.s32.totalorder %s94, %s96
      %p100 = scmp.eq.s32.totalorder %s18, 0
      %p101 = por %p99, %p100
      %p102 = scmp.ne.s32.totalorder %s94, %s96
      %p103 = scmp.eq.s32.totalorder %s23, 1
      %p104 = por %p102, %p103
      %p105 = scmp.ne.s32.totalorder %s96, %s97
      %p106 = scmp.eq.s32.totalorder %s23, 0
      %p107 = por %p105, %p106
      %p108 = scmp.ne.s32.totalorder %s96, %s97
      %p109 = scmp.eq.s32.totalorder %s24, 1
      %p110 = por %p108, %p109
      %p112 = scmp.ne.s32.totalorder %s97, %s111
      %p113 = scmp.eq.s32.totalorder %s24, 0
      %p114 = por %p112, %p113
      %s116 = sadd.s32 %s115, 1
      %p119 = scmp.eq.s32.totalorder %s18, 1
      %p120 = scmp.ne.s32.totalorder %s115, %s117
      %p121 = scmp.eq.s32.totalorder %s18, 0
      %p122 = por %p120, %p121
      %p123 = scmp.ne.s32.totalorder %s115, %s117
      %p124 = scmp.eq.s32.totalorder %s23, 1
      %p125 = por %p123, %p124
      %p126 = scmp.ne.s32.totalorder %s117, %s118
      %p127 = scmp.eq.s32.totalorder %s23, 0
      %p128 = por %p126, %p127
      %p129 = scmp.ne.s32.totalorder %s117, %s118
      %p130 = scmp.eq.s32.totalorder %s24, 1
      %p131 = por %p129, %p130
      %p133 = scmp.ne.s32.totalorder %s118, %s132
      %p134 = scmp.eq.s32.totalorder %s24, 0
      %p135 = por %p133, %p134
      %s137 = sadd.s32 %s136, 1
      %p140 = scmp.eq.s32.totalorder %s18, 1
      %p141 = scmp.ne.s32.totalorder %s136, %s138
      %p142 = scmp.eq.s32.totalorder %s18, 0
      %p143 = por %p141, %p142
      %p144 = scmp.ne.s32.totalorder %s136, %s138
      %p145 = scmp.eq.s32.totalorder %s23, 1
      %p146 = por %p144, %p145
      %p147 = scmp.ne.s32.totalorder %s138, %s139
      %p148 = scmp.eq.s32.totalorder %s23, 0
      %p149 = por %p147, %p148
      %p150 = scmp.ne.s32.totalorder %s138, %s139
      %p151 = scmp.eq.s32.totalorder %s24, 1
      %p152 = por %p150, %p151
      %p154 = scmp.ne.s32.totalorder %s139, %s153
      %p155 = scmp.eq.s32.totalorder %s24, 0
      %p156 = por %p154, %p155
      %s158 = sadd.s32 %s157, 1
      %p161 = scmp.eq.s32.totalorder %s18, 1
      %p162 = scmp.ne.s32.totalorder %s157, %s159
      %p163 = scmp.eq.s32.totalorder %s18, 0
      %p164 = por %p162, %p163
      %p165 = scmp.ne.s32.totalorder %s157, %s159
      %p166 = scmp.eq.s32.totalorder %s23, 1
      %p167 = por %p165, %p166
      %p168 = scmp.ne.s32.totalorder %s159, %s160
      %p169 = scmp.eq.s32.totalorder %s23, 0
      %p170 = por %p168, %p169
      %p171 = scmp.ne.s32.totalorder %s159, %s160
      %p172 = scmp.eq.s32.totalorder %s24, 1
      %p173 = por %p171, %p172
      %p175 = scmp.ne.s32.totalorder %s160, %s174
      %p176 = scmp.eq.s32.totalorder %s24, 0
      %p177 = por %p175, %p176
      %s179 = sadd.s32 %s178, 1
      %p182 = scmp.eq.s32.totalorder %s18, 1
      %p183 = scmp.ne.s32.totalorder %s178, %s180
      %p184 = scmp.eq.s32.totalorder %s18, 0
      %p185 = por %p183, %p184
      %p186 = scmp.ne.s32.totalorder %s178, %s180
      %p187 = scmp.eq.s32.totalorder %s23, 1
      %p188 = por %p186, %p187
      %p189 = scmp.ne.s32.totalorder %s180, %s181
      %p190 = scmp.eq.s32.totalorder %s23, 0
      %p191 = por %p189, %p190
      %p192 = scmp.ne.s32.totalorder %s180, %s181
      %p193 = scmp.eq.s32.totalorder %s24, 1
      %p194 = por %p192, %p193
      %p196 = scmp.ne.s32.totalorder %s181, %s195
      %p197 = scmp.eq.s32.totalorder %s24, 0
      %p198 = por %p196, %p197
      %s200 = sadd.s32 %s199, 1
      %p203 = scmp.eq.s32.totalorder %s18, 1
      %p204 = scmp.ne.s32.totalorder %s199, %s201
      %p205 = scmp.eq.s32.totalorder %s18, 0
      %p206 = por %p204, %p205
      %p207 = scmp.ne.s32.totalorder %s199, %s201
      %p208 = scmp.eq.s32.totalorder %s23, 1
      %p209 = por %p207, %p208
      %p210 = scmp.ne.s32.totalorder %s201, %s202
      %p211 = scmp.eq.s32.totalorder %s23, 0
      %p212 = por %p210, %p211
      %p213 = scmp.ne.s32.totalorder %s201, %s202
      %p214 = scmp.eq.s32.totalorder %s24, 1
      %p215 = por %p213, %p214
      %p217 = scmp.ne.s32.totalorder %s202, %s216
      %p218 = scmp.eq.s32.totalorder %s24, 0
      %p219 = por %p217, %p218
      %s220 = ssub.s32 %s18, %s25
      %p221 = scmp.eq.s32.totalorder %s220, 0
      %s223 = sadd.s32 %s222, 1
      %s224 = scalar_select %p221, %s222, %s223
      %p227 = pneg %p221
      %p228 = scmp.eq.s32.totalorder %s18, 1
      %p229 = por %p227, %p228
      %p230 = scmp.ne.s32.totalorder %s222, %s225
      %p231 = scmp.eq.s32.totalorder %s18, 0
      %p232 = por %p230, %p231
      %p233 = scmp.ne.s32.totalorder %s222, %s225
      %p234 = scmp.eq.s32.totalorder %s23, 1
      %p235 = por %p233, %p234
      %p236 = scmp.ne.s32.totalorder %s225, %s226
      %p237 = scmp.eq.s32.totalorder %s23, 0
      %p238 = por %p236, %p237
      %p239 = scmp.ne.s32.totalorder %s225, %s226
      %p240 = scmp.eq.s32.totalorder %s24, 1
      %p241 = por %p239, %p240
      %p243 = scmp.ne.s32.totalorder %s226, %s242
      %p244 = scmp.eq.s32.totalorder %s24, 0
      %p245 = por %p243, %p244
      %p246 = scmp.le.s32.totalorder 1, %s18
      %p247 = scmp.lt.s32.totalorder %s18, 3
      %p248 = pnand %p246, %p247
      %p249 = pneg %p248
      // Predicated region
      $region9: #{transformer_forward.1} parent=5 // pred_check
        _
      $region10: #{transformer_forward.1} parent=5 // pred_check_branch
        %251 = sbr.rel (%p248) target = $region12
      $region11: #{transformer_forward.1} parent=5 // pred_region
        %s252 = ssub.s32 %s18, 1
        // Predicated region
        $region13: #{transformer_forward.1} parent=11 // pred_check
          %p253 = pneg %p65
        $region14: #{transformer_forward.1} parent=11 // pred_check_branch
          %255 = sbr.rel (%p253) target = $region16
        $region15: #{transformer_forward.1} parent=11 // pred_region
          _
        $region16: #{transformer_forward.1} parent=11 // pred_fallthru
          _
        // Predicated region
        $region17: #{transformer_forward.1} parent=11 // pred_check
          %p256 = pneg %p86
        $region18: #{transformer_forward.1} parent=11 // pred_check_branch
          %258 = sbr.rel (%p256) target = $region20
        $region19: #{transformer_forward.1} parent=11 // pred_region
          _
        $region20: #{transformer_forward.1} parent=11 // pred_fallthru
          _
        // Predicated region
        $region21: #{transformer_forward.1} parent=11 // pred_check
          %p259 = pneg %p107
        $region22: #{transformer_forward.1} parent=11 // pred_check_branch
          %261 = sbr.rel (%p259) target = $region24
        $region23: #{transformer_forward.1} parent=11 // pred_region
          _
        $region24: #{transformer_forward.1} parent=11 // pred_fallthru
          _
        // Predicated region
        $region25: #{transformer_forward.1} parent=11 // pred_check
          %p262 = pneg %p128
        $region26: #{transformer_forward.1} parent=11 // pred_check_branch
          %264 = sbr.rel (%p262) target = $region28
        $region27: #{transformer_forward.1} parent=11 // pred_region
          _
        $region28: #{transformer_forward.1} parent=11 // pred_fallthru
          _
        // Predicated region
        $region29: #{transformer_forward.1} parent=11 // pred_check
          %p265 = pneg %p149
        $region30: #{transformer_forward.1} parent=11 // pred_check_branch
          %267 = sbr.rel (%p265) target = $region32
        $region31: #{transformer_forward.1} parent=11 // pred_region
          _
        $region32: #{transformer_forward.1} parent=11 // pred_fallthru
          _
        // Predicated region
        $region33: #{transformer_forward.1} parent=11 // pred_check
          %p268 = pneg %p170
        $region34: #{transformer_forward.1} parent=11 // pred_check_branch
          %270 = sbr.rel (%p268) target = $region36
        $region35: #{transformer_forward.1} parent=11 // pred_region
          _
        $region36: #{transformer_forward.1} parent=11 // pred_fallthru
          _
        // Predicated region
        $region37: #{transformer_forward.1} parent=11 // pred_check
          %p271 = pneg %p191
        $region38: #{transformer_forward.1} parent=11 // pred_check_branch
          %273 = sbr.rel (%p271) target = $region40
        $region39: #{transformer_forward.1} parent=11 // pred_region
          _
        $region40: #{transformer_forward.1} parent=11 // pred_fallthru
          _
        // Predicated region
        $region41: #{transformer_forward.1} parent=11 // pred_check
          %p274 = pneg %p212
        $region42: #{transformer_forward.1} parent=11 // pred_check_branch
          %276 = sbr.rel (%p274) target = $region44
        $region43: #{transformer_forward.1} parent=11 // pred_region
          _
        $region44: #{transformer_forward.1} parent=11 // pred_fallthru
          _
      $region12: #{transformer_forward.1} parent=5 // pred_fallthru
        _
      %p277 = scmp.lt.s32.totalorder %s18, 2
      // Predicated region
      $region45: #{transformer_forward.1} parent=5 // pred_check
        %p278 = pneg %p277
      $region46: #{transformer_forward.1} parent=5 // pred_check_branch
        %280 = sbr.rel (%p278) target = $region48
      $region47: #{transformer_forward.1} parent=5 // pred_region
        // Predicated region
        $region49: #{transformer_forward.1} parent=47 // pred_check
          %p281 = pneg %p38
        $region50: #{transformer_forward.1} parent=47 // pred_check_branch
          %283 = sbr.rel (%p281) target = $region52
        $region51: #{transformer_forward.1} parent=47 // pred_region
          %p284 = scmp.lt.s32.totalorder %s18, 1
          %s285 = scalar_select %p284, %s18, 1
          %s286 = smul.addr %s285, 2
          %s287 = smul.addr %s286, 8
          %s288 = scalar_lea.vmem %s0, %s287
        $region52: #{transformer_forward.1} parent=47 // pred_fallthru
          _
      $region48: #{transformer_forward.1} parent=5 // pred_fallthru
        _
      %p289 = scmp.le.s32.totalorder 1, %s18
      %p290 = scmp.lt.s32.totalorder %s18, 3
      %p291 = pnand %p289, %p290
      %p292 = pneg %p291
      // Predicated region
      $region53: #{transformer_forward.1} parent=5 // pred_check
        _
      $region54: #{transformer_forward.1} parent=5 // pred_check_branch
        %294 = sbr.rel (%p291) target = $region56
      $region55: #{transformer_forward.1} parent=5 // pred_region
        %s295 = ssub.s32 %s18, 1
        %p296 = scmp.lt.s32.totalorder %s23, 1
        %s297 = scalar_select %p296, %s23, 1
        %s298 = smul.addr %s297, 2
        %s299 = smul.addr %s298, 8
        %s300 = scalar_lea.vmem %s0, %s299
        %p301 = pneg %p44
        %p302 = pneg %p41
        %p303 = pneg %p65
        %p304 = pneg %p62
        %p305 = pneg %p86
        %p306 = pneg %p83
        %p307 = pneg %p107
        %p308 = pneg %p104
        %p309 = pneg %p128
        %p310 = pneg %p125
        %p311 = pneg %p149
        %p312 = pneg %p146
        %p313 = pneg %p170
        %p314 = pneg %p167
        %p315 = pneg %p191
        %p316 = pneg %p188
        %p317 = pneg %p212
        %p318 = pneg %p209
        %p319 = pneg %p238
        %p320 = pneg %p235
        %s321 = sand.u32 %s225, 1
        %s322 = scalar_lea.sflag [#allocation3], %s321
        %s323 = sand.u32 %s225, 1
        %s324 = smul.addr %s323, 16
        %s325 = scalar_lea.vmem [#allocation2], %s324
        %p326 = scmp.lt.s32.totalorder %s23, 1
        %s327 = scalar_select %p326, %s23, 1
        %s328 = smul.addr %s327, 2
        %s329 = smul.addr %s328, 8
        %s330 = scalar_lea.vmem %s0, %s329
        %v331 = vld [vmem:[%s330] sm:$0xff]
        %v332 = vld [vmem:[%s330 + $0x8] sm:$0xff]
        %v333 = vmul.f32 %v331, 5.656854
        %v334 = vmul.f32 %v332, 5.656854
        %v335 = vld [vmem:[%s1] sm:$0xff]
        %v336 = vld [vmem:[%s1 + $0x8] sm:$0xff]
        %v337 = vadd.f32 %v333, %v335
        %v338 = vadd.f32 %v334, %v336
        %v339 = vld [vmem:[%s2] sm:$0xff]
        %v340 = vld [vmem:[%s2 + $0x8] sm:$0xff]
        %v341 = vld [vmem:[%s2 + $0x10] sm:$0xff]
        %v342 = vld [vmem:[%s2 + $0x18] sm:$0xff]
        %v343 = vld [vmem:[%s3] sm:$0xff]
        %v344 = vld [vmem:[%s3 + $0x8] sm:$0xff]
        %v345 = vld [vmem:[%s3 + $0x10] sm:$0xff]
        %v346 = vld [vmem:[%s3 + $0x18] sm:$0xff]
        %v347 = vld [vmem:[%s4] sm:$0xff]
        %v348 = vld [vmem:[%s4 + $0x8] sm:$0xff]
        %v349 = vld [vmem:[%s4 + $0x10] sm:$0xff]
        %v350 = vld [vmem:[%s4 + $0x18] sm:$0xff]
        %v351 = vld [vmem:[%s5] sm:$0xff]
        %v352 = vld [vmem:[%s5 + $0x8] sm:$0xff]
        %v353 = vld [vmem:[%s5 + $0x10] sm:$0xff]
        %v354 = vld [vmem:[%s5 + $0x18] sm:$0xff]
        %v355 = vld [vmem:[%s6] sm:$0xff]
        %v356 = vld [vmem:[%s6 + $0x8] sm:$0xff]
        %v357 = vld [vmem:[%s6 + $0x10] sm:$0xff]
        %v358 = vld [vmem:[%s6 + $0x18] sm:$0xff]
        %v359 = vld [vmem:[%s7] sm:$0xff]
        %v360 = vld [vmem:[%s7 + $0x8] sm:$0xff]
        %v361 = vld [vmem:[%s7 + $0x10] sm:$0xff]
        %v362 = vld [vmem:[%s7 + $0x18] sm:$0xff]
        %v363 = vld [vmem:[%s7 + $0x20] sm:$0xff]
        %v364 = vld [vmem:[%s7 + $0x28] sm:$0xff]
        %v365 = vld [vmem:[%s7 + $0x30] sm:$0xff]
        %v366 = vld [vmem:[%s7 + $0x38] sm:$0xff]
        %v367 = vld [vmem:[%s8] sm:$0x1]
        %v368 = vld [vmem:[%s8 + $0x1] sm:$0x1]
        %v369 = vld [vmem:[%s8 + $0x2] sm:$0x1]
        %v370 = vld [vmem:[%s8 + $0x3] sm:$0x1]
        %v371 = vld [vmem:[%s8 + $0x4] sm:$0x1]
        %v372 = vld [vmem:[%s8 + $0x5] sm:$0x1]
        %v373 = vld [vmem:[%s8 + $0x6] sm:$0x1]
        %v374 = vld [vmem:[%s8 + $0x7] sm:$0x1]
        %v375 = vld [vmem:[%s8 + $0x8] sm:$0x1]
        %v376 = vld [vmem:[%s8 + $0x9] sm:$0x1]
        %v377 = vlaneseq
        %v378 = vshrl.u32 %v377, 7
        %v379 = vsub.s32 0, %v378
        %v380 = vrot.slane %v367, %v379
        %vm381 = vcmask 261120
        %v383 = vsel %vm381, %v337, 0
        %v386 = vsel %vm381, %v338, 0
        %388 = vmatprep.subr.mxu0 0.0
        %389 = vmatpush1.msra.mxu0 %v339
        %390 = vmatprep.subr.mxu0 0.0
        %391 = vmatpush1.msra.mxu0 %v340
        %392 = vmatprep.subr.mxu0 0.0
        %393 = vmatpush1.msra.mxu0 %v341
        %394 = vmatprep.subr.mxu0 0.0
        %395 = vmatpush1.msra.mxu0 %v342
        %396 = vmatprep.subr.mxu0 0.0
        %397 = vmatpush1.msra.mxu0 0.0
        %398 = vmatprep.subr.mxu0 0.0
        %399 = vmatpush1.msra.mxu0 0.0
        %400 = vmatprep.subr.mxu0 0.0
        %401 = vmatpush1.msra.mxu0 0.0
        %402 = vmatprep.subr.mxu0 0.0
        %403 = vmatpush1.msra.mxu0 0.0
        %404 = vmatprep.subr.mxu0 0.0
        %405 = vmatpush1.msra.mxu0 0.0
        %406 = vmatprep.subr.mxu0 0.0
        %407 = vmatpush1.msra.mxu0 0.0
        %408 = vmatprep.subr.mxu0 0.0
        %409 = vmatpush1.msra.mxu0 0.0
        %410 = vmatprep.subr.mxu0 0.0
        %411 = vmatpush1.msra.mxu0 0.0
        %412 = vmatprep.subr.mxu0 0.0
        %413 = vmatpush1.msra.mxu0 0.0
        %414 = vmatprep.subr.mxu0 0.0
        %415 = vmatpush1.msra.mxu0 0.0
        %416 = vmatprep.subr.mxu0 0.0
        %417 = vmatpush1.msra.mxu0 0.0
        %418 = vmatprep.subr.mxu0 0.0
        %419 = vmatpush1.msra.mxu0 0.0
        %420 = vmatprep.subr.mxu0 0.0
        %421 = vmatpush1.msra.mxu0 0.0
        %422 = vmatprep.subr.mxu0 0.0
        %423 = vmatpush1.msra.mxu0 0.0
        %424 = vmatprep.subr.mxu0 0.0
        %425 = vmatpush1.msra.mxu0 0.0
        %426 = vmatprep.subr.mxu0 0.0
        %427 = vmatpush1.msra.mxu0 0.0
        %428 = vmatprep.subr.mxu0 0.0
        %429 = vmatpush1.msra.mxu0 0.0
        %430 = vmatprep.subr.mxu0 0.0
        %431 = vmatpush1.msra.mxu0 0.0
        %432 = vmatprep.subr.mxu0 0.0
        %433 = vmatpush1.msra.mxu0 0.0
        %434 = vmatprep.subr.mxu0 0.0
        %435 = vmatpush1.msra.mxu0 0.0
        %436 = vmatprep.subr.mxu0 0.0
        %437 = vmatpush1.msra.mxu0 0.0
        %438 = vmatprep.subr.mxu0 0.0
        %439 = vmatpush1.msra.mxu0 0.0
        %440 = vmatprep.subr.mxu0 0.0
        %441 = vmatpush1.msra.mxu0 0.0
        %442 = vmatprep.subr.mxu0 0.0
        %443 = vmatpush1.msra.mxu0 0.0
        %444 = vmatprep.subr.mxu0 0.0
        %445 = vmatpush1.msra.mxu0 0.0
        %446 = vmatprep.subr.mxu0 0.0
        %447 = vmatpush1.msra.mxu0 0.0
        %448 = vmatprep.subr.mxu0 0.0
        %449 = vmatpush1.msra.mxu0 0.0
        %450 = vmatprep.subr.mxu0 0.0
        %451 = vmatpush1.msra.mxu0 0.0
        %452 = vmatprep.mubr.f32.mxu0 0.0
        %453 = vmatmul.mubr.f32.gmra.mrb[0].mxu0 %v383
        %v454 = vpop.f32.mrb[0].mxu0
        %v455 = vadd.f32 %v380, %v454
        %v456 = vpop.f32.mrb[0].mxu0
        %457 = vmatprep.mubr.f32.mxu0 0.0
        %458 = vmatmul.mubr.f32.gmra.mrb[0].mxu0 %v386
        %v459 = vpop.f32.mrb[0].mxu0
        %v460 = vadd.f32 %v380, %v459
        %v461 = vpop.f32.mrb[0].mxu0
        %462 = vdwg.mxu0
        %v463 = vlaneseq
        %v464 = vshrl.u32 %v463, 7
        %v465 = vsub.s32 0, %v464
        %v466 = vrot.slane %v368, %v465
        %467 = vmatprep.subr.mxu0 0.0
        %468 = vmatpush1.msra.mxu0 %v343
        %469 = vmatprep.subr.mxu0 0.0
        %470 = vmatpush1.msra.mxu0 %v344
        %471 = vmatprep.subr.mxu0 0.0
        %472 = vmatpush1.msra.mxu0 %v345
        %473 = vmatprep.subr.mxu0 0.0
        %474 = vmatpush1.msra.mxu0 %v346
        %475 = vmatprep.subr.mxu0 0.0
        %476 = vmatpush1.msra.mxu0 0.0
        %477 = vmatprep.subr.mxu0 0.0
        %478 = vmatpush1.msra.mxu0 0.0
        %479 = vmatprep.subr.mxu0 0.0
        %480 = vmatpush1.msra.mxu0 0.0
        %481 = vmatprep.subr.mxu0 0.0
        %482 = vmatpush1.msra.mxu0 0.0
        %483 = vmatprep.subr.mxu0 0.0
        %484 = vmatpush1.msra.mxu0 0.0
        %485 = vmatprep.subr.mxu0 0.0
        %486 = vmatpush1.msra.mxu0 0.0
        %487 = vmatprep.subr.mxu0 0.0
        %488 = vmatpush1.msra.mxu0 0.0
        %489 = vmatprep.subr.mxu0 0.0
        %490 = vmatpush1.msra.mxu0 0.0
        %491 = vmatprep.subr.mxu0 0.0
        %492 = vmatpush1.msra.mxu0 0.0
        %493 = vmatprep.subr.mxu0 0.0
        %494 = vmatpush1.msra.mxu0 0.0
        %495 = vmatprep.subr.mxu0 0.0
        %496 = vmatpush1.msra.mxu0 0.0
        %497 = vmatprep.subr.mxu0 0.0
        %498 = vmatpush1.msra.mxu0 0.0
        %499 = vmatprep.subr.mxu0 0.0
        %500 = vmatpush1.msra.mxu0 0.0
        %501 = vmatprep.subr.mxu0 0.0
        %502 = vmatpush1.msra.mxu0 0.0
        %503 = vmatprep.subr.mxu0 0.0
        %504 = vmatpush1.msra.mxu0 0.0
        %505 = vmatprep.subr.mxu0 0.0
        %506 = vmatpush1.msra.mxu0 0.0
        %507 = vmatprep.subr.mxu0 0.0
        %508 = vmatpush1.msra.mxu0 0.0
        %509 = vmatprep.subr.mxu0 0.0
        %510 = vmatpush1.msra.mxu0 0.0
        %511 = vmatprep.subr.mxu0 0.0
        %512 = vmatpush1.msra.mxu0 0.0
        %513 = vmatprep.subr.mxu0 0.0
        %514 = vmatpush1.msra.mxu0 0.0
        %515 = vmatprep.subr.mxu0 0.0
        %516 = vmatpush1.msra.mxu0 0.0
        %517 = vmatprep.subr.mxu0 0.0
        %518 = vmatpush1.msra.mxu0 0.0
        %519 = vmatprep.subr.mxu0 0.0
        %520 = vmatpush1.msra.mxu0 0.0
        %521 = vmatprep.subr.mxu0 0.0
        %522 = vmatpush1.msra.mxu0 0.0
        %523 = vmatprep.subr.mxu0 0.0
        %524 = vmatpush1.msra.mxu0 0.0
        %525 = vmatprep.subr.mxu0 0.0
        %526 = vmatpush1.msra.mxu0 0.0
        %527 = vmatprep.subr.mxu0 0.0
        %528 = vmatpush1.msra.mxu0 0.0
        %529 = vmatprep.subr.mxu0 0.0
        %530 = vmatpush1.msra.mxu0 0.0
        %531 = vmatprep.mubr.f32.mxu0 0.0
        %532 = vmatmul.mubr.f32.gmra.mrb[0].mxu0 %v383
        %v533 = vpop.f32.mrb[0].mxu0
        %v534 = vadd.f32 %v466, %v533
        %v535 = vpop.f32.mrb[0].mxu0
        %536 = vmatprep.mubr.f32.mxu0 0.0
        %537 = vmatmul.mubr.f32.gmra.mrb[0].mxu0 %v386
        %v538 = vpop.f32.mrb[0].mxu0
        %v539 = vadd.f32 %v466, %v538
        %v540 = vpop.f32.mrb[0].mxu0
        %541 = vdwg.mxu0
        %v542 = vlaneseq
        %v543 = vshrl.u32 %v542, 7
        %v544 = vsub.s32 0, %v543
        %v545 = vrot.slane %v369, %v544
        %546 = vmatprep.subr.mxu0 0.0
        %547 = vmatpush1.msra.mxu0 %v347
        %548 = vmatprep.subr.mxu0 0.0
        %549 = vmatpush1.msra.mxu0 %v348
        %550 = vmatprep.subr.mxu0 0.0
        %551 = vmatpush1.msra.mxu0 %v349
        %552 = vmatprep.subr.mxu0 0.0
        %553 = vmatpush1.msra.mxu0 %v350
        %554 = vmatprep.subr.mxu0 0.0
        %555 = vmatpush1.msra.mxu0 0.0
        %556 = vmatprep.subr.mxu0 0.0
        %557 = vmatpush1.msra.mxu0 0.0
        %558 = vmatprep.subr.mxu0 0.0
        %559 = vmatpush1.msra.mxu0 0.0
        %560 = vmatprep.subr.mxu0 0.0
        %561 = vmatpush1.msra.mxu0 0.0
        %562 = vmatprep.subr.mxu0 0.0
        %563 = vmatpush1.msra.mxu0 0.0
        %564 = vmatprep.subr.mxu0 0.0
        %565 = vmatpush1.msra.mxu0 0.0
        %566 = vmatprep.subr.mxu0 0.0
        %567 = vmatpush1.msra.mxu0 0.0
        %568 = vmatprep.subr.mxu0 0.0
        %569 = vmatpush1.msra.mxu0 0.0
        %570 = vmatprep.subr.mxu0 0.0
        %571 = vmatpush1.msra.mxu0 0.0
        %572 = vmatprep.subr.mxu0 0.0
        %573 = vmatpush1.msra.mxu0 0.0
        %574 = vmatprep.subr.mxu0 0.0
        %575 = vmatpush1.msra.mxu0 0.0
        %576 = vmatprep.subr.mxu0 0.0
        %577 = vmatpush1.msra.mxu0 0.0
        %578 = vmatprep.subr.mxu0 0.0
        %579 = vmatpush1.msra.mxu0 0.0
        %580 = vmatprep.subr.mxu0 0.0
        %581 = vmatpush1.msra.mxu0 0.0
        %582 = vmatprep.subr.mxu0 0.0
        %583 = vmatpush1.msra.mxu0 0.0
        %584 = vmatprep.subr.mxu0 0.0
        %585 = vmatpush1.msra.mxu0 0.0
        %586 = vmatprep.subr.mxu0 0.0
        %587 = vmatpush1.msra.mxu0 0.0
        %588 = vmatprep.subr.mxu0 0.0
        %589 = vmatpush1.msra.mxu0 0.0
        %590 = vmatprep.subr.mxu0 0.0
        %591 = vmatpush1.msra.mxu0 0.0
        %592 = vmatprep.subr.mxu0 0.0
        %593 = vmatpush1.msra.mxu0 0.0
        %594 = vmatprep.subr.mxu0 0.0
        %595 = vmatpush1.msra.mxu0 0.0
        %596 = vmatprep.subr.mxu0 0.0
        %597 = vmatpush1.msra.mxu0 0.0
        %598 = vmatprep.subr.mxu0 0.0
        %599 = vmatpush1.msra.mxu0 0.0
        %600 = vmatprep.subr.mxu0 0.0
        %601 = vmatpush1.msra.mxu0 0.0
        %602 = vmatprep.subr.mxu0 0.0
        %603 = vmatpush1.msra.mxu0 0.0
        %604 = vmatprep.subr.mxu0 0.0
        %605 = vmatpush1.msra.mxu0 0.0
        %606 = vmatprep.subr.mxu0 0.0
        %607 = vmatpush1.msra.mxu0 0.0
        %608 = vmatprep.subr.mxu0 0.0
        %609 = vmatpush1.msra.mxu0 0.0
        %610 = vmatprep.mubr.f32.mxu0 0.0
        %611 = vmatmul.mubr.f32.gmra.mrb[0].mxu0 %v383
        %v612 = vpop.f32.mrb[0].mxu0
        %v613 = vadd.f32 %v545, %v612
        %v614 = vpop.f32.mrb[0].mxu0
        %615 = vmatprep.mubr.f32.mxu0 0.0
        %616 = vmatmul.mubr.f32.gmra.mrb[0].mxu0 %v386
        %v617 = vpop.f32.mrb[0].mxu0
        %v618 = vadd.f32 %v545, %v617
        %v619 = vpop.f32.mrb[0].mxu0
        %620 = vdwg.mxu0
        %v622 = vsel %vm381, %v455, 0
        %v625 = vsel %vm381, %v460, 0
        %v628 = vsel %vm381, %v534, 0
        %v631 = vsel %vm381, %v539, 0
        %633 = vmatprep.subr.mxu0 0.0
        %634 = vmatpush1.xpose.msra.mxu0 %v628
        %635 = vmatprep.subr.mxu0 0.0
        %636 = vmatpush1.xpose.msra.mxu0 %v631
        %637 = vmatprep.subr.mxu0 0.0
        %638 = vmatpush1.xpose.msra.mxu0 0.0
        %639 = vmatprep.subr.mxu0 0.0
        %640 = vmatpush1.xpose.msra.mxu0 0.0
        %641 = vmatprep.subr.mxu0 0.0
        %642 = vmatpush1.xpose.msra.mxu0 0.0
        %643 = vmatprep.subr.mxu0 0.0
        %644 = vmatpush1.xpose.msra.mxu0 0.0
        %645 = vmatprep.subr.mxu0 0.0
        %646 = vmatpush1.xpose.msra.mxu0 0.0
        %647 = vmatprep.subr.mxu0 0.0
        %648 = vmatpush1.xpose.msra.mxu0 0.0
        %649 = vmatprep.subr.mxu0 0.0
        %650 = vmatpush1.xpose.msra.mxu0 0.0
        %651 = vmatprep.subr.mxu0 0.0
        %652 = vmatpush1.xpose.msra.mxu0 0.0
        %653 = vmatprep.subr.mxu0 0.0
        %654 = vmatpush1.xpose.msra.mxu0 0.0
        %655 = vmatprep.subr.mxu0 0.0
        %656 = vmatpush1.xpose.msra.mxu0 0.0
        %657 = vmatprep.subr.mxu0 0.0
        %658 = vmatpush1.xpose.msra.mxu0 0.0
        %659 = vmatprep.subr.mxu0 0.0
        %660 = vmatpush1.xpose.msra.mxu0 0.0
        %661 = vmatprep.subr.mxu0 0.0
        %662 = vmatpush1.xpose.msra.mxu0 0.0
        %663 = vmatprep.subr.mxu0 0.0
        %664 = vmatpush1.xpose.msra.mxu0 0.0
        %665 = vmatprep.subr.mxu0 0.0
        %666 = vmatpush1.xpose.msra.mxu0 0.0
        %667 = vmatprep.subr.mxu0 0.0
        %668 = vmatpush1.xpose.msra.mxu0 0.0
        %669 = vmatprep.subr.mxu0 0.0
        %670 = vmatpush1.xpose.msra.mxu0 0.0
        %671 = vmatprep.subr.mxu0 0.0
        %672 = vmatpush1.xpose.msra.mxu0 0.0
        %673 = vmatprep.subr.mxu0 0.0
        %674 = vmatpush1.xpose.msra.mxu0 0.0
        %675 = vmatprep.subr.mxu0 0.0
        %676 = vmatpush1.xpose.msra.mxu0 0.0
        %677 = vmatprep.subr.mxu0 0.0
        %678 = vmatpush1.xpose.msra.mxu0 0.0
        %679 = vmatprep.subr.mxu0 0.0
        %680 = vmatpush1.xpose.msra.mxu0 0.0
        %681 = vmatprep.subr.mxu0 0.0
        %682 = vmatpush1.xpose.msra.mxu0 0.0
        %683 = vmatprep.subr.mxu0 0.0
        %684 = vmatpush1.xpose.msra.mxu0 0.0
        %685 = vmatprep.subr.mxu0 0.0
        %686 = vmatpush1.xpose.msra.mxu0 0.0
        %687 = vmatprep.subr.mxu0 0.0
        %688 = vmatpush1.xpose.msra.mxu0 0.0
        %689 = vmatprep.subr.mxu0 0.0
        %690 = vmatpush1.xpose.msra.mxu0 0.0
        %691 = vmatprep.subr.mxu0 0.0
        %692 = vmatpush1.xpose.msra.mxu0 0.0
        %693 = vmatprep.subr.mxu0 0.0
        %694 = vmatpush1.xpose.msra.mxu0 0.0
        %695 = vmatprep.subr.mxu0 0.0
        %696 = vmatpush1.xpose.msra.mxu0 0.0
        %697 = vmatprep.mubr.f32.mxu0 0.0
        %698 = vmatmul.mubr.f32.gmra.mrb[0].mxu0 %v622
        %v699 = vpop.f32.mrb[0].mxu0
        %v700 = vadd.f32 0.0, %v699
        %v701 = vpop.f32.mrb[0].mxu0
        %702 = vmatprep.mubr.f32.mxu0 0.0
        %703 = vmatmul.mubr.f32.gmra.mrb[0].mxu0 %v625
        %v704 = vpop.f32.mrb[0].mxu0
        %v705 = vadd.f32 0.0, %v704
        %v706 = vpop.f32.mrb[0].mxu0
        %707 = vdwg.mxu0
        %v708 = vmul.f32 %v700, 0.17677669
        %v709 = vmul.f32 %v705, 0.17677669
        %vm710 = vcmask 130048
        %v711 = vsel %vm710, %v708, -inf
        %712 = vmax.xlane.f32.xlu0 %v711
        %v713 = vpop.xlane.xlu0 %712
        %v714 = vsel %vm710, %v709, -inf
        %715 = vmax.xlane.f32.xlu0 %v714
        %v716 = vpop.xlane.xlu0 %715
        %v717 = vsub.f32 %v708, %v713
        %v718 = vsub.f32 %v709, %v716
        %v719 = vmul.f32 %v717, 1.442695
        %v720 = vpow.pop %v719
        %v721 = vmul.f32 %v718, 1.442695
        %v722 = vpow.pop %v721
        %v723 = vsel %vm710, %v720, 0.0
        %724 = vadd.xlane.f32.xlu0 %v723
        %v725 = vpop.xlane.xlu0 %724
        %v726 = vsel %vm710, %v722, 0.0
        %727 = vadd.xlane.f32.xlu0 %v726
        %v728 = vpop.xlane.xlu0 %727
        %v729 = vrcp.pop %v725
        %v730 = vrcp.pop %v728
        %v731 = vmul.f32 %v720, %v729
        %v732 = vmul.f32 %v722, %v730
        %v734 = vsel %vm710, %v731, 0
        %v737 = vsel %vm710, %v732, 0
        %739 = vmatprep.subr.mxu0 0.0
        %740 = vmatpush1.msra.mxu0 %v613
        %741 = vmatprep.subr.mxu0 0.0
        %742 = vmatpush1.msra.mxu0 %v618
        %743 = vmatprep.subr.mxu0 0.0
        %744 = vmatpush1.msra.mxu0 0.0
        %745 = vmatprep.subr.mxu0 0.0
        %746 = vmatpush1.msra.mxu0 0.0
        %747 = vmatprep.subr.mxu0 0.0
        %748 = vmatpush1.msra.mxu0 0.0
        %749 = vmatprep.subr.mxu0 0.0
        %750 = vmatpush1.msra.mxu0 0.0
        %751 = vmatprep.subr.mxu0 0.0
        %752 = vmatpush1.msra.mxu0 0.0
        %753 = vmatprep.subr.mxu0 0.0
        %754 = vmatpush1.msra.mxu0 0.0
        %755 = vmatprep.subr.mxu0 0.0
        %756 = vmatpush1.msra.mxu0 0.0
        %757 = vmatprep.subr.mxu0 0.0
        %758 = vmatpush1.msra.mxu0 0.0
        %759 = vmatprep.subr.mxu0 0.0
        %760 = vmatpush1.msra.mxu0 0.0
        %761 = vmatprep.subr.mxu0 0.0
        %762 = vmatpush1.msra.mxu0 0.0
        %763 = vmatprep.subr.mxu0 0.0
        %764 = vmatpush1.msra.mxu0 0.0
        %765 = vmatprep.subr.mxu0 0.0
        %766 = vmatpush1.msra.mxu0 0.0
        %767 = vmatprep.subr.mxu0 0.0
        %768 = vmatpush1.msra.mxu0 0.0
        %769 = vmatprep.subr.mxu0 0.0
        %770 = vmatpush1.msra.mxu0 0.0
        %771 = vmatprep.subr.mxu0 0.0
        %772 = vmatpush1.msra.mxu0 0.0
        %773 = vmatprep.subr.mxu0 0.0
        %774 = vmatpush1.msra.mxu0 0.0
        %775 = vmatprep.subr.mxu0 0.0
        %776 = vmatpush1.msra.mxu0 0.0
        %777 = vmatprep.subr.mxu0 0.0
        %778 = vmatpush1.msra.mxu0 0.0
        %779 = vmatprep.subr.mxu0 0.0
        %780 = vmatpush1.msra.mxu0 0.0
        %781 = vmatprep.subr.mxu0 0.0
        %782 = vmatpush1.msra.mxu0 0.0
        %783 = vmatprep.subr.mxu0 0.0
        %784 = vmatpush1.msra.mxu0 0.0
        %785 = vmatprep.subr.mxu0 0.0
        %786 = vmatpush1.msra.mxu0 0.0
        %787 = vmatprep.subr.mxu0 0.0
        %788 = vmatpush1.msra.mxu0 0.0
        %789 = vmatprep.subr.mxu0 0.0
        %790 = vmatpush1.msra.mxu0 0.0
        %791 = vmatprep.subr.mxu0 0.0
        %792 = vmatpush1.msra.mxu0 0.0
        %793 = vmatprep.subr.mxu0 0.0
        %794 = vmatpush1.msra.mxu0 0.0
        %795 = vmatprep.subr.mxu0 0.0
        %796 = vmatpush1.msra.mxu0 0.0
        %797 = vmatprep.subr.mxu0 0.0
        %798 = vmatpush1.msra.mxu0 0.0
        %799 = vmatprep.subr.mxu0 0.0
        %800 = vmatpush1.msra.mxu0 0.0
        %801 = vmatprep.subr.mxu0 0.0
        %802 = vmatpush1.msra.mxu0 0.0
        %803 = vmatprep.mubr.f32.mxu0 0.0
        %804 = vmatmul.mubr.f32.gmra.mrb[0].mxu0 %v734
        %v805 = vpop.f32.mrb[0].mxu0
        %v806 = vadd.f32 0.0, %v805
        %v807 = vpop.f32.mrb[0].mxu0
        %808 = vmatprep.mubr.f32.mxu0 0.0
        %809 = vmatmul.mubr.f32.gmra.mrb[0].mxu0 %v737
        %v810 = vpop.f32.mrb[0].mxu0
        %v811 = vadd.f32 0.0, %v810
        %v812 = vpop.f32.mrb[0].mxu0
        %813 = vdwg.mxu0
        %v814 = vlaneseq
        %v815 = vshrl.u32 %v814, 7
        %v816 = vsub.s32 0, %v815
        %v817 = vrot.slane %v370, %v816
        %v819 = vsel %vm381, %v806, 0
        %v822 = vsel %vm381, %v811, 0
        %824 = vmatprep.subr.mxu0 0.0
        %825 = vmatpush1.msra.mxu0 %v351
        %826 = vmatprep.subr.mxu0 0.0
        %827 = vmatpush1.msra.mxu0 %v352
        %828 = vmatprep.subr.mxu0 0.0
        %829 = vmatpush1.msra.mxu0 %v353
        %830 = vmatprep.subr.mxu0 0.0
        %831 = vmatpush1.msra.mxu0 %v354
        %832 = vmatprep.subr.mxu0 0.0
        %833 = vmatpush1.msra.mxu0 0.0
        %834 = vmatprep.subr.mxu0 0.0
        %835 = vmatpush1.msra.mxu0 0.0
        %836 = vmatprep.subr.mxu0 0.0
        %837 = vmatpush1.msra.mxu0 0.0
        %838 = vmatprep.subr.mxu0 0.0
        %839 = vmatpush1.msra.mxu0 0.0
        %840 = vmatprep.subr.mxu0 0.0
        %841 = vmatpush1.msra.mxu0 0.0
        %842 = vmatprep.subr.mxu0 0.0
        %843 = vmatpush1.msra.mxu0 0.0
        %844 = vmatprep.subr.mxu0 0.0
        %845 = vmatpush1.msra.mxu0 0.0
        %846 = vmatprep.subr.mxu0 0.0
        %847 = vmatpush1.msra.mxu0 0.0
        %848 = vmatprep.subr.mxu0 0.0
        %849 = vmatpush1.msra.mxu0 0.0
        %850 = vmatprep.subr.mxu0 0.0
        %851 = vmatpush1.msra.mxu0 0.0
        %852 = vmatprep.subr.mxu0 0.0
        %853 = vmatpush1.msra.mxu0 0.0
        %854 = vmatprep.subr.mxu0 0.0
        %855 = vmatpush1.msra.mxu0 0.0
        %856 = vmatprep.subr.mxu0 0.0
        %857 = vmatpush1.msra.mxu0 0.0
        %858 = vmatprep.subr.mxu0 0.0
        %859 = vmatpush1.msra.mxu0 0.0
        %860 = vmatprep.subr.mxu0 0.0
        %861 = vmatpush1.msra.mxu0 0.0
        %862 = vmatprep.subr.mxu0 0.0
        %863 = vmatpush1.msra.mxu0 0.0
        %864 = vmatprep.subr.mxu0 0.0
        %865 = vmatpush1.msra.mxu0 0.0
        %866 = vmatprep.subr.mxu0 0.0
        %867 = vmatpush1.msra.mxu0 0.0
        %868 = vmatprep.subr.mxu0 0.0
        %869 = vmatpush1.msra.mxu0 0.0
        %870 = vmatprep.subr.mxu0 0.0
        %871 = vmatpush1.msra.mxu0 0.0
        %872 = vmatprep.subr.mxu0 0.0
        %873 = vmatpush1.msra.mxu0 0.0
        %874 = vmatprep.subr.mxu0 0.0
        %875 = vmatpush1.msra.mxu0 0.0
        %876 = vmatprep.subr.mxu0 0.0
        %877 = vmatpush1.msra.mxu0 0.0
        %878 = vmatprep.subr.mxu0 0.0
        %879 = vmatpush1.msra.mxu0 0.0
        %880 = vmatprep.subr.mxu0 0.0
        %881 = vmatpush1.msra.mxu0 0.0
        %882 = vmatprep.subr.mxu0 0.0
        %883 = vmatpush1.msra.mxu0 0.0
        %884 = vmatprep.subr.mxu0 0.0
        %885 = vmatpush1.msra.mxu0 0.0
        %886 = vmatprep.subr.mxu0 0.0
        %887 = vmatpush1.msra.mxu0 0.0
        %888 = vmatprep.mubr.f32.mxu0 0.0
        %889 = vmatmul.mubr.f32.gmra.mrb[0].mxu0 %v819
        %v890 = vpop.f32.mrb[0].mxu0
        %v891 = vadd.f32 %v817, %v890
        %v892 = vpop.f32.mrb[0].mxu0
        %893 = vmatprep.mubr.f32.mxu0 0.0
        %894 = vmatmul.mubr.f32.gmra.mrb[0].mxu0 %v822
        %v895 = vpop.f32.mrb[0].mxu0
        %v896 = vadd.f32 %v817, %v895
        %v897 = vpop.f32.mrb[0].mxu0
        %898 = vdwg.mxu0
        %v899 = vadd.f32 %v337, %v891
        %v900 = vadd.f32 %v338, %v896
        %v901 = vsel %vm381, %v899, 0.0
        %902 = vadd.xlane.f32.xlu0 %v901
        %v903 = vpop.xlane.xlu0 %902
        %v904 = vsel %vm381, %v900, 0.0
        %905 = vadd.xlane.f32.xlu0 %v904
        %v906 = vpop.xlane.xlu0 %905
        %v907 = vrcp.pop 32.0
        %v908 = vmul.f32 %v903, %v907
        %v909 = vmul.f32 %v906, %v907
        %v910 = vsub.f32 %v899, %v908
        %v911 = vsub.f32 %v900, %v909
        %v912 = vmul.f32 %v910, %v910
        %v913 = vmul.f32 %v911, %v911
        %v914 = vsel %vm381, %v912, 0.0
        %915 = vadd.xlane.f32.xlu0 %v914
        %v916 = vpop.xlane.xlu0 %915
        %v917 = vsel %vm381, %v913, 0.0
        %918 = vadd.xlane.f32.xlu0 %v917
        %v919 = vpop.xlane.xlu0 %918
        %v920 = vmul.f32 %v916, %v907
        %v921 = vmul.f32 %v919, %v907
        %v922 = vadd.f32 %v920, 1e-05
        %v923 = vadd.f32 %v921, 1e-05
        %v924 = vrsqrt.pop %v922
        %v925 = vrsqrt.pop %v923
        %v926 = vmul.f32 %v910, %v924
        %v927 = vmul.f32 %v911, %v925
        %v928 = vlaneseq
        %v929 = vshrl.u32 %v928, 7
        %v930 = vsub.s32 0, %v929
        %v931 = vrot.slane %v373, %v930
        %v932 = vmul.f32 %v926, %v931
        %v933 = vmul.f32 %v927, %v931
        %v934 = vlaneseq
        %v935 = vshrl.u32 %v934, 7
        %v936 = vsub.s32 0, %v935
        %v937 = vrot.slane %v374, %v936
        %v938 = vadd.f32 %v932, %v937
        %v939 = vadd.f32 %v933, %v937
        %v940 = vlaneseq
        %v941 = vshrl.u32 %v940, 7
        %v942 = vsub.s32 0, %v941
        %v943 = vrot.slane %v371, %v942
        %v945 = vsel %vm381, %v938, 0
        %v948 = vsel %vm381, %v939, 0
        %950 = vmatprep.subr.mxu0 0.0
        %951 = vmatpush1.msra.mxu0 %v355
        %952 = vmatprep.subr.mxu0 0.0
        %953 = vmatpush1.msra.mxu0 %v356
        %954 = vmatprep.subr.mxu0 0.0
        %955 = vmatpush1.msra.mxu0 %v357
        %956 = vmatprep.subr.mxu0 0.0
        %957 = vmatpush1.msra.mxu0 %v358
        %958 = vmatprep.subr.mxu0 0.0
        %959 = vmatpush1.msra.mxu0 0.0
        %960 = vmatprep.subr.mxu0 0.0
        %961 = vmatpush1.msra.mxu0 0.0
        %962 = vmatprep.subr.mxu0 0.0
        %963 = vmatpush1.msra.mxu0 0.0
        %964 = vmatprep.subr.mxu0 0.0
        %965 = vmatpush1.msra.mxu0 0.0
        %966 = vmatprep.subr.mxu0 0.0
        %967 = vmatpush1.msra.mxu0 0.0
        %968 = vmatprep.subr.mxu0 0.0
        %969 = vmatpush1.msra.mxu0 0.0
        %970 = vmatprep.subr.mxu0 0.0
        %971 = vmatpush1.msra.mxu0 0.0
        %972 = vmatprep.subr.mxu0 0.0
        %973 = vmatpush1.msra.mxu0 0.0
        %974 = vmatprep.subr.mxu0 0.0
        %975 = vmatpush1.msra.mxu0 0.0
        %976 = vmatprep.subr.mxu0 0.0
        %977 = vmatpush1.msra.mxu0 0.0
        %978 = vmatprep.subr.mxu0 0.0
        %979 = vmatpush1.msra.mxu0 0.0
        %980 = vmatprep.subr.mxu0 0.0
        %981 = vmatpush1.msra.mxu0 0.0
        %982 = vmatprep.subr.mxu0 0.0
        %983 = vmatpush1.msra.mxu0 0.0
        %984 = vmatprep.subr.mxu0 0.0
        %985 = vmatpush1.msra.mxu0 0.0
        %986 = vmatprep.subr.mxu0 0.0
        %987 = vmatpush1.msra.mxu0 0.0
        %988 = vmatprep.subr.mxu0 0.0
        %989 = vmatpush1.msra.mxu0 0.0
        %990 = vmatprep.subr.mxu0 0.0
        %991 = vmatpush1.msra.mxu0 0.0
        %992 = vmatprep.subr.mxu0 0.0
        %993 = vmatpush1.msra.mxu0 0.0
        %994 = vmatprep.subr.mxu0 0.0
        %995 = vmatpush1.msra.mxu0 0.0
        %996 = vmatprep.subr.mxu0 0.0
        %997 = vmatpush1.msra.mxu0 0.0
        %998 = vmatprep.subr.mxu0 0.0
        %999 = vmatpush1.msra.mxu0 0.0
        %1000 = vmatprep.subr.mxu0 0.0
        %1001 = vmatpush1.msra.mxu0 0.0
        %1002 = vmatprep.subr.mxu0 0.0
        %1003 = vmatpush1.msra.mxu0 0.0
        %1004 = vmatprep.subr.mxu0 0.0
        %1005 = vmatpush1.msra.mxu0 0.0
        %1006 = vmatprep.subr.mxu0 0.0
        %1007 = vmatpush1.msra.mxu0 0.0
        %1008 = vmatprep.subr.mxu0 0.0
        %1009 = vmatpush1.msra.mxu0 0.0
        %1010 = vmatprep.subr.mxu0 0.0
        %1011 = vmatpush1.msra.mxu0 0.0
        %1012 = vmatprep.subr.mxu0 0.0
        %1013 = vmatpush1.msra.mxu0 0.0
        %1014 = vmatprep.mubr.f32.mxu0 0.0
        %1015 = vmatmul.mubr.f32.gmra.mrb[0].mxu0 %v945
        %v1016 = vpop.f32.mrb[0].mxu0
        %v1017 = vadd.f32 %v943, %v1016
        %v1018 = vpop.f32.mrb[0].mxu0
        %1019 = vmatprep.mubr.f32.mxu0 0.0
        %1020 = vmatmul.mubr.f32.gmra.mrb[0].mxu0 %v948
        %v1021 = vpop.f32.mrb[0].mxu0
        %v1022 = vadd.f32 %v943, %v1021
        %v1023 = vpop.f32.mrb[0].mxu0
        %1024 = vdwg.mxu0
        %v1025 = vmax.f32 %v1017, 0.0
        %v1026 = vmax.f32 %v1022, 0.0
        %v1027 = vlaneseq
        %v1028 = vshrl.u32 %v1027, 7
        %v1029 = vsub.s32 0, %v1028
        %v1030 = vrot.slane %v372, %v1029
        %vm1031 = vcmask 523264
        %v1033 = vsel %vm1031, %v1025, 0
        %v1036 = vsel %vm1031, %v1026, 0
        %1038 = vmatprep.subr.mxu0 0.0
        %1039 = vmatpush1.msra.mxu0 %v359
        %1040 = vmatprep.subr.mxu0 0.0
        %1041 = vmatpush1.msra.mxu0 %v360
        %1042 = vmatprep.subr.mxu0 0.0
        %1043 = vmatpush1.msra.mxu0 %v361
        %1044 = vmatprep.subr.mxu0 0.0
        %1045 = vmatpush1.msra.mxu0 %v362
        %1046 = vmatprep.subr.mxu0 0.0
        %1047 = vmatpush1.msra.mxu0 %v363
        %1048 = vmatprep.subr.mxu0 0.0
        %1049 = vmatpush1.msra.mxu0 %v364
        %1050 = vmatprep.subr.mxu0 0.0
        %1051 = vmatpush1.msra.mxu0 %v365
        %1052 = vmatprep.subr.mxu0 0.0
        %1053 = vmatpush1.msra.mxu0 %v366
        %1054 = vmatprep.subr.mxu0 0.0
        %1055 = vmatpush1.msra.mxu0 0.0
        %1056 = vmatprep.subr.mxu0 0.0
        %1057 = vmatpush1.msra.mxu0 0.0
        %1058 = vmatprep.subr.mxu0 0.0
        %1059 = vmatpush1.msra.mxu0 0.0
        %1060 = vmatprep.subr.mxu0 0.0
        %1061 = vmatpush1.msra.mxu0 0.0
        %1062 = vmatprep.subr.mxu0 0.0
        %1063 = vmatpush1.msra.mxu0 0.0
        %1064 = vmatprep.subr.mxu0 0.0
        %1065 = vmatpush1.msra.mxu0 0.0
        %1066 = vmatprep.subr.mxu0 0.0
        %1067 = vmatpush1.msra.mxu0 0.0
        %1068 = vmatprep.subr.mxu0 0.0
        %1069 = vmatpush1.msra.mxu0 0.0
        %1070 = vmatprep.subr.mxu0 0.0
        %1071 = vmatpush1.msra.mxu0 0.0
        %1072 = vmatprep.subr.mxu0 0.0
        %1073 = vmatpush1.msra.mxu0 0.0
        %1074 = vmatprep.subr.mxu0 0.0
        %1075 = vmatpush1.msra.mxu0 0.0
        %1076 = vmatprep.subr.mxu0 0.0
        %1077 = vmatpush1.msra.mxu0 0.0
        %1078 = vmatprep.subr.mxu0 0.0
        %1079 = vmatpush1.msra.mxu0 0.0
        %1080 = vmatprep.subr.mxu0 0.0
        %1081 = vmatpush1.msra.mxu0 0.0
        %1082 = vmatprep.subr.mxu0 0.0
        %1083 = vmatpush1.msra.mxu0 0.0
        %1084 = vmatprep.subr.mxu0 0.0
        %1085 = vmatpush1.msra.mxu0 0.0
        %1086 = vmatprep.subr.mxu0 0.0
        %1087 = vmatpush1.msra.mxu0 0.0
        %1088 = vmatprep.subr.mxu0 0.0
        %1089 = vmatpush1.msra.mxu0 0.0
        %1090 = vmatprep.subr.mxu0 0.0
        %1091 = vmatpush1.msra.mxu0 0.0
        %1092 = vmatprep.subr.mxu0 0.0
        %1093 = vmatpush1.msra.mxu0 0.0
        %1094 = vmatprep.subr.mxu0 0.0
        %1095 = vmatpush1.msra.mxu0 0.0
        %1096 = vmatprep.subr.mxu0 0.0
        %1097 = vmatpush1.msra.mxu0 0.0
        %1098 = vmatprep.subr.mxu0 0.0
        %1099 = vmatpush1.msra.mxu0 0.0
        %1100 = vmatprep.subr.mxu0 0.0
        %1101 = vmatpush1.msra.mxu0 0.0
        %1102 = vmatprep.mubr.f32.mxu0 0.0
        %1103 = vmatmul.mubr.f32.gmra.mrb[0].mxu0 %v1033
        %v1104 = vpop.f32.mrb[0].mxu0
        %v1105 = vadd.f32 %v1030, %v1104
        %v1106 = vpop.f32.mrb[0].mxu0
        %1107 = vmatprep.mubr.f32.mxu0 0.0
        %1108 = vmatmul.mubr.f32.gmra.mrb[0].mxu0 %v1036
        %v1109 = vpop.f32.mrb[0].mxu0
        %v1110 = vadd.f32 %v1030, %v1109
        %v1111 = vpop.f32.mrb[0].mxu0
        %1112 = vdwg.mxu0
        %v1113 = vadd.f32 %v938, %v1105
        %v1114 = vadd.f32 %v939, %v1110
        %v1115 = vsel %vm381, %v1113, 0.0
        %1116 = vadd.xlane.f32.xlu0 %v1115
        %v1117 = vpop.xlane.xlu0 %1116
        %v1118 = vsel %vm381, %v1114, 0.0
        %1119 = vadd.xlane.f32.xlu0 %v1118
        %v1120 = vpop.xlane.xlu0 %1119
        %v1121 = vmul.f32 %v1117, %v907
        %v1122 = vmul.f32 %v1120, %v907
        %v1123 = vsub.f32 %v1113, %v1121
        %v1124 = vsub.f32 %v1114, %v1122
        %v1125 = vmul.f32 %v1123, %v1123
        %v1126 = vmul.f32 %v1124, %v1124
        %v1127 = vsel %vm381, %v1125, 0.0
        %1128 = vadd.xlane.f32.xlu0 %v1127
        %v1129 = vpop.xlane.xlu0 %1128
        %v1130 = vsel %vm381, %v1126, 0.0
        %1131 = vadd.xlane.f32.xlu0 %v1130
        %v1132 = vpop.xlane.xlu0 %1131
        %v1133 = vmul.f32 %v1129, %v907
        %v1134 = vmul.f32 %v1132, %v907
        %v1135 = vadd.f32 %v1133, 1e-05
        %v1136 = vadd.f32 %v1134, 1e-05
        %v1137 = vrsqrt.pop %v1135
        %v1138 = vrsqrt.pop %v1136
        %v1139 = vmul.f32 %v1123, %v1137
        %v1140 = vmul.f32 %v1124, %v1138
        %v1141 = vlaneseq
        %v1142 = vshrl.u32 %v1141, 7
        %v1143 = vsub.s32 0, %v1142
        %v1144 = vrot.slane %v375, %v1143
        %v1145 = vmul.f32 %v1139, %v1144
        %v1146 = vmul.f32 %v1140, %v1144
        %v1147 = vlaneseq
        %v1148 = vshrl.u32 %v1147, 7
        %v1149 = vsub.s32 0, %v1148
        %v1150 = vrot.slane %v376, %v1149
        %v1151 = vadd.f32 %v1145, %v1150
        %v1152 = vadd.f32 %v1146, %v1150
        %s1153 = scalar_lea.vmem %s2, 32
        %v1154 = vld [vmem:[%s1153] sm:$0xff]
        %v1155 = vld [vmem:[%s1153 + $0x8] sm:$0xff]
        %v1156 = vld [vmem:[%s1153 + $0x10] sm:$0xff]
        %v1157 = vld [vmem:[%s1153 + $0x18] sm:$0xff]
        %s1158 = scalar_lea.vmem %s3, 32
        %v1159 = vld [vmem:[%s1158] sm:$0xff]
        %v1160 = vld [vmem:[%s1158 + $0x8] sm:$0xff]
        %v1161 = vld [vmem:[%s1158 + $0x10] sm:$0xff]
        %v1162 = vld [vmem:[%s1158 + $0x18] sm:$0xff]
        %s1163 = scalar_lea.vmem %s4, 32
        %v1164 = vld [vmem:[%s1163] sm:$0xff]
        %v1165 = vld [vmem:[%s1163 + $0x8] sm:$0xff]
        %v1166 = vld [vmem:[%s1163 + $0x10] sm:$0xff]
        %v1167 = vld [vmem:[%s1163 + $0x18] sm:$0xff]
        %s1168 = scalar_lea.vmem %s5, 32
        %v1169 = vld [vmem:[%s1168] sm:$0xff]
        %v1170 = vld [vmem:[%s1168 + $0x8] sm:$0xff]
        %v1171 = vld [vmem:[%s1168 + $0x10] sm:$0xff]
        %v1172 = vld [vmem:[%s1168 + $0x18] sm:$0xff]
        %s1173 = scalar_lea.vmem %s6, 32
        %v1174 = vld [vmem:[%s1173] sm:$0xff]
        %v1175 = vld [vmem:[%s1173 + $0x8] sm:$0xff]
        %v1176 = vld [vmem:[%s1173 + $0x10] sm:$0xff]
        %v1177 = vld [vmem:[%s1173 + $0x18] sm:$0xff]
        %s1178 = scalar_lea.vmem %s7, 64
        %v1179 = vld [vmem:[%s1178] sm:$0xff]
        %v1180 = vld [vmem:[%s1178 + $0x8] sm:$0xff]
        %v1181 = vld [vmem:[%s1178 + $0x10] sm:$0xff]
        %v1182 = vld [vmem:[%s1178 + $0x18] sm:$0xff]
        %v1183 = vld [vmem:[%s1178 + $0x20] sm:$0xff]
        %v1184 = vld [vmem:[%s1178 + $0x28] sm:$0xff]
        %v1185 = vld [vmem:[%s1178 + $0x30] sm:$0xff]
        %v1186 = vld [vmem:[%s1178 + $0x38] sm:$0xff]
        %s1187 = scalar_lea.vmem %s8, 16
        %v1188 = vld [vmem:[%s1187] sm:$0x1]
        %v1189 = vld [vmem:[%s1187 + $0x1] sm:$0x1]
        %v1190 = vld [vmem:[%s1187 + $0x2] sm:$0x1]
        %v1191 = vld [vmem:[%s1187 + $0x3] sm:$0x1]
        %v1192 = vld [vmem:[%s1187 + $0x4] sm:$0x1]
        %v1193 = vld [vmem:[%s1187 + $0x5] sm:$0x1]
        %v1194 = vld [vmem:[%s1187 + $0x6] sm:$0x1]
        %v1195 = vld [vmem:[%s1187 + $0x7] sm:$0x1]
        %v1196 = vld [vmem:[%s1187 + $0x8] sm:$0x1]
        %v1197 = vld [vmem:[%s1187 + $0x9] sm:$0x1]
        %v1198 = vlaneseq
        %v1199 = vshrl.u32 %v1198, 7
        %v1200 = vsub.s32 0, %v1199
        %v1201 = vrot.slane %v1188, %v1200
        %v1203 = vsel %vm381, %v1151, 0
        %v1206 = vsel %vm381, %v1152, 0
        %1208 = vmatprep.subr.mxu0 0.0
        %1209 = vmatpush1.msra.mxu0 %v1154
        %1210 = vmatprep.subr.mxu0 0.0
        %1211 = vmatpush1.msra.mxu0 %v1155
        %1212 = vmatprep.subr.mxu0 0.0
        %1213 = vmatpush1.msra.mxu0 %v1156
        %1214 = vmatprep.subr.mxu0 0.0
        %1215 = vmatpush1.msra.mxu0 %v1157
        %1216 = vmatprep.subr.mxu0 0.0
        %1217 = vmatpush1.msra.mxu0 0.0
        %1218 = vmatprep.subr.mxu0 0.0
        %1219 = vmatpush1.msra.mxu0 0.0
        %1220 = vmatprep.subr.mxu0 0.0
        %1221 = vmatpush1.msra.mxu0 0.0
        %1222 = vmatprep.subr.mxu0 0.0
        %1223 = vmatpush1.msra.mxu0 0.0
        %1224 = vmatprep.subr.mxu0 0.0
        %1225 = vmatpush1.msra.mxu0 0.0
        %1226 = vmatprep.subr.mxu0 0.0
        %1227 = vmatpush1.msra.mxu0 0.0
        %1228 = vmatprep.subr.mxu0 0.0
        %1229 = vmatpush1.msra.mxu0 0.0
        %1230 = vmatprep.subr.mxu0 0.0
        %1231 = vmatpush1.msra.mxu0 0.0
        %1232 = vmatprep.subr.mxu0 0.0
        %1233 = vmatpush1.msra.mxu0 0.0
        %1234 = vmatprep.subr.mxu0 0.0
        %1235 = vmatpush1.msra.mxu0 0.0
        %1236 = vmatprep.subr.mxu0 0.0
        %1237 = vmatpush1.msra.mxu0 0.0
        %1238 = vmatprep.subr.mxu0 0.0
        %1239 = vmatpush1.msra.mxu0 0.0
        %1240 = vmatprep.subr.mxu0 0.0
        %1241 = vmatpush1.msra.mxu0 0.0
        %1242 = vmatprep.subr.mxu0 0.0
        %1243 = vmatpush1.msra.mxu0 0.0
        %1244 = vmatprep.subr.mxu0 0.0
        %1245 = vmatpush1.msra.mxu0 0.0
        %1246 = vmatprep.subr.mxu0 0.0
        %1247 = vmatpush1.msra.mxu0 0.0
        %1248 = vmatprep.subr.mxu0 0.0
        %1249 = vmatpush1.msra.mxu0 0.0
        %1250 = vmatprep.subr.mxu0 0.0
        %1251 = vmatpush1.msra.mxu0 0.0
        %1252 = vmatprep.subr.mxu0 0.0
        %1253 = vmatpush1.msra.mxu0 0.0
        %1254 = vmatprep.subr.mxu0 0.0
        %1255 = vmatpush1.msra.mxu0 0.0
        %1256 = vmatprep.subr.mxu0 0.0
        %1257 = vmatpush1.msra.mxu0 0.0
        %1258 = vmatprep.subr.mxu0 0.0
        %1259 = vmatpush1.msra.mxu0 0.0
        %1260 = vmatprep.subr.mxu0 0.0
        %1261 = vmatpush1.msra.mxu0 0.0
        %1262 = vmatprep.subr.mxu0 0.0
        %1263 = vmatpush1.msra.mxu0 0.0
        %1264 = vmatprep.subr.mxu0 0.0
        %1265 = vmatpush1.msra.mxu0 0.0
        %1266 = vmatprep.subr.mxu0 0.0
        %1267 = vmatpush1.msra.mxu0 0.0
        %1268 = vmatprep.subr.mxu0 0.0
        %1269 = vmatpush1.msra.mxu0 0.0
        %1270 = vmatprep.subr.mxu0 0.0
        %1271 = vmatpush1.msra.mxu0 0.0
        %1272 = vmatprep.mubr.f32.mxu0 0.0
        %1273 = vmatmul.mubr.f32.gmra.mrb[0].mxu0 %v1203
        %v1274 = vpop.f32.mrb[0].mxu0
        %v1275 = vadd.f32 %v1201, %v1274
        %v1276 = vpop.f32.mrb[0].mxu0
        %1277 = vmatprep.mubr.f32.mxu0 0.0
        %1278 = vmatmul.mubr.f32.gmra.mrb[0].mxu0 %v1206
        %v1279 = vpop.f32.mrb[0].mxu0
        %v1280 = vadd.f32 %v1201, %v1279
        %v1281 = vpop.f32.mrb[0].mxu0
        %1282 = vdwg.mxu0
        %v1283 = vlaneseq
        %v1284 = vshrl.u32 %v1283, 7
        %v1285 = vsub.s32 0, %v1284
        %v1286 = vrot.slane %v1189, %v1285
        %1287 = vmatprep.subr.mxu0 0.0
        %1288 = vmatpush1.msra.mxu0 %v1159
        %1289 = vmatprep.subr.mxu0 0.0
        %1290 = vmatpush1.msra.mxu0 %v1160
        %1291 = vmatprep.subr.mxu0 0.0
        %1292 = vmatpush1.msra.mxu0 %v1161
        %1293 = vmatprep.subr.mxu0 0.0
        %1294 = vmatpush1.msra.mxu0 %v1162
        %1295 = vmatprep.subr.mxu0 0.0
        %1296 = vmatpush1.msra.mxu0 0.0
        %1297 = vmatprep.subr.mxu0 0.0
        %1298 = vmatpush1.msra.mxu0 0.0
        %1299 = vmatprep.subr.mxu0 0.0
        %1300 = vmatpush1.msra.mxu0 0.0
        %1301 = vmatprep.subr.mxu0 0.0
        %1302 = vmatpush1.msra.mxu0 0.0
        %1303 = vmatprep.subr.mxu0 0.0
        %1304 = vmatpush1.msra.mxu0 0.0
        %1305 = vmatprep.subr.mxu0 0.0
        %1306 = vmatpush1.msra.mxu0 0.0
        %1307 = vmatprep.subr.mxu0 0.0
        %1308 = vmatpush1.msra.mxu0 0.0
        %1309 = vmatprep.subr.mxu0 0.0
        %1310 = vmatpush1.msra.mxu0 0.0
        %1311 = vmatprep.subr.mxu0 0.0
        %1312 = vmatpush1.msra.mxu0 0.0
        %1313 = vmatprep.subr.mxu0 0.0
        %1314 = vmatpush1.msra.mxu0 0.0
        %1315 = vmatprep.subr.mxu0 0.0
        %1316 = vmatpush1.msra.mxu0 0.0
        %1317 = vmatprep.subr.mxu0 0.0
        %1318 = vmatpush1.msra.mxu0 0.0
        %1319 = vmatprep.subr.mxu0 0.0
        %1320 = vmatpush1.msra.mxu0 0.0
        %1321 = vmatprep.subr.mxu0 0.0
        %1322 = vmatpush1.msra.mxu0 0.0
        %1323 = vmatprep.subr.mxu0 0.0
        %1324 = vmatpush1.msra.mxu0 0.0
        %1325 = vmatprep.subr.mxu0 0.0
        %1326 = vmatpush1.msra.mxu0 0.0
        %1327 = vmatprep.subr.mxu0 0.0
        %1328 = vmatpush1.msra.mxu0 0.0
        %1329 = vmatprep.subr.mxu0 0.0
        %1330 = vmatpush1.msra.mxu0 0.0
        %1331 = vmatprep.subr.mxu0 0.0
        %1332 = vmatpush1.msra.mxu0 0.0
        %1333 = vmatprep.subr.mxu0 0.0
        %1334 = vmatpush1.msra.mxu0 0.0
        %1335 = vmatprep.subr.mxu0 0.0
        %1336 = vmatpush1.msra.mxu0 0.0
        %1337 = vmatprep.subr.mxu0 0.0
        %1338 = vmatpush1.msra.mxu0 0.0
        %1339 = vmatprep.subr.mxu0 0.0
        %1340 = vmatpush1.msra.mxu0 0.0
        %1341 = vmatprep.subr.mxu0 0.0
        %1342 = vmatpush1.msra.mxu0 0.0
        %1343 = vmatprep.subr.mxu0 0.0
        %1344 = vmatpush1.msra.mxu0 0.0
        %1345 = vmatprep.subr.mxu0 0.0
        %1346 = vmatpush1.msra.mxu0 0.0
        %1347 = vmatprep.subr.mxu0 0.0
        %1348 = vmatpush1.msra.mxu0 0.0
        %1349 = vmatprep.subr.mxu0 0.0
        %1350 = vmatpush1.msra.mxu0 0.0
        %1351 = vmatprep.mubr.f32.mxu0 0.0
        %1352 = vmatmul.mubr.f32.gmra.mrb[0].mxu0 %v1203
        %v1353 = vpop.f32.mrb[0].mxu0
        %v1354 = vadd.f32 %v1286, %v1353
        %v1355 = vpop.f32.mrb[0].mxu0
        %1356 = vmatprep.mubr.f32.mxu0 0.0
        %1357 = vmatmul.mubr.f32.gmra.mrb[0].mxu0 %v1206
        %v1358 = vpop.f32.mrb[0].mxu0
        %v1359 = vadd.f32 %v1286, %v1358
        %v1360 = vpop.f32.mrb[0].mxu0
        %1361 = vdwg.mxu0
        %v1362 = vlaneseq
        %v1363 = vshrl.u32 %v1362, 7
        %v1364 = vsub.s32 0, %v1363
        %v1365 = vrot.slane %v1190, %v1364
        %1366 = vmatprep.subr.mxu0 0.0
        %1367 = vmatpush1.msra.mxu0 %v1164
        %1368 = vmatprep.subr.mxu0 0.0
        %1369 = vmatpush1.msra.mxu0 %v1165
        %1370 = vmatprep.subr.mxu0 0.0
        %1371 = vmatpush1.msra.mxu0 %v1166
        %1372 = vmatprep.subr.mxu0 0.0
        %1373 = vmatpush1.msra.mxu0 %v1167
        %1374 = vmatprep.subr.mxu0 0.0
        %1375 = vmatpush1.msra.mxu0 0.0
        %1376 = vmatprep.subr.mxu0 0.0
        %1377 = vmatpush1.msra.mxu0 0.0
        %1378 = vmatprep.subr.mxu0 0.0
        %1379 = vmatpush1.msra.mxu0 0.0
        %1380 = vmatprep.subr.mxu0 0.0
        %1381 = vmatpush1.msra.mxu0 0.0
        %1382 = vmatprep.subr.mxu0 0.0
        %1383 = vmatpush1.msra.mxu0 0.0
        %1384 = vmatprep.subr.mxu0 0.0
        %1385 = vmatpush1.msra.mxu0 0.0
        %1386 = vmatprep.subr.mxu0 0.0
        %1387 = vmatpush1.msra.mxu0 0.0
        %1388 = vmatprep.subr.mxu0 0.0
        %1389 = vmatpush1.msra.mxu0 0.0
        %1390 = vmatprep.subr.mxu0 0.0
        %1391 = vmatpush1.msra.mxu0 0.0
        %1392 = vmatprep.subr.mxu0 0.0
        %1393 = vmatpush1.msra.mxu0 0.0
        %1394 = vmatprep.subr.mxu0 0.0
        %1395 = vmatpush1.msra.mxu0 0.0
        %1396 = vmatprep.subr.mxu0 0.0
        %1397 = vmatpush1.msra.mxu0 0.0
        %1398 = vmatprep.subr.mxu0 0.0
        %1399 = vmatpush1.msra.mxu0 0.0
        %1400 = vmatprep.subr.mxu0 0.0
        %1401 = vmatpush1.msra.mxu0 0.0
        %1402 = vmatprep.subr.mxu0 0.0
        %1403 = vmatpush1.msra.mxu0 0.0
        %1404 = vmatprep.subr.mxu0 0.0
        %1405 = vmatpush1.msra.mxu0 0.0
        %1406 = vmatprep.subr.mxu0 0.0
        %1407 = vmatpush1.msra.mxu0 0.0
        %1408 = vmatprep.subr.mxu0 0.0
        %1409 = vmatpush1.msra.mxu0 0.0
        %1410 = vmatprep.subr.mxu0 0.0
        %1411 = vmatpush1.msra.mxu0 0.0
        %1412 = vmatprep.subr.mxu0 0.0
        %1413 = vmatpush1.msra.mxu0 0.0
        %1414 = vmatprep.subr.mxu0 0.0
        %1415 = vmatpush1.msra.mxu0 0.0
        %1416 = vmatprep.subr.mxu0 0.0
        %1417 = vmatpush1.msra.mxu0 0.0
        %1418 = vmatprep.subr.mxu0 0.0
        %1419 = vmatpush1.msra.mxu0 0.0
        %1420 = vmatprep.subr.mxu0 0.0
        %1421 = vmatpush1.msra.mxu0 0.0
        %1422 = vmatprep.subr.mxu0 0.0
        %1423 = vmatpush1.msra.mxu0 0.0
        %1424 = vmatprep.subr.mxu0 0.0
        %1425 = vmatpush1.msra.mxu0 0.0
        %1426 = vmatprep.subr.mxu0 0.0
        %1427 = vmatpush1.msra.mxu0 0.0
        %1428 = vmatprep.subr.mxu0 0.0
        %1429 = vmatpush1.msra.mxu0 0.0
        %1430 = vmatprep.mubr.f32.mxu0 0.0
        %1431 = vmatmul.mubr.f32.gmra.mrb[0].mxu0 %v1203
        %v1432 = vpop.f32.mrb[0].mxu0
        %v1433 = vadd.f32 %v1365, %v1432
        %v1434 = vpop.f32.mrb[0].mxu0
        %1435 = vmatprep.mubr.f32.mxu0 0.0
        %1436 = vmatmul.mubr.f32.gmra.mrb[0].mxu0 %v1206
        %v1437 = vpop.f32.mrb[0].mxu0
        %v1438 = vadd.f32 %v1365, %v1437
        %v1439 = vpop.f32.mrb[0].mxu0
        %1440 = vdwg.mxu0
        %v1442 = vsel %vm381, %v1275, 0
        %v1445 = vsel %vm381, %v1280, 0
        %v1448 = vsel %vm381, %v1354, 0
        %v1451 = vsel %vm381, %v1359, 0
        %1453 = vmatprep.subr.mxu0 0.0
        %1454 = vmatpush1.xpose.msra.mxu0 %v1448
        %1455 = vmatprep.subr.mxu0 0.0
        %1456 = vmatpush1.xpose.msra.mxu0 %v1451
        %1457 = vmatprep.subr.mxu0 0.0
        %1458 = vmatpush1.xpose.msra.mxu0 0.0
        %1459 = vmatprep.subr.mxu0 0.0
        %1460 = vmatpush1.xpose.msra.mxu0 0.0
        %1461 = vmatprep.subr.mxu0 0.0
        %1462 = vmatpush1.xpose.msra.mxu0 0.0
        %1463 = vmatprep.subr.mxu0 0.0
        %1464 = vmatpush1.xpose.msra.mxu0 0.0
        %1465 = vmatprep.subr.mxu0 0.0
        %1466 = vmatpush1.xpose.msra.mxu0 0.0
        %1467 = vmatprep.subr.mxu0 0.0
        %1468 = vmatpush1.xpose.msra.mxu0 0.0
        %1469 = vmatprep.subr.mxu0 0.0
        %1470 = vmatpush1.xpose.msra.mxu0 0.0
        %1471 = vmatprep.subr.mxu0 0.0
        %1472 = vmatpush1.xpose.msra.mxu0 0.0
        %1473 = vmatprep.subr.mxu0 0.0
        %1474 = vmatpush1.xpose.msra.mxu0 0.0
        %1475 = vmatprep.subr.mxu0 0.0
        %1476 = vmatpush1.xpose.msra.mxu0 0.0
        %1477 = vmatprep.subr.mxu0 0.0
        %1478 = vmatpush1.xpose.msra.mxu0 0.0
        %1479 = vmatprep.subr.mxu0 0.0
        %1480 = vmatpush1.xpose.msra.mxu0 0.0
        %1481 = vmatprep.subr.mxu0 0.0
        %1482 = vmatpush1.xpose.msra.mxu0 0.0
        %1483 = vmatprep.subr.mxu0 0.0
        %1484 = vmatpush1.xpose.msra.mxu0 0.0
        %1485 = vmatprep.subr.mxu0 0.0
        %1486 = vmatpush1.xpose.msra.mxu0 0.0
        %1487 = vmatprep.subr.mxu0 0.0
        %1488 = vmatpush1.xpose.msra.mxu0 0.0
        %1489 = vmatprep.subr.mxu0 0.0
        %1490 = vmatpush1.xpose.msra.mxu0 0.0
        %1491 = vmatprep.subr.mxu0 0.0
        %1492 = vmatpush1.xpose.msra.mxu0 0.0
        %1493 = vmatprep.subr.mxu0 0.0
        %1494 = vmatpush1.xpose.msra.mxu0 0.0
        %1495 = vmatprep.subr.mxu0 0.0
        %1496 = vmatpush1.xpose.msra.mxu0 0.0
        %1497 = vmatprep.subr.mxu0 0.0
        %1498 = vmatpush1.xpose.msra.mxu0 0.0
        %1499 = vmatprep.subr.mxu0 0.0
        %1500 = vmatpush1.xpose.msra.mxu0 0.0
        %1501 = vmatprep.subr.mxu0 0.0
        %1502 = vmatpush1.xpose.msra.mxu0 0.0
        %1503 = vmatprep.subr.mxu0 0.0
        %1504 = vmatpush1.xpose.msra.mxu0 0.0
        %1505 = vmatprep.subr.mxu0 0.0
        %1506 = vmatpush1.xpose.msra.mxu0 0.0
        %1507 = vmatprep.subr.mxu0 0.0
        %1508 = vmatpush1.xpose.msra.mxu0 0.0
        %1509 = vmatprep.subr.mxu0 0.0
        %1510 = vmatpush1.xpose.msra.mxu0 0.0
        %1511 = vmatprep.subr.mxu0 0.0
        %1512 = vmatpush1.xpose.msra.mxu0 0.0
        %1513 = vmatprep.subr.mxu0 0.0
        %1514 = vmatpush1.xpose.msra.mxu0 0.0
        %1515 = vmatprep.subr.mxu0 0.0
        %1516 = vmatpush1.xpose.msra.mxu0 0.0
        %1517 = vmatprep.mubr.f32.mxu0 0.0
        %1518 = vmatmul.mubr.f32.gmra.mrb[0].mxu0 %v1442
        %v1519 = vpop.f32.mrb[0].mxu0
        %v1520 = vadd.f32 0.0, %v1519
        %v1521 = vpop.f32.mrb[0].mxu0
        %1522 = vmatprep.mubr.f32.mxu0 0.0
        %1523 = vmatmul.mubr.f32.gmra.mrb[0].mxu0 %v1445
        %v1524 = vpop.f32.mrb[0].mxu0
        %v1525 = vadd.f32 0.0, %v1524
        %v1526 = vpop.f32.mrb[0].mxu0
        %1527 = vdwg.mxu0
        %v1528 = vmul.f32 %v1520, 0.17677669
        %v1529 = vmul.f32 %v1525, 0.17677669
        %v1530 = vsel %vm710, %v1528, -inf
        %1531 = vmax.xlane.f32.xlu0 %v1530
        %v1532 = vpop.xlane.xlu0 %1531
        %v1533 = vsel %vm710, %v1529, -inf
        %1534 = vmax.xlane.f32.xlu0 %v1533
        %v1535 = vpop.xlane.xlu0 %1534
        %v1536 = vsub.f32 %v1528, %v1532
        %v1537 = vsub.f32 %v1529, %v1535
        %v1538 = vmul.f32 %v1536, 1.442695
        %v1539 = vpow.pop %v1538
        %v1540 = vmul.f32 %v1537, 1.442695
        %v1541 = vpow.pop %v1540
        %v1542 = vsel %vm710, %v1539, 0.0
        %1543 = vadd.xlane.f32.xlu0 %v1542
        %v1544 = vpop.xlane.xlu0 %1543
        %v1545 = vsel %vm710, %v1541, 0.0
        %1546 = vadd.xlane.f32.xlu0 %v1545
        %v1547 = vpop.xlane.xlu0 %1546
        %v1548 = vrcp.pop %v1544
        %v1549 = vrcp.pop %v1547
        %v1550 = vmul.f32 %v1539, %v1548
        %v1551 = vmul.f32 %v1541, %v1549
        %v1553 = vsel %vm710, %v1550, 0
        %v1556 = vsel %vm710, %v1551, 0
        %1558 = vmatprep.subr.mxu0 0.0
        %1559 = vmatpush1.msra.mxu0 %v1433
        %1560 = vmatprep.subr.mxu0 0.0
        %1561 = vmatpush1.msra.mxu0 %v1438
        %1562 = vmatprep.subr.mxu0 0.0
        %1563 = vmatpush1.msra.mxu0 0.0
        %1564 = vmatprep.subr.mxu0 0.0
        %1565 = vmatpush1.msra.mxu0 0.0
        %1566 = vmatprep.subr.mxu0 0.0
        %1567 = vmatpush1.msra.mxu0 0.0
        %1568 = vmatprep.subr.mxu0 0.0
        %1569 = vmatpush1.msra.mxu0 0.0
        %1570 = vmatprep.subr.mxu0 0.0
        %1571 = vmatpush1.msra.mxu0 0.0
        %1572 = vmatprep.subr.mxu0 0.0
        %1573 = vmatpush1.msra.mxu0 0.0
        %1574 = vmatprep.subr.mxu0 0.0
        %1575 = vmatpush1.msra.mxu0 0.0
        %1576 = vmatprep.subr.mxu0 0.0
        %1577 = vmatpush1.msra.mxu0 0.0
        %1578 = vmatprep.subr.mxu0 0.0
        %1579 = vmatpush1.msra.mxu0 0.0
        %1580 = vmatprep.subr.mxu0 0.0
        %1581 = vmatpush1.msra.mxu0 0.0
        %1582 = vmatprep.subr.mxu0 0.0
        %1583 = vmatpush1.msra.mxu0 0.0
        %1584 = vmatprep.subr.mxu0 0.0
        %1585 = vmatpush1.msra.mxu0 0.0
        %1586 = vmatprep.subr.mxu0 0.0
        %1587 = vmatpush1.msra.mxu0 0.0
        %1588 = vmatprep.subr.mxu0 0.0
        %1589 = vmatpush1.msra.mxu0 0.0
        %1590 = vmatprep.subr.mxu0 0.0
        %1591 = vmatpush1.msra.mxu0 0.0
        %1592 = vmatprep.subr.mxu0 0.0
        %1593 = vmatpush1.msra.mxu0 0.0
        %1594 = vmatprep.subr.mxu0 0.0
        %1595 = vmatpush1.msra.mxu0 0.0
        %1596 = vmatprep.subr.mxu0 0.0
        %1597 = vmatpush1.msra.mxu0 0.0
        %1598 = vmatprep.subr.mxu0 0.0
        %1599 = vmatpush1.msra.mxu0 0.0
        %1600 = vmatprep.subr.mxu0 0.0
        %1601 = vmatpush1.msra.mxu0 0.0
        %1602 = vmatprep.subr.mxu0 0.0
        %1603 = vmatpush1.msra.mxu0 0.0
        %1604 = vmatprep.subr.mxu0 0.0
        %1605 = vmatpush1.msra.mxu0 0.0
        %1606 = vmatprep.subr.mxu0 0.0
        %1607 = vmatpush1.msra.mxu0 0.0
        %1608 = vmatprep.subr.mxu0 0.0
        %1609 = vmatpush1.msra.mxu0 0.0
        %1610 = vmatprep.subr.mxu0 0.0
        %1611 = vmatpush1.msra.mxu0 0.0
        %1612 = vmatprep.subr.mxu0 0.0
        %1613 = vmatpush1.msra.mxu0 0.0
        %1614 = vmatprep.subr.mxu0 0.0
        %1615 = vmatpush1.msra.mxu0 0.0
        %1616 = vmatprep.subr.mxu0 0.0
        %1617 = vmatpush1.msra.mxu0 0.0
        %1618 = vmatprep.subr.mxu0 0.0
        %1619 = vmatpush1.msra.mxu0 0.0
        %1620 = vmatprep.subr.mxu0 0.0
        %1621 = vmatpush1.msra.mxu0 0.0
        %1622 = vmatprep.mubr.f32.mxu0 0.0
        %1623 = vmatmul.mubr.f32.gmra.mrb[0].mxu0 %v1553
        %v1624 = vpop.f32.mrb[0].mxu0
        %v1625 = vadd.f32 0.0, %v1624
        %v1626 = vpop.f32.mrb[0].mxu0
        %1627 = vmatprep.mubr.f32.mxu0 0.0
        %1628 = vmatmul.mubr.f32.gmra.mrb[0].mxu0 %v1556
        %v1629 = vpop.f32.mrb[0].mxu0
        %v1630 = vadd.f32 0.0, %v1629
        %v1631 = vpop.f32.mrb[0].mxu0
        %1632 = vdwg.mxu0
        %v1633 = vlaneseq
        %v1634 = vshrl.u32 %v1633, 7
        %v1635 = vsub.s32 0, %v1634
        %v1636 = vrot.slane %v1191, %v1635
        %v1638 = vsel %vm381, %v1625, 0
        %v1641 = vsel %vm381, %v1630, 0
        %1643 = vmatprep.subr.mxu0 0.0
        %1644 = vmatpush1.msra.mxu0 %v1169
        %1645 = vmatprep.subr.mxu0 0.0
        %1646 = vmatpush1.msra.mxu0 %v1170
        %1647 = vmatprep.subr.mxu0 0.0
        %1648 = vmatpush1.msra.mxu0 %v1171
        %1649 = vmatprep.subr.mxu0 0.0
        %1650 = vmatpush1.msra.mxu0 %v1172
        %1651 = vmatprep.subr.mxu0 0.0
        %1652 = vmatpush1.msra.mxu0 0.0
        %1653 = vmatprep.subr.mxu0 0.0
        %1654 = vmatpush1.msra.mxu0 0.0
        %1655 = vmatprep.subr.mxu0 0.0
        %1656 = vmatpush1.msra.mxu0 0.0
        %1657 = vmatprep.subr.mxu0 0.0
        %1658 = vmatpush1.msra.mxu0 0.0
        %1659 = vmatprep.subr.mxu0 0.0
        %1660 = vmatpush1.msra.mxu0 0.0
        %1661 = vmatprep.subr.mxu0 0.0
        %1662 = vmatpush1.msra.mxu0 0.0
        %1663 = vmatprep.subr.mxu0 0.0
        %1664 = vmatpush1.msra.mxu0 0.0
        %1665 = vmatprep.subr.mxu0 0.0
        %1666 = vmatpush1.msra.mxu0 0.0
        %1667 = vmatprep.subr.mxu0 0.0
        %1668 = vmatpush1.msra.mxu0 0.0
        %1669 = vmatprep.subr.mxu0 0.0
        %1670 = vmatpush1.msra.mxu0 0.0
        %1671 = vmatprep.subr.mxu0 0.0
        %1672 = vmatpush1.msra.mxu0 0.0
        %1673 = vmatprep.subr.mxu0 0.0
        %1674 = vmatpush1.msra.mxu0 0.0
        %1675 = vmatprep.subr.mxu0 0.0
        %1676 = vmatpush1.msra.mxu0 0.0
        %1677 = vmatprep.subr.mxu0 0.0
        %1678 = vmatpush1.msra.mxu0 0.0
        %1679 = vmatprep.subr.mxu0 0.0
        %1680 = vmatpush1.msra.mxu0 0.0
        %1681 = vmatprep.subr.mxu0 0.0
        %1682 = vmatpush1.msra.mxu0 0.0
        %1683 = vmatprep.subr.mxu0 0.0
        %1684 = vmatpush1.msra.mxu0 0.0
        %1685 = vmatprep.subr.mxu0 0.0
        %1686 = vmatpush1.msra.mxu0 0.0
        %1687 = vmatprep.subr.mxu0 0.0
        %1688 = vmatpush1.msra.mxu0 0.0
        %1689 = vmatprep.subr.mxu0 0.0
        %1690 = vmatpush1.msra.mxu0 0.0
        %1691 = vmatprep.subr.mxu0 0.0
        %1692 = vmatpush1.msra.mxu0 0.0
        %1693 = vmatprep.subr.mxu0 0.0
        %1694 = vmatpush1.msra.mxu0 0.0
        %1695 = vmatprep.subr.mxu0 0.0
        %1696 = vmatpush1.msra.mxu0 0.0
        %1697 = vmatprep.subr.mxu0 0.0
        %1698 = vmatpush1.msra.mxu0 0.0
        %1699 = vmatprep.subr.mxu0 0.0
        %1700 = vmatpush1.msra.mxu0 0.0
        %1701 = vmatprep.subr.mxu0 0.0
        %1702 = vmatpush1.msra.mxu0 0.0
        %1703 = vmatprep.subr.mxu0 0.0
        %1704 = vmatpush1.msra.mxu0 0.0
        %1705 = vmatprep.subr.mxu0 0.0
        %1706 = vmatpush1.msra.mxu0 0.0
        %1707 = vmatprep.mubr.f32.mxu0 0.0
        %1708 = vmatmul.mubr.f32.gmra.mrb[0].mxu0 %v1638
        %v1709 = vpop.f32.mrb[0].mxu0
        %v1710 = vadd.f32 %v1636, %v1709
        %v1711 = vpop.f32.mrb[0].mxu0
        %1712 = vmatprep.mubr.f32.mxu0 0.0
        %1713 = vmatmul.mubr.f32.gmra.mrb[0].mxu0 %v1641
        %v1714 = vpop.f32.mrb[0].mxu0
        %v1715 = vadd.f32 %v1636, %v1714
        %v1716 = vpop.f32.mrb[0].mxu0
        %1717 = vdwg.mxu0
        %v1718 = vadd.f32 %v1151, %v1710
        %v1719 = vadd.f32 %v1152, %v1715
        %v1720 = vsel %vm381, %v1718, 0.0
        %1721 = vadd.xlane.f32.xlu0 %v1720
        %v1722 = vpop.xlane.xlu0 %1721
        %v1723 = vsel %vm381, %v1719, 0.0
        %1724 = vadd.xlane.f32.xlu0 %v1723
        %v1725 = vpop.xlane.xlu0 %1724
        %v1726 = vmul.f32 %v1722, %v907
        %v1727 = vmul.f32 %v1725, %v907
        %v1728 = vsub.f32 %v1718, %v1726
        %v1729 = vsub.f32 %v1719, %v1727
        %v1730 = vmul.f32 %v1728, %v1728
        %v1731 = vmul.f32 %v1729, %v1729
        %v1732 = vsel %vm381, %v1730, 0.0
        %1733 = vadd.xlane.f32.xlu0 %v1732
        %v1734 = vpop.xlane.xlu0 %1733
        %v1735 = vsel %vm381, %v1731, 0.0
        %1736 = vadd.xlane.f32.xlu0 %v1735
        %v1737 = vpop.xlane.xlu0 %1736
        %v1738 = vmul.f32 %v1734, %v907
        %v1739 = vmul.f32 %v1737, %v907
        %v1740 = vadd.f32 %v1738, 1e-05
        %v1741 = vadd.f32 %v1739, 1e-05
        %v1742 = vrsqrt.pop %v1740
        %v1743 = vrsqrt.pop %v1741
        %v1744 = vmul.f32 %v1728, %v1742
        %v1745 = vmul.f32 %v1729, %v1743
        %v1746 = vlaneseq
        %v1747 = vshrl.u32 %v1746, 7
        %v1748 = vsub.s32 0, %v1747
        %v1749 = vrot.slane %v1194, %v1748
        %v1750 = vmul.f32 %v1744, %v1749
        %v1751 = vmul.f32 %v1745, %v1749
        %v1752 = vlaneseq
        %v1753 = vshrl.u32 %v1752, 7
        %v1754 = vsub.s32 0, %v1753
        %v1755 = vrot.slane %v1195, %v1754
        %v1756 = vadd.f32 %v1750, %v1755
        %v1757 = vadd.f32 %v1751, %v1755
        %v1758 = vlaneseq
        %v1759 = vshrl.u32 %v1758, 7
        %v1760 = vsub.s32 0, %v1759
        %v1761 = vrot.slane %v1192, %v1760
        %v1763 = vsel %vm381, %v1756, 0
        %v1766 = vsel %vm381, %v1757, 0
        %1768 = vmatprep.subr.mxu0 0.0
        %1769 = vmatpush1.msra.mxu0 %v1174
        %1770 = vmatprep.subr.mxu0 0.0
        %1771 = vmatpush1.msra.mxu0 %v1175
        %1772 = vmatprep.subr.mxu0 0.0
        %1773 = vmatpush1.msra.mxu0 %v1176
        %1774 = vmatprep.subr.mxu0 0.0
        %1775 = vmatpush1.msra.mxu0 %v1177
        %1776 = vmatprep.subr.mxu0 0.0
        %1777 = vmatpush1.msra.mxu0 0.0
        %1778 = vmatprep.subr.mxu0 0.0
        %1779 = vmatpush1.msra.mxu0 0.0
        %1780 = vmatprep.subr.mxu0 0.0
        %1781 = vmatpush1.msra.mxu0 0.0
        %1782 = vmatprep.subr.mxu0 0.0
        %1783 = vmatpush1.msra.mxu0 0.0
        %1784 = vmatprep.subr.mxu0 0.0
        %1785 = vmatpush1.msra.mxu0 0.0
        %1786 = vmatprep.subr.mxu0 0.0
        %1787 = vmatpush1.msra.mxu0 0.0
        %1788 = vmatprep.subr.mxu0 0.0
        %1789 = vmatpush1.msra.mxu0 0.0
        %1790 = vmatprep.subr.mxu0 0.0
        %1791 = vmatpush1.msra.mxu0 0.0
        %1792 = vmatprep.subr.mxu0 0.0
        %1793 = vmatpush1.msra.mxu0 0.0
        %1794 = vmatprep.subr.mxu0 0.0
        %1795 = vmatpush1.msra.mxu0 0.0
        %1796 = vmatprep.subr.mxu0 0.0
        %1797 = vmatpush1.msra.mxu0 0.0
        %1798 = vmatprep.subr.mxu0 0.0
        %1799 = vmatpush1.msra.mxu0 0.0
        %1800 = vmatprep.subr.mxu0 0.0
        %1801 = vmatpush1.msra.mxu0 0.0
        %1802 = vmatprep.subr.mxu0 0.0
        %1803 = vmatpush1.msra.mxu0 0.0
        %1804 = vmatprep.subr.mxu0 0.0
        %1805 = vmatpush1.msra.mxu0 0.0
        %1806 = vmatprep.subr.mxu0 0.0
        %1807 = vmatpush1.msra.mxu0 0.0
        %1808 = vmatprep.subr.mxu0 0.0
        %1809 = vmatpush1.msra.mxu0 0.0
        %1810 = vmatprep.subr.mxu0 0.0
        %1811 = vmatpush1.msra.mxu0 0.0
        %1812 = vmatprep.subr.mxu0 0.0
        %1813 = vmatpush1.msra.mxu0 0.0
        %1814 = vmatprep.subr.mxu0 0.0
        %1815 = vmatpush1.msra.mxu0 0.0
        %1816 = vmatprep.subr.mxu0 0.0
        %1817 = vmatpush1.msra.mxu0 0.0
        %1818 = vmatprep.subr.mxu0 0.0
        %1819 = vmatpush1.msra.mxu0 0.0
        %1820 = vmatprep.subr.mxu0 0.0
        %1821 = vmatpush1.msra.mxu0 0.0
        %1822 = vmatprep.subr.mxu0 0.0
        %1823 = vmatpush1.msra.mxu0 0.0
        %1824 = vmatprep.subr.mxu0 0.0
        %1825 = vmatpush1.msra.mxu0 0.0
        %1826 = vmatprep.subr.mxu0 0.0
        %1827 = vmatpush1.msra.mxu0 0.0
        %1828 = vmatprep.subr.mxu0 0.0
        %1829 = vmatpush1.msra.mxu0 0.0
        %1830 = vmatprep.subr.mxu0 0.0
        %1831 = vmatpush1.msra.mxu0 0.0
        %1832 = vmatprep.mubr.f32.mxu0 0.0
        %1833 = vmatmul.mubr.f32.gmra.mrb[0].mxu0 %v1763
        %v1834 = vpop.f32.mrb[0].mxu0
        %v1835 = vadd.f32 %v1761, %v1834
        %v1836 = vpop.f32.mrb[0].mxu0
        %1837 = vmatprep.mubr.f32.mxu0 0.0
        %1838 = vmatmul.mubr.f32.gmra.mrb[0].mxu0 %v1766
        %v1839 = vpop.f32.mrb[0].mxu0
        %v1840 = vadd.f32 %v1761, %v1839
        %v1841 = vpop.f32.mrb[0].mxu0
        %1842 = vdwg.mxu0
        %v1843 = vmax.f32 %v1835, 0.0
        %v1844 = vmax.f32 %v1840, 0.0
        %v1845 = vlaneseq
        %v1846 = vshrl.u32 %v1845, 7
        %v1847 = vsub.s32 0, %v1846
        %v1848 = vrot.slane %v1193, %v1847
        %v1850 = vsel %vm1031, %v1843, 0
        %v1853 = vsel %vm1031, %v1844, 0
        %1855 = vmatprep.subr.mxu0 0.0
        %1856 = vmatpush1.msra.mxu0 %v1179
        %1857 = vmatprep.subr.mxu0 0.0
        %1858 = vmatpush1.msra.mxu0 %v1180
        %1859 = vmatprep.subr.mxu0 0.0
        %1860 = vmatpush1.msra.mxu0 %v1181
        %1861 = vmatprep.subr.mxu0 0.0
        %1862 = vmatpush1.msra.mxu0 %v1182
        %1863 = vmatprep.subr.mxu0 0.0
        %1864 = vmatpush1.msra.mxu0 %v1183
        %1865 = vmatprep.subr.mxu0 0.0
        %1866 = vmatpush1.msra.mxu0 %v1184
        %1867 = vmatprep.subr.mxu0 0.0
        %1868 = vmatpush1.msra.mxu0 %v1185
        %1869 = vmatprep.subr.mxu0 0.0
        %1870 = vmatpush1.msra.mxu0 %v1186
        %1871 = vmatprep.subr.mxu0 0.0
        %1872 = vmatpush1.msra.mxu0 0.0
        %1873 = vmatprep.subr.mxu0 0.0
        %1874 = vmatpush1.msra.mxu0 0.0
        %1875 = vmatprep.subr.mxu0 0.0
        %1876 = vmatpush1.msra.mxu0 0.0
        %1877 = vmatprep.subr.mxu0 0.0
        %1878 = vmatpush1.msra.mxu0 0.0
        %1879 = vmatprep.subr.mxu0 0.0
        %1880 = vmatpush1.msra.mxu0 0.0
        %1881 = vmatprep.subr.mxu0 0.0
        %1882 = vmatpush1.msra.mxu0 0.0
        %1883 = vmatprep.subr.mxu0 0.0
        %1884 = vmatpush1.msra.mxu0 0.0
        %1885 = vmatprep.subr.mxu0 0.0
        %1886 = vmatpush1.msra.mxu0 0.0
        %1887 = vmatprep.subr.mxu0 0.0
        %1888 = vmatpush1.msra.mxu0 0.0
        %1889 = vmatprep.subr.mxu0 0.0
        %1890 = vmatpush1.msra.mxu0 0.0
        %1891 = vmatprep.subr.mxu0 0.0
        %1892 = vmatpush1.msra.mxu0 0.0
        %1893 = vmatprep.subr.mxu0 0.0
        %1894 = vmatpush1.msra.mxu0 0.0
        %1895 = vmatprep.subr.mxu0 0.0
        %1896 = vmatpush1.msra.mxu0 0.0
        %1897 = vmatprep.subr.mxu0 0.0
        %1898 = vmatpush1.msra.mxu0 0.0
        %1899 = vmatprep.subr.mxu0 0.0
        %1900 = vmatpush1.msra.mxu0 0.0
        %1901 = vmatprep.subr.mxu0 0.0
        %1902 = vmatpush1.msra.mxu0 0.0
        %1903 = vmatprep.subr.mxu0 0.0
        %1904 = vmatpush1.msra.mxu0 0.0
        %1905 = vmatprep.subr.mxu0 0.0
        %1906 = vmatpush1.msra.mxu0 0.0
        %1907 = vmatprep.subr.mxu0 0.0
        %1908 = vmatpush1.msra.mxu0 0.0
        %1909 = vmatprep.subr.mxu0 0.0
        %1910 = vmatpush1.msra.mxu0 0.0
        %1911 = vmatprep.subr.mxu0 0.0
        %1912 = vmatpush1.msra.mxu0 0.0
        %1913 = vmatprep.subr.mxu0 0.0
        %1914 = vmatpush1.msra.mxu0 0.0
        %1915 = vmatprep.subr.mxu0 0.0
        %1916 = vmatpush1.msra.mxu0 0.0
        %1917 = vmatprep.subr.mxu0 0.0
        %1918 = vmatpush1.msra.mxu0 0.0
        %1919 = vmatprep.mubr.f32.mxu0 0.0
        %1920 = vmatmul.mubr.f32.gmra.mrb[0].mxu0 %v1850
        %v1921 = vpop.f32.mrb[0].mxu0
        %v1922 = vadd.f32 %v1848, %v1921
        %v1923 = vpop.f32.mrb[0].mxu0
        %1924 = vmatprep.mubr.f32.mxu0 0.0
        %1925 = vmatmul.mubr.f32.gmra.mrb[0].mxu0 %v1853
        %v1926 = vpop.f32.mrb[0].mxu0
        %v1927 = vadd.f32 %v1848, %v1926
        %v1928 = vpop.f32.mrb[0].mxu0
        %1929 = vdwg.mxu0
        %v1930 = vadd.f32 %v1756, %v1922
        %v1931 = vadd.f32 %v1757, %v1927
        %v1932 = vsel %vm381, %v1930, 0.0
        %1933 = vadd.xlane.f32.xlu0 %v1932
        %v1934 = vpop.xlane.xlu0 %1933
        %v1935 = vsel %vm381, %v1931, 0.0
        %1936 = vadd.xlane.f32.xlu0 %v1935
        %v1937 = vpop.xlane.xlu0 %1936
        %v1938 = vmul.f32 %v1934, %v907
        %v1939 = vmul.f32 %v1937, %v907
        %v1940 = vsub.f32 %v1930, %v1938
        %v1941 = vsub.f32 %v1931, %v1939
        %v1942 = vmul.f32 %v1940, %v1940
        %v1943 = vmul.f32 %v1941, %v1941
        %v1944 = vsel %vm381, %v1942, 0.0
        %1945 = vadd.xlane.f32.xlu0 %v1944
        %v1946 = vpop.xlane.xlu0 %1945
        %v1947 = vsel %vm381, %v1943, 0.0
        %1948 = vadd.xlane.f32.xlu0 %v1947
        %v1949 = vpop.xlane.xlu0 %1948
        %v1950 = vmul.f32 %v1946, %v907
        %v1951 = vmul.f32 %v1949, %v907
        %v1952 = vadd.f32 %v1950, 1e-05
        %v1953 = vadd.f32 %v1951, 1e-05
        %v1954 = vrsqrt.pop %v1952
        %v1955 = vrsqrt.pop %v1953
        %v1956 = vmul.f32 %v1940, %v1954
        %v1957 = vmul.f32 %v1941, %v1955
        %v1958 = vlaneseq
        %v1959 = vshrl.u32 %v1958, 7
        %v1960 = vsub.s32 0, %v1959
        %v1961 = vrot.slane %v1196, %v1960
        %v1962 = vmul.f32 %v1956, %v1961
        %v1963 = vmul.f32 %v1957, %v1961
        %v1964 = vlaneseq
        %v1965 = vshrl.u32 %v1964, 7
        %v1966 = vsub.s32 0, %v1965
        %v1967 = vrot.slane %v1197, %v1966
        %v1968 = vadd.f32 %v1962, %v1967
        %v1969 = vadd.f32 %v1963, %v1967
        %s1970 = scalar_lea.vmem %s2, 64
        %v1971 = vld [vmem:[%s1970] sm:$0xff]
        %v1972 = vld [vmem:[%s1970 + $0x8] sm:$0xff]
        %v1973 = vld [vmem:[%s1970 + $0x10] sm:$0xff]
        %v1974 = vld [vmem:[%s1970 + $0x18] sm:$0xff]
        %s1975 = scalar_lea.vmem %s3, 64
        %v1976 = vld [vmem:[%s1975] sm:$0xff]
        %v1977 = vld [vmem:[%s1975 + $0x8] sm:$0xff]
        %v1978 = vld [vmem:[%s1975 + $0x10] sm:$0xff]
        %v1979 = vld [vmem:[%s1975 + $0x18] sm:$0xff]
        %s1980 = scalar_lea.vmem %s4, 64
        %v1981 = vld [vmem:[%s1980] sm:$0xff]
        %v1982 = vld [vmem:[%s1980 + $0x8] sm:$0xff]
        %v1983 = vld [vmem:[%s1980 + $0x10] sm:$0xff]
        %v1984 = vld [vmem:[%s1980 + $0x18] sm:$0xff]
        %s1985 = scalar_lea.vmem %s5, 64
        %v1986 = vld [vmem:[%s1985] sm:$0xff]
        %v1987 = vld [vmem:[%s1985 + $0x8] sm:$0xff]
        %v1988 = vld [vmem:[%s1985 + $0x10] sm:$0xff]
        %v1989 = vld [vmem:[%s1985 + $0x18] sm:$0xff]
        %s1990 = scalar_lea.vmem %s6, 64
        %v1991 = vld [vmem:[%s1990] sm:$0xff]
        %v1992 = vld [vmem:[%s1990 + $0x8] sm:$0xff]
        %v1993 = vld [vmem:[%s1990 + $0x10] sm:$0xff]
        %v1994 = vld [vmem:[%s1990 + $0x18] sm:$0xff]
        %s1995 = scalar_lea.vmem %s7, 128
        %v1996 = vld [vmem:[%s1995] sm:$0xff]
        %v1997 = vld [vmem:[%s1995 + $0x8] sm:$0xff]
        %v1998 = vld [vmem:[%s1995 + $0x10] sm:$0xff]
        %v1999 = vld [vmem:[%s1995 + $0x18] sm:$0xff]
        %v2000 = vld [vmem:[%s1995 + $0x20] sm:$0xff]
        %v2001 = vld [vmem:[%s1995 + $0x28] sm:$0xff]
        %v2002 = vld [vmem:[%s1995 + $0x30] sm:$0xff]
        %v2003 = vld [vmem:[%s1995 + $0x38] sm:$0xff]
        %s2004 = scalar_lea.vmem %s8, 32
        %v2005 = vld [vmem:[%s2004] sm:$0x1]
        %v2006 = vld [vmem:[%s2004 + $0x1] sm:$0x1]
        %v2007 = vld [vmem:[%s2004 + $0x2] sm:$0x1]
        %v2008 = vld [vmem:[%s2004 + $0x3] sm:$0x1]
        %v2009 = vld [vmem:[%s2004 + $0x4] sm:$0x1]
        %v2010 = vld [vmem:[%s2004 + $0x5] sm:$0x1]
        %v2011 = vld [vmem:[%s2004 + $0x6] sm:$0x1]
        %v2012 = vld [vmem:[%s2004 + $0x7] sm:$0x1]
        %v2013 = vld [vmem:[%s2004 + $0x8] sm:$0x1]
        %v2014 = vld [vmem:[%s2004 + $0x9] sm:$0x1]
        %v2015 = vlaneseq
        %v2016 = vshrl.u32 %v2015, 7
        %v2017 = vsub.s32 0, %v2016
        %v2018 = vrot.slane %v2005, %v2017
        %v2020 = vsel %vm381, %v1968, 0
        %v2023 = vsel %vm381, %v1969, 0
        %2025 = vmatprep.subr.mxu0 0.0
        %2026 = vmatpush1.msra.mxu0 %v1971
        %2027 = vmatprep.subr.mxu0 0.0
        %2028 = vmatpush1.msra.mxu0 %v1972
        %2029 = vmatprep.subr.mxu0 0.0
        %2030 = vmatpush1.msra.mxu0 %v1973
        %2031 = vmatprep.subr.mxu0 0.0
        %2032 = vmatpush1.msra.mxu0 %v1974
        %2033 = vmatprep.subr.mxu0 0.0
        %2034 = vmatpush1.msra.mxu0 0.0
        %2035 = vmatprep.subr.mxu0 0.0
        %2036 = vmatpush1.msra.mxu0 0.0
        %2037 = vmatprep.subr.mxu0 0.0
        %2038 = vmatpush1.msra.mxu0 0.0
        %2039 = vmatprep.subr.mxu0 0.0
        %2040 = vmatpush1.msra.mxu0 0.0
        %2041 = vmatprep.subr.mxu0 0.0
        %2042 = vmatpush1.msra.mxu0 0.0
        %2043 = vmatprep.subr.mxu0 0.0
        %2044 = vmatpush1.msra.mxu0 0.0
        %2045 = vmatprep.subr.mxu0 0.0
        %2046 = vmatpush1.msra.mxu0 0.0
        %2047 = vmatprep.subr.mxu0 0.0
        %2048 = vmatpush1.msra.mxu0 0.0
        %2049 = vmatprep.subr.mxu0 0.0
        %2050 = vmatpush1.msra.mxu0 0.0
        %2051 = vmatprep.subr.mxu0 0.0
        %2052 = vmatpush1.msra.mxu0 0.0
        %2053 = vmatprep.subr.mxu0 0.0
        %2054 = vmatpush1.msra.mxu0 0.0
        %2055 = vmatprep.subr.mxu0 0.0
        %2056 = vmatpush1.msra.mxu0 0.0
        %2057 = vmatprep.subr.mxu0 0.0
        %2058 = vmatpush1.msra.mxu0 0.0
        %2059 = vmatprep.subr.mxu0 0.0
        %2060 = vmatpush1.msra.mxu0 0.0
        %2061 = vmatprep.subr.mxu0 0.0
        %2062 = vmatpush1.msra.mxu0 0.0
        %2063 = vmatprep.subr.mxu0 0.0
        %2064 = vmatpush1.msra.mxu0 0.0
        %2065 = vmatprep.subr.mxu0 0.0
        %2066 = vmatpush1.msra.mxu0 0.0
        %2067 = vmatprep.subr.mxu0 0.0
        %2068 = vmatpush1.msra.mxu0 0.0
        %2069 = vmatprep.subr.mxu0 0.0
        %2070 = vmatpush1.msra.mxu0 0.0
        %2071 = vmatprep.subr.mxu0 0.0
        %2072 = vmatpush1.msra.mxu0 0.0
        %2073 = vmatprep.subr.mxu0 0.0
        %2074 = vmatpush1.msra.mxu0 0.0
        %2075 = vmatprep.subr.mxu0 0.0
        %2076 = vmatpush1.msra.mxu0 0.0
        %2077 = vmatprep.subr.mxu0 0.0
        %2078 = vmatpush1.msra.mxu0 0.0
        %2079 = vmatprep.subr.mxu0 0.0
        %2080 = vmatpush1.msra.mxu0 0.0
        %2081 = vmatprep.subr.mxu0 0.0
        %2082 = vmatpush1.msra.mxu0 0.0
        %2083 = vmatprep.subr.mxu0 0.0
        %2084 = vmatpush1.msra.mxu0 0.0
        %2085 = vmatprep.subr.mxu0 0.0
        %2086 = vmatpush1.msra.mxu0 0.0
        %2087 = vmatprep.subr.mxu0 0.0
        %2088 = vmatpush1.msra.mxu0 0.0
        %2089 = vmatprep.mubr.f32.mxu0 0.0
        %2090 = vmatmul.mubr.f32.gmra.mrb[0].mxu0 %v2020
        %v2091 = vpop.f32.mrb[0].mxu0
        %v2092 = vadd.f32 %v2018, %v2091
        %v2093 = vpop.f32.mrb[0].mxu0
        %2094 = vmatprep.mubr.f32.mxu0 0.0
        %2095 = vmatmul.mubr.f32.gmra.mrb[0].mxu0 %v2023
        %v2096 = vpop.f32.mrb[0].mxu0
        %v2097 = vadd.f32 %v2018, %v2096
        %v2098 = vpop.f32.mrb[0].mxu0
        %2099 = vdwg.mxu0
        %v2100 = vlaneseq
        %v2101 = vshrl.u32 %v2100, 7
        %v2102 = vsub.s32 0, %v2101
        %v2103 = vrot.slane %v2006, %v2102
        %2104 = vmatprep.subr.mxu0 0.0
        %2105 = vmatpush1.msra.mxu0 %v1976
        %2106 = vmatprep.subr.mxu0 0.0
        %2107 = vmatpush1.msra.mxu0 %v1977
        %2108 = vmatprep.subr.mxu0 0.0
        %2109 = vmatpush1.msra.mxu0 %v1978
        %2110 = vmatprep.subr.mxu0 0.0
        %2111 = vmatpush1.msra.mxu0 %v1979
        %2112 = vmatprep.subr.mxu0 0.0
        %2113 = vmatpush1.msra.mxu0 0.0
        %2114 = vmatprep.subr.mxu0 0.0
        %2115 = vmatpush1.msra.mxu0 0.0
        %2116 = vmatprep.subr.mxu0 0.0
        %2117 = vmatpush1.msra.mxu0 0.0
        %2118 = vmatprep.subr.mxu0 0.0
        %2119 = vmatpush1.msra.mxu0 0.0
        %2120 = vmatprep.subr.mxu0 0.0
        %2121 = vmatpush1.msra.mxu0 0.0
        %2122 = vmatprep.subr.mxu0 0.0
        %2123 = vmatpush1.msra.mxu0 0.0
        %2124 = vmatprep.subr.mxu0 0.0
        %2125 = vmatpush1.msra.mxu0 0.0
        %2126 = vmatprep.subr.mxu0 0.0
        %2127 = vmatpush1.msra.mxu0 0.0
        %2128 = vmatprep.subr.mxu0 0.0
        %2129 = vmatpush1.msra.mxu0 0.0
        %2130 = vmatprep.subr.mxu0 0.0
        %2131 = vmatpush1.msra.mxu0 0.0
        %2132 = vmatprep.subr.mxu0 0.0
        %2133 = vmatpush1.msra.mxu0 0.0
        %2134 = vmatprep.subr.mxu0 0.0
        %2135 = vmatpush1.msra.mxu0 0.0
        %2136 = vmatprep.subr.mxu0 0.0
        %2137 = vmatpush1.msra.mxu0 0.0
        %2138 = vmatprep.subr.mxu0 0.0
        %2139 = vmatpush1.msra.mxu0 0.0
        %2140 = vmatprep.subr.mxu0 0.0
        %2141 = vmatpush1.msra.mxu0 0.0
        %2142 = vmatprep.subr.mxu0 0.0
        %2143 = vmatpush1.msra.mxu0 0.0
        %2144 = vmatprep.subr.mxu0 0.0
        %2145 = vmatpush1.msra.mxu0 0.0
        %2146 = vmatprep.subr.mxu0 0.0
        %2147 = vmatpush1.msra.mxu0 0.0
        %2148 = vmatprep.subr.mxu0 0.0
        %2149 = vmatpush1.msra.mxu0 0.0
        %2150 = vmatprep.subr.mxu0 0.0
        %2151 = vmatpush1.msra.mxu0 0.0
        %2152 = vmatprep.subr.mxu0 0.0
        %2153 = vmatpush1.msra.mxu0 0.0
        %2154 = vmatprep.subr.mxu0 0.0
        %2155 = vmatpush1.msra.mxu0 0.0
        %2156 = vmatprep.subr.mxu0 0.0
        %2157 = vmatpush1.msra.mxu0 0.0
        %2158 = vmatprep.subr.mxu0 0.0
        %2159 = vmatpush1.msra.mxu0 0.0
        %2160 = vmatprep.subr.mxu0 0.0
        %2161 = vmatpush1.msra.mxu0 0.0
        %2162 = vmatprep.subr.mxu0 0.0
        %2163 = vmatpush1.msra.mxu0 0.0
        %2164 = vmatprep.subr.mxu0 0.0
        %2165 = vmatpush1.msra.mxu0 0.0
        %2166 = vmatprep.subr.mxu0 0.0
        %2167 = vmatpush1.msra.mxu0 0.0
        %2168 = vmatprep.mubr.f32.mxu0 0.0
        %2169 = vmatmul.mubr.f32.gmra.mrb[0].mxu0 %v2020
        %v2170 = vpop.f32.mrb[0].mxu0
        %v2171 = vadd.f32 %v2103, %v2170
        %v2172 = vpop.f32.mrb[0].mxu0
        %2173 = vmatprep.mubr.f32.mxu0 0.0
        %2174 = vmatmul.mubr.f32.gmra.mrb[0].mxu0 %v2023
        %v2175 = vpop.f32.mrb[0].mxu0
        %v2176 = vadd.f32 %v2103, %v2175
        %v2177 = vpop.f32.mrb[0].mxu0
        %2178 = vdwg.mxu0
        %v2179 = vlaneseq
        %v2180 = vshrl.u32 %v2179, 7
        %v2181 = vsub.s32 0, %v2180
        %v2182 = vrot.slane %v2007, %v2181
        %2183 = vmatprep.subr.mxu0 0.0
        %2184 = vmatpush1.msra.mxu0 %v1981
        %2185 = vmatprep.subr.mxu0 0.0
        %2186 = vmatpush1.msra.mxu0 %v1982
        %2187 = vmatprep.subr.mxu0 0.0
        %2188 = vmatpush1.msra.mxu0 %v1983
        %2189 = vmatprep.subr.mxu0 0.0
        %2190 = vmatpush1.msra.mxu0 %v1984
        %2191 = vmatprep.subr.mxu0 0.0
        %2192 = vmatpush1.msra.mxu0 0.0
        %2193 = vmatprep.subr.mxu0 0.0
        %2194 = vmatpush1.msra.mxu0 0.0
        %2195 = vmatprep.subr.mxu0 0.0
        %2196 = vmatpush1.msra.mxu0 0.0
        %2197 = vmatprep.subr.mxu0 0.0
        %2198 = vmatpush1.msra.mxu0 0.0
        %2199 = vmatprep.subr.mxu0 0.0
        %2200 = vmatpush1.msra.mxu0 0.0
        %2201 = vmatprep.subr.mxu0 0.0
        %2202 = vmatpush1.msra.mxu0 0.0
        %2203 = vmatprep.subr.mxu0 0.0
        %2204 = vmatpush1.msra.mxu0 0.0
        %2205 = vmatprep.subr.mxu0 0.0
        %2206 = vmatpush1.msra.mxu0 0.0
        %2207 = vmatprep.subr.mxu0 0.0
        %2208 = vmatpush1.msra.mxu0 0.0
        %2209 = vmatprep.subr.mxu0 0.0
        %2210 = vmatpush1.msra.mxu0 0.0
        %2211 = vmatprep.subr.mxu0 0.0
        %2212 = vmatpush1.msra.mxu0 0.0
        %2213 = vmatprep.subr.mxu0 0.0
        %2214 = vmatpush1.msra.mxu0 0.0
        %2215 = vmatprep.subr.mxu0 0.0
        %2216 = vmatpush1.msra.mxu0 0.0
        %2217 = vmatprep.subr.mxu0 0.0
        %2218 = vmatpush1.msra.mxu0 0.0
        %2219 = vmatprep.subr.mxu0 0.0
        %2220 = vmatpush1.msra.mxu0 0.0
        %2221 = vmatprep.subr.mxu0 0.0
        %2222 = vmatpush1.msra.mxu0 0.0
        %2223 = vmatprep.subr.mxu0 0.0
        %2224 = vmatpush1.msra.mxu0 0.0
        %2225 = vmatprep.subr.mxu0 0.0
        %2226 = vmatpush1.msra.mxu0 0.0
        %2227 = vmatprep.subr.mxu0 0.0
        %2228 = vmatpush1.msra.mxu0 0.0
        %2229 = vmatprep.subr.mxu0 0.0
        %2230 = vmatpush1.msra.mxu0 0.0
        %2231 = vmatprep.subr.mxu0 0.0
        %2232 = vmatpush1.msra.mxu0 0.0
        %2233 = vmatprep.subr.mxu0 0.0
        %2234 = vmatpush1.msra.mxu0 0.0
        %2235 = vmatprep.subr.mxu0 0.0
        %2236 = vmatpush1.msra.mxu0 0.0
        %2237 = vmatprep.subr.mxu0 0.0
        %2238 = vmatpush1.msra.mxu0 0.0
        %2239 = vmatprep.subr.mxu0 0.0
        %2240 = vmatpush1.msra.mxu0 0.0
        %2241 = vmatprep.subr.mxu0 0.0
        %2242 = vmatpush1.msra.mxu0 0.0
        %2243 = vmatprep.subr.mxu0 0.0
        %2244 = vmatpush1.msra.mxu0 0.0
        %2245 = vmatprep.subr.mxu0 0.0
        %2246 = vmatpush1.msra.mxu0 0.0
        %2247 = vmatprep.mubr.f32.mxu0 0.0
        %2248 = vmatmul.mubr.f32.gmra.mrb[0].mxu0 %v2020
        %v2249 = vpop.f32.mrb[0].mxu0
        %v2250 = vadd.f32 %v2182, %v2249
        %v2251 = vpop.f32.mrb[0].mxu0
        %2252 = vmatprep.mubr.f32.mxu0 0.0
        %2253 = vmatmul.mubr.f32.gmra.mrb[0].mxu0 %v2023
        %v2254 = vpop.f32.mrb[0].mxu0
        %v2255 = vadd.f32 %v2182, %v2254
        %v2256 = vpop.f32.mrb[0].mxu0
        %2257 = vdwg.mxu0
        %v2259 = vsel %vm381, %v2092, 0
        %v2262 = vsel %vm381, %v2097, 0
        %v2265 = vsel %vm381, %v2171, 0
        %v2268 = vsel %vm381, %v2176, 0
        %2270 = vmatprep.subr.mxu0 0.0
        %2271 = vmatpush1.xpose.msra.mxu0 %v2265
        %2272 = vmatprep.subr.mxu0 0.0
        %2273 = vmatpush1.xpose.msra.mxu0 %v2268
        %2274 = vmatprep.subr.mxu0 0.0
        %2275 = vmatpush1.xpose.msra.mxu0 0.0
        %2276 = vmatprep.subr.mxu0 0.0
        %2277 = vmatpush1.xpose.msra.mxu0 0.0
        %2278 = vmatprep.subr.mxu0 0.0
        %2279 = vmatpush1.xpose.msra.mxu0 0.0
        %2280 = vmatprep.subr.mxu0 0.0
        %2281 = vmatpush1.xpose.msra.mxu0 0.0
        %2282 = vmatprep.subr.mxu0 0.0
        %2283 = vmatpush1.xpose.msra.mxu0 0.0
        %2284 = vmatprep.subr.mxu0 0.0
        %2285 = vmatpush1.xpose.msra.mxu0 0.0
        %2286 = vmatprep.subr.mxu0 0.0
        %2287 = vmatpush1.xpose.msra.mxu0 0.0
        %2288 = vmatprep.subr.mxu0 0.0
        %2289 = vmatpush1.xpose.msra.mxu0 0.0
        %2290 = vmatprep.subr.mxu0 0.0
        %2291 = vmatpush1.xpose.msra.mxu0 0.0
        %2292 = vmatprep.subr.mxu0 0.0
        %2293 = vmatpush1.xpose.msra.mxu0 0.0
        %2294 = vmatprep.subr.mxu0 0.0
        %2295 = vmatpush1.xpose.msra.mxu0 0.0
        %2296 = vmatprep.subr.mxu0 0.0
        %2297 = vmatpush1.xpose.msra.mxu0 0.0
        %2298 = vmatprep.subr.mxu0 0.0
        %2299 = vmatpush1.xpose.msra.mxu0 0.0
        %2300 = vmatprep.subr.mxu0 0.0
        %2301 = vmatpush1.xpose.msra.mxu0 0.0
        %2302 = vmatprep.subr.mxu0 0.0
        %2303 = vmatpush1.xpose.msra.mxu0 0.0
        %2304 = vmatprep.subr.mxu0 0.0
        %2305 = vmatpush1.xpose.msra.mxu0 0.0
        %2306 = vmatprep.subr.mxu0 0.0
        %2307 = vmatpush1.xpose.msra.mxu0 0.0
        %2308 = vmatprep.subr.mxu0 0.0
        %2309 = vmatpush1.xpose.msra.mxu0 0.0
        %2310 = vmatprep.subr.mxu0 0.0
        %2311 = vmatpush1.xpose.msra.mxu0 0.0
        %2312 = vmatprep.subr.mxu0 0.0
        %2313 = vmatpush1.xpose.msra.mxu0 0.0
        %2314 = vmatprep.subr.mxu0 0.0
        %2315 = vmatpush1.xpose.msra.mxu0 0.0
        %2316 = vmatprep.subr.mxu0 0.0
        %2317 = vmatpush1.xpose.msra.mxu0 0.0
        %2318 = vmatprep.subr.mxu0 0.0
        %2319 = vmatpush1.xpose.msra.mxu0 0.0
        %2320 = vmatprep.subr.mxu0 0.0
        %2321 = vmatpush1.xpose.msra.mxu0 0.0
        %2322 = vmatprep.subr.mxu0 0.0
        %2323 = vmatpush1.xpose.msra.mxu0 0.0
        %2324 = vmatprep.subr.mxu0 0.0
        %2325 = vmatpush1.xpose.msra.mxu0 0.0
        %2326 = vmatprep.subr.mxu0 0.0
        %2327 = vmatpush1.xpose.msra.mxu0 0.0
        %2328 = vmatprep.subr.mxu0 0.0
        %2329 = vmatpush1.xpose.msra.mxu0 0.0
        %2330 = vmatprep.subr.mxu0 0.0
        %2331 = vmatpush1.xpose.msra.mxu0 0.0
        %2332 = vmatprep.subr.mxu0 0.0
        %2333 = vmatpush1.xpose.msra.mxu0 0.0
        %2334 = vmatprep.mubr.f32.mxu0 0.0
        %2335 = vmatmul.mubr.f32.gmra.mrb[0].mxu0 %v2259
        %v2336 = vpop.f32.mrb[0].mxu0
        %v2337 = vadd.f32 0.0, %v2336
        %v2338 = vpop.f32.mrb[0].mxu0
        %2339 = vmatprep.mubr.f32.mxu0 0.0
        %2340 = vmatmul.mubr.f32.gmra.mrb[0].mxu0 %v2262
        %v2341 = vpop.f32.mrb[0].mxu0
        %v2342 = vadd.f32 0.0, %v2341
        %v2343 = vpop.f32.mrb[0].mxu0
        %2344 = vdwg.mxu0
        %v2345 = vmul.f32 %v2337, 0.17677669
        %v2346 = vmul.f32 %v2342, 0.17677669
        %v2347 = vsel %vm710, %v2345, -inf
        %2348 = vmax.xlane.f32.xlu0 %v2347
        %v2349 = vpop.xlane.xlu0 %2348
        %v2350 = vsel %vm710, %v2346, -inf
        %2351 = vmax.xlane.f32.xlu0 %v2350
        %v2352 = vpop.xlane.xlu0 %2351
        %v2353 = vsub.f32 %v2345, %v2349
        %v2354 = vsub.f32 %v2346, %v2352
        %v2355 = vmul.f32 %v2353, 1.442695
        %v2356 = vpow.pop %v2355
        %v2357 = vmul.f32 %v2354, 1.442695
        %v2358 = vpow.pop %v2357
        %v2359 = vsel %vm710, %v2356, 0.0
        %2360 = vadd.xlane.f32.xlu0 %v2359
        %v2361 = vpop.xlane.xlu0 %2360
        %v2362 = vsel %vm710, %v2358, 0.0
        %2363 = vadd.xlane.f32.xlu0 %v2362
        %v2364 = vpop.xlane.xlu0 %2363
        %v2365 = vrcp.pop %v2361
        %v2366 = vrcp.pop %v2364
        %v2367 = vmul.f32 %v2356, %v2365
        %v2368 = vmul.f32 %v2358, %v2366
        %v2370 = vsel %vm710, %v2367, 0
        %v2373 = vsel %vm710, %v2368, 0
        %2375 = vmatprep.subr.mxu0 0.0
        %2376 = vmatpush1.msra.mxu0 %v2250
        %2377 = vmatprep.subr.mxu0 0.0
        %2378 = vmatpush1.msra.mxu0 %v2255
        %2379 = vmatprep.subr.mxu0 0.0
        %2380 = vmatpush1.msra.mxu0 0.0
        %2381 = vmatprep.subr.mxu0 0.0
        %2382 = vmatpush1.msra.mxu0 0.0
        %2383 = vmatprep.subr.mxu0 0.0
        %2384 = vmatpush1.msra.mxu0 0.0
        %2385 = vmatprep.subr.mxu0 0.0
        %2386 = vmatpush1.msra.mxu0 0.0
        %2387 = vmatprep.subr.mxu0 0.0
        %2388 = vmatpush1.msra.mxu0 0.0
        %2389 = vmatprep.subr.mxu0 0.0
        %2390 = vmatpush1.msra.mxu0 0.0
        %2391 = vmatprep.subr.mxu0 0.0
        %2392 = vmatpush1.msra.mxu0 0.0
        %2393 = vmatprep.subr.mxu0 0.0
        %2394 = vmatpush1.msra.mxu0 0.0
        %2395 = vmatprep.subr.mxu0 0.0
        %2396 = vmatpush1.msra.mxu0 0.0
        %2397 = vmatprep.subr.mxu0 0.0
        %2398 = vmatpush1.msra.mxu0 0.0
        %2399 = vmatprep.subr.mxu0 0.0
        %2400 = vmatpush1.msra.mxu0 0.0
        %2401 = vmatprep.subr.mxu0 0.0
        %2402 = vmatpush1.msra.mxu0 0.0
        %2403 = vmatprep.subr.mxu0 0.0
        %2404 = vmatpush1.msra.mxu0 0.0
        %2405 = vmatprep.subr.mxu0 0.0
        %2406 = vmatpush1.msra.mxu0 0.0
        %2407 = vmatprep.subr.mxu0 0.0
        %2408 = vmatpush1.msra.mxu0 0.0
        %2409 = vmatprep.subr.mxu0 0.0
        %2410 = vmatpush1.msra.mxu0 0.0
        %2411 = vmatprep.subr.mxu0 0.0
        %2412 = vmatpush1.msra.mxu0 0.0
        %2413 = vmatprep.subr.mxu0 0.0
        %2414 = vmatpush1.msra.mxu0 0.0
        %2415 = vmatprep.subr.mxu0 0.0
        %2416 = vmatpush1.msra.mxu0 0.0
        %2417 = vmatprep.subr.mxu0 0.0
        %2418 = vmatpush1.msra.mxu0 0.0
        %2419 = vmatprep.subr.mxu0 0.0
        %2420 = vmatpush1.msra.mxu0 0.0
        %2421 = vmatprep.subr.mxu0 0.0
        %2422 = vmatpush1.msra.mxu0 0.0
        %2423 = vmatprep.subr.mxu0 0.0
        %2424 = vmatpush1.msra.mxu0 0.0
        %2425 = vmatprep.subr.mxu0 0.0
        %2426 = vmatpush1.msra.mxu0 0.0
        %2427 = vmatprep.subr.mxu0 0.0
        %2428 = vmatpush1.msra.mxu0 0.0
        %2429 = vmatprep.subr.mxu0 0.0
        %2430 = vmatpush1.msra.mxu0 0.0
        %2431 = vmatprep.subr.mxu0 0.0
        %2432 = vmatpush1.msra.mxu0 0.0
        %2433 = vmatprep.subr.mxu0 0.0
        %2434 = vmatpush1.msra.mxu0 0.0
        %2435 = vmatprep.subr.mxu0 0.0
        %2436 = vmatpush1.msra.mxu0 0.0
        %2437 = vmatprep.subr.mxu0 0.0
        %2438 = vmatpush1.msra.mxu0 0.0
        %2439 = vmatprep.mubr.f32.mxu0 0.0
        %2440 = vmatmul.mubr.f32.gmra.mrb[0].mxu0 %v2370
        %v2441 = vpop.f32.mrb[0].mxu0
        %v2442 = vadd.f32 0.0, %v2441
        %v2443 = vpop.f32.mrb[0].mxu0
        %2444 = vmatprep.mubr.f32.mxu0 0.0
        %2445 = vmatmul.mubr.f32.gmra.mrb[0].mxu0 %v2373
        %v2446 = vpop.f32.mrb[0].mxu0
        %v2447 = vadd.f32 0.0, %v2446
        %v2448 = vpop.f32.mrb[0].mxu0
        %2449 = vdwg.mxu0
        %v2450 = vlaneseq
        %v2451 = vshrl.u32 %v2450, 7
        %v2452 = vsub.s32 0, %v2451
        %v2453 = vrot.slane %v2008, %v2452
        %v2455 = vsel %vm381, %v2442, 0
        %v2458 = vsel %vm381, %v2447, 0
        %2460 = vmatprep.subr.mxu0 0.0
        %2461 = vmatpush1.msra.mxu0 %v1986
        %2462 = vmatprep.subr.mxu0 0.0
        %2463 = vmatpush1.msra.mxu0 %v1987
        %2464 = vmatprep.subr.mxu0 0.0
        %2465 = vmatpush1.msra.mxu0 %v1988
        %2466 = vmatprep.subr.mxu0 0.0
        %2467 = vmatpush1.msra.mxu0 %v1989
        %2468 = vmatprep.subr.mxu0 0.0
        %2469 = vmatpush1.msra.mxu0 0.0
        %2470 = vmatprep.subr.mxu0 0.0
        %2471 = vmatpush1.msra.mxu0 0.0
        %2472 = vmatprep.subr.mxu0 0.0
        %2473 = vmatpush1.msra.mxu0 0.0
        %2474 = vmatprep.subr.mxu0 0.0
        %2475 = vmatpush1.msra.mxu0 0.0
        %2476 = vmatprep.subr.mxu0 0.0
        %2477 = vmatpush1.msra.mxu0 0.0
        %2478 = vmatprep.subr.mxu0 0.0
        %2479 = vmatpush1.msra.mxu0 0.0
        %2480 = vmatprep.subr.mxu0 0.0
        %2481 = vmatpush1.msra.mxu0 0.0
        %2482 = vmatprep.subr.mxu0 0.0
        %2483 = vmatpush1.msra.mxu0 0.0
        %2484 = vmatprep.subr.mxu0 0.0
        %2485 = vmatpush1.msra.mxu0 0.0
        %2486 = vmatprep.subr.mxu0 0.0
        %2487 = vmatpush1.msra.mxu0 0.0
        %2488 = vmatprep.subr.mxu0 0.0
        %2489 = vmatpush1.msra.mxu0 0.0
        %2490 = vmatprep.subr.mxu0 0.0
        %2491 = vmatpush1.msra.mxu0 0.0
        %2492 = vmatprep.subr.mxu0 0.0
        %2493 = vmatpush1.msra.mxu0 0.0
        %2494 = vmatprep.subr.mxu0 0.0
        %2495 = vmatpush1.msra.mxu0 0.0
        %2496 = vmatprep.subr.mxu0 0.0
        %2497 = vmatpush1.msra.mxu0 0.0
        %2498 = vmatprep.subr.mxu0 0.0
        %2499 = vmatpush1.msra.mxu0 0.0
        %2500 = vmatprep.subr.mxu0 0.0
        %2501 = vmatpush1.msra.mxu0 0.0
        %2502 = vmatprep.subr.mxu0 0.0
        %2503 = vmatpush1.msra.mxu0 0.0
        %2504 = vmatprep.subr.mxu0 0.0
        %2505 = vmatpush1.msra.mxu0 0.0
        %2506 = vmatprep.subr.mxu0 0.0
        %2507 = vmatpush1.msra.mxu0 0.0
        %2508 = vmatprep.subr.mxu0 0.0
        %2509 = vmatpush1.msra.mxu0 0.0
        %2510 = vmatprep.subr.mxu0 0.0
        %2511 = vmatpush1.msra.mxu0 0.0
        %2512 = vmatprep.subr.mxu0 0.0
        %2513 = vmatpush1.msra.mxu0 0.0
        %2514 = vmatprep.subr.mxu0 0.0
        %2515 = vmatpush1.msra.mxu0 0.0
        %2516 = vmatprep.subr.mxu0 0.0
        %2517 = vmatpush1.msra.mxu0 0.0
        %2518 = vmatprep.subr.mxu0 0.0
        %2519 = vmatpush1.msra.mxu0 0.0
        %2520 = vmatprep.subr.mxu0 0.0
        %2521 = vmatpush1.msra.mxu0 0.0
        %2522 = vmatprep.subr.mxu0 0.0
        %2523 = vmatpush1.msra.mxu0 0.0
        %2524 = vmatprep.mubr.f32.mxu0 0.0
        %2525 = vmatmul.mubr.f32.gmra.mrb[0].mxu0 %v2455
        %v2526 = vpop.f32.mrb[0].mxu0
        %v2527 = vadd.f32 %v2453, %v2526
        %v2528 = vpop.f32.mrb[0].mxu0
        %2529 = vmatprep.mubr.f32.mxu0 0.0
        %2530 = vmatmul.mubr.f32.gmra.mrb[0].mxu0 %v2458
        %v2531 = vpop.f32.mrb[0].mxu0
        %v2532 = vadd.f32 %v2453, %v2531
        %v2533 = vpop.f32.mrb[0].mxu0
        %2534 = vdwg.mxu0
        %v2535 = vadd.f32 %v1968, %v2527
        %v2536 = vadd.f32 %v1969, %v2532
        %v2537 = vsel %vm381, %v2535, 0.0
        %2538 = vadd.xlane.f32.xlu0 %v2537
        %v2539 = vpop.xlane.xlu0 %2538
        %v2540 = vsel %vm381, %v2536, 0.0
        %2541 = vadd.xlane.f32.xlu0 %v2540
        %v2542 = vpop.xlane.xlu0 %2541
        %v2543 = vmul.f32 %v2539, %v907
        %v2544 = vmul.f32 %v2542, %v907
        %v2545 = vsub.f32 %v2535, %v2543
        %v2546 = vsub.f32 %v2536, %v2544
        %v2547 = vmul.f32 %v2545, %v2545
        %v2548 = vmul.f32 %v2546, %v2546
        %v2549 = vsel %vm381, %v2547, 0.0
        %2550 = vadd.xlane.f32.xlu0 %v2549
        %v2551 = vpop.xlane.xlu0 %2550
        %v2552 = vsel %vm381, %v2548, 0.0
        %2553 = vadd.xlane.f32.xlu0 %v2552
        %v2554 = vpop.xlane.xlu0 %2553
        %v2555 = vmul.f32 %v2551, %v907
        %v2556 = vmul.f32 %v2554, %v907
        %v2557 = vadd.f32 %v2555, 1e-05
        %v2558 = vadd.f32 %v2556, 1e-05
        %v2559 = vrsqrt.pop %v2557
        %v2560 = vrsqrt.pop %v2558
        %v2561 = vmul.f32 %v2545, %v2559
        %v2562 = vmul.f32 %v2546, %v2560
        %v2563 = vlaneseq
        %v2564 = vshrl.u32 %v2563, 7
        %v2565 = vsub.s32 0, %v2564
        %v2566 = vrot.slane %v2011, %v2565
        %v2567 = vmul.f32 %v2561, %v2566
        %v2568 = vmul.f32 %v2562, %v2566
        %v2569 = vlaneseq
        %v2570 = vshrl.u32 %v2569, 7
        %v2571 = vsub.s32 0, %v2570
        %v2572 = vrot.slane %v2012, %v2571
        %v2573 = vadd.f32 %v2567, %v2572
        %v2574 = vadd.f32 %v2568, %v2572
        %v2575 = vlaneseq
        %v2576 = vshrl.u32 %v2575, 7
        %v2577 = vsub.s32 0, %v2576
        %v2578 = vrot.slane %v2009, %v2577
        %v2580 = vsel %vm381, %v2573, 0
        %v2583 = vsel %vm381, %v2574, 0
        %2585 = vmatprep.subr.mxu0 0.0
        %2586 = vmatpush1.msra.mxu0 %v1991
        %2587 = vmatprep.subr.mxu0 0.0
        %2588 = vmatpush1.msra.mxu0 %v1992
        %2589 = vmatprep.subr.mxu0 0.0
        %2590 = vmatpush1.msra.mxu0 %v1993
        %2591 = vmatprep.subr.mxu0 0.0
        %2592 = vmatpush1.msra.mxu0 %v1994
        %2593 = vmatprep.subr.mxu0 0.0
        %2594 = vmatpush1.msra.mxu0 0.0
        %2595 = vmatprep.subr.mxu0 0.0
        %2596 = vmatpush1.msra.mxu0 0.0
        %2597 = vmatprep.subr.mxu0 0.0
        %2598 = vmatpush1.msra.mxu0 0.0
        %2599 = vmatprep.subr.mxu0 0.0
        %2600 = vmatpush1.msra.mxu0 0.0
        %2601 = vmatprep.subr.mxu0 0.0
        %2602 = vmatpush1.msra.mxu0 0.0
        %2603 = vmatprep.subr.mxu0 0.0
        %2604 = vmatpush1.msra.mxu0 0.0
        %2605 = vmatprep.subr.mxu0 0.0
        %2606 = vmatpush1.msra.mxu0 0.0
        %2607 = vmatprep.subr.mxu0 0.0
        %2608 = vmatpush1.msra.mxu0 0.0
        %2609 = vmatprep.subr.mxu0 0.0
        %2610 = vmatpush1.msra.mxu0 0.0
        %2611 = vmatprep.subr.mxu0 0.0
        %2612 = vmatpush1.msra.mxu0 0.0
        %2613 = vmatprep.subr.mxu0 0.0
        %2614 = vmatpush1.msra.mxu0 0.0
        %2615 = vmatprep.subr.mxu0 0.0
        %2616 = vmatpush1.msra.mxu0 0.0
        %2617 = vmatprep.subr.mxu0 0.0
        %2618 = vmatpush1.msra.mxu0 0.0
        %2619 = vmatprep.subr.mxu0 0.0
        %2620 = vmatpush1.msra.mxu0 0.0
        %2621 = vmatprep.subr.mxu0 0.0
        %2622 = vmatpush1.msra.mxu0 0.0
        %2623 = vmatprep.subr.mxu0 0.0
        %2624 = vmatpush1.msra.mxu0 0.0
        %2625 = vmatprep.subr.mxu0 0.0
        %2626 = vmatpush1.msra.mxu0 0.0
        %2627 = vmatprep.subr.mxu0 0.0
        %2628 = vmatpush1.msra.mxu0 0.0
        %2629 = vmatprep.subr.mxu0 0.0
        %2630 = vmatpush1.msra.mxu0 0.0
        %2631 = vmatprep.subr.mxu0 0.0
        %2632 = vmatpush1.msra.mxu0 0.0
        %2633 = vmatprep.subr.mxu0 0.0
        %2634 = vmatpush1.msra.mxu0 0.0
        %2635 = vmatprep.subr.mxu0 0.0
        %2636 = vmatpush1.msra.mxu0 0.0
        %2637 = vmatprep.subr.mxu0 0.0
        %2638 = vmatpush1.msra.mxu0 0.0
        %2639 = vmatprep.subr.mxu0 0.0
        %2640 = vmatpush1.msra.mxu0 0.0
        %2641 = vmatprep.subr.mxu0 0.0
        %2642 = vmatpush1.msra.mxu0 0.0
        %2643 = vmatprep.subr.mxu0 0.0
        %2644 = vmatpush1.msra.mxu0 0.0
        %2645 = vmatprep.subr.mxu0 0.0
        %2646 = vmatpush1.msra.mxu0 0.0
        %2647 = vmatprep.subr.mxu0 0.0
        %2648 = vmatpush1.msra.mxu0 0.0
        %2649 = vmatprep.mubr.f32.mxu0 0.0
        %2650 = vmatmul.mubr.f32.gmra.mrb[0].mxu0 %v2580
        %v2651 = vpop.f32.mrb[0].mxu0
        %v2652 = vadd.f32 %v2578, %v2651
        %v2653 = vpop.f32.mrb[0].mxu0
        %2654 = vmatprep.mubr.f32.mxu0 0.0
        %2655 = vmatmul.mubr.f32.gmra.mrb[0].mxu0 %v2583
        %v2656 = vpop.f32.mrb[0].mxu0
        %v2657 = vadd.f32 %v2578, %v2656
        %v2658 = vpop.f32.mrb[0].mxu0
        %2659 = vdwg.mxu0
        %v2660 = vmax.f32 %v2652, 0.0
        %v2661 = vmax.f32 %v2657, 0.0
        %v2662 = vlaneseq
        %v2663 = vshrl.u32 %v2662, 7
        %v2664 = vsub.s32 0, %v2663
        %v2665 = vrot.slane %v2010, %v2664
        %v2667 = vsel %vm1031, %v2660, 0
        %v2670 = vsel %vm1031, %v2661, 0
        %2672 = vmatprep.subr.mxu0 0.0
        %2673 = vmatpush1.msra.mxu0 %v1996
        %2674 = vmatprep.subr.mxu0 0.0
        %2675 = vmatpush1.msra.mxu0 %v1997
        %2676 = vmatprep.subr.mxu0 0.0
        %2677 = vmatpush1.msra.mxu0 %v1998
        %2678 = vmatprep.subr.mxu0 0.0
        %2679 = vmatpush1.msra.mxu0 %v1999
        %2680 = vmatprep.subr.mxu0 0.0
        %2681 = vmatpush1.msra.mxu0 %v2000
        %2682 = vmatprep.subr.mxu0 0.0
        %2683 = vmatpush1.msra.mxu0 %v2001
        %2684 = vmatprep.subr.mxu0 0.0
        %2685 = vmatpush1.msra.mxu0 %v2002
        %2686 = vmatprep.subr.mxu0 0.0
        %2687 = vmatpush1.msra.mxu0 %v2003
        %2688 = vmatprep.subr.mxu0 0.0
        %2689 = vmatpush1.msra.mxu0 0.0
        %2690 = vmatprep.subr.mxu0 0.0
        %2691 = vmatpush1.msra.mxu0 0.0
        %2692 = vmatprep.subr.mxu0 0.0
        %2693 = vmatpush1.msra.mxu0 0.0
        %2694 = vmatprep.subr.mxu0 0.0
        %2695 = vmatpush1.msra.mxu0 0.0
        %2696 = vmatprep.subr.mxu0 0.0
        %2697 = vmatpush1.msra.mxu0 0.0
        %2698 = vmatprep.subr.mxu0 0.0
        %2699 = vmatpush1.msra.mxu0 0.0
        %2700 = vmatprep.subr.mxu0 0.0
        %2701 = vmatpush1.msra.mxu0 0.0
        %2702 = vmatprep.subr.mxu0 0.0
        %2703 = vmatpush1.msra.mxu0 0.0
        %2704 = vmatprep.subr.mxu0 0.0
        %2705 = vmatpush1.msra.mxu0 0.0
        %2706 = vmatprep.subr.mxu0 0.0
        %2707 = vmatpush1.msra.mxu0 0.0
        %2708 = vmatprep.subr.mxu0 0.0
        %2709 = vmatpush1.msra.mxu0 0.0
        %2710 = vmatprep.subr.mxu0 0.0
        %2711 = vmatpush1.msra.mxu0 0.0
        %2712 = vmatprep.subr.mxu0 0.0
        %2713 = vmatpush1.msra.mxu0 0.0
        %2714 = vmatprep.subr.mxu0 0.0
        %2715 = vmatpush1.msra.mxu0 0.0
        %2716 = vmatprep.subr.mxu0 0.0
        %2717 = vmatpush1.msra.mxu0 0.0
        %2718 = vmatprep.subr.mxu0 0.0
        %2719 = vmatpush1.msra.mxu0 0.0
        %2720 = vmatprep.subr.mxu0 0.0
        %2721 = vmatpush1.msra.mxu0 0.0
        %2722 = vmatprep.subr.mxu0 0.0
        %2723 = vmatpush1.msra.mxu0 0.0
        %2724 = vmatprep.subr.mxu0 0.0
        %2725 = vmatpush1.msra.mxu0 0.0
        %2726 = vmatprep.subr.mxu0 0.0
        %2727 = vmatpush1.msra.mxu0 0.0
        %2728 = vmatprep.subr.mxu0 0.0
        %2729 = vmatpush1.msra.mxu0 0.0
        %2730 = vmatprep.subr.mxu0 0.0
        %2731 = vmatpush1.msra.mxu0 0.0
        %2732 = vmatprep.subr.mxu0 0.0
        %2733 = vmatpush1.msra.mxu0 0.0
        %2734 = vmatprep.subr.mxu0 0.0
        %2735 = vmatpush1.msra.mxu0 0.0
        %2736 = vmatprep.mubr.f32.mxu0 0.0
        %2737 = vmatmul.mubr.f32.gmra.mrb[0].mxu0 %v2667
        %v2738 = vpop.f32.mrb[0].mxu0
        %v2739 = vadd.f32 %v2665, %v2738
        %v2740 = vpop.f32.mrb[0].mxu0
        %2741 = vmatprep.mubr.f32.mxu0 0.0
        %2742 = vmatmul.mubr.f32.gmra.mrb[0].mxu0 %v2670
        %v2743 = vpop.f32.mrb[0].mxu0
        %v2744 = vadd.f32 %v2665, %v2743
        %v2745 = vpop.f32.mrb[0].mxu0
        %2746 = vdwg.mxu0
        %v2747 = vadd.f32 %v2573, %v2739
        %v2748 = vadd.f32 %v2574, %v2744
        %v2749 = vsel %vm381, %v2747, 0.0
        %2750 = vadd.xlane.f32.xlu0 %v2749
        %v2751 = vpop.xlane.xlu0 %2750
        %v2752 = vsel %vm381, %v2748, 0.0
        %2753 = vadd.xlane.f32.xlu0 %v2752
        %v2754 = vpop.xlane.xlu0 %2753
        %v2755 = vmul.f32 %v2751, %v907
        %v2756 = vmul.f32 %v2754, %v907
        %v2757 = vsub.f32 %v2747, %v2755
        %v2758 = vsub.f32 %v2748, %v2756
        %v2759 = vmul.f32 %v2757, %v2757
        %v2760 = vmul.f32 %v2758, %v2758
        %v2761 = vsel %vm381, %v2759, 0.0
        %2762 = vadd.xlane.f32.xlu0 %v2761
        %v2763 = vpop.xlane.xlu0 %2762
        %v2764 = vsel %vm381, %v2760, 0.0
        %2765 = vadd.xlane.f32.xlu0 %v2764
        %v2766 = vpop.xlane.xlu0 %2765
        %v2767 = vmul.f32 %v2763, %v907
        %v2768 = vmul.f32 %v2766, %v907
        %v2769 = vadd.f32 %v2767, 1e-05
        %v2770 = vadd.f32 %v2768, 1e-05
        %v2771 = vrsqrt.pop %v2769
        %v2772 = vrsqrt.pop %v2770
        %v2773 = vmul.f32 %v2757, %v2771
        %v2774 = vmul.f32 %v2758, %v2772
        %v2775 = vlaneseq
        %v2776 = vshrl.u32 %v2775, 7
        %v2777 = vsub.s32 0, %v2776
        %v2778 = vrot.slane %v2013, %v2777
        %v2779 = vmul.f32 %v2773, %v2778
        %v2780 = vmul.f32 %v2774, %v2778
        %v2781 = vlaneseq
        %v2782 = vshrl.u32 %v2781, 7
        %v2783 = vsub.s32 0, %v2782
        %v2784 = vrot.slane %v2014, %v2783
        %v2785 = vadd.f32 %v2779, %v2784
        %v2786 = vadd.f32 %v2780, %v2784
        %s2787 = scalar_lea.vmem %s2, 96
        %v2788 = vld [vmem:[%s2787] sm:$0xff]
        %v2789 = vld [vmem:[%s2787 + $0x8] sm:$0xff]
        %v2790 = vld [vmem:[%s2787 + $0x10] sm:$0xff]
        %v2791 = vld [vmem:[%s2787 + $0x18] sm:$0xff]
        %s2792 = scalar_lea.vmem %s3, 96
        %v2793 = vld [vmem:[%s2792] sm:$0xff]
        %v2794 = vld [vmem:[%s2792 + $0x8] sm:$0xff]
        %v2795 = vld [vmem:[%s2792 + $0x10] sm:$0xff]
        %v2796 = vld [vmem:[%s2792 + $0x18] sm:$0xff]
        %s2797 = scalar_lea.vmem %s4, 96
        %v2798 = vld [vmem:[%s2797] sm:$0xff]
        %v2799 = vld [vmem:[%s2797 + $0x8] sm:$0xff]
        %v2800 = vld [vmem:[%s2797 + $0x10] sm:$0xff]
        %v2801 = vld [vmem:[%s2797 + $0x18] sm:$0xff]
        %s2802 = scalar_lea.vmem %s5, 96
        %v2803 = vld [vmem:[%s2802] sm:$0xff]
        %v2804 = vld [vmem:[%s2802 + $0x8] sm:$0xff]
        %v2805 = vld [vmem:[%s2802 + $0x10] sm:$0xff]
        %v2806 = vld [vmem:[%s2802 + $0x18] sm:$0xff]
        %s2807 = scalar_lea.vmem %s6, 96
        %v2808 = vld [vmem:[%s2807] sm:$0xff]
        %v2809 = vld [vmem:[%s2807 + $0x8] sm:$0xff]
        %v2810 = vld [vmem:[%s2807 + $0x10] sm:$0xff]
        %v2811 = vld [vmem:[%s2807 + $0x18] sm:$0xff]
        %s2812 = scalar_lea.vmem %s7, 192
        %v2813 = vld [vmem:[%s2812] sm:$0xff]
        %v2814 = vld [vmem:[%s2812 + $0x8] sm:$0xff]
        %v2815 = vld [vmem:[%s2812 + $0x10] sm:$0xff]
        %v2816 = vld [vmem:[%s2812 + $0x18] sm:$0xff]
        %v2817 = vld [vmem:[%s2812 + $0x20] sm:$0xff]
        %v2818 = vld [vmem:[%s2812 + $0x28] sm:$0xff]
        %v2819 = vld [vmem:[%s2812 + $0x30] sm:$0xff]
        %v2820 = vld [vmem:[%s2812 + $0x38] sm:$0xff]
        %s2821 = scalar_lea.vmem %s8, 48
        %v2822 = vld [vmem:[%s2821] sm:$0x1]
        %v2823 = vld [vmem:[%s2821 + $0x1] sm:$0x1]
        %v2824 = vld [vmem:[%s2821 + $0x2] sm:$0x1]
        %v2825 = vld [vmem:[%s2821 + $0x3] sm:$0x1]
        %v2826 = vld [vmem:[%s2821 + $0x4] sm:$0x1]
        %v2827 = vld [vmem:[%s2821 + $0x5] sm:$0x1]
        %v2828 = vld [vmem:[%s2821 + $0x6] sm:$0x1]
        %v2829 = vld [vmem:[%s2821 + $0x7] sm:$0x1]
        %v2830 = vld [vmem:[%s2821 + $0x8] sm:$0x1]
        %v2831 = vld [vmem:[%s2821 + $0x9] sm:$0x1]
        %v2832 = vlaneseq
        %v2833 = vshrl.u32 %v2832, 7
        %v2834 = vsub.s32 0, %v2833
        %v2835 = vrot.slane %v2822, %v2834
        %v2837 = vsel %vm381, %v2785, 0
        %v2840 = vsel %vm381, %v2786, 0
        %2842 = vmatprep.subr.mxu0 0.0
        %2843 = vmatpush1.msra.mxu0 %v2788
        %2844 = vmatprep.subr.mxu0 0.0
        %2845 = vmatpush1.msra.mxu0 %v2789
        %2846 = vmatprep.subr.mxu0 0.0
        %2847 = vmatpush1.msra.mxu0 %v2790
        %2848 = vmatprep.subr.mxu0 0.0
        %2849 = vmatpush1.msra.mxu0 %v2791
        %2850 = vmatprep.subr.mxu0 0.0
        %2851 = vmatpush1.msra.mxu0 0.0
        %2852 = vmatprep.subr.mxu0 0.0
        %2853 = vmatpush1.msra.mxu0 0.0
        %2854 = vmatprep.subr.mxu0 0.0
        %2855 = vmatpush1.msra.mxu0 0.0
        %2856 = vmatprep.subr.mxu0 0.0
        %2857 = vmatpush1.msra.mxu0 0.0
        %2858 = vmatprep.subr.mxu0 0.0
        %2859 = vmatpush1.msra.mxu0 0.0
        %2860 = vmatprep.subr.mxu0 0.0
        %2861 = vmatpush1.msra.mxu0 0.0
        %2862 = vmatprep.subr.mxu0 0.0
        %2863 = vmatpush1.msra.mxu0 0.0
        %2864 = vmatprep.subr.mxu0 0.0
        %2865 = vmatpush1.msra.mxu0 0.0
        %2866 = vmatprep.subr.mxu0 0.0
        %2867 = vmatpush1.msra.mxu0 0.0
        %2868 = vmatprep.subr.mxu0 0.0
        %2869 = vmatpush1.msra.mxu0 0.0
        %2870 = vmatprep.subr.mxu0 0.0
        %2871 = vmatpush1.msra.mxu0 0.0
        %2872 = vmatprep.subr.mxu0 0.0
        %2873 = vmatpush1.msra.mxu0 0.0
        %2874 = vmatprep.subr.mxu0 0.0
        %2875 = vmatpush1.msra.mxu0 0.0
        %2876 = vmatprep.subr.mxu0 0.0
        %2877 = vmatpush1.msra.mxu0 0.0
        %2878 = vmatprep.subr.mxu0 0.0
        %2879 = vmatpush1.msra.mxu0 0.0
        %2880 = vmatprep.subr.mxu0 0.0
        %2881 = vmatpush1.msra.mxu0 0.0
        %2882 = vmatprep.subr.mxu0 0.0
        %2883 = vmatpush1.msra.mxu0 0.0
        %2884 = vmatprep.subr.mxu0 0.0
        %2885 = vmatpush1.msra.mxu0 0.0
        %2886 = vmatprep.subr.mxu0 0.0
        %2887 = vmatpush1.msra.mxu0 0.0
        %2888 = vmatprep.subr.mxu0 0.0
        %2889 = vmatpush1.msra.mxu0 0.0
        %2890 = vmatprep.subr.mxu0 0.0
        %2891 = vmatpush1.msra.mxu0 0.0
        %2892 = vmatprep.subr.mxu0 0.0
        %2893 = vmatpush1.msra.mxu0 0.0
        %2894 = vmatprep.subr.mxu0 0.0
        %2895 = vmatpush1.msra.mxu0 0.0
        %2896 = vmatprep.subr.mxu0 0.0
        %2897 = vmatpush1.msra.mxu0 0.0
        %2898 = vmatprep.subr.mxu0 0.0
        %2899 = vmatpush1.msra.mxu0 0.0
        %2900 = vmatprep.subr.mxu0 0.0
        %2901 = vmatpush1.msra.mxu0 0.0
        %2902 = vmatprep.subr.mxu0 0.0
        %2903 = vmatpush1.msra.mxu0 0.0
        %2904 = vmatprep.subr.mxu0 0.0
        %2905 = vmatpush1.msra.mxu0 0.0
        %2906 = vmatprep.mubr.f32.mxu0 0.0
        %2907 = vmatmul.mubr.f32.gmra.mrb[0].mxu0 %v2837
        %v2908 = vpop.f32.mrb[0].mxu0
        %v2909 = vadd.f32 %v2835, %v2908
        %v2910 = vpop.f32.mrb[0].mxu0
        %2911 = vmatprep.mubr.f32.mxu0 0.0
        %2912 = vmatmul.mubr.f32.gmra.mrb[0].mxu0 %v2840
        %v2913 = vpop.f32.mrb[0].mxu0
        %v2914 = vadd.f32 %v2835, %v2913
        %v2915 = vpop.f32.mrb[0].mxu0
        %2916 = vdwg.mxu0
        %v2917 = vlaneseq
        %v2918 = vshrl.u32 %v2917, 7
        %v2919 = vsub.s32 0, %v2918
        %v2920 = vrot.slane %v2823, %v2919
        %2921 = vmatprep.subr.mxu0 0.0
        %2922 = vmatpush1.msra.mxu0 %v2793
        %2923 = vmatprep.subr.mxu0 0.0
        %2924 = vmatpush1.msra.mxu0 %v2794
        %2925 = vmatprep.subr.mxu0 0.0
        %2926 = vmatpush1.msra.mxu0 %v2795
        %2927 = vmatprep.subr.mxu0 0.0
        %2928 = vmatpush1.msra.mxu0 %v2796
        %2929 = vmatprep.subr.mxu0 0.0
        %2930 = vmatpush1.msra.mxu0 0.0
        %2931 = vmatprep.subr.mxu0 0.0
        %2932 = vmatpush1.msra.mxu0 0.0
        %2933 = vmatprep.subr.mxu0 0.0
        %2934 = vmatpush1.msra.mxu0 0.0
        %2935 = vmatprep.subr.mxu0 0.0
        %2936 = vmatpush1.msra.mxu0 0.0
        %2937 = vmatprep.subr.mxu0 0.0
        %2938 = vmatpush1.msra.mxu0 0.0
        %2939 = vmatprep.subr.mxu0 0.0
        %2940 = vmatpush1.msra.mxu0 0.0
        %2941 = vmatprep.subr.mxu0 0.0
        %2942 = vmatpush1.msra.mxu0 0.0
        %2943 = vmatprep.subr.mxu0 0.0
        %2944 = vmatpush1.msra.mxu0 0.0
        %2945 = vmatprep.subr.mxu0 0.0
        %2946 = vmatpush1.msra.mxu0 0.0
        %2947 = vmatprep.subr.mxu0 0.0
        %2948 = vmatpush1.msra.mxu0 0.0
        %2949 = vmatprep.subr.mxu0 0.0
        %2950 = vmatpush1.msra.mxu0 0.0
        %2951 = vmatprep.subr.mxu0 0.0
        %2952 = vmatpush1.msra.mxu0 0.0
        %2953 = vmatprep.subr.mxu0 0.0
        %2954 = vmatpush1.msra.mxu0 0.0
        %2955 = vmatprep.subr.mxu0 0.0
        %2956 = vmatpush1.msra.mxu0 0.0
        %2957 = vmatprep.subr.mxu0 0.0
        %2958 = vmatpush1.msra.mxu0 0.0
        %2959 = vmatprep.subr.mxu0 0.0
        %2960 = vmatpush1.msra.mxu0 0.0
        %2961 = vmatprep.subr.mxu0 0.0
        %2962 = vmatpush1.msra.mxu0 0.0
        %2963 = vmatprep.subr.mxu0 0.0
        %2964 = vmatpush1.msra.mxu0 0.0
        %2965 = vmatprep.subr.mxu0 0.0
        %2966 = vmatpush1.msra.mxu0 0.0
        %2967 = vmatprep.subr.mxu0 0.0
        %2968 = vmatpush1.msra.mxu0 0.0
        %2969 = vmatprep.subr.mxu0 0.0
        %2970 = vmatpush1.msra.mxu0 0.0
        %2971 = vmatprep.subr.mxu0 0.0
        %2972 = vmatpush1.msra.mxu0 0.0
        %2973 = vmatprep.subr.mxu0 0.0
        %2974 = vmatpush1.msra.mxu0 0.0
        %2975 = vmatprep.subr.mxu0 0.0
        %2976 = vmatpush1.msra.mxu0 0.0
        %2977 = vmatprep.subr.mxu0 0.0
        %2978 = vmatpush1.msra.mxu0 0.0
        %2979 = vmatprep.subr.mxu0 0.0
        %2980 = vmatpush1.msra.mxu0 0.0
        %2981 = vmatprep.subr.mxu0 0.0
        %2982 = vmatpush1.msra.mxu0 0.0
        %2983 = vmatprep.subr.mxu0 0.0
        %2984 = vmatpush1.msra.mxu0 0.0
        %2985 = vmatprep.mubr.f32.mxu0 0.0
        %2986 = vmatmul.mubr.f32.gmra.mrb[0].mxu0 %v2837
        %v2987 = vpop.f32.mrb[0].mxu0
        %v2988 = vadd.f32 %v2920, %v2987
        %v2989 = vpop.f32.mrb[0].mxu0
        %2990 = vmatprep.mubr.f32.mxu0 0.0
        %2991 = vmatmul.mubr.f32.gmra.mrb[0].mxu0 %v2840
        %v2992 = vpop.f32.mrb[0].mxu0
        %v2993 = vadd.f32 %v2920, %v2992
        %v2994 = vpop.f32.mrb[0].mxu0
        %2995 = vdwg.mxu0
        %v2996 = vlaneseq
        %v2997 = vshrl.u32 %v2996, 7
        %v2998 = vsub.s32 0, %v2997
        %v2999 = vrot.slane %v2824, %v2998
        %3000 = vmatprep.subr.mxu0 0.0
        %3001 = vmatpush1.msra.mxu0 %v2798
        %3002 = vmatprep.subr.mxu0 0.0
        %3003 = vmatpush1.msra.mxu0 %v2799
        %3004 = vmatprep.subr.mxu0 0.0
        %3005 = vmatpush1.msra.mxu0 %v2800
        %3006 = vmatprep.subr.mxu0 0.0
        %3007 = vmatpush1.msra.mxu0 %v2801
        %3008 = vmatprep.subr.mxu0 0.0
        %3009 = vmatpush1.msra.mxu0 0.0
        %3010 = vmatprep.subr.mxu0 0.0
        %3011 = vmatpush1.msra.mxu0 0.0
        %3012 = vmatprep.subr.mxu0 0.0
        %3013 = vmatpush1.msra.mxu0 0.0
        %3014 = vmatprep.subr.mxu0 0.0
        %3015 = vmatpush1.msra.mxu0 0.0
        %3016 = vmatprep.subr.mxu0 0.0
        %3017 = vmatpush1.msra.mxu0 0.0
        %3018 = vmatprep.subr.mxu0 0.0
        %3019 = vmatpush1.msra.mxu0 0.0
        %3020 = vmatprep.subr.mxu0 0.0
        %3021 = vmatpush1.msra.mxu0 0.0
        %3022 = vmatprep.subr.mxu0 0.0
        %3023 = vmatpush1.msra.mxu0 0.0
        %3024 = vmatprep.subr.mxu0 0.0
        %3025 = vmatpush1.msra.mxu0 0.0
        %3026 = vmatprep.subr.mxu0 0.0
        %3027 = vmatpush1.msra.mxu0 0.0
        %3028 = vmatprep.subr.mxu0 0.0
        %3029 = vmatpush1.msra.mxu0 0.0
        %3030 = vmatprep.subr.mxu0 0.0
        %3031 = vmatpush1.msra.mxu0 0.0
        %3032 = vmatprep.subr.mxu0 0.0
        %3033 = vmatpush1.msra.mxu0 0.0
        %3034 = vmatprep.subr.mxu0 0.0
        %3035 = vmatpush1.msra.mxu0 0.0
        %3036 = vmatprep.subr.mxu0 0.0
        %3037 = vmatpush1.msra.mxu0 0.0
        %3038 = vmatprep.subr.mxu0 0.0
        %3039 = vmatpush1.msra.mxu0 0.0
        %3040 = vmatprep.subr.mxu0 0.0
        %3041 = vmatpush1.msra.mxu0 0.0
        %3042 = vmatprep.subr.mxu0 0.0
        %3043 = vmatpush1.msra.mxu0 0.0
        %3044 = vmatprep.subr.mxu0 0.0
        %3045 = vmatpush1.msra.mxu0 0.0
        %3046 = vmatprep.subr.mxu0 0.0
        %3047 = vmatpush1.msra.mxu0 0.0
        %3048 = vmatprep.subr.mxu0 0.0
        %3049 = vmatpush1.msra.mxu0 0.0
        %3050 = vmatprep.subr.mxu0 0.0
        %3051 = vmatpush1.msra.mxu0 0.0
        %3052 = vmatprep.subr.mxu0 0.0
        %3053 = vmatpush1.msra.mxu0 0.0
        %3054 = vmatprep.subr.mxu0 0.0
        %3055 = vmatpush1.msra.mxu0 0.0
        %3056 = vmatprep.subr.mxu0 0.0
        %3057 = vmatpush1.msra.mxu0 0.0
        %3058 = vmatprep.subr.mxu0 0.0
        %3059 = vmatpush1.msra.mxu0 0.0
        %3060 = vmatprep.subr.mxu0 0.0
        %3061 = vmatpush1.msra.mxu0 0.0
        %3062 = vmatprep.subr.mxu0 0.0
        %3063 = vmatpush1.msra.mxu0 0.0
        %3064 = vmatprep.mubr.f32.mxu0 0.0
        %3065 = vmatmul.mubr.f32.gmra.mrb[0].mxu0 %v2837
        %v3066 = vpop.f32.mrb[0].mxu0
        %v3067 = vadd.f32 %v2999, %v3066
        %v3068 = vpop.f32.mrb[0].mxu0
        %3069 = vmatprep.mubr.f32.mxu0 0.0
        %3070 = vmatmul.mubr.f32.gmra.mrb[0].mxu0 %v2840
        %v3071 = vpop.f32.mrb[0].mxu0
        %v3072 = vadd.f32 %v2999, %v3071
        %v3073 = vpop.f32.mrb[0].mxu0
        %3074 = vdwg.mxu0
        %v3076 = vsel %vm381, %v2909, 0
        %v3079 = vsel %vm381, %v2914, 0
        %v3082 = vsel %vm381, %v2988, 0
        %v3085 = vsel %vm381, %v2993, 0
        %3087 = vmatprep.subr.mxu0 0.0
        %3088 = vmatpush1.xpose.msra.mxu0 %v3082
        %3089 = vmatprep.subr.mxu0 0.0
        %3090 = vmatpush1.xpose.msra.mxu0 %v3085
        %3091 = vmatprep.subr.mxu0 0.0
        %3092 = vmatpush1.xpose.msra.mxu0 0.0
        %3093 = vmatprep.subr.mxu0 0.0
        %3094 = vmatpush1.xpose.msra.mxu0 0.0
        %3095 = vmatprep.subr.mxu0 0.0
        %3096 = vmatpush1.xpose.msra.mxu0 0.0
        %3097 = vmatprep.subr.mxu0 0.0
        %3098 = vmatpush1.xpose.msra.mxu0 0.0
        %3099 = vmatprep.subr.mxu0 0.0
        %3100 = vmatpush1.xpose.msra.mxu0 0.0
        %3101 = vmatprep.subr.mxu0 0.0
        %3102 = vmatpush1.xpose.msra.mxu0 0.0
        %3103 = vmatprep.subr.mxu0 0.0
        %3104 = vmatpush1.xpose.msra.mxu0 0.0
        %3105 = vmatprep.subr.mxu0 0.0
        %3106 = vmatpush1.xpose.msra.mxu0 0.0
        %3107 = vmatprep.subr.mxu0 0.0
        %3108 = vmatpush1.xpose.msra.mxu0 0.0
        %3109 = vmatprep.subr.mxu0 0.0
        %3110 = vmatpush1.xpose.msra.mxu0 0.0
        %3111 = vmatprep.subr.mxu0 0.0
        %3112 = vmatpush1.xpose.msra.mxu0 0.0
        %3113 = vmatprep.subr.mxu0 0.0
        %3114 = vmatpush1.xpose.msra.mxu0 0.0
        %3115 = vmatprep.subr.mxu0 0.0
        %3116 = vmatpush1.xpose.msra.mxu0 0.0
        %3117 = vmatprep.subr.mxu0 0.0
        %3118 = vmatpush1.xpose.msra.mxu0 0.0
        %3119 = vmatprep.subr.mxu0 0.0
        %3120 = vmatpush1.xpose.msra.mxu0 0.0
        %3121 = vmatprep.subr.mxu0 0.0
        %3122 = vmatpush1.xpose.msra.mxu0 0.0
        %3123 = vmatprep.subr.mxu0 0.0
        %3124 = vmatpush1.xpose.msra.mxu0 0.0
        %3125 = vmatprep.subr.mxu0 0.0
        %3126 = vmatpush1.xpose.msra.mxu0 0.0
        %3127 = vmatprep.subr.mxu0 0.0
        %3128 = vmatpush1.xpose.msra.mxu0 0.0
        %3129 = vmatprep.subr.mxu0 0.0
        %3130 = vmatpush1.xpose.msra.mxu0 0.0
        %3131 = vmatprep.subr.mxu0 0.0
        %3132 = vmatpush1.xpose.msra.mxu0 0.0
        %3133 = vmatprep.subr.mxu0 0.0
        %3134 = vmatpush1.xpose.msra.mxu0 0.0
        %3135 = vmatprep.subr.mxu0 0.0
        %3136 = vmatpush1.xpose.msra.mxu0 0.0
        %3137 = vmatprep.subr.mxu0 0.0
        %3138 = vmatpush1.xpose.msra.mxu0 0.0
        %3139 = vmatprep.subr.mxu0 0.0
        %3140 = vmatpush1.xpose.msra.mxu0 0.0
        %3141 = vmatprep.subr.mxu0 0.0
        %3142 = vmatpush1.xpose.msra.mxu0 0.0
        %3143 = vmatprep.subr.mxu0 0.0
        %3144 = vmatpush1.xpose.msra.mxu0 0.0
        %3145 = vmatprep.subr.mxu0 0.0
        %3146 = vmatpush1.xpose.msra.mxu0 0.0
        %3147 = vmatprep.subr.mxu0 0.0
        %3148 = vmatpush1.xpose.msra.mxu0 0.0
        %3149 = vmatprep.subr.mxu0 0.0
        %3150 = vmatpush1.xpose.msra.mxu0 0.0
        %3151 = vmatprep.mubr.f32.mxu0 0.0
        %3152 = vmatmul.mubr.f32.gmra.mrb[0].mxu0 %v3076
        %v3153 = vpop.f32.mrb[0].mxu0
        %v3154 = vadd.f32 0.0, %v3153
        %v3155 = vpop.f32.mrb[0].mxu0
        %3156 = vmatprep.mubr.f32.mxu0 0.0
        %3157 = vmatmul.mubr.f32.gmra.mrb[0].mxu0 %v3079
        %v3158 = vpop.f32.mrb[0].mxu0
        %v3159 = vadd.f32 0.0, %v3158
        %v3160 = vpop.f32.mrb[0].mxu0
        %3161 = vdwg.mxu0
        %v3162 = vmul.f32 %v3154, 0.17677669
        %v3163 = vmul.f32 %v3159, 0.17677669
        %v3164 = vsel %vm710, %v3162, -inf
        %3165 = vmax.xlane.f32.xlu0 %v3164
        %v3166 = vpop.xlane.xlu0 %3165
        %v3167 = vsel %vm710, %v3163, -inf
        %3168 = vmax.xlane.f32.xlu0 %v3167
        %v3169 = vpop.xlane.xlu0 %3168
        %v3170 = vsub.f32 %v3162, %v3166
        %v3171 = vsub.f32 %v3163, %v3169
        %v3172 = vmul.f32 %v3170, 1.442695
        %v3173 = vpow.pop %v3172
        %v3174 = vmul.f32 %v3171, 1.442695
        %v3175 = vpow.pop %v3174
        %v3176 = vsel %vm710, %v3173, 0.0
        %3177 = vadd.xlane.f32.xlu0 %v3176
        %v3178 = vpop.xlane.xlu0 %3177
        %v3179 = vsel %vm710, %v3175, 0.0
        %3180 = vadd.xlane.f32.xlu0 %v3179
        %v3181 = vpop.xlane.xlu0 %3180
        %v3182 = vrcp.pop %v3178
        %v3183 = vrcp.pop %v3181
        %v3184 = vmul.f32 %v3173, %v3182
        %v3185 = vmul.f32 %v3175, %v3183
        %v3187 = vsel %vm710, %v3184, 0
        %v3190 = vsel %vm710, %v3185, 0
        %3192 = vmatprep.subr.mxu0 0.0
        %3193 = vmatpush1.msra.mxu0 %v3067
        %3194 = vmatprep.subr.mxu0 0.0
        %3195 = vmatpush1.msra.mxu0 %v3072
        %3196 = vmatprep.subr.mxu0 0.0
        %3197 = vmatpush1.msra.mxu0 0.0
        %3198 = vmatprep.subr.mxu0 0.0
        %3199 = vmatpush1.msra.mxu0 0.0
        %3200 = vmatprep.subr.mxu0 0.0
        %3201 = vmatpush1.msra.mxu0 0.0
        %3202 = vmatprep.subr.mxu0 0.0
        %3203 = vmatpush1.msra.mxu0 0.0
        %3204 = vmatprep.subr.mxu0 0.0
        %3205 = vmatpush1.msra.mxu0 0.0
        %3206 = vmatprep.subr.mxu0 0.0
        %3207 = vmatpush1.msra.mxu0 0.0
        %3208 = vmatprep.subr.mxu0 0.0
        %3209 = vmatpush1.msra.mxu0 0.0
        %3210 = vmatprep.subr.mxu0 0.0
        %3211 = vmatpush1.msra.mxu0 0.0
        %3212 = vmatprep.subr.mxu0 0.0
        %3213 = vmatpush1.msra.mxu0 0.0
        %3214 = vmatprep.subr.mxu0 0.0
        %3215 = vmatpush1.msra.mxu0 0.0
        %3216 = vmatprep.subr.mxu0 0.0
        %3217 = vmatpush1.msra.mxu0 0.0
        %3218 = vmatprep.subr.mxu0 0.0
        %3219 = vmatpush1.msra.mxu0 0.0
        %3220 = vmatprep.subr.mxu0 0.0
        %3221 = vmatpush1.msra.mxu0 0.0
        %3222 = vmatprep.subr.mxu0 0.0
        %3223 = vmatpush1.msra.mxu0 0.0
        %3224 = vmatprep.subr.mxu0 0.0
        %3225 = vmatpush1.msra.mxu0 0.0
        %3226 = vmatprep.subr.mxu0 0.0
        %3227 = vmatpush1.msra.mxu0 0.0
        %3228 = vmatprep.subr.mxu0 0.0
        %3229 = vmatpush1.msra.mxu0 0.0
        %3230 = vmatprep.subr.mxu0 0.0
        %3231 = vmatpush1.msra.mxu0 0.0
        %3232 = vmatprep.subr.mxu0 0.0
        %3233 = vmatpush1.msra.mxu0 0.0
        %3234 = vmatprep.subr.mxu0 0.0
        %3235 = vmatpush1.msra.mxu0 0.0
        %3236 = vmatprep.subr.mxu0 0.0
        %3237 = vmatpush1.msra.mxu0 0.0
        %3238 = vmatprep.subr.mxu0 0.0
        %3239 = vmatpush1.msra.mxu0 0.0
        %3240 = vmatprep.subr.mxu0 0.0
        %3241 = vmatpush1.msra.mxu0 0.0
        %3242 = vmatprep.subr.mxu0 0.0
        %3243 = vmatpush1.msra.mxu0 0.0
        %3244 = vmatprep.subr.mxu0 0.0
        %3245 = vmatpush1.msra.mxu0 0.0
        %3246 = vmatprep.subr.mxu0 0.0
        %3247 = vmatpush1.msra.mxu0 0.0
        %3248 = vmatprep.subr.mxu0 0.0
        %3249 = vmatpush1.msra.mxu0 0.0
        %3250 = vmatprep.subr.mxu0 0.0
        %3251 = vmatpush1.msra.mxu0 0.0
        %3252 = vmatprep.subr.mxu0 0.0
        %3253 = vmatpush1.msra.mxu0 0.0
        %3254 = vmatprep.subr.mxu0 0.0
        %3255 = vmatpush1.msra.mxu0 0.0
        %3256 = vmatprep.mubr.f32.mxu0 0.0
        %3257 = vmatmul.mubr.f32.gmra.mrb[0].mxu0 %v3187
        %v3258 = vpop.f32.mrb[0].mxu0
        %v3259 = vadd.f32 0.0, %v3258
        %v3260 = vpop.f32.mrb[0].mxu0
        %3261 = vmatprep.mubr.f32.mxu0 0.0
        %3262 = vmatmul.mubr.f32.gmra.mrb[0].mxu0 %v3190
        %v3263 = vpop.f32.mrb[0].mxu0
        %v3264 = vadd.f32 0.0, %v3263
        %v3265 = vpop.f32.mrb[0].mxu0
        %3266 = vdwg.mxu0
        %v3267 = vlaneseq
        %v3268 = vshrl.u32 %v3267, 7
        %v3269 = vsub.s32 0, %v3268
        %v3270 = vrot.slane %v2825, %v3269
        %v3272 = vsel %vm381, %v3259, 0
        %v3275 = vsel %vm381, %v3264, 0
        %3277 = vmatprep.subr.mxu0 0.0
        %3278 = vmatpush1.msra.mxu0 %v2803
        %3279 = vmatprep.subr.mxu0 0.0
        %3280 = vmatpush1.msra.mxu0 %v2804
        %3281 = vmatprep.subr.mxu0 0.0
        %3282 = vmatpush1.msra.mxu0 %v2805
        %3283 = vmatprep.subr.mxu0 0.0
        %3284 = vmatpush1.msra.mxu0 %v2806
        %3285 = vmatprep.subr.mxu0 0.0
        %3286 = vmatpush1.msra.mxu0 0.0
        %3287 = vmatprep.subr.mxu0 0.0
        %3288 = vmatpush1.msra.mxu0 0.0
        %3289 = vmatprep.subr.mxu0 0.0
        %3290 = vmatpush1.msra.mxu0 0.0
        %3291 = vmatprep.subr.mxu0 0.0
        %3292 = vmatpush1.msra.mxu0 0.0
        %3293 = vmatprep.subr.mxu0 0.0
        %3294 = vmatpush1.msra.mxu0 0.0
        %3295 = vmatprep.subr.mxu0 0.0
        %3296 = vmatpush1.msra.mxu0 0.0
        %3297 = vmatprep.subr.mxu0 0.0
        %3298 = vmatpush1.msra.mxu0 0.0
        %3299 = vmatprep.subr.mxu0 0.0
        %3300 = vmatpush1.msra.mxu0 0.0
        %3301 = vmatprep.subr.mxu0 0.0
        %3302 = vmatpush1.msra.mxu0 0.0
        %3303 = vmatprep.subr.mxu0 0.0
        %3304 = vmatpush1.msra.mxu0 0.0
        %3305 = vmatprep.subr.mxu0 0.0
        %3306 = vmatpush1.msra.mxu0 0.0
        %3307 = vmatprep.subr.mxu0 0.0
        %3308 = vmatpush1.msra.mxu0 0.0
        %3309 = vmatprep.subr.mxu0 0.0
        %3310 = vmatpush1.msra.mxu0 0.0
        %3311 = vmatprep.subr.mxu0 0.0
        %3312 = vmatpush1.msra.mxu0 0.0
        %3313 = vmatprep.subr.mxu0 0.0
        %3314 = vmatpush1.msra.mxu0 0.0
        %3315 = vmatprep.subr.mxu0 0.0
        %3316 = vmatpush1.msra.mxu0 0.0
        %3317 = vmatprep.subr.mxu0 0.0
        %3318 = vmatpush1.msra.mxu0 0.0
        %3319 = vmatprep.subr.mxu0 0.0
        %3320 = vmatpush1.msra.mxu0 0.0
        %3321 = vmatprep.subr.mxu0 0.0
        %3322 = vmatpush1.msra.mxu0 0.0
        %3323 = vmatprep.subr.mxu0 0.0
        %3324 = vmatpush1.msra.mxu0 0.0
        %3325 = vmatprep.subr.mxu0 0.0
        %3326 = vmatpush1.msra.mxu0 0.0
        %3327 = vmatprep.subr.mxu0 0.0
        %3328 = vmatpush1.msra.mxu0 0.0
        %3329 = vmatprep.subr.mxu0 0.0
        %3330 = vmatpush1.msra.mxu0 0.0
        %3331 = vmatprep.subr.mxu0 0.0
        %3332 = vmatpush1.msra.mxu0 0.0
        %3333 = vmatprep.subr.mxu0 0.0
        %3334 = vmatpush1.msra.mxu0 0.0
        %3335 = vmatprep.subr.mxu0 0.0
        %3336 = vmatpush1.msra.mxu0 0.0
        %3337 = vmatprep.subr.mxu0 0.0
        %3338 = vmatpush1.msra.mxu0 0.0
        %3339 = vmatprep.subr.mxu0 0.0
        %3340 = vmatpush1.msra.mxu0 0.0
        %3341 = vmatprep.mubr.f32.mxu0 0.0
        %3342 = vmatmul.mubr.f32.gmra.mrb[0].mxu0 %v3272
        %v3343 = vpop.f32.mrb[0].mxu0
        %v3344 = vadd.f32 %v3270, %v3343
        %v3345 = vpop.f32.mrb[0].mxu0
        %3346 = vmatprep.mubr.f32.mxu0 0.0
        %3347 = vmatmul.mubr.f32.gmra.mrb[0].mxu0 %v3275
        %v3348 = vpop.f32.mrb[0].mxu0
        %v3349 = vadd.f32 %v3270, %v3348
        %v3350 = vpop.f32.mrb[0].mxu0
        %3351 = vdwg.mxu0
        %v3352 = vadd.f32 %v2785, %v3344
        %v3353 = vadd.f32 %v2786, %v3349
        %v3354 = vsel %vm381, %v3352, 0.0
        %3355 = vadd.xlane.f32.xlu0 %v3354
        %v3356 = vpop.xlane.xlu0 %3355
        %v3357 = vsel %vm381, %v3353, 0.0
        %3358 = vadd.xlane.f32.xlu0 %v3357
        %v3359 = vpop.xlane.xlu0 %3358
        %v3360 = vmul.f32 %v3356, %v907
        %v3361 = vmul.f32 %v3359, %v907
        %v3362 = vsub.f32 %v3352, %v3360
        %v3363 = vsub.f32 %v3353, %v3361
        %v3364 = vmul.f32 %v3362, %v3362
        %v3365 = vmul.f32 %v3363, %v3363
        %v3366 = vsel %vm381, %v3364, 0.0
        %3367 = vadd.xlane.f32.xlu0 %v3366
        %v3368 = vpop.xlane.xlu0 %3367
        %v3369 = vsel %vm381, %v3365, 0.0
        %3370 = vadd.xlane.f32.xlu0 %v3369
        %v3371 = vpop.xlane.xlu0 %3370
        %v3372 = vmul.f32 %v3368, %v907
        %v3373 = vmul.f32 %v3371, %v907
        %v3374 = vadd.f32 %v3372, 1e-05
        %v3375 = vadd.f32 %v3373, 1e-05
        %v3376 = vrsqrt.pop %v3374
        %v3377 = vrsqrt.pop %v3375
        %v3378 = vmul.f32 %v3362, %v3376
        %v3379 = vmul.f32 %v3363, %v3377
        %v3380 = vlaneseq
        %v3381 = vshrl.u32 %v3380, 7
        %v3382 = vsub.s32 0, %v3381
        %v3383 = vrot.slane %v2828, %v3382
        %v3384 = vmul.f32 %v3378, %v3383
        %v3385 = vmul.f32 %v3379, %v3383
        %v3386 = vlaneseq
        %v3387 = vshrl.u32 %v3386, 7
        %v3388 = vsub.s32 0, %v3387
        %v3389 = vrot.slane %v2829, %v3388
        %v3390 = vadd.f32 %v3384, %v3389
        %v3391 = vadd.f32 %v3385, %v3389
        %v3392 = vlaneseq
        %v3393 = vshrl.u32 %v3392, 7
        %v3394 = vsub.s32 0, %v3393
        %v3395 = vrot.slane %v2826, %v3394
        %v3397 = vsel %vm381, %v3390, 0
        %v3400 = vsel %vm381, %v3391, 0
        %3402 = vmatprep.subr.mxu0 0.0
        %3403 = vmatpush1.msra.mxu0 %v2808
        %3404 = vmatprep.subr.mxu0 0.0
        %3405 = vmatpush1.msra.mxu0 %v2809
        %3406 = vmatprep.subr.mxu0 0.0
        %3407 = vmatpush1.msra.mxu0 %v2810
        %3408 = vmatprep.subr.mxu0 0.0
        %3409 = vmatpush1.msra.mxu0 %v2811
        %3410 = vmatprep.subr.mxu0 0.0
        %3411 = vmatpush1.msra.mxu0 0.0
        %3412 = vmatprep.subr.mxu0 0.0
        %3413 = vmatpush1.msra.mxu0 0.0
        %3414 = vmatprep.subr.mxu0 0.0
        %3415 = vmatpush1.msra.mxu0 0.0
        %3416 = vmatprep.subr.mxu0 0.0
        %3417 = vmatpush1.msra.mxu0 0.0
        %3418 = vmatprep.subr.mxu0 0.0
        %3419 = vmatpush1.msra.mxu0 0.0
        %3420 = vmatprep.subr.mxu0 0.0
        %3421 = vmatpush1.msra.mxu0 0.0
        %3422 = vmatprep.subr.mxu0 0.0
        %3423 = vmatpush1.msra.mxu0 0.0
        %3424 = vmatprep.subr.mxu0 0.0
        %3425 = vmatpush1.msra.mxu0 0.0
        %3426 = vmatprep.subr.mxu0 0.0
        %3427 = vmatpush1.msra.mxu0 0.0
        %3428 = vmatprep.subr.mxu0 0.0
        %3429 = vmatpush1.msra.mxu0 0.0
        %3430 = vmatprep.subr.mxu0 0.0
        %3431 = vmatpush1.msra.mxu0 0.0
        %3432 = vmatprep.subr.mxu0 0.0
        %3433 = vmatpush1.msra.mxu0 0.0
        %3434 = vmatprep.subr.mxu0 0.0
        %3435 = vmatpush1.msra.mxu0 0.0
        %3436 = vmatprep.subr.mxu0 0.0
        %3437 = vmatpush1.msra.mxu0 0.0
        %3438 = vmatprep.subr.mxu0 0.0
        %3439 = vmatpush1.msra.mxu0 0.0
        %3440 = vmatprep.subr.mxu0 0.0
        %3441 = vmatpush1.msra.mxu0 0.0
        %3442 = vmatprep.subr.mxu0 0.0
        %3443 = vmatpush1.msra.mxu0 0.0
        %3444 = vmatprep.subr.mxu0 0.0
        %3445 = vmatpush1.msra.mxu0 0.0
        %3446 = vmatprep.subr.mxu0 0.0
        %3447 = vmatpush1.msra.mxu0 0.0
        %3448 = vmatprep.subr.mxu0 0.0
        %3449 = vmatpush1.msra.mxu0 0.0
        %3450 = vmatprep.subr.mxu0 0.0
        %3451 = vmatpush1.msra.mxu0 0.0
        %3452 = vmatprep.subr.mxu0 0.0
        %3453 = vmatpush1.msra.mxu0 0.0
        %3454 = vmatprep.subr.mxu0 0.0
        %3455 = vmatpush1.msra.mxu0 0.0
        %3456 = vmatprep.subr.mxu0 0.0
        %3457 = vmatpush1.msra.mxu0 0.0
        %3458 = vmatprep.subr.mxu0 0.0
        %3459 = vmatpush1.msra.mxu0 0.0
        %3460 = vmatprep.subr.mxu0 0.0
        %3461 = vmatpush1.msra.mxu0 0.0
        %3462 = vmatprep.subr.mxu0 0.0
        %3463 = vmatpush1.msra.mxu0 0.0
        %3464 = vmatprep.subr.mxu0 0.0
        %3465 = vmatpush1.msra.mxu0 0.0
        %3466 = vmatprep.mubr.f32.mxu0 0.0
        %3467 = vmatmul.mubr.f32.gmra.mrb[0].mxu0 %v3397
        %v3468 = vpop.f32.mrb[0].mxu0
        %v3469 = vadd.f32 %v3395, %v3468
        %v3470 = vpop.f32.mrb[0].mxu0
        %3471 = vmatprep.mubr.f32.mxu0 0.0
        %3472 = vmatmul.mubr.f32.gmra.mrb[0].mxu0 %v3400
        %v3473 = vpop.f32.mrb[0].mxu0
        %v3474 = vadd.f32 %v3395, %v3473
        %v3475 = vpop.f32.mrb[0].mxu0
        %3476 = vdwg.mxu0
        %v3477 = vmax.f32 %v3469, 0.0
        %v3478 = vmax.f32 %v3474, 0.0
        %v3479 = vlaneseq
        %v3480 = vshrl.u32 %v3479, 7
        %v3481 = vsub.s32 0, %v3480
        %v3482 = vrot.slane %v2827, %v3481
        %v3484 = vsel %vm1031, %v3477, 0
        %v3487 = vsel %vm1031, %v3478, 0
        %3489 = vmatprep.subr.mxu0 0.0
        %3490 = vmatpush1.msra.mxu0 %v2813
        %3491 = vmatprep.subr.mxu0 0.0
        %3492 = vmatpush1.msra.mxu0 %v2814
        %3493 = vmatprep.subr.mxu0 0.0
        %3494 = vmatpush1.msra.mxu0 %v2815
        %3495 = vmatprep.subr.mxu0 0.0
        %3496 = vmatpush1.msra.mxu0 %v2816
        %3497 = vmatprep.subr.mxu0 0.0
        %3498 = vmatpush1.msra.mxu0 %v2817
        %3499 = vmatprep.subr.mxu0 0.0
        %3500 = vmatpush1.msra.mxu0 %v2818
        %3501 = vmatprep.subr.mxu0 0.0
        %3502 = vmatpush1.msra.mxu0 %v2819
        %3503 = vmatprep.subr.mxu0 0.0
        %3504 = vmatpush1.msra.mxu0 %v2820
        %3505 = vmatprep.subr.mxu0 0.0
        %3506 = vmatpush1.msra.mxu0 0.0
        %3507 = vmatprep.subr.mxu0 0.0
        %3508 = vmatpush1.msra.mxu0 0.0
        %3509 = vmatprep.subr.mxu0 0.0
        %3510 = vmatpush1.msra.mxu0 0.0
        %3511 = vmatprep.subr.mxu0 0.0
        %3512 = vmatpush1.msra.mxu0 0.0
        %3513 = vmatprep.subr.mxu0 0.0
        %3514 = vmatpush1.msra.mxu0 0.0
        %3515 = vmatprep.subr.mxu0 0.0
        %3516 = vmatpush1.msra.mxu0 0.0
        %3517 = vmatprep.subr.mxu0 0.0
        %3518 = vmatpush1.msra.mxu0 0.0
        %3519 = vmatprep.subr.mxu0 0.0
        %3520 = vmatpush1.msra.mxu0 0.0
        %3521 = vmatprep.subr.mxu0 0.0
        %3522 = vmatpush1.msra.mxu0 0.0
        %3523 = vmatprep.subr.mxu0 0.0
        %3524 = vmatpush1.msra.mxu0 0.0
        %3525 = vmatprep.subr.mxu0 0.0
        %3526 = vmatpush1.msra.mxu0 0.0
        %3527 = vmatprep.subr.mxu0 0.0
        %3528 = vmatpush1.msra.mxu0 0.0
        %3529 = vmatprep.subr.mxu0 0.0
        %3530 = vmatpush1.msra.mxu0 0.0
        %3531 = vmatprep.subr.mxu0 0.0
        %3532 = vmatpush1.msra.mxu0 0.0
        %3533 = vmatprep.subr.mxu0 0.0
        %3534 = vmatpush1.msra.mxu0 0.0
        %3535 = vmatprep.subr.mxu0 0.0
        %3536 = vmatpush1.msra.mxu0 0.0
        %3537 = vmatprep.subr.mxu0 0.0
        %3538 = vmatpush1.msra.mxu0 0.0
        %3539 = vmatprep.subr.mxu0 0.0
        %3540 = vmatpush1.msra.mxu0 0.0
        %3541 = vmatprep.subr.mxu0 0.0
        %3542 = vmatpush1.msra.mxu0 0.0
        %3543 = vmatprep.subr.mxu0 0.0
        %3544 = vmatpush1.msra.mxu0 0.0
        %3545 = vmatprep.subr.mxu0 0.0
        %3546 = vmatpush1.msra.mxu0 0.0
        %3547 = vmatprep.subr.mxu0 0.0
        %3548 = vmatpush1.msra.mxu0 0.0
        %3549 = vmatprep.subr.mxu0 0.0
        %3550 = vmatpush1.msra.mxu0 0.0
        %3551 = vmatprep.subr.mxu0 0.0
        %3552 = vmatpush1.msra.mxu0 0.0
        %3553 = vmatprep.mubr.f32.mxu0 0.0
        %3554 = vmatmul.mubr.f32.gmra.mrb[0].mxu0 %v3484
        %v3555 = vpop.f32.mrb[0].mxu0
        %v3556 = vadd.f32 %v3482, %v3555
        %v3557 = vpop.f32.mrb[0].mxu0
        %3558 = vmatprep.mubr.f32.mxu0 0.0
        %3559 = vmatmul.mubr.f32.gmra.mrb[0].mxu0 %v3487
        %v3560 = vpop.f32.mrb[0].mxu0
        %v3561 = vadd.f32 %v3482, %v3560
        %v3562 = vpop.f32.mrb[0].mxu0
        %3563 = vdwg.mxu0
        %v3564 = vadd.f32 %v3390, %v3556
        %v3565 = vadd.f32 %v3391, %v3561
        %v3566 = vsel %vm381, %v3564, 0.0
        %3567 = vadd.xlane.f32.xlu0 %v3566
        %v3568 = vpop.xlane.xlu0 %3567
        %v3569 = vsel %vm381, %v3565, 0.0
        %3570 = vadd.xlane.f32.xlu0 %v3569
        %v3571 = vpop.xlane.xlu0 %3570
        %v3572 = vmul.f32 %v3568, %v907
        %v3573 = vmul.f32 %v3571, %v907
        %v3574 = vsub.f32 %v3564, %v3572
        %v3575 = vsub.f32 %v3565, %v3573
        %v3576 = vmul.f32 %v3574, %v3574
        %v3577 = vmul.f32 %v3575, %v3575
        %v3578 = vsel %vm381, %v3576, 0.0
        %3579 = vadd.xlane.f32.xlu0 %v3578
        %v3580 = vpop.xlane.xlu0 %3579
        %v3581 = vsel %vm381, %v3577, 0.0
        %3582 = vadd.xlane.f32.xlu0 %v3581
        %v3583 = vpop.xlane.xlu0 %3582
        %v3584 = vmul.f32 %v3580, %v907
        %v3585 = vmul.f32 %v3583, %v907
        %v3586 = vadd.f32 %v3584, 1e-05
        %v3587 = vadd.f32 %v3585, 1e-05
        %v3588 = vrsqrt.pop %v3586
        %v3589 = vrsqrt.pop %v3587
        %v3590 = vmul.f32 %v3574, %v3588
        %v3591 = vmul.f32 %v3575, %v3589
        %v3592 = vlaneseq
        %v3593 = vshrl.u32 %v3592, 7
        %v3594 = vsub.s32 0, %v3593
        %v3595 = vrot.slane %v2830, %v3594
        %v3596 = vmul.f32 %v3590, %v3595
        %v3597 = vmul.f32 %v3591, %v3595
        %v3598 = vlaneseq
        %v3599 = vshrl.u32 %v3598, 7
        %v3600 = vsub.s32 0, %v3599
        %v3601 = vrot.slane %v2831, %v3600
        %v3602 = vadd.f32 %v3596, %v3601
        %v3603 = vadd.f32 %v3597, %v3601
        %s3604 = scalar_lea.vmem %s2, 128
        %v3605 = vld [vmem:[%s3604] sm:$0xff]
        %v3606 = vld [vmem:[%s3604 + $0x8] sm:$0xff]
        %v3607 = vld [vmem:[%s3604 + $0x10] sm:$0xff]
        %v3608 = vld [vmem:[%s3604 + $0x18] sm:$0xff]
        %s3609 = scalar_lea.vmem %s3, 128
        %v3610 = vld [vmem:[%s3609] sm:$0xff]
        %v3611 = vld [vmem:[%s3609 + $0x8] sm:$0xff]
        %v3612 = vld [vmem:[%s3609 + $0x10] sm:$0xff]
        %v3613 = vld [vmem:[%s3609 + $0x18] sm:$0xff]
        %s3614 = scalar_lea.vmem %s4, 128
        %v3615 = vld [vmem:[%s3614] sm:$0xff]
        %v3616 = vld [vmem:[%s3614 + $0x8] sm:$0xff]
        %v3617 = vld [vmem:[%s3614 + $0x10] sm:$0xff]
        %v3618 = vld [vmem:[%s3614 + $0x18] sm:$0xff]
        %s3619 = scalar_lea.vmem %s5, 128
        %v3620 = vld [vmem:[%s3619] sm:$0xff]
        %v3621 = vld [vmem:[%s3619 + $0x8] sm:$0xff]
        %v3622 = vld [vmem:[%s3619 + $0x10] sm:$0xff]
        %v3623 = vld [vmem:[%s3619 + $0x18] sm:$0xff]
        %s3624 = scalar_lea.vmem %s6, 128
        %v3625 = vld [vmem:[%s3624] sm:$0xff]
        %v3626 = vld [vmem:[%s3624 + $0x8] sm:$0xff]
        %v3627 = vld [vmem:[%s3624 + $0x10] sm:$0xff]
        %v3628 = vld [vmem:[%s3624 + $0x18] sm:$0xff]
        %s3629 = scalar_lea.vmem %s7, 256
        %v3630 = vld [vmem:[%s3629] sm:$0xff]
        %v3631 = vld [vmem:[%s3629 + $0x8] sm:$0xff]
        %v3632 = vld [vmem:[%s3629 + $0x10] sm:$0xff]
        %v3633 = vld [vmem:[%s3629 + $0x18] sm:$0xff]
        %v3634 = vld [vmem:[%s3629 + $0x20] sm:$0xff]
        %v3635 = vld [vmem:[%s3629 + $0x28] sm:$0xff]
        %v3636 = vld [vmem:[%s3629 + $0x30] sm:$0xff]
        %v3637 = vld [vmem:[%s3629 + $0x38] sm:$0xff]
        %s3638 = scalar_lea.vmem %s8, 64
        %v3639 = vld [vmem:[%s3638] sm:$0x1]
        %v3640 = vld [vmem:[%s3638 + $0x1] sm:$0x1]
        %v3641 = vld [vmem:[%s3638 + $0x2] sm:$0x1]
        %v3642 = vld [vmem:[%s3638 + $0x3] sm:$0x1]
        %v3643 = vld [vmem:[%s3638 + $0x4] sm:$0x1]
        %v3644 = vld [vmem:[%s3638 + $0x5] sm:$0x1]
        %v3645 = vld [vmem:[%s3638 + $0x6] sm:$0x1]
        %v3646 = vld [vmem:[%s3638 + $0x7] sm:$0x1]
        %v3647 = vld [vmem:[%s3638 + $0x8] sm:$0x1]
        %v3648 = vld [vmem:[%s3638 + $0x9] sm:$0x1]
        %v3649 = vlaneseq
        %v3650 = vshrl.u32 %v3649, 7
        %v3651 = vsub.s32 0, %v3650
        %v3652 = vrot.slane %v3639, %v3651
        %v3654 = vsel %vm381, %v3602, 0
        %v3657 = vsel %vm381, %v3603, 0
        %3659 = vmatprep.subr.mxu0 0.0
        %3660 = vmatpush1.msra.mxu0 %v3605
        %3661 = vmatprep.subr.mxu0 0.0
        %3662 = vmatpush1.msra.mxu0 %v3606
        %3663 = vmatprep.subr.mxu0 0.0
        %3664 = vmatpush1.msra.mxu0 %v3607
        %3665 = vmatprep.subr.mxu0 0.0
        %3666 = vmatpush1.msra.mxu0 %v3608
        %3667 = vmatprep.subr.mxu0 0.0
        %3668 = vmatpush1.msra.mxu0 0.0
        %3669 = vmatprep.subr.mxu0 0.0
        %3670 = vmatpush1.msra.mxu0 0.0
        %3671 = vmatprep.subr.mxu0 0.0
        %3672 = vmatpush1.msra.mxu0 0.0
        %3673 = vmatprep.subr.mxu0 0.0
        %3674 = vmatpush1.msra.mxu0 0.0
        %3675 = vmatprep.subr.mxu0 0.0
        %3676 = vmatpush1.msra.mxu0 0.0
        %3677 = vmatprep.subr.mxu0 0.0
        %3678 = vmatpush1.msra.mxu0 0.0
        %3679 = vmatprep.subr.mxu0 0.0
        %3680 = vmatpush1.msra.mxu0 0.0
        %3681 = vmatprep.subr.mxu0 0.0
        %3682 = vmatpush1.msra.mxu0 0.0
        %3683 = vmatprep.subr.mxu0 0.0
        %3684 = vmatpush1.msra.mxu0 0.0
        %3685 = vmatprep.subr.mxu0 0.0
        %3686 = vmatpush1.msra.mxu0 0.0
        %3687 = vmatprep.subr.mxu0 0.0
        %3688 = vmatpush1.msra.mxu0 0.0
        %3689 = vmatprep.subr.mxu0 0.0
        %3690 = vmatpush1.msra.mxu0 0.0
        %3691 = vmatprep.subr.mxu0 0.0
        %3692 = vmatpush1.msra.mxu0 0.0
        %3693 = vmatprep.subr.mxu0 0.0
        %3694 = vmatpush1.msra.mxu0 0.0
        %3695 = vmatprep.subr.mxu0 0.0
        %3696 = vmatpush1.msra.mxu0 0.0
        %3697 = vmatprep.subr.mxu0 0.0
        %3698 = vmatpush1.msra.mxu0 0.0
        %3699 = vmatprep.subr.mxu0 0.0
        %3700 = vmatpush1.msra.mxu0 0.0
        %3701 = vmatprep.subr.mxu0 0.0
        %3702 = vmatpush1.msra.mxu0 0.0
        %3703 = vmatprep.subr.mxu0 0.0
        %3704 = vmatpush1.msra.mxu0 0.0
        %3705 = vmatprep.subr.mxu0 0.0
        %3706 = vmatpush1.msra.mxu0 0.0
        %3707 = vmatprep.subr.mxu0 0.0
        %3708 = vmatpush1.msra.mxu0 0.0
        %3709 = vmatprep.subr.mxu0 0.0
        %3710 = vmatpush1.msra.mxu0 0.0
        %3711 = vmatprep.subr.mxu0 0.0
        %3712 = vmatpush1.msra.mxu0 0.0
        %3713 = vmatprep.subr.mxu0 0.0
        %3714 = vmatpush1.msra.mxu0 0.0
        %3715 = vmatprep.subr.mxu0 0.0
        %3716 = vmatpush1.msra.mxu0 0.0
        %3717 = vmatprep.subr.mxu0 0.0
        %3718 = vmatpush1.msra.mxu0 0.0
        %3719 = vmatprep.subr.mxu0 0.0
        %3720 = vmatpush1.msra.mxu0 0.0
        %3721 = vmatprep.subr.mxu0 0.0
        %3722 = vmatpush1.msra.mxu0 0.0
        %3723 = vmatprep.mubr.f32.mxu0 0.0
        %3724 = vmatmul.mubr.f32.gmra.mrb[0].mxu0 %v3654
        %v3725 = vpop.f32.mrb[0].mxu0
        %v3726 = vadd.f32 %v3652, %v3725
        %v3727 = vpop.f32.mrb[0].mxu0
        %3728 = vmatprep.mubr.f32.mxu0 0.0
        %3729 = vmatmul.mubr.f32.gmra.mrb[0].mxu0 %v3657
        %v3730 = vpop.f32.mrb[0].mxu0
        %v3731 = vadd.f32 %v3652, %v3730
        %v3732 = vpop.f32.mrb[0].mxu0
        %3733 = vdwg.mxu0
        %v3734 = vlaneseq
        %v3735 = vshrl.u32 %v3734, 7
        %v3736 = vsub.s32 0, %v3735
        %v3737 = vrot.slane %v3640, %v3736
        %3738 = vmatprep.subr.mxu0 0.0
        %3739 = vmatpush1.msra.mxu0 %v3610
        %3740 = vmatprep.subr.mxu0 0.0
        %3741 = vmatpush1.msra.mxu0 %v3611
        %3742 = vmatprep.subr.mxu0 0.0
        %3743 = vmatpush1.msra.mxu0 %v3612
        %3744 = vmatprep.subr.mxu0 0.0
        %3745 = vmatpush1.msra.mxu0 %v3613
        %3746 = vmatprep.subr.mxu0 0.0
        %3747 = vmatpush1.msra.mxu0 0.0
        %3748 = vmatprep.subr.mxu0 0.0
        %3749 = vmatpush1.msra.mxu0 0.0
        %3750 = vmatprep.subr.mxu0 0.0
        %3751 = vmatpush1.msra.mxu0 0.0
        %3752 = vmatprep.subr.mxu0 0.0
        %3753 = vmatpush1.msra.mxu0 0.0
        %3754 = vmatprep.subr.mxu0 0.0
        %3755 = vmatpush1.msra.mxu0 0.0
        %3756 = vmatprep.subr.mxu0 0.0
        %3757 = vmatpush1.msra.mxu0 0.0
        %3758 = vmatprep.subr.mxu0 0.0
        %3759 = vmatpush1.msra.mxu0 0.0
        %3760 = vmatprep.subr.mxu0 0.0
        %3761 = vmatpush1.msra.mxu0 0.0
        %3762 = vmatprep.subr.mxu0 0.0
        %3763 = vmatpush1.msra.mxu0 0.0
        %3764 = vmatprep.subr.mxu0 0.0
        %3765 = vmatpush1.msra.mxu0 0.0
        %3766 = vmatprep.subr.mxu0 0.0
        %3767 = vmatpush1.msra.mxu0 0.0
        %3768 = vmatprep.subr.mxu0 0.0
        %3769 = vmatpush1.msra.mxu0 0.0
        %3770 = vmatprep.subr.mxu0 0.0
        %3771 = vmatpush1.msra.mxu0 0.0
        %3772 = vmatprep.subr.mxu0 0.0
        %3773 = vmatpush1.msra.mxu0 0.0
        %3774 = vmatprep.subr.mxu0 0.0
        %3775 = vmatpush1.msra.mxu0 0.0
        %3776 = vmatprep.subr.mxu0 0.0
        %3777 = vmatpush1.msra.mxu0 0.0
        %3778 = vmatprep.subr.mxu0 0.0
        %3779 = vmatpush1.msra.mxu0 0.0
        %3780 = vmatprep.subr.mxu0 0.0
        %3781 = vmatpush1.msra.mxu0 0.0
        %3782 = vmatprep.subr.mxu0 0.0
        %3783 = vmatpush1.msra.mxu0 0.0
        %3784 = vmatprep.subr.mxu0 0.0
        %3785 = vmatpush1.msra.mxu0 0.0
        %3786 = vmatprep.subr.mxu0 0.0
        %3787 = vmatpush1.msra.mxu0 0.0
        %3788 = vmatprep.subr.mxu0 0.0
        %3789 = vmatpush1.msra.mxu0 0.0
        %3790 = vmatprep.subr.mxu0 0.0
        %3791 = vmatpush1.msra.mxu0 0.0
        %3792 = vmatprep.subr.mxu0 0.0
        %3793 = vmatpush1.msra.mxu0 0.0
        %3794 = vmatprep.subr.mxu0 0.0
        %3795 = vmatpush1.msra.mxu0 0.0
        %3796 = vmatprep.subr.mxu0 0.0
        %3797 = vmatpush1.msra.mxu0 0.0
        %3798 = vmatprep.subr.mxu0 0.0
        %3799 = vmatpush1.msra.mxu0 0.0
        %3800 = vmatprep.subr.mxu0 0.0
        %3801 = vmatpush1.msra.mxu0 0.0
        %3802 = vmatprep.mubr.f32.mxu0 0.0
        %3803 = vmatmul.mubr.f32.gmra.mrb[0].mxu0 %v3654
        %v3804 = vpop.f32.mrb[0].mxu0
        %v3805 = vadd.f32 %v3737, %v3804
        %v3806 = vpop.f32.mrb[0].mxu0
        %3807 = vmatprep.mubr.f32.mxu0 0.0
        %3808 = vmatmul.mubr.f32.gmra.mrb[0].mxu0 %v3657
        %v3809 = vpop.f32.mrb[0].mxu0
        %v3810 = vadd.f32 %v3737, %v3809
        %v3811 = vpop.f32.mrb[0].mxu0
        %3812 = vdwg.mxu0
        %v3813 = vlaneseq
        %v3814 = vshrl.u32 %v3813, 7
        %v3815 = vsub.s32 0, %v3814
        %v3816 = vrot.slane %v3641, %v3815
        %3817 = vmatprep.subr.mxu0 0.0
        %3818 = vmatpush1.msra.mxu0 %v3615
        %3819 = vmatprep.subr.mxu0 0.0
        %3820 = vmatpush1.msra.mxu0 %v3616
        %3821 = vmatprep.subr.mxu0 0.0
        %3822 = vmatpush1.msra.mxu0 %v3617
        %3823 = vmatprep.subr.mxu0 0.0
        %3824 = vmatpush1.msra.mxu0 %v3618
        %3825 = vmatprep.subr.mxu0 0.0
        %3826 = vmatpush1.msra.mxu0 0.0
        %3827 = vmatprep.subr.mxu0 0.0
        %3828 = vmatpush1.msra.mxu0 0.0
        %3829 = vmatprep.subr.mxu0 0.0
        %3830 = vmatpush1.msra.mxu0 0.0
        %3831 = vmatprep.subr.mxu0 0.0
        %3832 = vmatpush1.msra.mxu0 0.0
        %3833 = vmatprep.subr.mxu0 0.0
        %3834 = vmatpush1.msra.mxu0 0.0
        %3835 = vmatprep.subr.mxu0 0.0
        %3836 = vmatpush1.msra.mxu0 0.0
        %3837 = vmatprep.subr.mxu0 0.0
        %3838 = vmatpush1.msra.mxu0 0.0
        %3839 = vmatprep.subr.mxu0 0.0
        %3840 = vmatpush1.msra.mxu0 0.0
        %3841 = vmatprep.subr.mxu0 0.0
        %3842 = vmatpush1.msra.mxu0 0.0
        %3843 = vmatprep.subr.mxu0 0.0
        %3844 = vmatpush1.msra.mxu0 0.0
        %3845 = vmatprep.subr.mxu0 0.0
        %3846 = vmatpush1.msra.mxu0 0.0
        %3847 = vmatprep.subr.mxu0 0.0
        %3848 = vmatpush1.msra.mxu0 0.0
        %3849 = vmatprep.subr.mxu0 0.0
        %3850 = vmatpush1.msra.mxu0 0.0
        %3851 = vmatprep.subr.mxu0 0.0
        %3852 = vmatpush1.msra.mxu0 0.0
        %3853 = vmatprep.subr.mxu0 0.0
        %3854 = vmatpush1.msra.mxu0 0.0
        %3855 = vmatprep.subr.mxu0 0.0
        %3856 = vmatpush1.msra.mxu0 0.0
        %3857 = vmatprep.subr.mxu0 0.0
        %3858 = vmatpush1.msra.mxu0 0.0
        %3859 = vmatprep.subr.mxu0 0.0
        %3860 = vmatpush1.msra.mxu0 0.0
        %3861 = vmatprep.subr.mxu0 0.0
        %3862 = vmatpush1.msra.mxu0 0.0
        %3863 = vmatprep.subr.mxu0 0.0
        %3864 = vmatpush1.msra.mxu0 0.0
        %3865 = vmatprep.subr.mxu0 0.0
        %3866 = vmatpush1.msra.mxu0 0.0
        %3867 = vmatprep.subr.mxu0 0.0
        %3868 = vmatpush1.msra.mxu0 0.0
        %3869 = vmatprep.subr.mxu0 0.0
        %3870 = vmatpush1.msra.mxu0 0.0
        %3871 = vmatprep.subr.mxu0 0.0
        %3872 = vmatpush1.msra.mxu0 0.0
        %3873 = vmatprep.subr.mxu0 0.0
        %3874 = vmatpush1.msra.mxu0 0.0
        %3875 = vmatprep.subr.mxu0 0.0
        %3876 = vmatpush1.msra.mxu0 0.0
        %3877 = vmatprep.subr.mxu0 0.0
        %3878 = vmatpush1.msra.mxu0 0.0
        %3879 = vmatprep.subr.mxu0 0.0
        %3880 = vmatpush1.msra.mxu0 0.0
        %3881 = vmatprep.mubr.f32.mxu0 0.0
        %3882 = vmatmul.mubr.f32.gmra.mrb[0].mxu0 %v3654
        %v3883 = vpop.f32.mrb[0].mxu0
        %v3884 = vadd.f32 %v3816, %v3883
        %v3885 = vpop.f32.mrb[0].mxu0
        %3886 = vmatprep.mubr.f32.mxu0 0.0
        %3887 = vmatmul.mubr.f32.gmra.mrb[0].mxu0 %v3657
        %v3888 = vpop.f32.mrb[0].mxu0
        %v3889 = vadd.f32 %v3816, %v3888
        %v3890 = vpop.f32.mrb[0].mxu0
        %3891 = vdwg.mxu0
        %v3893 = vsel %vm381, %v3726, 0
        %v3896 = vsel %vm381, %v3731, 0
        %v3899 = vsel %vm381, %v3805, 0
        %v3902 = vsel %vm381, %v3810, 0
        %3904 = vmatprep.subr.mxu0 0.0
        %3905 = vmatpush1.xpose.msra.mxu0 %v3899
        %3906 = vmatprep.subr.mxu0 0.0
        %3907 = vmatpush1.xpose.msra.mxu0 %v3902
        %3908 = vmatprep.subr.mxu0 0.0
        %3909 = vmatpush1.xpose.msra.mxu0 0.0
        %3910 = vmatprep.subr.mxu0 0.0
        %3911 = vmatpush1.xpose.msra.mxu0 0.0
        %3912 = vmatprep.subr.mxu0 0.0
        %3913 = vmatpush1.xpose.msra.mxu0 0.0
        %3914 = vmatprep.subr.mxu0 0.0
        %3915 = vmatpush1.xpose.msra.mxu0 0.0
        %3916 = vmatprep.subr.mxu0 0.0
        %3917 = vmatpush1.xpose.msra.mxu0 0.0
        %3918 = vmatprep.subr.mxu0 0.0
        %3919 = vmatpush1.xpose.msra.mxu0 0.0
        %3920 = vmatprep.subr.mxu0 0.0
        %3921 = vmatpush1.xpose.msra.mxu0 0.0
        %3922 = vmatprep.subr.mxu0 0.0
        %3923 = vmatpush1.xpose.msra.mxu0 0.0
        %3924 = vmatprep.subr.mxu0 0.0
        %3925 = vmatpush1.xpose.msra.mxu0 0.0
        %3926 = vmatprep.subr.mxu0 0.0
        %3927 = vmatpush1.xpose.msra.mxu0 0.0
        %3928 = vmatprep.subr.mxu0 0.0
        %3929 = vmatpush1.xpose.msra.mxu0 0.0
        %3930 = vmatprep.subr.mxu0 0.0
        %3931 = vmatpush1.xpose.msra.mxu0 0.0
        %3932 = vmatprep.subr.mxu0 0.0
        %3933 = vmatpush1.xpose.msra.mxu0 0.0
        %3934 = vmatprep.subr.mxu0 0.0
        %3935 = vmatpush1.xpose.msra.mxu0 0.0
        %3936 = vmatprep.subr.mxu0 0.0
        %3937 = vmatpush1.xpose.msra.mxu0 0.0
        %3938 = vmatprep.subr.mxu0 0.0
        %3939 = vmatpush1.xpose.msra.mxu0 0.0
        %3940 = vmatprep.subr.mxu0 0.0
        %3941 = vmatpush1.xpose.msra.mxu0 0.0
        %3942 = vmatprep.subr.mxu0 0.0
        %3943 = vmatpush1.xpose.msra.mxu0 0.0
        %3944 = vmatprep.subr.mxu0 0.0
        %3945 = vmatpush1.xpose.msra.mxu0 0.0
        %3946 = vmatprep.subr.mxu0 0.0
        %3947 = vmatpush1.xpose.msra.mxu0 0.0
        %3948 = vmatprep.subr.mxu0 0.0
        %3949 = vmatpush1.xpose.msra.mxu0 0.0
        %3950 = vmatprep.subr.mxu0 0.0
        %3951 = vmatpush1.xpose.msra.mxu0 0.0
        %3952 = vmatprep.subr.mxu0 0.0
        %3953 = vmatpush1.xpose.msra.mxu0 0.0
        %3954 = vmatprep.subr.mxu0 0.0
        %3955 = vmatpush1.xpose.msra.mxu0 0.0
        %3956 = vmatprep.subr.mxu0 0.0
        %3957 = vmatpush1.xpose.msra.mxu0 0.0
        %3958 = vmatprep.subr.mxu0 0.0
        %3959 = vmatpush1.xpose.msra.mxu0 0.0
        %3960 = vmatprep.subr.mxu0 0.0
        %3961 = vmatpush1.xpose.msra.mxu0 0.0
        %3962 = vmatprep.subr.mxu0 0.0
        %3963 = vmatpush1.xpose.msra.mxu0 0.0
        %3964 = vmatprep.subr.mxu0 0.0
        %3965 = vmatpush1.xpose.msra.mxu0 0.0
        %3966 = vmatprep.subr.mxu0 0.0
        %3967 = vmatpush1.xpose.msra.mxu0 0.0
        %3968 = vmatprep.mubr.f32.mxu0 0.0
        %3969 = vmatmul.mubr.f32.gmra.mrb[0].mxu0 %v3893
        %v3970 = vpop.f32.mrb[0].mxu0
        %v3971 = vadd.f32 0.0, %v3970
        %v3972 = vpop.f32.mrb[0].mxu0
        %3973 = vmatprep.mubr.f32.mxu0 0.0
        %3974 = vmatmul.mubr.f32.gmra.mrb[0].mxu0 %v3896
        %v3975 = vpop.f32.mrb[0].mxu0
        %v3976 = vadd.f32 0.0, %v3975
        %v3977 = vpop.f32.mrb[0].mxu0
        %3978 = vdwg.mxu0
        %v3979 = vmul.f32 %v3971, 0.17677669
        %v3980 = vmul.f32 %v3976, 0.17677669
        %v3981 = vsel %vm710, %v3979, -inf
        %3982 = vmax.xlane.f32.xlu0 %v3981
        %v3983 = vpop.xlane.xlu0 %3982
        %v3984 = vsel %vm710, %v3980, -inf
        %3985 = vmax.xlane.f32.xlu0 %v3984
        %v3986 = vpop.xlane.xlu0 %3985
        %v3987 = vsub.f32 %v3979, %v3983
        %v3988 = vsub.f32 %v3980, %v3986
        %v3989 = vmul.f32 %v3987, 1.442695
        %v3990 = vpow.pop %v3989
        %v3991 = vmul.f32 %v3988, 1.442695
        %v3992 = vpow.pop %v3991
        %v3993 = vsel %vm710, %v3990, 0.0
        %3994 = vadd.xlane.f32.xlu0 %v3993
        %v3995 = vpop.xlane.xlu0 %3994
        %v3996 = vsel %vm710, %v3992, 0.0
        %3997 = vadd.xlane.f32.xlu0 %v3996
        %v3998 = vpop.xlane.xlu0 %3997
        %v3999 = vrcp.pop %v3995
        %v4000 = vrcp.pop %v3998
        %v4001 = vmul.f32 %v3990, %v3999
        %v4002 = vmul.f32 %v3992, %v4000
        %v4004 = vsel %vm710, %v4001, 0
        %v4007 = vsel %vm710, %v4002, 0
        %4009 = vmatprep.subr.mxu0 0.0
        %4010 = vmatpush1.msra.mxu0 %v3884
        %4011 = vmatprep.subr.mxu0 0.0
        %4012 = vmatpush1.msra.mxu0 %v3889
        %4013 = vmatprep.subr.mxu0 0.0
        %4014 = vmatpush1.msra.mxu0 0.0
        %4015 = vmatprep.subr.mxu0 0.0
        %4016 = vmatpush1.msra.mxu0 0.0
        %4017 = vmatprep.subr.mxu0 0.0
        %4018 = vmatpush1.msra.mxu0 0.0
        %4019 = vmatprep.subr.mxu0 0.0
        %4020 = vmatpush1.msra.mxu0 0.0
        %4021 = vmatprep.subr.mxu0 0.0
        %4022 = vmatpush1.msra.mxu0 0.0
        %4023 = vmatprep.subr.mxu0 0.0
        %4024 = vmatpush1.msra.mxu0 0.0
        %4025 = vmatprep.subr.mxu0 0.0
        %4026 = vmatpush1.msra.mxu0 0.0
        %4027 = vmatprep.subr.mxu0 0.0
        %4028 = vmatpush1.msra.mxu0 0.0
        %4029 = vmatprep.subr.mxu0 0.0
        %4030 = vmatpush1.msra.mxu0 0.0
        %4031 = vmatprep.subr.mxu0 0.0
        %4032 = vmatpush1.msra.mxu0 0.0
        %4033 = vmatprep.subr.mxu0 0.0
        %4034 = vmatpush1.msra.mxu0 0.0
        %4035 = vmatprep.subr.mxu0 0.0
        %4036 = vmatpush1.msra.mxu0 0.0
        %4037 = vmatprep.subr.mxu0 0.0
        %4038 = vmatpush1.msra.mxu0 0.0
        %4039 = vmatprep.subr.mxu0 0.0
        %4040 = vmatpush1.msra.mxu0 0.0
        %4041 = vmatprep.subr.mxu0 0.0
        %4042 = vmatpush1.msra.mxu0 0.0
        %4043 = vmatprep.subr.mxu0 0.0
        %4044 = vmatpush1.msra.mxu0 0.0
        %4045 = vmatprep.subr.mxu0 0.0
        %4046 = vmatpush1.msra.mxu0 0.0
        %4047 = vmatprep.subr.mxu0 0.0
        %4048 = vmatpush1.msra.mxu0 0.0
        %4049 = vmatprep.subr.mxu0 0.0
        %4050 = vmatpush1.msra.mxu0 0.0
        %4051 = vmatprep.subr.mxu0 0.0
        %4052 = vmatpush1.msra.mxu0 0.0
        %4053 = vmatprep.subr.mxu0 0.0
        %4054 = vmatpush1.msra.mxu0 0.0
        %4055 = vmatprep.subr.mxu0 0.0
        %4056 = vmatpush1.msra.mxu0 0.0
        %4057 = vmatprep.subr.mxu0 0.0
        %4058 = vmatpush1.msra.mxu0 0.0
        %4059 = vmatprep.subr.mxu0 0.0
        %4060 = vmatpush1.msra.mxu0 0.0
        %4061 = vmatprep.subr.mxu0 0.0
        %4062 = vmatpush1.msra.mxu0 0.0
        %4063 = vmatprep.subr.mxu0 0.0
        %4064 = vmatpush1.msra.mxu0 0.0
        %4065 = vmatprep.subr.mxu0 0.0
        %4066 = vmatpush1.msra.mxu0 0.0
        %4067 = vmatprep.subr.mxu0 0.0
        %4068 = vmatpush1.msra.mxu0 0.0
        %4069 = vmatprep.subr.mxu0 0.0
        %4070 = vmatpush1.msra.mxu0 0.0
        %4071 = vmatprep.subr.mxu0 0.0
        %4072 = vmatpush1.msra.mxu0 0.0
        %4073 = vmatprep.mubr.f32.mxu0 0.0
        %4074 = vmatmul.mubr.f32.gmra.mrb[0].mxu0 %v4004
        %v4075 = vpop.f32.mrb[0].mxu0
        %v4076 = vadd.f32 0.0, %v4075
        %v4077 = vpop.f32.mrb[0].mxu0
        %4078 = vmatprep.mubr.f32.mxu0 0.0
        %4079 = vmatmul.mubr.f32.gmra.mrb[0].mxu0 %v4007
        %v4080 = vpop.f32.mrb[0].mxu0
        %v4081 = vadd.f32 0.0, %v4080
        %v4082 = vpop.f32.mrb[0].mxu0
        %4083 = vdwg.mxu0
        %v4084 = vlaneseq
        %v4085 = vshrl.u32 %v4084, 7
        %v4086 = vsub.s32 0, %v4085
        %v4087 = vrot.slane %v3642, %v4086
        %v4089 = vsel %vm381, %v4076, 0
        %v4092 = vsel %vm381, %v4081, 0
        %4094 = vmatprep.subr.mxu0 0.0
        %4095 = vmatpush1.msra.mxu0 %v3620
        %4096 = vmatprep.subr.mxu0 0.0
        %4097 = vmatpush1.msra.mxu0 %v3621
        %4098 = vmatprep.subr.mxu0 0.0
        %4099 = vmatpush1.msra.mxu0 %v3622
        %4100 = vmatprep.subr.mxu0 0.0
        %4101 = vmatpush1.msra.mxu0 %v3623
        %4102 = vmatprep.subr.mxu0 0.0
        %4103 = vmatpush1.msra.mxu0 0.0
        %4104 = vmatprep.subr.mxu0 0.0
        %4105 = vmatpush1.msra.mxu0 0.0
        %4106 = vmatprep.subr.mxu0 0.0
        %4107 = vmatpush1.msra.mxu0 0.0
        %4108 = vmatprep.subr.mxu0 0.0
        %4109 = vmatpush1.msra.mxu0 0.0
        %4110 = vmatprep.subr.mxu0 0.0
        %4111 = vmatpush1.msra.mxu0 0.0
        %4112 = vmatprep.subr.mxu0 0.0
        %4113 = vmatpush1.msra.mxu0 0.0
        %4114 = vmatprep.subr.mxu0 0.0
        %4115 = vmatpush1.msra.mxu0 0.0
        %4116 = vmatprep.subr.mxu0 0.0
        %4117 = vmatpush1.msra.mxu0 0.0
        %4118 = vmatprep.subr.mxu0 0.0
        %4119 = vmatpush1.msra.mxu0 0.0
        %4120 = vmatprep.subr.mxu0 0.0
        %4121 = vmatpush1.msra.mxu0 0.0
        %4122 = vmatprep.subr.mxu0 0.0
        %4123 = vmatpush1.msra.mxu0 0.0
        %4124 = vmatprep.subr.mxu0 0.0
        %4125 = vmatpush1.msra.mxu0 0.0
        %4126 = vmatprep.subr.mxu0 0.0
        %4127 = vmatpush1.msra.mxu0 0.0
        %4128 = vmatprep.subr.mxu0 0.0
        %4129 = vmatpush1.msra.mxu0 0.0
        %4130 = vmatprep.subr.mxu0 0.0
        %4131 = vmatpush1.msra.mxu0 0.0
        %4132 = vmatprep.subr.mxu0 0.0
        %4133 = vmatpush1.msra.mxu0 0.0
        %4134 = vmatprep.subr.mxu0 0.0
        %4135 = vmatpush1.msra.mxu0 0.0
        %4136 = vmatprep.subr.mxu0 0.0
        %4137 = vmatpush1.msra.mxu0 0.0
        %4138 = vmatprep.subr.mxu0 0.0
        %4139 = vmatpush1.msra.mxu0 0.0
        %4140 = vmatprep.subr.mxu0 0.0
        %4141 = vmatpush1.msra.mxu0 0.0
        %4142 = vmatprep.subr.mxu0 0.0
        %4143 = vmatpush1.msra.mxu0 0.0
        %4144 = vmatprep.subr.mxu0 0.0
        %4145 = vmatpush1.msra.mxu0 0.0
        %4146 = vmatprep.subr.mxu0 0.0
        %4147 = vmatpush1.msra.mxu0 0.0
        %4148 = vmatprep.subr.mxu0 0.0
        %4149 = vmatpush1.msra.mxu0 0.0
        %4150 = vmatprep.subr.mxu0 0.0
        %4151 = vmatpush1.msra.mxu0 0.0
        %4152 = vmatprep.subr.mxu0 0.0
        %4153 = vmatpush1.msra.mxu0 0.0
        %4154 = vmatprep.subr.mxu0 0.0
        %4155 = vmatpush1.msra.mxu0 0.0
        %4156 = vmatprep.subr.mxu0 0.0
        %4157 = vmatpush1.msra.mxu0 0.0
        %4158 = vmatprep.mubr.f32.mxu0 0.0
        %4159 = vmatmul.mubr.f32.gmra.mrb[0].mxu0 %v4089
        %v4160 = vpop.f32.mrb[0].mxu0
        %v4161 = vadd.f32 %v4087, %v4160
        %v4162 = vpop.f32.mrb[0].mxu0
        %4163 = vmatprep.mubr.f32.mxu0 0.0
        %4164 = vmatmul.mubr.f32.gmra.mrb[0].mxu0 %v4092
        %v4165 = vpop.f32.mrb[0].mxu0
        %v4166 = vadd.f32 %v4087, %v4165
        %v4167 = vpop.f32.mrb[0].mxu0
        %4168 = vdwg.mxu0
        %v4169 = vadd.f32 %v3602, %v4161
        %v4170 = vadd.f32 %v3603, %v4166
        %v4171 = vsel %vm381, %v4169, 0.0
        %4172 = vadd.xlane.f32.xlu0 %v4171
        %v4173 = vpop.xlane.xlu0 %4172
        %v4174 = vsel %vm381, %v4170, 0.0
        %4175 = vadd.xlane.f32.xlu0 %v4174
        %v4176 = vpop.xlane.xlu0 %4175
        %v4177 = vmul.f32 %v4173, %v907
        %v4178 = vmul.f32 %v4176, %v907
        %v4179 = vsub.f32 %v4169, %v4177
        %v4180 = vsub.f32 %v4170, %v4178
        %v4181 = vmul.f32 %v4179, %v4179
        %v4182 = vmul.f32 %v4180, %v4180
        %v4183 = vsel %vm381, %v4181, 0.0
        %4184 = vadd.xlane.f32.xlu0 %v4183
        %v4185 = vpop.xlane.xlu0 %4184
        %v4186 = vsel %vm381, %v4182, 0.0
        %4187 = vadd.xlane.f32.xlu0 %v4186
        %v4188 = vpop.xlane.xlu0 %4187
        %v4189 = vmul.f32 %v4185, %v907
        %v4190 = vmul.f32 %v4188, %v907
        %v4191 = vadd.f32 %v4189, 1e-05
        %v4192 = vadd.f32 %v4190, 1e-05
        %v4193 = vrsqrt.pop %v4191
        %v4194 = vrsqrt.pop %v4192
        %v4195 = vmul.f32 %v4179, %v4193
        %v4196 = vmul.f32 %v4180, %v4194
        %v4197 = vlaneseq
        %v4198 = vshrl.u32 %v4197, 7
        %v4199 = vsub.s32 0, %v4198
        %v4200 = vrot.slane %v3645, %v4199
        %v4201 = vmul.f32 %v4195, %v4200
        %v4202 = vmul.f32 %v4196, %v4200
        %v4203 = vlaneseq
        %v4204 = vshrl.u32 %v4203, 7
        %v4205 = vsub.s32 0, %v4204
        %v4206 = vrot.slane %v3646, %v4205
        %v4207 = vadd.f32 %v4201, %v4206
        %v4208 = vadd.f32 %v4202, %v4206
        %v4209 = vlaneseq
        %v4210 = vshrl.u32 %v4209, 7
        %v4211 = vsub.s32 0, %v4210
        %v4212 = vrot.slane %v3643, %v4211
        %v4214 = vsel %vm381, %v4207, 0
        %v4217 = vsel %vm381, %v4208, 0
        %4219 = vmatprep.subr.mxu0 0.0
        %4220 = vmatpush1.msra.mxu0 %v3625
        %4221 = vmatprep.subr.mxu0 0.0
        %4222 = vmatpush1.msra.mxu0 %v3626
        %4223 = vmatprep.subr.mxu0 0.0
        %4224 = vmatpush1.msra.mxu0 %v3627
        %4225 = vmatprep.subr.mxu0 0.0
        %4226 = vmatpush1.msra.mxu0 %v3628
        %4227 = vmatprep.subr.mxu0 0.0
        %4228 = vmatpush1.msra.mxu0 0.0
        %4229 = vmatprep.subr.mxu0 0.0
        %4230 = vmatpush1.msra.mxu0 0.0
        %4231 = vmatprep.subr.mxu0 0.0
        %4232 = vmatpush1.msra.mxu0 0.0
        %4233 = vmatprep.subr.mxu0 0.0
        %4234 = vmatpush1.msra.mxu0 0.0
        %4235 = vmatprep.subr.mxu0 0.0
        %4236 = vmatpush1.msra.mxu0 0.0
        %4237 = vmatprep.subr.mxu0 0.0
        %4238 = vmatpush1.msra.mxu0 0.0
        %4239 = vmatprep.subr.mxu0 0.0
        %4240 = vmatpush1.msra.mxu0 0.0
        %4241 = vmatprep.subr.mxu0 0.0
        %4242 = vmatpush1.msra.mxu0 0.0
        %4243 = vmatprep.subr.mxu0 0.0
        %4244 = vmatpush1.msra.mxu0 0.0
        %4245 = vmatprep.subr.mxu0 0.0
        %4246 = vmatpush1.msra.mxu0 0.0
        %4247 = vmatprep.subr.mxu0 0.0
        %4248 = vmatpush1.msra.mxu0 0.0
        %4249 = vmatprep.subr.mxu0 0.0
        %4250 = vmatpush1.msra.mxu0 0.0
        %4251 = vmatprep.subr.mxu0 0.0
        %4252 = vmatpush1.msra.mxu0 0.0
        %4253 = vmatprep.subr.mxu0 0.0
        %4254 = vmatpush1.msra.mxu0 0.0
        %4255 = vmatprep.subr.mxu0 0.0
        %4256 = vmatpush1.msra.mxu0 0.0
        %4257 = vmatprep.subr.mxu0 0.0
        %4258 = vmatpush1.msra.mxu0 0.0
        %4259 = vmatprep.subr.mxu0 0.0
        %4260 = vmatpush1.msra.mxu0 0.0
        %4261 = vmatprep.subr.mxu0 0.0
        %4262 = vmatpush1.msra.mxu0 0.0
        %4263 = vmatprep.subr.mxu0 0.0
        %4264 = vmatpush1.msra.mxu0 0.0
        %4265 = vmatprep.subr.mxu0 0.0
        %4266 = vmatpush1.msra.mxu0 0.0
        %4267 = vmatprep.subr.mxu0 0.0
        %4268 = vmatpush1.msra.mxu0 0.0
        %4269 = vmatprep.subr.mxu0 0.0
        %4270 = vmatpush1.msra.mxu0 0.0
        %4271 = vmatprep.subr.mxu0 0.0
        %4272 = vmatpush1.msra.mxu0 0.0
        %4273 = vmatprep.subr.mxu0 0.0
        %4274 = vmatpush1.msra.mxu0 0.0
        %4275 = vmatprep.subr.mxu0 0.0
        %4276 = vmatpush1.msra.mxu0 0.0
        %4277 = vmatprep.subr.mxu0 0.0
        %4278 = vmatpush1.msra.mxu0 0.0
        %4279 = vmatprep.subr.mxu0 0.0
        %4280 = vmatpush1.msra.mxu0 0.0
        %4281 = vmatprep.subr.mxu0 0.0
        %4282 = vmatpush1.msra.mxu0 0.0
        %4283 = vmatprep.mubr.f32.mxu0 0.0
        %4284 = vmatmul.mubr.f32.gmra.mrb[0].mxu0 %v4214
        %v4285 = vpop.f32.mrb[0].mxu0
        %v4286 = vadd.f32 %v4212, %v4285
        %v4287 = vpop.f32.mrb[0].mxu0
        %4288 = vmatprep.mubr.f32.mxu0 0.0
        %4289 = vmatmul.mubr.f32.gmra.mrb[0].mxu0 %v4217
        %v4290 = vpop.f32.mrb[0].mxu0
        %v4291 = vadd.f32 %v4212, %v4290
        %v4292 = vpop.f32.mrb[0].mxu0
        %4293 = vdwg.mxu0
        %v4294 = vmax.f32 %v4286, 0.0
        %v4295 = vmax.f32 %v4291, 0.0
        %v4296 = vlaneseq
        %v4297 = vshrl.u32 %v4296, 7
        %v4298 = vsub.s32 0, %v4297
        %v4299 = vrot.slane %v3644, %v4298
        %v4301 = vsel %vm1031, %v4294, 0
        %v4304 = vsel %vm1031, %v4295, 0
        %4306 = vmatprep.subr.mxu0 0.0
        %4307 = vmatpush1.msra.mxu0 %v3630
        %4308 = vmatprep.subr.mxu0 0.0
        %4309 = vmatpush1.msra.mxu0 %v3631
        %4310 = vmatprep.subr.mxu0 0.0
        %4311 = vmatpush1.msra.mxu0 %v3632
        %4312 = vmatprep.subr.mxu0 0.0
        %4313 = vmatpush1.msra.mxu0 %v3633
        %4314 = vmatprep.subr.mxu0 0.0
        %4315 = vmatpush1.msra.mxu0 %v3634
        %4316 = vmatprep.subr.mxu0 0.0
        %4317 = vmatpush1.msra.mxu0 %v3635
        %4318 = vmatprep.subr.mxu0 0.0
        %4319 = vmatpush1.msra.mxu0 %v3636
        %4320 = vmatprep.subr.mxu0 0.0
        %4321 = vmatpush1.msra.mxu0 %v3637
        %4322 = vmatprep.subr.mxu0 0.0
        %4323 = vmatpush1.msra.mxu0 0.0
        %4324 = vmatprep.subr.mxu0 0.0
        %4325 = vmatpush1.msra.mxu0 0.0
        %4326 = vmatprep.subr.mxu0 0.0
        %4327 = vmatpush1.msra.mxu0 0.0
        %4328 = vmatprep.subr.mxu0 0.0
        %4329 = vmatpush1.msra.mxu0 0.0
        %4330 = vmatprep.subr.mxu0 0.0
        %4331 = vmatpush1.msra.mxu0 0.0
        %4332 = vmatprep.subr.mxu0 0.0
        %4333 = vmatpush1.msra.mxu0 0.0
        %4334 = vmatprep.subr.mxu0 0.0
        %4335 = vmatpush1.msra.mxu0 0.0
        %4336 = vmatprep.subr.mxu0 0.0
        %4337 = vmatpush1.msra.mxu0 0.0
        %4338 = vmatprep.subr.mxu0 0.0
        %4339 = vmatpush1.msra.mxu0 0.0
        %4340 = vmatprep.subr.mxu0 0.0
        %4341 = vmatpush1.msra.mxu0 0.0
        %4342 = vmatprep.subr.mxu0 0.0
        %4343 = vmatpush1.msra.mxu0 0.0
        %4344 = vmatprep.subr.mxu0 0.0
        %4345 = vmatpush1.msra.mxu0 0.0
        %4346 = vmatprep.subr.mxu0 0.0
        %4347 = vmatpush1.msra.mxu0 0.0
        %4348 = vmatprep.subr.mxu0 0.0
        %4349 = vmatpush1.msra.mxu0 0.0
        %4350 = vmatprep.subr.mxu0 0.0
        %4351 = vmatpush1.msra.mxu0 0.0
        %4352 = vmatprep.subr.mxu0 0.0
        %4353 = vmatpush1.msra.mxu0 0.0
        %4354 = vmatprep.subr.mxu0 0.0
        %4355 = vmatpush1.msra.mxu0 0.0
        %4356 = vmatprep.subr.mxu0 0.0
        %4357 = vmatpush1.msra.mxu0 0.0
        %4358 = vmatprep.subr.mxu0 0.0
        %4359 = vmatpush1.msra.mxu0 0.0
        %4360 = vmatprep.subr.mxu0 0.0
        %4361 = vmatpush1.msra.mxu0 0.0
        %4362 = vmatprep.subr.mxu0 0.0
        %4363 = vmatpush1.msra.mxu0 0.0
        %4364 = vmatprep.subr.mxu0 0.0
        %4365 = vmatpush1.msra.mxu0 0.0
        %4366 = vmatprep.subr.mxu0 0.0
        %4367 = vmatpush1.msra.mxu0 0.0
        %4368 = vmatprep.subr.mxu0 0.0
        %4369 = vmatpush1.msra.mxu0 0.0
        %4370 = vmatprep.mubr.f32.mxu0 0.0
        %4371 = vmatmul.mubr.f32.gmra.mrb[0].mxu0 %v4301
        %v4372 = vpop.f32.mrb[0].mxu0
        %v4373 = vadd.f32 %v4299, %v4372
        %v4374 = vpop.f32.mrb[0].mxu0
        %4375 = vmatprep.mubr.f32.mxu0 0.0
        %4376 = vmatmul.mubr.f32.gmra.mrb[0].mxu0 %v4304
        %v4377 = vpop.f32.mrb[0].mxu0
        %v4378 = vadd.f32 %v4299, %v4377
        %v4379 = vpop.f32.mrb[0].mxu0
        %4380 = vdwg.mxu0
        %v4381 = vadd.f32 %v4207, %v4373
        %v4382 = vadd.f32 %v4208, %v4378
        %v4383 = vsel %vm381, %v4381, 0.0
        %4384 = vadd.xlane.f32.xlu0 %v4383
        %v4385 = vpop.xlane.xlu0 %4384
        %v4386 = vsel %vm381, %v4382, 0.0
        %4387 = vadd.xlane.f32.xlu0 %v4386
        %v4388 = vpop.xlane.xlu0 %4387
        %v4389 = vmul.f32 %v4385, %v907
        %v4390 = vmul.f32 %v4388, %v907
        %v4391 = vsub.f32 %v4381, %v4389
        %v4392 = vsub.f32 %v4382, %v4390
        %v4393 = vmul.f32 %v4391, %v4391
        %v4394 = vmul.f32 %v4392, %v4392
        %v4395 = vsel %vm381, %v4393, 0.0
        %4396 = vadd.xlane.f32.xlu0 %v4395
        %v4397 = vpop.xlane.xlu0 %4396
        %v4398 = vsel %vm381, %v4394, 0.0
        %4399 = vadd.xlane.f32.xlu0 %v4398
        %v4400 = vpop.xlane.xlu0 %4399
        %v4401 = vmul.f32 %v4397, %v907
        %v4402 = vmul.f32 %v4400, %v907
        %v4403 = vadd.f32 %v4401, 1e-05
        %v4404 = vadd.f32 %v4402, 1e-05
        %v4405 = vrsqrt.pop %v4403
        %v4406 = vrsqrt.pop %v4404
        %v4407 = vmul.f32 %v4391, %v4405
        %v4408 = vmul.f32 %v4392, %v4406
        %v4409 = vlaneseq
        %v4410 = vshrl.u32 %v4409, 7
        %v4411 = vsub.s32 0, %v4410
        %v4412 = vrot.slane %v3647, %v4411
        %v4413 = vmul.f32 %v4407, %v4412
        %v4414 = vmul.f32 %v4408, %v4412
        %v4415 = vlaneseq
        %v4416 = vshrl.u32 %v4415, 7
        %v4417 = vsub.s32 0, %v4416
        %v4418 = vrot.slane %v3648, %v4417
        %v4419 = vadd.f32 %v4413, %v4418
        %v4420 = vadd.f32 %v4414, %v4418
        %s4421 = scalar_lea.vmem %s2, 160
        %v4422 = vld [vmem:[%s4421] sm:$0xff]
        %v4423 = vld [vmem:[%s4421 + $0x8] sm:$0xff]
        %v4424 = vld [vmem:[%s4421 + $0x10] sm:$0xff]
        %v4425 = vld [vmem:[%s4421 + $0x18] sm:$0xff]
        %s4426 = scalar_lea.vmem %s3, 160
        %v4427 = vld [vmem:[%s4426] sm:$0xff]
        %v4428 = vld [vmem:[%s4426 + $0x8] sm:$0xff]
        %v4429 = vld [vmem:[%s4426 + $0x10] sm:$0xff]
        %v4430 = vld [vmem:[%s4426 + $0x18] sm:$0xff]
        %s4431 = scalar_lea.vmem %s4, 160
        %v4432 = vld [vmem:[%s4431] sm:$0xff]
        %v4433 = vld [vmem:[%s4431 + $0x8] sm:$0xff]
        %v4434 = vld [vmem:[%s4431 + $0x10] sm:$0xff]
        %v4435 = vld [vmem:[%s4431 + $0x18] sm:$0xff]
        %s4436 = scalar_lea.vmem %s5, 160
        %v4437 = vld [vmem:[%s4436] sm:$0xff]
        %v4438 = vld [vmem:[%s4436 + $0x8] sm:$0xff]
        %v4439 = vld [vmem:[%s4436 + $0x10] sm:$0xff]
        %v4440 = vld [vmem:[%s4436 + $0x18] sm:$0xff]
        %s4441 = scalar_lea.vmem %s6, 160
        %v4442 = vld [vmem:[%s4441] sm:$0xff]
        %v4443 = vld [vmem:[%s4441 + $0x8] sm:$0xff]
        %v4444 = vld [vmem:[%s4441 + $0x10] sm:$0xff]
        %v4445 = vld [vmem:[%s4441 + $0x18] sm:$0xff]
        %s4446 = scalar_lea.vmem %s7, 320
        %v4447 = vld [vmem:[%s4446] sm:$0xff]
        %v4448 = vld [vmem:[%s4446 + $0x8] sm:$0xff]
        %v4449 = vld [vmem:[%s4446 + $0x10] sm:$0xff]
        %v4450 = vld [vmem:[%s4446 + $0x18] sm:$0xff]
        %v4451 = vld [vmem:[%s4446 + $0x20] sm:$0xff]
        %v4452 = vld [vmem:[%s4446 + $0x28] sm:$0xff]
        %v4453 = vld [vmem:[%s4446 + $0x30] sm:$0xff]
        %v4454 = vld [vmem:[%s4446 + $0x38] sm:$0xff]
        %s4455 = scalar_lea.vmem %s8, 80
        %v4456 = vld [vmem:[%s4455] sm:$0x1]
        %v4457 = vld [vmem:[%s4455 + $0x1] sm:$0x1]
        %v4458 = vld [vmem:[%s4455 + $0x2] sm:$0x1]
        %v4459 = vld [vmem:[%s4455 + $0x3] sm:$0x1]
        %v4460 = vld [vmem:[%s4455 + $0x4] sm:$0x1]
        %v4461 = vld [vmem:[%s4455 + $0x5] sm:$0x1]
        %v4462 = vld [vmem:[%s4455 + $0x6] sm:$0x1]
        %v4463 = vld [vmem:[%s4455 + $0x7] sm:$0x1]
        %v4464 = vld [vmem:[%s4455 + $0x8] sm:$0x1]
        %v4465 = vld [vmem:[%s4455 + $0x9] sm:$0x1]
        %v4466 = vlaneseq
        %v4467 = vshrl.u32 %v4466, 7
        %v4468 = vsub.s32 0, %v4467
        %v4469 = vrot.slane %v4456, %v4468
        %v4471 = vsel %vm381, %v4419, 0
        %v4474 = vsel %vm381, %v4420, 0
        %4476 = vmatprep.subr.mxu0 0.0
        %4477 = vmatpush1.msra.mxu0 %v4422
        %4478 = vmatprep.subr.mxu0 0.0
        %4479 = vmatpush1.msra.mxu0 %v4423
        %4480 = vmatprep.subr.mxu0 0.0
        %4481 = vmatpush1.msra.mxu0 %v4424
        %4482 = vmatprep.subr.mxu0 0.0
        %4483 = vmatpush1.msra.mxu0 %v4425
        %4484 = vmatprep.subr.mxu0 0.0
        %4485 = vmatpush1.msra.mxu0 0.0
        %4486 = vmatprep.subr.mxu0 0.0
        %4487 = vmatpush1.msra.mxu0 0.0
        %4488 = vmatprep.subr.mxu0 0.0
        %4489 = vmatpush1.msra.mxu0 0.0
        %4490 = vmatprep.subr.mxu0 0.0
        %4491 = vmatpush1.msra.mxu0 0.0
        %4492 = vmatprep.subr.mxu0 0.0
        %4493 = vmatpush1.msra.mxu0 0.0
        %4494 = vmatprep.subr.mxu0 0.0
        %4495 = vmatpush1.msra.mxu0 0.0
        %4496 = vmatprep.subr.mxu0 0.0
        %4497 = vmatpush1.msra.mxu0 0.0
        %4498 = vmatprep.subr.mxu0 0.0
        %4499 = vmatpush1.msra.mxu0 0.0
        %4500 = vmatprep.subr.mxu0 0.0
        %4501 = vmatpush1.msra.mxu0 0.0
        %4502 = vmatprep.subr.mxu0 0.0
        %4503 = vmatpush1.msra.mxu0 0.0
        %4504 = vmatprep.subr.mxu0 0.0
        %4505 = vmatpush1.msra.mxu0 0.0
        %4506 = vmatprep.subr.mxu0 0.0
        %4507 = vmatpush1.msra.mxu0 0.0
        %4508 = vmatprep.subr.mxu0 0.0
        %4509 = vmatpush1.msra.mxu0 0.0
        %4510 = vmatprep.subr.mxu0 0.0
        %4511 = vmatpush1.msra.mxu0 0.0
        %4512 = vmatprep.subr.mxu0 0.0
        %4513 = vmatpush1.msra.mxu0 0.0
        %4514 = vmatprep.subr.mxu0 0.0
        %4515 = vmatpush1.msra.mxu0 0.0
        %4516 = vmatprep.subr.mxu0 0.0
        %4517 = vmatpush1.msra.mxu0 0.0
        %4518 = vmatprep.subr.mxu0 0.0
        %4519 = vmatpush1.msra.mxu0 0.0
        %4520 = vmatprep.subr.mxu0 0.0
        %4521 = vmatpush1.msra.mxu0 0.0
        %4522 = vmatprep.subr.mxu0 0.0
        %4523 = vmatpush1.msra.mxu0 0.0
        %4524 = vmatprep.subr.mxu0 0.0
        %4525 = vmatpush1.msra.mxu0 0.0
        %4526 = vmatprep.subr.mxu0 0.0
        %4527 = vmatpush1.msra.mxu0 0.0
        %4528 = vmatprep.subr.mxu0 0.0
        %4529 = vmatpush1.msra.mxu0 0.0
        %4530 = vmatprep.subr.mxu0 0.0
        %4531 = vmatpush1.msra.mxu0 0.0
        %4532 = vmatprep.subr.mxu0 0.0
        %4533 = vmatpush1.msra.mxu0 0.0
        %4534 = vmatprep.subr.mxu0 0.0
        %4535 = vmatpush1.msra.mxu0 0.0
        %4536 = vmatprep.subr.mxu0 0.0
        %4537 = vmatpush1.msra.mxu0 0.0
        %4538 = vmatprep.subr.mxu0 0.0
        %4539 = vmatpush1.msra.mxu0 0.0
        %4540 = vmatprep.mubr.f32.mxu0 0.0
        %4541 = vmatmul.mubr.f32.gmra.mrb[0].mxu0 %v4471
        %v4542 = vpop.f32.mrb[0].mxu0
        %v4543 = vadd.f32 %v4469, %v4542
        %v4544 = vpop.f32.mrb[0].mxu0
        %4545 = vmatprep.mubr.f32.mxu0 0.0
        %4546 = vmatmul.mubr.f32.gmra.mrb[0].mxu0 %v4474
        %v4547 = vpop.f32.mrb[0].mxu0
        %v4548 = vadd.f32 %v4469, %v4547
        %v4549 = vpop.f32.mrb[0].mxu0
        %4550 = vdwg.mxu0
        %v4551 = vlaneseq
        %v4552 = vshrl.u32 %v4551, 7
        %v4553 = vsub.s32 0, %v4552
        %v4554 = vrot.slane %v4457, %v4553
        %4555 = vmatprep.subr.mxu0 0.0
        %4556 = vmatpush1.msra.mxu0 %v4427
        %4557 = vmatprep.subr.mxu0 0.0
        %4558 = vmatpush1.msra.mxu0 %v4428
        %4559 = vmatprep.subr.mxu0 0.0
        %4560 = vmatpush1.msra.mxu0 %v4429
        %4561 = vmatprep.subr.mxu0 0.0
        %4562 = vmatpush1.msra.mxu0 %v4430
        %4563 = vmatprep.subr.mxu0 0.0
        %4564 = vmatpush1.msra.mxu0 0.0
        %4565 = vmatprep.subr.mxu0 0.0
        %4566 = vmatpush1.msra.mxu0 0.0
        %4567 = vmatprep.subr.mxu0 0.0
        %4568 = vmatpush1.msra.mxu0 0.0
        %4569 = vmatprep.subr.mxu0 0.0
        %4570 = vmatpush1.msra.mxu0 0.0
        %4571 = vmatprep.subr.mxu0 0.0
        %4572 = vmatpush1.msra.mxu0 0.0
        %4573 = vmatprep.subr.mxu0 0.0
        %4574 = vmatpush1.msra.mxu0 0.0
        %4575 = vmatprep.subr.mxu0 0.0
        %4576 = vmatpush1.msra.mxu0 0.0
        %4577 = vmatprep.subr.mxu0 0.0
        %4578 = vmatpush1.msra.mxu0 0.0
        %4579 = vmatprep.subr.mxu0 0.0
        %4580 = vmatpush1.msra.mxu0 0.0
        %4581 = vmatprep.subr.mxu0 0.0
        %4582 = vmatpush1.msra.mxu0 0.0
        %4583 = vmatprep.subr.mxu0 0.0
        %4584 = vmatpush1.msra.mxu0 0.0
        %4585 = vmatprep.subr.mxu0 0.0
        %4586 = vmatpush1.msra.mxu0 0.0
        %4587 = vmatprep.subr.mxu0 0.0
        %4588 = vmatpush1.msra.mxu0 0.0
        %4589 = vmatprep.subr.mxu0 0.0
        %4590 = vmatpush1.msra.mxu0 0.0
        %4591 = vmatprep.subr.mxu0 0.0
        %4592 = vmatpush1.msra.mxu0 0.0
        %4593 = vmatprep.subr.mxu0 0.0
        %4594 = vmatpush1.msra.mxu0 0.0
        %4595 = vmatprep.subr.mxu0 0.0
        %4596 = vmatpush1.msra.mxu0 0.0
        %4597 = vmatprep.subr.mxu0 0.0
        %4598 = vmatpush1.msra.mxu0 0.0
        %4599 = vmatprep.subr.mxu0 0.0
        %4600 = vmatpush1.msra.mxu0 0.0
        %4601 = vmatprep.subr.mxu0 0.0
        %4602 = vmatpush1.msra.mxu0 0.0
        %4603 = vmatprep.subr.mxu0 0.0
        %4604 = vmatpush1.msra.mxu0 0.0
        %4605 = vmatprep.subr.mxu0 0.0
        %4606 = vmatpush1.msra.mxu0 0.0
        %4607 = vmatprep.subr.mxu0 0.0
        %4608 = vmatpush1.msra.mxu0 0.0
        %4609 = vmatprep.subr.mxu0 0.0
        %4610 = vmatpush1.msra.mxu0 0.0
        %4611 = vmatprep.subr.mxu0 0.0
        %4612 = vmatpush1.msra.mxu0 0.0
        %4613 = vmatprep.subr.mxu0 0.0
        %4614 = vmatpush1.msra.mxu0 0.0
        %4615 = vmatprep.subr.mxu0 0.0
        %4616 = vmatpush1.msra.mxu0 0.0
        %4617 = vmatprep.subr.mxu0 0.0
        %4618 = vmatpush1.msra.mxu0 0.0
        %4619 = vmatprep.mubr.f32.mxu0 0.0
        %4620 = vmatmul.mubr.f32.gmra.mrb[0].mxu0 %v4471
        %v4621 = vpop.f32.mrb[0].mxu0
        %v4622 = vadd.f32 %v4554, %v4621
        %v4623 = vpop.f32.mrb[0].mxu0
        %4624 = vmatprep.mubr.f32.mxu0 0.0
        %4625 = vmatmul.mubr.f32.gmra.mrb[0].mxu0 %v4474
        %v4626 = vpop.f32.mrb[0].mxu0
        %v4627 = vadd.f32 %v4554, %v4626
        %v4628 = vpop.f32.mrb[0].mxu0
        %4629 = vdwg.mxu0
        %v4630 = vlaneseq
        %v4631 = vshrl.u32 %v4630, 7
        %v4632 = vsub.s32 0, %v4631
        %v4633 = vrot.slane %v4458, %v4632
        %4634 = vmatprep.subr.mxu0 0.0
        %4635 = vmatpush1.msra.mxu0 %v4432
        %4636 = vmatprep.subr.mxu0 0.0
        %4637 = vmatpush1.msra.mxu0 %v4433
        %4638 = vmatprep.subr.mxu0 0.0
        %4639 = vmatpush1.msra.mxu0 %v4434
        %4640 = vmatprep.subr.mxu0 0.0
        %4641 = vmatpush1.msra.mxu0 %v4435
        %4642 = vmatprep.subr.mxu0 0.0
        %4643 = vmatpush1.msra.mxu0 0.0
        %4644 = vmatprep.subr.mxu0 0.0
        %4645 = vmatpush1.msra.mxu0 0.0
        %4646 = vmatprep.subr.mxu0 0.0
        %4647 = vmatpush1.msra.mxu0 0.0
        %4648 = vmatprep.subr.mxu0 0.0
        %4649 = vmatpush1.msra.mxu0 0.0
        %4650 = vmatprep.subr.mxu0 0.0
        %4651 = vmatpush1.msra.mxu0 0.0
        %4652 = vmatprep.subr.mxu0 0.0
        %4653 = vmatpush1.msra.mxu0 0.0
        %4654 = vmatprep.subr.mxu0 0.0
        %4655 = vmatpush1.msra.mxu0 0.0
        %4656 = vmatprep.subr.mxu0 0.0
        %4657 = vmatpush1.msra.mxu0 0.0
        %4658 = vmatprep.subr.mxu0 0.0
        %4659 = vmatpush1.msra.mxu0 0.0
        %4660 = vmatprep.subr.mxu0 0.0
        %4661 = vmatpush1.msra.mxu0 0.0
        %4662 = vmatprep.subr.mxu0 0.0
        %4663 = vmatpush1.msra.mxu0 0.0
        %4664 = vmatprep.subr.mxu0 0.0
        %4665 = vmatpush1.msra.mxu0 0.0
        %4666 = vmatprep.subr.mxu0 0.0
        %4667 = vmatpush1.msra.mxu0 0.0
        %4668 = vmatprep.subr.mxu0 0.0
        %4669 = vmatpush1.msra.mxu0 0.0
        %4670 = vmatprep.subr.mxu0 0.0
        %4671 = vmatpush1.msra.mxu0 0.0
        %4672 = vmatprep.subr.mxu0 0.0
        %4673 = vmatpush1.msra.mxu0 0.0
        %4674 = vmatprep.subr.mxu0 0.0
        %4675 = vmatpush1.msra.mxu0 0.0
        %4676 = vmatprep.subr.mxu0 0.0
        %4677 = vmatpush1.msra.mxu0 0.0
        %4678 = vmatprep.subr.mxu0 0.0
        %4679 = vmatpush1.msra.mxu0 0.0
        %4680 = vmatprep.subr.mxu0 0.0
        %4681 = vmatpush1.msra.mxu0 0.0
        %4682 = vmatprep.subr.mxu0 0.0
        %4683 = vmatpush1.msra.mxu0 0.0
        %4684 = vmatprep.subr.mxu0 0.0
        %4685 = vmatpush1.msra.mxu0 0.0
        %4686 = vmatprep.subr.mxu0 0.0
        %4687 = vmatpush1.msra.mxu0 0.0
        %4688 = vmatprep.subr.mxu0 0.0
        %4689 = vmatpush1.msra.mxu0 0.0
        %4690 = vmatprep.subr.mxu0 0.0
        %4691 = vmatpush1.msra.mxu0 0.0
        %4692 = vmatprep.subr.mxu0 0.0
        %4693 = vmatpush1.msra.mxu0 0.0
        %4694 = vmatprep.subr.mxu0 0.0
        %4695 = vmatpush1.msra.mxu0 0.0
        %4696 = vmatprep.subr.mxu0 0.0
        %4697 = vmatpush1.msra.mxu0 0.0
        %4698 = vmatprep.mubr.f32.mxu0 0.0
        %4699 = vmatmul.mubr.f32.gmra.mrb[0].mxu0 %v4471
        %v4700 = vpop.f32.mrb[0].mxu0
        %v4701 = vadd.f32 %v4633, %v4700
        %v4702 = vpop.f32.mrb[0].mxu0
        %4703 = vmatprep.mubr.f32.mxu0 0.0
        %4704 = vmatmul.mubr.f32.gmra.mrb[0].mxu0 %v4474
        %v4705 = vpop.f32.mrb[0].mxu0
        %v4706 = vadd.f32 %v4633, %v4705
        %v4707 = vpop.f32.mrb[0].mxu0
        %4708 = vdwg.mxu0
        %v4710 = vsel %vm381, %v4543, 0
        %v4713 = vsel %vm381, %v4548, 0
        %v4716 = vsel %vm381, %v4622, 0
        %v4719 = vsel %vm381, %v4627, 0
        %4721 = vmatprep.subr.mxu0 0.0
        %4722 = vmatpush1.xpose.msra.mxu0 %v4716
        %4723 = vmatprep.subr.mxu0 0.0
        %4724 = vmatpush1.xpose.msra.mxu0 %v4719
        %4725 = vmatprep.subr.mxu0 0.0
        %4726 = vmatpush1.xpose.msra.mxu0 0.0
        %4727 = vmatprep.subr.mxu0 0.0
        %4728 = vmatpush1.xpose.msra.mxu0 0.0
        %4729 = vmatprep.subr.mxu0 0.0
        %4730 = vmatpush1.xpose.msra.mxu0 0.0
        %4731 = vmatprep.subr.mxu0 0.0
        %4732 = vmatpush1.xpose.msra.mxu0 0.0
        %4733 = vmatprep.subr.mxu0 0.0
        %4734 = vmatpush1.xpose.msra.mxu0 0.0
        %4735 = vmatprep.subr.mxu0 0.0
        %4736 = vmatpush1.xpose.msra.mxu0 0.0
        %4737 = vmatprep.subr.mxu0 0.0
        %4738 = vmatpush1.xpose.msra.mxu0 0.0
        %4739 = vmatprep.subr.mxu0 0.0
        %4740 = vmatpush1.xpose.msra.mxu0 0.0
        %4741 = vmatprep.subr.mxu0 0.0
        %4742 = vmatpush1.xpose.msra.mxu0 0.0
        %4743 = vmatprep.subr.mxu0 0.0
        %4744 = vmatpush1.xpose.msra.mxu0 0.0
        %4745 = vmatprep.subr.mxu0 0.0
        %4746 = vmatpush1.xpose.msra.mxu0 0.0
        %4747 = vmatprep.subr.mxu0 0.0
        %4748 = vmatpush1.xpose.msra.mxu0 0.0
        %4749 = vmatprep.subr.mxu0 0.0
        %4750 = vmatpush1.xpose.msra.mxu0 0.0
        %4751 = vmatprep.subr.mxu0 0.0
        %4752 = vmatpush1.xpose.msra.mxu0 0.0
        %4753 = vmatprep.subr.mxu0 0.0
        %4754 = vmatpush1.xpose.msra.mxu0 0.0
        %4755 = vmatprep.subr.mxu0 0.0
        %4756 = vmatpush1.xpose.msra.mxu0 0.0
        %4757 = vmatprep.subr.mxu0 0.0
        %4758 = vmatpush1.xpose.msra.mxu0 0.0
        %4759 = vmatprep.subr.mxu0 0.0
        %4760 = vmatpush1.xpose.msra.mxu0 0.0
        %4761 = vmatprep.subr.mxu0 0.0
        %4762 = vmatpush1.xpose.msra.mxu0 0.0
        %4763 = vmatprep.subr.mxu0 0.0
        %4764 = vmatpush1.xpose.msra.mxu0 0.0
        %4765 = vmatprep.subr.mxu0 0.0
        %4766 = vmatpush1.xpose.msra.mxu0 0.0
        %4767 = vmatprep.subr.mxu0 0.0
        %4768 = vmatpush1.xpose.msra.mxu0 0.0
        %4769 = vmatprep.subr.mxu0 0.0
        %4770 = vmatpush1.xpose.msra.mxu0 0.0
        %4771 = vmatprep.subr.mxu0 0.0
        %4772 = vmatpush1.xpose.msra.mxu0 0.0
        %4773 = vmatprep.subr.mxu0 0.0
        %4774 = vmatpush1.xpose.msra.mxu0 0.0
        %4775 = vmatprep.subr.mxu0 0.0
        %4776 = vmatpush1.xpose.msra.mxu0 0.0
        %4777 = vmatprep.subr.mxu0 0.0
        %4778 = vmatpush1.xpose.msra.mxu0 0.0
        %4779 = vmatprep.subr.mxu0 0.0
        %4780 = vmatpush1.xpose.msra.mxu0 0.0
        %4781 = vmatprep.subr.mxu0 0.0
        %4782 = vmatpush1.xpose.msra.mxu0 0.0
        %4783 = vmatprep.subr.mxu0 0.0
        %4784 = vmatpush1.xpose.msra.mxu0 0.0
        %4785 = vmatprep.mubr.f32.mxu0 0.0
        %4786 = vmatmul.mubr.f32.gmra.mrb[0].mxu0 %v4710
        %v4787 = vpop.f32.mrb[0].mxu0
        %v4788 = vadd.f32 0.0, %v4787
        %v4789 = vpop.f32.mrb[0].mxu0
        %4790 = vmatprep.mubr.f32.mxu0 0.0
        %4791 = vmatmul.mubr.f32.gmra.mrb[0].mxu0 %v4713
        %v4792 = vpop.f32.mrb[0].mxu0
        %v4793 = vadd.f32 0.0, %v4792
        %v4794 = vpop.f32.mrb[0].mxu0
        %4795 = vdwg.mxu0
        %v4796 = vmul.f32 %v4788, 0.17677669
        %v4797 = vmul.f32 %v4793, 0.17677669
        %v4798 = vsel %vm710, %v4796, -inf
        %4799 = vmax.xlane.f32.xlu0 %v4798
        %v4800 = vpop.xlane.xlu0 %4799
        %v4801 = vsel %vm710, %v4797, -inf
        %4802 = vmax.xlane.f32.xlu0 %v4801
        %v4803 = vpop.xlane.xlu0 %4802
        %v4804 = vsub.f32 %v4796, %v4800
        %v4805 = vsub.f32 %v4797, %v4803
        %v4806 = vmul.f32 %v4804, 1.442695
        %v4807 = vpow.pop %v4806
        %v4808 = vmul.f32 %v4805, 1.442695
        %v4809 = vpow.pop %v4808
        %v4810 = vsel %vm710, %v4807, 0.0
        %4811 = vadd.xlane.f32.xlu0 %v4810
        %v4812 = vpop.xlane.xlu0 %4811
        %v4813 = vsel %vm710, %v4809, 0.0
        %4814 = vadd.xlane.f32.xlu0 %v4813
        %v4815 = vpop.xlane.xlu0 %4814
        %v4816 = vrcp.pop %v4812
        %v4817 = vrcp.pop %v4815
        %v4818 = vmul.f32 %v4807, %v4816
        %v4819 = vmul.f32 %v4809, %v4817
        %v4821 = vsel %vm710, %v4818, 0
        %v4824 = vsel %vm710, %v4819, 0
        %4826 = vmatprep.subr.mxu0 0.0
        %4827 = vmatpush1.msra.mxu0 %v4701
        %4828 = vmatprep.subr.mxu0 0.0
        %4829 = vmatpush1.msra.mxu0 %v4706
        %4830 = vmatprep.subr.mxu0 0.0
        %4831 = vmatpush1.msra.mxu0 0.0
        %4832 = vmatprep.subr.mxu0 0.0
        %4833 = vmatpush1.msra.mxu0 0.0
        %4834 = vmatprep.subr.mxu0 0.0
        %4835 = vmatpush1.msra.mxu0 0.0
        %4836 = vmatprep.subr.mxu0 0.0
        %4837 = vmatpush1.msra.mxu0 0.0
        %4838 = vmatprep.subr.mxu0 0.0
        %4839 = vmatpush1.msra.mxu0 0.0
        %4840 = vmatprep.subr.mxu0 0.0
        %4841 = vmatpush1.msra.mxu0 0.0
        %4842 = vmatprep.subr.mxu0 0.0
        %4843 = vmatpush1.msra.mxu0 0.0
        %4844 = vmatprep.subr.mxu0 0.0
        %4845 = vmatpush1.msra.mxu0 0.0
        %4846 = vmatprep.subr.mxu0 0.0
        %4847 = vmatpush1.msra.mxu0 0.0
        %4848 = vmatprep.subr.mxu0 0.0
        %4849 = vmatpush1.msra.mxu0 0.0
        %4850 = vmatprep.subr.mxu0 0.0
        %4851 = vmatpush1.msra.mxu0 0.0
        %4852 = vmatprep.subr.mxu0 0.0
        %4853 = vmatpush1.msra.mxu0 0.0
        %4854 = vmatprep.subr.mxu0 0.0
        %4855 = vmatpush1.msra.mxu0 0.0
        %4856 = vmatprep.subr.mxu0 0.0
        %4857 = vmatpush1.msra.mxu0 0.0
        %4858 = vmatprep.subr.mxu0 0.0
        %4859 = vmatpush1.msra.mxu0 0.0
        %4860 = vmatprep.subr.mxu0 0.0
        %4861 = vmatpush1.msra.mxu0 0.0
        %4862 = vmatprep.subr.mxu0 0.0
        %4863 = vmatpush1.msra.mxu0 0.0
        %4864 = vmatprep.subr.mxu0 0.0
        %4865 = vmatpush1.msra.mxu0 0.0
        %4866 = vmatprep.subr.mxu0 0.0
        %4867 = vmatpush1.msra.mxu0 0.0
        %4868 = vmatprep.subr.mxu0 0.0
        %4869 = vmatpush1.msra.mxu0 0.0
        %4870 = vmatprep.subr.mxu0 0.0
        %4871 = vmatpush1.msra.mxu0 0.0
        %4872 = vmatprep.subr.mxu0 0.0
        %4873 = vmatpush1.msra.mxu0 0.0
        %4874 = vmatprep.subr.mxu0 0.0
        %4875 = vmatpush1.msra.mxu0 0.0
        %4876 = vmatprep.subr.mxu0 0.0
        %4877 = vmatpush1.msra.mxu0 0.0
        %4878 = vmatprep.subr.mxu0 0.0
        %4879 = vmatpush1.msra.mxu0 0.0
        %4880 = vmatprep.subr.mxu0 0.0
        %4881 = vmatpush1.msra.mxu0 0.0
        %4882 = vmatprep.subr.mxu0 0.0
        %4883 = vmatpush1.msra.mxu0 0.0
        %4884 = vmatprep.subr.mxu0 0.0
        %4885 = vmatpush1.msra.mxu0 0.0
        %4886 = vmatprep.subr.mxu0 0.0
        %4887 = vmatpush1.msra.mxu0 0.0
        %4888 = vmatprep.subr.mxu0 0.0
        %4889 = vmatpush1.msra.mxu0 0.0
        %4890 = vmatprep.mubr.f32.mxu0 0.0
        %4891 = vmatmul.mubr.f32.gmra.mrb[0].mxu0 %v4821
        %v4892 = vpop.f32.mrb[0].mxu0
        %v4893 = vadd.f32 0.0, %v4892
        %v4894 = vpop.f32.mrb[0].mxu0
        %4895 = vmatprep.mubr.f32.mxu0 0.0
        %4896 = vmatmul.mubr.f32.gmra.mrb[0].mxu0 %v4824
        %v4897 = vpop.f32.mrb[0].mxu0
        %v4898 = vadd.f32 0.0, %v4897
        %v4899 = vpop.f32.mrb[0].mxu0
        %4900 = vdwg.mxu0
        %v4901 = vlaneseq
        %v4902 = vshrl.u32 %v4901, 7
        %v4903 = vsub.s32 0, %v4902
        %v4904 = vrot.slane %v4459, %v4903
        %v4906 = vsel %vm381, %v4893, 0
        %v4909 = vsel %vm381, %v4898, 0
        %4911 = vmatprep.subr.mxu0 0.0
        %4912 = vmatpush1.msra.mxu0 %v4437
        %4913 = vmatprep.subr.mxu0 0.0
        %4914 = vmatpush1.msra.mxu0 %v4438
        %4915 = vmatprep.subr.mxu0 0.0
        %4916 = vmatpush1.msra.mxu0 %v4439
        %4917 = vmatprep.subr.mxu0 0.0
        %4918 = vmatpush1.msra.mxu0 %v4440
        %4919 = vmatprep.subr.mxu0 0.0
        %4920 = vmatpush1.msra.mxu0 0.0
        %4921 = vmatprep.subr.mxu0 0.0
        %4922 = vmatpush1.msra.mxu0 0.0
        %4923 = vmatprep.subr.mxu0 0.0
        %4924 = vmatpush1.msra.mxu0 0.0
        %4925 = vmatprep.subr.mxu0 0.0
        %4926 = vmatpush1.msra.mxu0 0.0
        %4927 = vmatprep.subr.mxu0 0.0
        %4928 = vmatpush1.msra.mxu0 0.0
        %4929 = vmatprep.subr.mxu0 0.0
        %4930 = vmatpush1.msra.mxu0 0.0
        %4931 = vmatprep.subr.mxu0 0.0
        %4932 = vmatpush1.msra.mxu0 0.0
        %4933 = vmatprep.subr.mxu0 0.0
        %4934 = vmatpush1.msra.mxu0 0.0
        %4935 = vmatprep.subr.mxu0 0.0
        %4936 = vmatpush1.msra.mxu0 0.0
        %4937 = vmatprep.subr.mxu0 0.0
        %4938 = vmatpush1.msra.mxu0 0.0
        %4939 = vmatprep.subr.mxu0 0.0
        %4940 = vmatpush1.msra.mxu0 0.0
        %4941 = vmatprep.subr.mxu0 0.0
        %4942 = vmatpush1.msra.mxu0 0.0
        %4943 = vmatprep.subr.mxu0 0.0
        %4944 = vmatpush1.msra.mxu0 0.0
        %4945 = vmatprep.subr.mxu0 0.0
        %4946 = vmatpush1.msra.mxu0 0.0
        %4947 = vmatprep.subr.mxu0 0.0
        %4948 = vmatpush1.msra.mxu0 0.0
        %4949 = vmatprep.subr.mxu0 0.0
        %4950 = vmatpush1.msra.mxu0 0.0
        %4951 = vmatprep.subr.mxu0 0.0
        %4952 = vmatpush1.msra.mxu0 0.0
        %4953 = vmatprep.subr.mxu0 0.0
        %4954 = vmatpush1.msra.mxu0 0.0
        %4955 = vmatprep.subr.mxu0 0.0
        %4956 = vmatpush1.msra.mxu0 0.0
        %4957 = vmatprep.subr.mxu0 0.0
        %4958 = vmatpush1.msra.mxu0 0.0
        %4959 = vmatprep.subr.mxu0 0.0
        %4960 = vmatpush1.msra.mxu0 0.0
        %4961 = vmatprep.subr.mxu0 0.0
        %4962 = vmatpush1.msra.mxu0 0.0
        %4963 = vmatprep.subr.mxu0 0.0
        %4964 = vmatpush1.msra.mxu0 0.0
        %4965 = vmatprep.subr.mxu0 0.0
        %4966 = vmatpush1.msra.mxu0 0.0
        %4967 = vmatprep.subr.mxu0 0.0
        %4968 = vmatpush1.msra.mxu0 0.0
        %4969 = vmatprep.subr.mxu0 0.0
        %4970 = vmatpush1.msra.mxu0 0.0
        %4971 = vmatprep.subr.mxu0 0.0
        %4972 = vmatpush1.msra.mxu0 0.0
        %4973 = vmatprep.subr.mxu0 0.0
        %4974 = vmatpush1.msra.mxu0 0.0
        %4975 = vmatprep.mubr.f32.mxu0 0.0
        %4976 = vmatmul.mubr.f32.gmra.mrb[0].mxu0 %v4906
        %v4977 = vpop.f32.mrb[0].mxu0
        %v4978 = vadd.f32 %v4904, %v4977
        %v4979 = vpop.f32.mrb[0].mxu0
        %4980 = vmatprep.mubr.f32.mxu0 0.0
        %4981 = vmatmul.mubr.f32.gmra.mrb[0].mxu0 %v4909
        %v4982 = vpop.f32.mrb[0].mxu0
        %v4983 = vadd.f32 %v4904, %v4982
        %v4984 = vpop.f32.mrb[0].mxu0
        %4985 = vdwg.mxu0
        %v4986 = vadd.f32 %v4419, %v4978
        %v4987 = vadd.f32 %v4420, %v4983
        %v4988 = vsel %vm381, %v4986, 0.0
        %4989 = vadd.xlane.f32.xlu0 %v4988
        %v4990 = vpop.xlane.xlu0 %4989
        %v4991 = vsel %vm381, %v4987, 0.0
        %4992 = vadd.xlane.f32.xlu0 %v4991
        %v4993 = vpop.xlane.xlu0 %4992
        %v4994 = vmul.f32 %v4990, %v907
        %v4995 = vmul.f32 %v4993, %v907
        %v4996 = vsub.f32 %v4986, %v4994
        %v4997 = vsub.f32 %v4987, %v4995
        %v4998 = vmul.f32 %v4996, %v4996
        %v4999 = vmul.f32 %v4997, %v4997
        %v5000 = vsel %vm381, %v4998, 0.0
        %5001 = vadd.xlane.f32.xlu0 %v5000
        %v5002 = vpop.xlane.xlu0 %5001
        %v5003 = vsel %vm381, %v4999, 0.0
        %5004 = vadd.xlane.f32.xlu0 %v5003
        %v5005 = vpop.xlane.xlu0 %5004
        %v5006 = vmul.f32 %v5002, %v907
        %v5007 = vmul.f32 %v5005, %v907
        %v5008 = vadd.f32 %v5006, 1e-05
        %v5009 = vadd.f32 %v5007, 1e-05
        %v5010 = vrsqrt.pop %v5008
        %v5011 = vrsqrt.pop %v5009
        %v5012 = vmul.f32 %v4996, %v5010
        %v5013 = vmul.f32 %v4997, %v5011
        %v5014 = vlaneseq
        %v5015 = vshrl.u32 %v5014, 7
        %v5016 = vsub.s32 0, %v5015
        %v5017 = vrot.slane %v4462, %v5016
        %v5018 = vmul.f32 %v5012, %v5017
        %v5019 = vmul.f32 %v5013, %v5017
        %v5020 = vlaneseq
        %v5021 = vshrl.u32 %v5020, 7
        %v5022 = vsub.s32 0, %v5021
        %v5023 = vrot.slane %v4463, %v5022
        %v5024 = vadd.f32 %v5018, %v5023
        %v5025 = vadd.f32 %v5019, %v5023
        %v5026 = vlaneseq
        %v5027 = vshrl.u32 %v5026, 7
        %v5028 = vsub.s32 0, %v5027
        %v5029 = vrot.slane %v4460, %v5028
        %v5031 = vsel %vm381, %v5024, 0
        %v5034 = vsel %vm381, %v5025, 0
        %5036 = vmatprep.subr.mxu0 0.0
        %5037 = vmatpush1.msra.mxu0 %v4442
        %5038 = vmatprep.subr.mxu0 0.0
        %5039 = vmatpush1.msra.mxu0 %v4443
        %5040 = vmatprep.subr.mxu0 0.0
        %5041 = vmatpush1.msra.mxu0 %v4444
        %5042 = vmatprep.subr.mxu0 0.0
        %5043 = vmatpush1.msra.mxu0 %v4445
        %5044 = vmatprep.subr.mxu0 0.0
        %5045 = vmatpush1.msra.mxu0 0.0
        %5046 = vmatprep.subr.mxu0 0.0
        %5047 = vmatpush1.msra.mxu0 0.0
        %5048 = vmatprep.subr.mxu0 0.0
        %5049 = vmatpush1.msra.mxu0 0.0
        %5050 = vmatprep.subr.mxu0 0.0
        %5051 = vmatpush1.msra.mxu0 0.0
        %5052 = vmatprep.subr.mxu0 0.0
        %5053 = vmatpush1.msra.mxu0 0.0
        %5054 = vmatprep.subr.mxu0 0.0
        %5055 = vmatpush1.msra.mxu0 0.0
        %5056 = vmatprep.subr.mxu0 0.0
        %5057 = vmatpush1.msra.mxu0 0.0
        %5058 = vmatprep.subr.mxu0 0.0
        %5059 = vmatpush1.msra.mxu0 0.0
        %5060 = vmatprep.subr.mxu0 0.0
        %5061 = vmatpush1.msra.mxu0 0.0
        %5062 = vmatprep.subr.mxu0 0.0
        %5063 = vmatpush1.msra.mxu0 0.0
        %5064 = vmatprep.subr.mxu0 0.0
        %5065 = vmatpush1.msra.mxu0 0.0
        %5066 = vmatprep.subr.mxu0 0.0
        %5067 = vmatpush1.msra.mxu0 0.0
        %5068 = vmatprep.subr.mxu0 0.0
        %5069 = vmatpush1.msra.mxu0 0.0
        %5070 = vmatprep.subr.mxu0 0.0
        %5071 = vmatpush1.msra.mxu0 0.0
        %5072 = vmatprep.subr.mxu0 0.0
        %5073 = vmatpush1.msra.mxu0 0.0
        %5074 = vmatprep.subr.mxu0 0.0
        %5075 = vmatpush1.msra.mxu0 0.0
        %5076 = vmatprep.subr.mxu0 0.0
        %5077 = vmatpush1.msra.mxu0 0.0
        %5078 = vmatprep.subr.mxu0 0.0
        %5079 = vmatpush1.msra.mxu0 0.0
        %5080 = vmatprep.subr.mxu0 0.0
        %5081 = vmatpush1.msra.mxu0 0.0
        %5082 = vmatprep.subr.mxu0 0.0
        %5083 = vmatpush1.msra.mxu0 0.0
        %5084 = vmatprep.subr.mxu0 0.0
        %5085 = vmatpush1.msra.mxu0 0.0
        %5086 = vmatprep.subr.mxu0 0.0
        %5087 = vmatpush1.msra.mxu0 0.0
        %5088 = vmatprep.subr.mxu0 0.0
        %5089 = vmatpush1.msra.mxu0 0.0
        %5090 = vmatprep.subr.mxu0 0.0
        %5091 = vmatpush1.msra.mxu0 0.0
        %5092 = vmatprep.subr.mxu0 0.0
        %5093 = vmatpush1.msra.mxu0 0.0
        %5094 = vmatprep.subr.mxu0 0.0
        %5095 = vmatpush1.msra.mxu0 0.0
        %5096 = vmatprep.subr.mxu0 0.0
        %5097 = vmatpush1.msra.mxu0 0.0
        %5098 = vmatprep.subr.mxu0 0.0
        %5099 = vmatpush1.msra.mxu0 0.0
        %5100 = vmatprep.mubr.f32.mxu0 0.0
        %5101 = vmatmul.mubr.f32.gmra.mrb[0].mxu0 %v5031
        %v5102 = vpop.f32.mrb[0].mxu0
        %v5103 = vadd.f32 %v5029, %v5102
        %v5104 = vpop.f32.mrb[0].mxu0
        %5105 = vmatprep.mubr.f32.mxu0 0.0
        %5106 = vmatmul.mubr.f32.gmra.mrb[0].mxu0 %v5034
        %v5107 = vpop.f32.mrb[0].mxu0
        %v5108 = vadd.f32 %v5029, %v5107
        %v5109 = vpop.f32.mrb[0].mxu0
        %5110 = vdwg.mxu0
        %v5111 = vmax.f32 %v5103, 0.0
        %v5112 = vmax.f32 %v5108, 0.0
        %v5113 = vlaneseq
        %v5114 = vshrl.u32 %v5113, 7
        %v5115 = vsub.s32 0, %v5114
        %v5116 = vrot.slane %v4461, %v5115
        %v5118 = vsel %vm1031, %v5111, 0
        %v5121 = vsel %vm1031, %v5112, 0
        %5123 = vmatprep.subr.mxu0 0.0
        %5124 = vmatpush1.msra.mxu0 %v4447
        %5125 = vmatprep.subr.mxu0 0.0
        %5126 = vmatpush1.msra.mxu0 %v4448
        %5127 = vmatprep.subr.mxu0 0.0
        %5128 = vmatpush1.msra.mxu0 %v4449
        %5129 = vmatprep.subr.mxu0 0.0
        %5130 = vmatpush1.msra.mxu0 %v4450
        %5131 = vmatprep.subr.mxu0 0.0
        %5132 = vmatpush1.msra.mxu0 %v4451
        %5133 = vmatprep.subr.mxu0 0.0
        %5134 = vmatpush1.msra.mxu0 %v4452
        %5135 = vmatprep.subr.mxu0 0.0
        %5136 = vmatpush1.msra.mxu0 %v4453
        %5137 = vmatprep.subr.mxu0 0.0
        %5138 = vmatpush1.msra.mxu0 %v4454
        %5139 = vmatprep.subr.mxu0 0.0
        %5140 = vmatpush1.msra.mxu0 0.0
        %5141 = vmatprep.subr.mxu0 0.0
        %5142 = vmatpush1.msra.mxu0 0.0
        %5143 = vmatprep.subr.mxu0 0.0
        %5144 = vmatpush1.msra.mxu0 0.0
        %5145 = vmatprep.subr.mxu0 0.0
        %5146 = vmatpush1.msra.mxu0 0.0
        %5147 = vmatprep.subr.mxu0 0.0
        %5148 = vmatpush1.msra.mxu0 0.0
        %5149 = vmatprep.subr.mxu0 0.0
        %5150 = vmatpush1.msra.mxu0 0.0
        %5151 = vmatprep.subr.mxu0 0.0
        %5152 = vmatpush1.msra.mxu0 0.0
        %5153 = vmatprep.subr.mxu0 0.0
        %5154 = vmatpush1.msra.mxu0 0.0
        %5155 = vmatprep.subr.mxu0 0.0
        %5156 = vmatpush1.msra.mxu0 0.0
        %5157 = vmatprep.subr.mxu0 0.0
        %5158 = vmatpush1.msra.mxu0 0.0
        %5159 = vmatprep.subr.mxu0 0.0
        %5160 = vmatpush1.msra.mxu0 0.0
        %5161 = vmatprep.subr.mxu0 0.0
        %5162 = vmatpush1.msra.mxu0 0.0
        %5163 = vmatprep.subr.mxu0 0.0
        %5164 = vmatpush1.msra.mxu0 0.0
        %5165 = vmatprep.subr.mxu0 0.0
        %5166 = vmatpush1.msra.mxu0 0.0
        %5167 = vmatprep.subr.mxu0 0.0
        %5168 = vmatpush1.msra.mxu0 0.0
        %5169 = vmatprep.subr.mxu0 0.0
        %5170 = vmatpush1.msra.mxu0 0.0
        %5171 = vmatprep.subr.mxu0 0.0
        %5172 = vmatpush1.msra.mxu0 0.0
        %5173 = vmatprep.subr.mxu0 0.0
        %5174 = vmatpush1.msra.mxu0 0.0
        %5175 = vmatprep.subr.mxu0 0.0
        %5176 = vmatpush1.msra.mxu0 0.0
        %5177 = vmatprep.subr.mxu0 0.0
        %5178 = vmatpush1.msra.mxu0 0.0
        %5179 = vmatprep.subr.mxu0 0.0
        %5180 = vmatpush1.msra.mxu0 0.0
        %5181 = vmatprep.subr.mxu0 0.0
        %5182 = vmatpush1.msra.mxu0 0.0
        %5183 = vmatprep.subr.mxu0 0.0
        %5184 = vmatpush1.msra.mxu0 0.0
        %5185 = vmatprep.subr.mxu0 0.0
        %5186 = vmatpush1.msra.mxu0 0.0
        %5187 = vmatprep.mubr.f32.mxu0 0.0
        %5188 = vmatmul.mubr.f32.gmra.mrb[0].mxu0 %v5118
        %v5189 = vpop.f32.mrb[0].mxu0
        %v5190 = vadd.f32 %v5116, %v5189
        %v5191 = vpop.f32.mrb[0].mxu0
        %5192 = vmatprep.mubr.f32.mxu0 0.0
        %5193 = vmatmul.mubr.f32.gmra.mrb[0].mxu0 %v5121
        %v5194 = vpop.f32.mrb[0].mxu0
        %v5195 = vadd.f32 %v5116, %v5194
        %v5196 = vpop.f32.mrb[0].mxu0
        %5197 = vdwg.mxu0
        %v5198 = vadd.f32 %v5024, %v5190
        %v5199 = vadd.f32 %v5025, %v5195
        %v5200 = vsel %vm381, %v5198, 0.0
        %5201 = vadd.xlane.f32.xlu0 %v5200
        %v5202 = vpop.xlane.xlu0 %5201
        %v5203 = vsel %vm381, %v5199, 0.0
        %5204 = vadd.xlane.f32.xlu0 %v5203
        %v5205 = vpop.xlane.xlu0 %5204
        %v5206 = vmul.f32 %v5202, %v907
        %v5207 = vmul.f32 %v5205, %v907
        %v5208 = vsub.f32 %v5198, %v5206
        %v5209 = vsub.f32 %v5199, %v5207
        %v5210 = vmul.f32 %v5208, %v5208
        %v5211 = vmul.f32 %v5209, %v5209
        %v5212 = vsel %vm381, %v5210, 0.0
        %5213 = vadd.xlane.f32.xlu0 %v5212
        %v5214 = vpop.xlane.xlu0 %5213
        %v5215 = vsel %vm381, %v5211, 0.0
        %5216 = vadd.xlane.f32.xlu0 %v5215
        %v5217 = vpop.xlane.xlu0 %5216
        %v5218 = vmul.f32 %v5214, %v907
        %v5219 = vmul.f32 %v5217, %v907
        %v5220 = vadd.f32 %v5218, 1e-05
        %v5221 = vadd.f32 %v5219, 1e-05
        %v5222 = vrsqrt.pop %v5220
        %v5223 = vrsqrt.pop %v5221
        %v5224 = vmul.f32 %v5208, %v5222
        %v5225 = vmul.f32 %v5209, %v5223
        %v5226 = vlaneseq
        %v5227 = vshrl.u32 %v5226, 7
        %v5228 = vsub.s32 0, %v5227
        %v5229 = vrot.slane %v4464, %v5228
        %v5230 = vmul.f32 %v5224, %v5229
        %v5231 = vmul.f32 %v5225, %v5229
        %v5232 = vlaneseq
        %v5233 = vshrl.u32 %v5232, 7
        %v5234 = vsub.s32 0, %v5233
        %v5235 = vrot.slane %v4465, %v5234
        %v5236 = vadd.f32 %v5230, %v5235
        %v5237 = vadd.f32 %v5231, %v5235
        %s5238 = scalar_lea.vmem %s2, 192
        %v5239 = vld [vmem:[%s5238] sm:$0xff]
        %v5240 = vld [vmem:[%s5238 + $0x8] sm:$0xff]
        %v5241 = vld [vmem:[%s5238 + $0x10] sm:$0xff]
        %v5242 = vld [vmem:[%s5238 + $0x18] sm:$0xff]
        %s5243 = scalar_lea.vmem %s3, 192
        %v5244 = vld [vmem:[%s5243] sm:$0xff]
        %v5245 = vld [vmem:[%s5243 + $0x8] sm:$0xff]
        %v5246 = vld [vmem:[%s5243 + $0x10] sm:$0xff]
        %v5247 = vld [vmem:[%s5243 + $0x18] sm:$0xff]
        %s5248 = scalar_lea.vmem %s4, 192
        %v5249 = vld [vmem:[%s5248] sm:$0xff]
        %v5250 = vld [vmem:[%s5248 + $0x8] sm:$0xff]
        %v5251 = vld [vmem:[%s5248 + $0x10] sm:$0xff]
        %v5252 = vld [vmem:[%s5248 + $0x18] sm:$0xff]
        %s5253 = scalar_lea.vmem %s5, 192
        %v5254 = vld [vmem:[%s5253] sm:$0xff]
        %v5255 = vld [vmem:[%s5253 + $0x8] sm:$0xff]
        %v5256 = vld [vmem:[%s5253 + $0x10] sm:$0xff]
        %v5257 = vld [vmem:[%s5253 + $0x18] sm:$0xff]
        %s5258 = scalar_lea.vmem %s6, 192
        %v5259 = vld [vmem:[%s5258] sm:$0xff]
        %v5260 = vld [vmem:[%s5258 + $0x8] sm:$0xff]
        %v5261 = vld [vmem:[%s5258 + $0x10] sm:$0xff]
        %v5262 = vld [vmem:[%s5258 + $0x18] sm:$0xff]
        %s5263 = scalar_lea.vmem %s7, 384
        %v5264 = vld [vmem:[%s5263] sm:$0xff]
        %v5265 = vld [vmem:[%s5263 + $0x8] sm:$0xff]
        %v5266 = vld [vmem:[%s5263 + $0x10] sm:$0xff]
        %v5267 = vld [vmem:[%s5263 + $0x18] sm:$0xff]
        %v5268 = vld [vmem:[%s5263 + $0x20] sm:$0xff]
        %v5269 = vld [vmem:[%s5263 + $0x28] sm:$0xff]
        %v5270 = vld [vmem:[%s5263 + $0x30] sm:$0xff]
        %v5271 = vld [vmem:[%s5263 + $0x38] sm:$0xff]
        %s5272 = scalar_lea.vmem %s8, 96
        %v5273 = vld [vmem:[%s5272] sm:$0x1]
        %v5274 = vld [vmem:[%s5272 + $0x1] sm:$0x1]
        %v5275 = vld [vmem:[%s5272 + $0x2] sm:$0x1]
        %v5276 = vld [vmem:[%s5272 + $0x3] sm:$0x1]
        %v5277 = vld [vmem:[%s5272 + $0x4] sm:$0x1]
        %v5278 = vld [vmem:[%s5272 + $0x5] sm:$0x1]
        %v5279 = vld [vmem:[%s5272 + $0x6] sm:$0x1]
        %v5280 = vld [vmem:[%s5272 + $0x7] sm:$0x1]
        %v5281 = vld [vmem:[%s5272 + $0x8] sm:$0x1]
        %v5282 = vld [vmem:[%s5272 + $0x9] sm:$0x1]
        %v5283 = vlaneseq
        %v5284 = vshrl.u32 %v5283, 7
        %v5285 = vsub.s32 0, %v5284
        %v5286 = vrot.slane %v5273, %v5285
        %v5288 = vsel %vm381, %v5236, 0
        %v5291 = vsel %vm381, %v5237, 0
        %5293 = vmatprep.subr.mxu0 0.0
        %5294 = vmatpush1.msra.mxu0 %v5239
        %5295 = vmatprep.subr.mxu0 0.0
        %5296 = vmatpush1.msra.mxu0 %v5240
        %5297 = vmatprep.subr.mxu0 0.0
        %5298 = vmatpush1.msra.mxu0 %v5241
        %5299 = vmatprep.subr.mxu0 0.0
        %5300 = vmatpush1.msra.mxu0 %v5242
        %5301 = vmatprep.subr.mxu0 0.0
        %5302 = vmatpush1.msra.mxu0 0.0
        %5303 = vmatprep.subr.mxu0 0.0
        %5304 = vmatpush1.msra.mxu0 0.0
        %5305 = vmatprep.subr.mxu0 0.0
        %5306 = vmatpush1.msra.mxu0 0.0
        %5307 = vmatprep.subr.mxu0 0.0
        %5308 = vmatpush1.msra.mxu0 0.0
        %5309 = vmatprep.subr.mxu0 0.0
        %5310 = vmatpush1.msra.mxu0 0.0
        %5311 = vmatprep.subr.mxu0 0.0
        %5312 = vmatpush1.msra.mxu0 0.0
        %5313 = vmatprep.subr.mxu0 0.0
        %5314 = vmatpush1.msra.mxu0 0.0
        %5315 = vmatprep.subr.mxu0 0.0
        %5316 = vmatpush1.msra.mxu0 0.0
        %5317 = vmatprep.subr.mxu0 0.0
        %5318 = vmatpush1.msra.mxu0 0.0
        %5319 = vmatprep.subr.mxu0 0.0
        %5320 = vmatpush1.msra.mxu0 0.0
        %5321 = vmatprep.subr.mxu0 0.0
        %5322 = vmatpush1.msra.mxu0 0.0
        %5323 = vmatprep.subr.mxu0 0.0
        %5324 = vmatpush1.msra.mxu0 0.0
        %5325 = vmatprep.subr.mxu0 0.0
        %5326 = vmatpush1.msra.mxu0 0.0
        %5327 = vmatprep.subr.mxu0 0.0
        %5328 = vmatpush1.msra.mxu0 0.0
        %5329 = vmatprep.subr.mxu0 0.0
        %5330 = vmatpush1.msra.mxu0 0.0
        %5331 = vmatprep.subr.mxu0 0.0
        %5332 = vmatpush1.msra.mxu0 0.0
        %5333 = vmatprep.subr.mxu0 0.0
        %5334 = vmatpush1.msra.mxu0 0.0
        %5335 = vmatprep.subr.mxu0 0.0
        %5336 = vmatpush1.msra.mxu0 0.0
        %5337 = vmatprep.subr.mxu0 0.0
        %5338 = vmatpush1.msra.mxu0 0.0
        %5339 = vmatprep.subr.mxu0 0.0
        %5340 = vmatpush1.msra.mxu0 0.0
        %5341 = vmatprep.subr.mxu0 0.0
        %5342 = vmatpush1.msra.mxu0 0.0
        %5343 = vmatprep.subr.mxu0 0.0
        %5344 = vmatpush1.msra.mxu0 0.0
        %5345 = vmatprep.subr.mxu0 0.0
        %5346 = vmatpush1.msra.mxu0 0.0
        %5347 = vmatprep.subr.mxu0 0.0
        %5348 = vmatpush1.msra.mxu0 0.0
        %5349 = vmatprep.subr.mxu0 0.0
        %5350 = vmatpush1.msra.mxu0 0.0
        %5351 = vmatprep.subr.mxu0 0.0
        %5352 = vmatpush1.msra.mxu0 0.0
        %5353 = vmatprep.subr.mxu0 0.0
        %5354 = vmatpush1.msra.mxu0 0.0
        %5355 = vmatprep.subr.mxu0 0.0
        %5356 = vmatpush1.msra.mxu0 0.0
        %5357 = vmatprep.mubr.f32.mxu0 0.0
        %5358 = vmatmul.mubr.f32.gmra.mrb[0].mxu0 %v5288
        %v5359 = vpop.f32.mrb[0].mxu0
        %v5360 = vadd.f32 %v5286, %v5359
        %v5361 = vpop.f32.mrb[0].mxu0
        %5362 = vmatprep.mubr.f32.mxu0 0.0
        %5363 = vmatmul.mubr.f32.gmra.mrb[0].mxu0 %v5291
        %v5364 = vpop.f32.mrb[0].mxu0
        %v5365 = vadd.f32 %v5286, %v5364
        %v5366 = vpop.f32.mrb[0].mxu0
        %5367 = vdwg.mxu0
        %v5368 = vlaneseq
        %v5369 = vshrl.u32 %v5368, 7
        %v5370 = vsub.s32 0, %v5369
        %v5371 = vrot.slane %v5274, %v5370
        %5372 = vmatprep.subr.mxu0 0.0
        %5373 = vmatpush1.msra.mxu0 %v5244
        %5374 = vmatprep.subr.mxu0 0.0
        %5375 = vmatpush1.msra.mxu0 %v5245
        %5376 = vmatprep.subr.mxu0 0.0
        %5377 = vmatpush1.msra.mxu0 %v5246
        %5378 = vmatprep.subr.mxu0 0.0
        %5379 = vmatpush1.msra.mxu0 %v5247
        %5380 = vmatprep.subr.mxu0 0.0
        %5381 = vmatpush1.msra.mxu0 0.0
        %5382 = vmatprep.subr.mxu0 0.0
        %5383 = vmatpush1.msra.mxu0 0.0
        %5384 = vmatprep.subr.mxu0 0.0
        %5385 = vmatpush1.msra.mxu0 0.0
        %5386 = vmatprep.subr.mxu0 0.0
        %5387 = vmatpush1.msra.mxu0 0.0
        %5388 = vmatprep.subr.mxu0 0.0
        %5389 = vmatpush1.msra.mxu0 0.0
        %5390 = vmatprep.subr.mxu0 0.0
        %5391 = vmatpush1.msra.mxu0 0.0
        %5392 = vmatprep.subr.mxu0 0.0
        %5393 = vmatpush1.msra.mxu0 0.0
        %5394 = vmatprep.subr.mxu0 0.0
        %5395 = vmatpush1.msra.mxu0 0.0
        %5396 = vmatprep.subr.mxu0 0.0
        %5397 = vmatpush1.msra.mxu0 0.0
        %5398 = vmatprep.subr.mxu0 0.0
        %5399 = vmatpush1.msra.mxu0 0.0
        %5400 = vmatprep.subr.mxu0 0.0
        %5401 = vmatpush1.msra.mxu0 0.0
        %5402 = vmatprep.subr.mxu0 0.0
        %5403 = vmatpush1.msra.mxu0 0.0
        %5404 = vmatprep.subr.mxu0 0.0
        %5405 = vmatpush1.msra.mxu0 0.0
        %5406 = vmatprep.subr.mxu0 0.0
        %5407 = vmatpush1.msra.mxu0 0.0
        %5408 = vmatprep.subr.mxu0 0.0
        %5409 = vmatpush1.msra.mxu0 0.0
        %5410 = vmatprep.subr.mxu0 0.0
        %5411 = vmatpush1.msra.mxu0 0.0
        %5412 = vmatprep.subr.mxu0 0.0
        %5413 = vmatpush1.msra.mxu0 0.0
        %5414 = vmatprep.subr.mxu0 0.0
        %5415 = vmatpush1.msra.mxu0 0.0
        %5416 = vmatprep.subr.mxu0 0.0
        %5417 = vmatpush1.msra.mxu0 0.0
        %5418 = vmatprep.subr.mxu0 0.0
        %5419 = vmatpush1.msra.mxu0 0.0
        %5420 = vmatprep.subr.mxu0 0.0
        %5421 = vmatpush1.msra.mxu0 0.0
        %5422 = vmatprep.subr.mxu0 0.0
        %5423 = vmatpush1.msra.mxu0 0.0
        %5424 = vmatprep.subr.mxu0 0.0
        %5425 = vmatpush1.msra.mxu0 0.0
        %5426 = vmatprep.subr.mxu0 0.0
        %5427 = vmatpush1.msra.mxu0 0.0
        %5428 = vmatprep.subr.mxu0 0.0
        %5429 = vmatpush1.msra.mxu0 0.0
        %5430 = vmatprep.subr.mxu0 0.0
        %5431 = vmatpush1.msra.mxu0 0.0
        %5432 = vmatprep.subr.mxu0 0.0
        %5433 = vmatpush1.msra.mxu0 0.0
        %5434 = vmatprep.subr.mxu0 0.0
        %5435 = vmatpush1.msra.mxu0 0.0
        %5436 = vmatprep.mubr.f32.mxu0 0.0
        %5437 = vmatmul.mubr.f32.gmra.mrb[0].mxu0 %v5288
        %v5438 = vpop.f32.mrb[0].mxu0
        %v5439 = vadd.f32 %v5371, %v5438
        %v5440 = vpop.f32.mrb[0].mxu0
        %5441 = vmatprep.mubr.f32.mxu0 0.0
        %5442 = vmatmul.mubr.f32.gmra.mrb[0].mxu0 %v5291
        %v5443 = vpop.f32.mrb[0].mxu0
        %v5444 = vadd.f32 %v5371, %v5443
        %v5445 = vpop.f32.mrb[0].mxu0
        %5446 = vdwg.mxu0
        %v5447 = vlaneseq
        %v5448 = vshrl.u32 %v5447, 7
        %v5449 = vsub.s32 0, %v5448
        %v5450 = vrot.slane %v5275, %v5449
        %5451 = vmatprep.subr.mxu0 0.0
        %5452 = vmatpush1.msra.mxu0 %v5249
        %5453 = vmatprep.subr.mxu0 0.0
        %5454 = vmatpush1.msra.mxu0 %v5250
        %5455 = vmatprep.subr.mxu0 0.0
        %5456 = vmatpush1.msra.mxu0 %v5251
        %5457 = vmatprep.subr.mxu0 0.0
        %5458 = vmatpush1.msra.mxu0 %v5252
        %5459 = vmatprep.subr.mxu0 0.0
        %5460 = vmatpush1.msra.mxu0 0.0
        %5461 = vmatprep.subr.mxu0 0.0
        %5462 = vmatpush1.msra.mxu0 0.0
        %5463 = vmatprep.subr.mxu0 0.0
        %5464 = vmatpush1.msra.mxu0 0.0
        %5465 = vmatprep.subr.mxu0 0.0
        %5466 = vmatpush1.msra.mxu0 0.0
        %5467 = vmatprep.subr.mxu0 0.0
        %5468 = vmatpush1.msra.mxu0 0.0
        %5469 = vmatprep.subr.mxu0 0.0
        %5470 = vmatpush1.msra.mxu0 0.0
        %5471 = vmatprep.subr.mxu0 0.0
        %5472 = vmatpush1.msra.mxu0 0.0
        %5473 = vmatprep.subr.mxu0 0.0
        %5474 = vmatpush1.msra.mxu0 0.0
        %5475 = vmatprep.subr.mxu0 0.0
        %5476 = vmatpush1.msra.mxu0 0.0
        %5477 = vmatprep.subr.mxu0 0.0
        %5478 = vmatpush1.msra.mxu0 0.0
        %5479 = vmatprep.subr.mxu0 0.0
        %5480 = vmatpush1.msra.mxu0 0.0
        %5481 = vmatprep.subr.mxu0 0.0
        %5482 = vmatpush1.msra.mxu0 0.0
        %5483 = vmatprep.subr.mxu0 0.0
        %5484 = vmatpush1.msra.mxu0 0.0
        %5485 = vmatprep.subr.mxu0 0.0
        %5486 = vmatpush1.msra.mxu0 0.0
        %5487 = vmatprep.subr.mxu0 0.0
        %5488 = vmatpush1.msra.mxu0 0.0
        %5489 = vmatprep.subr.mxu0 0.0
        %5490 = vmatpush1.msra.mxu0 0.0
        %5491 = vmatprep.subr.mxu0 0.0
        %5492 = vmatpush1.msra.mxu0 0.0
        %5493 = vmatprep.subr.mxu0 0.0
        %5494 = vmatpush1.msra.mxu0 0.0
        %5495 = vmatprep.subr.mxu0 0.0
        %5496 = vmatpush1.msra.mxu0 0.0
        %5497 = vmatprep.subr.mxu0 0.0
        %5498 = vmatpush1.msra.mxu0 0.0
        %5499 = vmatprep.subr.mxu0 0.0
        %5500 = vmatpush1.msra.mxu0 0.0
        %5501 = vmatprep.subr.mxu0 0.0
        %5502 = vmatpush1.msra.mxu0 0.0
        %5503 = vmatprep.subr.mxu0 0.0
        %5504 = vmatpush1.msra.mxu0 0.0
        %5505 = vmatprep.subr.mxu0 0.0
        %5506 = vmatpush1.msra.mxu0 0.0
        %5507 = vmatprep.subr.mxu0 0.0
        %5508 = vmatpush1.msra.mxu0 0.0
        %5509 = vmatprep.subr.mxu0 0.0
        %5510 = vmatpush1.msra.mxu0 0.0
        %5511 = vmatprep.subr.mxu0 0.0
        %5512 = vmatpush1.msra.mxu0 0.0
        %5513 = vmatprep.subr.mxu0 0.0
        %5514 = vmatpush1.msra.mxu0 0.0
        %5515 = vmatprep.mubr.f32.mxu0 0.0
        %5516 = vmatmul.mubr.f32.gmra.mrb[0].mxu0 %v5288
        %v5517 = vpop.f32.mrb[0].mxu0
        %v5518 = vadd.f32 %v5450, %v5517
        %v5519 = vpop.f32.mrb[0].mxu0
        %5520 = vmatprep.mubr.f32.mxu0 0.0
        %5521 = vmatmul.mubr.f32.gmra.mrb[0].mxu0 %v5291
        %v5522 = vpop.f32.mrb[0].mxu0
        %v5523 = vadd.f32 %v5450, %v5522
        %v5524 = vpop.f32.mrb[0].mxu0
        %5525 = vdwg.mxu0
        %v5527 = vsel %vm381, %v5360, 0
        %v5530 = vsel %vm381, %v5365, 0
        %v5533 = vsel %vm381, %v5439, 0
        %v5536 = vsel %vm381, %v5444, 0
        %5538 = vmatprep.subr.mxu0 0.0
        %5539 = vmatpush1.xpose.msra.mxu0 %v5533
        %5540 = vmatprep.subr.mxu0 0.0
        %5541 = vmatpush1.xpose.msra.mxu0 %v5536
        %5542 = vmatprep.subr.mxu0 0.0
        %5543 = vmatpush1.xpose.msra.mxu0 0.0
        %5544 = vmatprep.subr.mxu0 0.0
        %5545 = vmatpush1.xpose.msra.mxu0 0.0
        %5546 = vmatprep.subr.mxu0 0.0
        %5547 = vmatpush1.xpose.msra.mxu0 0.0
        %5548 = vmatprep.subr.mxu0 0.0
        %5549 = vmatpush1.xpose.msra.mxu0 0.0
        %5550 = vmatprep.subr.mxu0 0.0
        %5551 = vmatpush1.xpose.msra.mxu0 0.0
        %5552 = vmatprep.subr.mxu0 0.0
        %5553 = vmatpush1.xpose.msra.mxu0 0.0
        %5554 = vmatprep.subr.mxu0 0.0
        %5555 = vmatpush1.xpose.msra.mxu0 0.0
        %5556 = vmatprep.subr.mxu0 0.0
        %5557 = vmatpush1.xpose.msra.mxu0 0.0
        %5558 = vmatprep.subr.mxu0 0.0
        %5559 = vmatpush1.xpose.msra.mxu0 0.0
        %5560 = vmatprep.subr.mxu0 0.0
        %5561 = vmatpush1.xpose.msra.mxu0 0.0
        %5562 = vmatprep.subr.mxu0 0.0
        %5563 = vmatpush1.xpose.msra.mxu0 0.0
        %5564 = vmatprep.subr.mxu0 0.0
        %5565 = vmatpush1.xpose.msra.mxu0 0.0
        %5566 = vmatprep.subr.mxu0 0.0
        %5567 = vmatpush1.xpose.msra.mxu0 0.0
        %5568 = vmatprep.subr.mxu0 0.0
        %5569 = vmatpush1.xpose.msra.mxu0 0.0
        %5570 = vmatprep.subr.mxu0 0.0
        %5571 = vmatpush1.xpose.msra.mxu0 0.0
        %5572 = vmatprep.subr.mxu0 0.0
        %5573 = vmatpush1.xpose.msra.mxu0 0.0
        %5574 = vmatprep.subr.mxu0 0.0
        %5575 = vmatpush1.xpose.msra.mxu0 0.0
        %5576 = vmatprep.subr.mxu0 0.0
        %5577 = vmatpush1.xpose.msra.mxu0 0.0
        %5578 = vmatprep.subr.mxu0 0.0
        %5579 = vmatpush1.xpose.msra.mxu0 0.0
        %5580 = vmatprep.subr.mxu0 0.0
        %5581 = vmatpush1.xpose.msra.mxu0 0.0
        %5582 = vmatprep.subr.mxu0 0.0
        %5583 = vmatpush1.xpose.msra.mxu0 0.0
        %5584 = vmatprep.subr.mxu0 0.0
        %5585 = vmatpush1.xpose.msra.mxu0 0.0
        %5586 = vmatprep.subr.mxu0 0.0
        %5587 = vmatpush1.xpose.msra.mxu0 0.0
        %5588 = vmatprep.subr.mxu0 0.0
        %5589 = vmatpush1.xpose.msra.mxu0 0.0
        %5590 = vmatprep.subr.mxu0 0.0
        %5591 = vmatpush1.xpose.msra.mxu0 0.0
        %5592 = vmatprep.subr.mxu0 0.0
        %5593 = vmatpush1.xpose.msra.mxu0 0.0
        %5594 = vmatprep.subr.mxu0 0.0
        %5595 = vmatpush1.xpose.msra.mxu0 0.0
        %5596 = vmatprep.subr.mxu0 0.0
        %5597 = vmatpush1.xpose.msra.mxu0 0.0
        %5598 = vmatprep.subr.mxu0 0.0
        %5599 = vmatpush1.xpose.msra.mxu0 0.0
        %5600 = vmatprep.subr.mxu0 0.0
        %5601 = vmatpush1.xpose.msra.mxu0 0.0
        %5602 = vmatprep.mubr.f32.mxu0 0.0
        %5603 = vmatmul.mubr.f32.gmra.mrb[0].mxu0 %v5527
        %v5604 = vpop.f32.mrb[0].mxu0
        %v5605 = vadd.f32 0.0, %v5604
        %v5606 = vpop.f32.mrb[0].mxu0
        %5607 = vmatprep.mubr.f32.mxu0 0.0
        %5608 = vmatmul.mubr.f32.gmra.mrb[0].mxu0 %v5530
        %v5609 = vpop.f32.mrb[0].mxu0
        %v5610 = vadd.f32 0.0, %v5609
        %v5611 = vpop.f32.mrb[0].mxu0
        %5612 = vdwg.mxu0
        %v5613 = vmul.f32 %v5605, 0.17677669
        %v5614 = vmul.f32 %v5610, 0.17677669
        %v5615 = vsel %vm710, %v5613, -inf
        %5616 = vmax.xlane.f32.xlu0 %v5615
        %v5617 = vpop.xlane.xlu0 %5616
        %v5618 = vsel %vm710, %v5614, -inf
        %5619 = vmax.xlane.f32.xlu0 %v5618
        %v5620 = vpop.xlane.xlu0 %5619
        %v5621 = vsub.f32 %v5613, %v5617
        %v5622 = vsub.f32 %v5614, %v5620
        %v5623 = vmul.f32 %v5621, 1.442695
        %v5624 = vpow.pop %v5623
        %v5625 = vmul.f32 %v5622, 1.442695
        %v5626 = vpow.pop %v5625
        %v5627 = vsel %vm710, %v5624, 0.0
        %5628 = vadd.xlane.f32.xlu0 %v5627
        %v5629 = vpop.xlane.xlu0 %5628
        %v5630 = vsel %vm710, %v5626, 0.0
        %5631 = vadd.xlane.f32.xlu0 %v5630
        %v5632 = vpop.xlane.xlu0 %5631
        %v5633 = vrcp.pop %v5629
        %v5634 = vrcp.pop %v5632
        %v5635 = vmul.f32 %v5624, %v5633
        %v5636 = vmul.f32 %v5626, %v5634
        %v5638 = vsel %vm710, %v5635, 0
        %v5641 = vsel %vm710, %v5636, 0
        %5643 = vmatprep.subr.mxu0 0.0
        %5644 = vmatpush1.msra.mxu0 %v5518
        %5645 = vmatprep.subr.mxu0 0.0
        %5646 = vmatpush1.msra.mxu0 %v5523
        %5647 = vmatprep.subr.mxu0 0.0
        %5648 = vmatpush1.msra.mxu0 0.0
        %5649 = vmatprep.subr.mxu0 0.0
        %5650 = vmatpush1.msra.mxu0 0.0
        %5651 = vmatprep.subr.mxu0 0.0
        %5652 = vmatpush1.msra.mxu0 0.0
        %5653 = vmatprep.subr.mxu0 0.0
        %5654 = vmatpush1.msra.mxu0 0.0
        %5655 = vmatprep.subr.mxu0 0.0
        %5656 = vmatpush1.msra.mxu0 0.0
        %5657 = vmatprep.subr.mxu0 0.0
        %5658 = vmatpush1.msra.mxu0 0.0
        %5659 = vmatprep.subr.mxu0 0.0
        %5660 = vmatpush1.msra.mxu0 0.0
        %5661 = vmatprep.subr.mxu0 0.0
        %5662 = vmatpush1.msra.mxu0 0.0
        %5663 = vmatprep.subr.mxu0 0.0
        %5664 = vmatpush1.msra.mxu0 0.0
        %5665 = vmatprep.subr.mxu0 0.0
        %5666 = vmatpush1.msra.mxu0 0.0
        %5667 = vmatprep.subr.mxu0 0.0
        %5668 = vmatpush1.msra.mxu0 0.0
        %5669 = vmatprep.subr.mxu0 0.0
        %5670 = vmatpush1.msra.mxu0 0.0
        %5671 = vmatprep.subr.mxu0 0.0
        %5672 = vmatpush1.msra.mxu0 0.0
        %5673 = vmatprep.subr.mxu0 0.0
        %5674 = vmatpush1.msra.mxu0 0.0
        %5675 = vmatprep.subr.mxu0 0.0
        %5676 = vmatpush1.msra.mxu0 0.0
        %5677 = vmatprep.subr.mxu0 0.0
        %5678 = vmatpush1.msra.mxu0 0.0
        %5679 = vmatprep.subr.mxu0 0.0
        %5680 = vmatpush1.msra.mxu0 0.0
        %5681 = vmatprep.subr.mxu0 0.0
        %5682 = vmatpush1.msra.mxu0 0.0
        %5683 = vmatprep.subr.mxu0 0.0
        %5684 = vmatpush1.msra.mxu0 0.0
        %5685 = vmatprep.subr.mxu0 0.0
        %5686 = vmatpush1.msra.mxu0 0.0
        %5687 = vmatprep.subr.mxu0 0.0
        %5688 = vmatpush1.msra.mxu0 0.0
        %5689 = vmatprep.subr.mxu0 0.0
        %5690 = vmatpush1.msra.mxu0 0.0
        %5691 = vmatprep.subr.mxu0 0.0
        %5692 = vmatpush1.msra.mxu0 0.0
        %5693 = vmatprep.subr.mxu0 0.0
        %5694 = vmatpush1.msra.mxu0 0.0
        %5695 = vmatprep.subr.mxu0 0.0
        %5696 = vmatpush1.msra.mxu0 0.0
        %5697 = vmatprep.subr.mxu0 0.0
        %5698 = vmatpush1.msra.mxu0 0.0
        %5699 = vmatprep.subr.mxu0 0.0
        %5700 = vmatpush1.msra.mxu0 0.0
        %5701 = vmatprep.subr.mxu0 0.0
        %5702 = vmatpush1.msra.mxu0 0.0
        %5703 = vmatprep.subr.mxu0 0.0
        %5704 = vmatpush1.msra.mxu0 0.0
        %5705 = vmatprep.subr.mxu0 0.0
        %5706 = vmatpush1.msra.mxu0 0.0
        %5707 = vmatprep.mubr.f32.mxu0 0.0
        %5708 = vmatmul.mubr.f32.gmra.mrb[0].mxu0 %v5638
        %v5709 = vpop.f32.mrb[0].mxu0
        %v5710 = vadd.f32 0.0, %v5709
        %v5711 = vpop.f32.mrb[0].mxu0
        %5712 = vmatprep.mubr.f32.mxu0 0.0
        %5713 = vmatmul.mubr.f32.gmra.mrb[0].mxu0 %v5641
        %v5714 = vpop.f32.mrb[0].mxu0
        %v5715 = vadd.f32 0.0, %v5714
        %v5716 = vpop.f32.mrb[0].mxu0
        %5717 = vdwg.mxu0
        %v5718 = vlaneseq
        %v5719 = vshrl.u32 %v5718, 7
        %v5720 = vsub.s32 0, %v5719
        %v5721 = vrot.slane %v5276, %v5720
        %v5723 = vsel %vm381, %v5710, 0
        %v5726 = vsel %vm381, %v5715, 0
        %5728 = vmatprep.subr.mxu0 0.0
        %5729 = vmatpush1.msra.mxu0 %v5254
        %5730 = vmatprep.subr.mxu0 0.0
        %5731 = vmatpush1.msra.mxu0 %v5255
        %5732 = vmatprep.subr.mxu0 0.0
        %5733 = vmatpush1.msra.mxu0 %v5256
        %5734 = vmatprep.subr.mxu0 0.0
        %5735 = vmatpush1.msra.mxu0 %v5257
        %5736 = vmatprep.subr.mxu0 0.0
        %5737 = vmatpush1.msra.mxu0 0.0
        %5738 = vmatprep.subr.mxu0 0.0
        %5739 = vmatpush1.msra.mxu0 0.0
        %5740 = vmatprep.subr.mxu0 0.0
        %5741 = vmatpush1.msra.mxu0 0.0
        %5742 = vmatprep.subr.mxu0 0.0
        %5743 = vmatpush1.msra.mxu0 0.0
        %5744 = vmatprep.subr.mxu0 0.0
        %5745 = vmatpush1.msra.mxu0 0.0
        %5746 = vmatprep.subr.mxu0 0.0
        %5747 = vmatpush1.msra.mxu0 0.0
        %5748 = vmatprep.subr.mxu0 0.0
        %5749 = vmatpush1.msra.mxu0 0.0
        %5750 = vmatprep.subr.mxu0 0.0
        %5751 = vmatpush1.msra.mxu0 0.0
        %5752 = vmatprep.subr.mxu0 0.0
        %5753 = vmatpush1.msra.mxu0 0.0
        %5754 = vmatprep.subr.mxu0 0.0
        %5755 = vmatpush1.msra.mxu0 0.0
        %5756 = vmatprep.subr.mxu0 0.0
        %5757 = vmatpush1.msra.mxu0 0.0
        %5758 = vmatprep.subr.mxu0 0.0
        %5759 = vmatpush1.msra.mxu0 0.0
        %5760 = vmatprep.subr.mxu0 0.0
        %5761 = vmatpush1.msra.mxu0 0.0
        %5762 = vmatprep.subr.mxu0 0.0
        %5763 = vmatpush1.msra.mxu0 0.0
        %5764 = vmatprep.subr.mxu0 0.0
        %5765 = vmatpush1.msra.mxu0 0.0
        %5766 = vmatprep.subr.mxu0 0.0
        %5767 = vmatpush1.msra.mxu0 0.0
        %5768 = vmatprep.subr.mxu0 0.0
        %5769 = vmatpush1.msra.mxu0 0.0
        %5770 = vmatprep.subr.mxu0 0.0
        %5771 = vmatpush1.msra.mxu0 0.0
        %5772 = vmatprep.subr.mxu0 0.0
        %5773 = vmatpush1.msra.mxu0 0.0
        %5774 = vmatprep.subr.mxu0 0.0
        %5775 = vmatpush1.msra.mxu0 0.0
        %5776 = vmatprep.subr.mxu0 0.0
        %5777 = vmatpush1.msra.mxu0 0.0
        %5778 = vmatprep.subr.mxu0 0.0
        %5779 = vmatpush1.msra.mxu0 0.0
        %5780 = vmatprep.subr.mxu0 0.0
        %5781 = vmatpush1.msra.mxu0 0.0
        %5782 = vmatprep.subr.mxu0 0.0
        %5783 = vmatpush1.msra.mxu0 0.0
        %5784 = vmatprep.subr.mxu0 0.0
        %5785 = vmatpush1.msra.mxu0 0.0
        %5786 = vmatprep.subr.mxu0 0.0
        %5787 = vmatpush1.msra.mxu0 0.0
        %5788 = vmatprep.subr.mxu0 0.0
        %5789 = vmatpush1.msra.mxu0 0.0
        %5790 = vmatprep.subr.mxu0 0.0
        %5791 = vmatpush1.msra.mxu0 0.0
        %5792 = vmatprep.mubr.f32.mxu0 0.0
        %5793 = vmatmul.mubr.f32.gmra.mrb[0].mxu0 %v5723
        %v5794 = vpop.f32.mrb[0].mxu0
        %v5795 = vadd.f32 %v5721, %v5794
        %v5796 = vpop.f32.mrb[0].mxu0
        %5797 = vmatprep.mubr.f32.mxu0 0.0
        %5798 = vmatmul.mubr.f32.gmra.mrb[0].mxu0 %v5726
        %v5799 = vpop.f32.mrb[0].mxu0
        %v5800 = vadd.f32 %v5721, %v5799
        %v5801 = vpop.f32.mrb[0].mxu0
        %5802 = vdwg.mxu0
        %v5803 = vadd.f32 %v5236, %v5795
        %v5804 = vadd.f32 %v5237, %v5800
        %v5805 = vsel %vm381, %v5803, 0.0
        %5806 = vadd.xlane.f32.xlu0 %v5805
        %v5807 = vpop.xlane.xlu0 %5806
        %v5808 = vsel %vm381, %v5804, 0.0
        %5809 = vadd.xlane.f32.xlu0 %v5808
        %v5810 = vpop.xlane.xlu0 %5809
        %v5811 = vmul.f32 %v5807, %v907
        %v5812 = vmul.f32 %v5810, %v907
        %v5813 = vsub.f32 %v5803, %v5811
        %v5814 = vsub.f32 %v5804, %v5812
        %v5815 = vmul.f32 %v5813, %v5813
        %v5816 = vmul.f32 %v5814, %v5814
        %v5817 = vsel %vm381, %v5815, 0.0
        %5818 = vadd.xlane.f32.xlu0 %v5817
        %v5819 = vpop.xlane.xlu0 %5818
        %v5820 = vsel %vm381, %v5816, 0.0
        %5821 = vadd.xlane.f32.xlu0 %v5820
        %v5822 = vpop.xlane.xlu0 %5821
        %v5823 = vmul.f32 %v5819, %v907
        %v5824 = vmul.f32 %v5822, %v907
        %v5825 = vadd.f32 %v5823, 1e-05
        %v5826 = vadd.f32 %v5824, 1e-05
        %v5827 = vrsqrt.pop %v5825
        %v5828 = vrsqrt.pop %v5826
        %v5829 = vmul.f32 %v5813, %v5827
        %v5830 = vmul.f32 %v5814, %v5828
        %v5831 = vlaneseq
        %v5832 = vshrl.u32 %v5831, 7
        %v5833 = vsub.s32 0, %v5832
        %v5834 = vrot.slane %v5279, %v5833
        %v5835 = vmul.f32 %v5829, %v5834
        %v5836 = vmul.f32 %v5830, %v5834
        %v5837 = vlaneseq
        %v5838 = vshrl.u32 %v5837, 7
        %v5839 = vsub.s32 0, %v5838
        %v5840 = vrot.slane %v5280, %v5839
        %v5841 = vadd.f32 %v5835, %v5840
        %v5842 = vadd.f32 %v5836, %v5840
        %v5843 = vlaneseq
        %v5844 = vshrl.u32 %v5843, 7
        %v5845 = vsub.s32 0, %v5844
        %v5846 = vrot.slane %v5277, %v5845
        %v5848 = vsel %vm381, %v5841, 0
        %v5851 = vsel %vm381, %v5842, 0
        %5853 = vmatprep.subr.mxu0 0.0
        %5854 = vmatpush1.msra.mxu0 %v5259
        %5855 = vmatprep.subr.mxu0 0.0
        %5856 = vmatpush1.msra.mxu0 %v5260
        %5857 = vmatprep.subr.mxu0 0.0
        %5858 = vmatpush1.msra.mxu0 %v5261
        %5859 = vmatprep.subr.mxu0 0.0
        %5860 = vmatpush1.msra.mxu0 %v5262
        %5861 = vmatprep.subr.mxu0 0.0
        %5862 = vmatpush1.msra.mxu0 0.0
        %5863 = vmatprep.subr.mxu0 0.0
        %5864 = vmatpush1.msra.mxu0 0.0
        %5865 = vmatprep.subr.mxu0 0.0
        %5866 = vmatpush1.msra.mxu0 0.0
        %5867 = vmatprep.subr.mxu0 0.0
        %5868 = vmatpush1.msra.mxu0 0.0
        %5869 = vmatprep.subr.mxu0 0.0
        %5870 = vmatpush1.msra.mxu0 0.0
        %5871 = vmatprep.subr.mxu0 0.0
        %5872 = vmatpush1.msra.mxu0 0.0
        %5873 = vmatprep.subr.mxu0 0.0
        %5874 = vmatpush1.msra.mxu0 0.0
        %5875 = vmatprep.subr.mxu0 0.0
        %5876 = vmatpush1.msra.mxu0 0.0
        %5877 = vmatprep.subr.mxu0 0.0
        %5878 = vmatpush1.msra.mxu0 0.0
        %5879 = vmatprep.subr.mxu0 0.0
        %5880 = vmatpush1.msra.mxu0 0.0
        %5881 = vmatprep.subr.mxu0 0.0
        %5882 = vmatpush1.msra.mxu0 0.0
        %5883 = vmatprep.subr.mxu0 0.0
        %5884 = vmatpush1.msra.mxu0 0.0
        %5885 = vmatprep.subr.mxu0 0.0
        %5886 = vmatpush1.msra.mxu0 0.0
        %5887 = vmatprep.subr.mxu0 0.0
        %5888 = vmatpush1.msra.mxu0 0.0
        %5889 = vmatprep.subr.mxu0 0.0
        %5890 = vmatpush1.msra.mxu0 0.0
        %5891 = vmatprep.subr.mxu0 0.0
        %5892 = vmatpush1.msra.mxu0 0.0
        %5893 = vmatprep.subr.mxu0 0.0
        %5894 = vmatpush1.msra.mxu0 0.0
        %5895 = vmatprep.subr.mxu0 0.0
        %5896 = vmatpush1.msra.mxu0 0.0
        %5897 = vmatprep.subr.mxu0 0.0
        %5898 = vmatpush1.msra.mxu0 0.0
        %5899 = vmatprep.subr.mxu0 0.0
        %5900 = vmatpush1.msra.mxu0 0.0
        %5901 = vmatprep.subr.mxu0 0.0
        %5902 = vmatpush1.msra.mxu0 0.0
        %5903 = vmatprep.subr.mxu0 0.0
        %5904 = vmatpush1.msra.mxu0 0.0
        %5905 = vmatprep.subr.mxu0 0.0
        %5906 = vmatpush1.msra.mxu0 0.0
        %5907 = vmatprep.subr.mxu0 0.0
        %5908 = vmatpush1.msra.mxu0 0.0
        %5909 = vmatprep.subr.mxu0 0.0
        %5910 = vmatpush1.msra.mxu0 0.0
        %5911 = vmatprep.subr.mxu0 0.0
        %5912 = vmatpush1.msra.mxu0 0.0
        %5913 = vmatprep.subr.mxu0 0.0
        %5914 = vmatpush1.msra.mxu0 0.0
        %5915 = vmatprep.subr.mxu0 0.0
        %5916 = vmatpush1.msra.mxu0 0.0
        %5917 = vmatprep.mubr.f32.mxu0 0.0
        %5918 = vmatmul.mubr.f32.gmra.mrb[0].mxu0 %v5848
        %v5919 = vpop.f32.mrb[0].mxu0
        %v5920 = vadd.f32 %v5846, %v5919
        %v5921 = vpop.f32.mrb[0].mxu0
        %5922 = vmatprep.mubr.f32.mxu0 0.0
        %5923 = vmatmul.mubr.f32.gmra.mrb[0].mxu0 %v5851
        %v5924 = vpop.f32.mrb[0].mxu0
        %v5925 = vadd.f32 %v5846, %v5924
        %v5926 = vpop.f32.mrb[0].mxu0
        %5927 = vdwg.mxu0
        %v5928 = vmax.f32 %v5920, 0.0
        %v5929 = vmax.f32 %v5925, 0.0
        %v5930 = vlaneseq
        %v5931 = vshrl.u32 %v5930, 7
        %v5932 = vsub.s32 0, %v5931
        %v5933 = vrot.slane %v5278, %v5932
        %v5935 = vsel %vm1031, %v5928, 0
        %v5938 = vsel %vm1031, %v5929, 0
        %5940 = vmatprep.subr.mxu0 0.0
        %5941 = vmatpush1.msra.mxu0 %v5264
        %5942 = vmatprep.subr.mxu0 0.0
        %5943 = vmatpush1.msra.mxu0 %v5265
        %5944 = vmatprep.subr.mxu0 0.0
        %5945 = vmatpush1.msra.mxu0 %v5266
        %5946 = vmatprep.subr.mxu0 0.0
        %5947 = vmatpush1.msra.mxu0 %v5267
        %5948 = vmatprep.subr.mxu0 0.0
        %5949 = vmatpush1.msra.mxu0 %v5268
        %5950 = vmatprep.subr.mxu0 0.0
        %5951 = vmatpush1.msra.mxu0 %v5269
        %5952 = vmatprep.subr.mxu0 0.0
        %5953 = vmatpush1.msra.mxu0 %v5270
        %5954 = vmatprep.subr.mxu0 0.0
        %5955 = vmatpush1.msra.mxu0 %v5271
        %5956 = vmatprep.subr.mxu0 0.0
        %5957 = vmatpush1.msra.mxu0 0.0
        %5958 = vmatprep.subr.mxu0 0.0
        %5959 = vmatpush1.msra.mxu0 0.0
        %5960 = vmatprep.subr.mxu0 0.0
        %5961 = vmatpush1.msra.mxu0 0.0
        %5962 = vmatprep.subr.mxu0 0.0
        %5963 = vmatpush1.msra.mxu0 0.0
        %5964 = vmatprep.subr.mxu0 0.0
        %5965 = vmatpush1.msra.mxu0 0.0
        %5966 = vmatprep.subr.mxu0 0.0
        %5967 = vmatpush1.msra.mxu0 0.0
        %5968 = vmatprep.subr.mxu0 0.0
        %5969 = vmatpush1.msra.mxu0 0.0
        %5970 = vmatprep.subr.mxu0 0.0
        %5971 = vmatpush1.msra.mxu0 0.0
        %5972 = vmatprep.subr.mxu0 0.0
        %5973 = vmatpush1.msra.mxu0 0.0
        %5974 = vmatprep.subr.mxu0 0.0
        %5975 = vmatpush1.msra.mxu0 0.0
        %5976 = vmatprep.subr.mxu0 0.0
        %5977 = vmatpush1.msra.mxu0 0.0
        %5978 = vmatprep.subr.mxu0 0.0
        %5979 = vmatpush1.msra.mxu0 0.0
        %5980 = vmatprep.subr.mxu0 0.0
        %5981 = vmatpush1.msra.mxu0 0.0
        %5982 = vmatprep.subr.mxu0 0.0
        %5983 = vmatpush1.msra.mxu0 0.0
        %5984 = vmatprep.subr.mxu0 0.0
        %5985 = vmatpush1.msra.mxu0 0.0
        %5986 = vmatprep.subr.mxu0 0.0
        %5987 = vmatpush1.msra.mxu0 0.0
        %5988 = vmatprep.subr.mxu0 0.0
        %5989 = vmatpush1.msra.mxu0 0.0
        %5990 = vmatprep.subr.mxu0 0.0
        %5991 = vmatpush1.msra.mxu0 0.0
        %5992 = vmatprep.subr.mxu0 0.0
        %5993 = vmatpush1.msra.mxu0 0.0
        %5994 = vmatprep.subr.mxu0 0.0
        %5995 = vmatpush1.msra.mxu0 0.0
        %5996 = vmatprep.subr.mxu0 0.0
        %5997 = vmatpush1.msra.mxu0 0.0
        %5998 = vmatprep.subr.mxu0 0.0
        %5999 = vmatpush1.msra.mxu0 0.0
        %6000 = vmatprep.subr.mxu0 0.0
        %6001 = vmatpush1.msra.mxu0 0.0
        %6002 = vmatprep.subr.mxu0 0.0
        %6003 = vmatpush1.msra.mxu0 0.0
        %6004 = vmatprep.mubr.f32.mxu0 0.0
        %6005 = vmatmul.mubr.f32.gmra.mrb[0].mxu0 %v5935
        %v6006 = vpop.f32.mrb[0].mxu0
        %v6007 = vadd.f32 %v5933, %v6006
        %v6008 = vpop.f32.mrb[0].mxu0
        %6009 = vmatprep.mubr.f32.mxu0 0.0
        %6010 = vmatmul.mubr.f32.gmra.mrb[0].mxu0 %v5938
        %v6011 = vpop.f32.mrb[0].mxu0
        %v6012 = vadd.f32 %v5933, %v6011
        %v6013 = vpop.f32.mrb[0].mxu0
        %6014 = vdwg.mxu0
        %v6015 = vadd.f32 %v5841, %v6007
        %v6016 = vadd.f32 %v5842, %v6012
        %v6017 = vsel %vm381, %v6015, 0.0
        %6018 = vadd.xlane.f32.xlu0 %v6017
        %v6019 = vpop.xlane.xlu0 %6018
        %v6020 = vsel %vm381, %v6016, 0.0
        %6021 = vadd.xlane.f32.xlu0 %v6020
        %v6022 = vpop.xlane.xlu0 %6021
        %v6023 = vmul.f32 %v6019, %v907
        %v6024 = vmul.f32 %v6022, %v907
        %v6025 = vsub.f32 %v6015, %v6023
        %v6026 = vsub.f32 %v6016, %v6024
        %v6027 = vmul.f32 %v6025, %v6025
        %v6028 = vmul.f32 %v6026, %v6026
        %v6029 = vsel %vm381, %v6027, 0.0
        %6030 = vadd.xlane.f32.xlu0 %v6029
        %v6031 = vpop.xlane.xlu0 %6030
        %v6032 = vsel %vm381, %v6028, 0.0
        %6033 = vadd.xlane.f32.xlu0 %v6032
        %v6034 = vpop.xlane.xlu0 %6033
        %v6035 = vmul.f32 %v6031, %v907
        %v6036 = vmul.f32 %v6034, %v907
        %v6037 = vadd.f32 %v6035, 1e-05
        %v6038 = vadd.f32 %v6036, 1e-05
        %v6039 = vrsqrt.pop %v6037
        %v6040 = vrsqrt.pop %v6038
        %v6041 = vmul.f32 %v6025, %v6039
        %v6042 = vmul.f32 %v6026, %v6040
        %v6043 = vlaneseq
        %v6044 = vshrl.u32 %v6043, 7
        %v6045 = vsub.s32 0, %v6044
        %v6046 = vrot.slane %v5281, %v6045
        %v6047 = vmul.f32 %v6041, %v6046
        %v6048 = vmul.f32 %v6042, %v6046
        %v6049 = vlaneseq
        %v6050 = vshrl.u32 %v6049, 7
        %v6051 = vsub.s32 0, %v6050
        %v6052 = vrot.slane %v5282, %v6051
        %v6053 = vadd.f32 %v6047, %v6052
        %v6054 = vadd.f32 %v6048, %v6052
        %s6055 = scalar_lea.vmem %s2, 224
        %v6056 = vld [vmem:[%s6055] sm:$0xff]
        %v6057 = vld [vmem:[%s6055 + $0x8] sm:$0xff]
        %v6058 = vld [vmem:[%s6055 + $0x10] sm:$0xff]
        %v6059 = vld [vmem:[%s6055 + $0x18] sm:$0xff]
        %s6060 = scalar_lea.vmem %s3, 224
        %v6061 = vld [vmem:[%s6060] sm:$0xff]
        %v6062 = vld [vmem:[%s6060 + $0x8] sm:$0xff]
        %v6063 = vld [vmem:[%s6060 + $0x10] sm:$0xff]
        %v6064 = vld [vmem:[%s6060 + $0x18] sm:$0xff]
        %s6065 = scalar_lea.vmem %s4, 224
        %v6066 = vld [vmem:[%s6065] sm:$0xff]
        %v6067 = vld [vmem:[%s6065 + $0x8] sm:$0xff]
        %v6068 = vld [vmem:[%s6065 + $0x10] sm:$0xff]
        %v6069 = vld [vmem:[%s6065 + $0x18] sm:$0xff]
        %s6070 = scalar_lea.vmem %s5, 224
        %v6071 = vld [vmem:[%s6070] sm:$0xff]
        %v6072 = vld [vmem:[%s6070 + $0x8] sm:$0xff]
        %v6073 = vld [vmem:[%s6070 + $0x10] sm:$0xff]
        %v6074 = vld [vmem:[%s6070 + $0x18] sm:$0xff]
        %s6075 = scalar_lea.vmem %s6, 224
        %v6076 = vld [vmem:[%s6075] sm:$0xff]
        %v6077 = vld [vmem:[%s6075 + $0x8] sm:$0xff]
        %v6078 = vld [vmem:[%s6075 + $0x10] sm:$0xff]
        %v6079 = vld [vmem:[%s6075 + $0x18] sm:$0xff]
        %s6080 = scalar_lea.vmem %s7, 448
        %v6081 = vld [vmem:[%s6080] sm:$0xff]
        %v6082 = vld [vmem:[%s6080 + $0x8] sm:$0xff]
        %v6083 = vld [vmem:[%s6080 + $0x10] sm:$0xff]
        %v6084 = vld [vmem:[%s6080 + $0x18] sm:$0xff]
        %v6085 = vld [vmem:[%s6080 + $0x20] sm:$0xff]
        %v6086 = vld [vmem:[%s6080 + $0x28] sm:$0xff]
        %v6087 = vld [vmem:[%s6080 + $0x30] sm:$0xff]
        %v6088 = vld [vmem:[%s6080 + $0x38] sm:$0xff]
        %s6089 = scalar_lea.vmem %s8, 112
        %v6090 = vld [vmem:[%s6089] sm:$0x1]
        %v6091 = vld [vmem:[%s6089 + $0x1] sm:$0x1]
        %v6092 = vld [vmem:[%s6089 + $0x2] sm:$0x1]
        %v6093 = vld [vmem:[%s6089 + $0x3] sm:$0x1]
        %v6094 = vld [vmem:[%s6089 + $0x4] sm:$0x1]
        %v6095 = vld [vmem:[%s6089 + $0x5] sm:$0x1]
        %v6096 = vld [vmem:[%s6089 + $0x6] sm:$0x1]
        %v6097 = vld [vmem:[%s6089 + $0x7] sm:$0x1]
        %v6098 = vld [vmem:[%s6089 + $0x8] sm:$0x1]
        %v6099 = vld [vmem:[%s6089 + $0x9] sm:$0x1]
        %v6100 = vlaneseq
        %v6101 = vshrl.u32 %v6100, 7
        %v6102 = vsub.s32 0, %v6101
        %v6103 = vrot.slane %v6090, %v6102
        %v6105 = vsel %vm381, %v6053, 0
        %v6108 = vsel %vm381, %v6054, 0
        %6110 = vmatprep.subr.mxu0 0.0
        %6111 = vmatpush1.msra.mxu0 %v6056
        %6112 = vmatprep.subr.mxu0 0.0
        %6113 = vmatpush1.msra.mxu0 %v6057
        %6114 = vmatprep.subr.mxu0 0.0
        %6115 = vmatpush1.msra.mxu0 %v6058
        %6116 = vmatprep.subr.mxu0 0.0
        %6117 = vmatpush1.msra.mxu0 %v6059
        %6118 = vmatprep.subr.mxu0 0.0
        %6119 = vmatpush1.msra.mxu0 0.0
        %6120 = vmatprep.subr.mxu0 0.0
        %6121 = vmatpush1.msra.mxu0 0.0
        %6122 = vmatprep.subr.mxu0 0.0
        %6123 = vmatpush1.msra.mxu0 0.0
        %6124 = vmatprep.subr.mxu0 0.0
        %6125 = vmatpush1.msra.mxu0 0.0
        %6126 = vmatprep.subr.mxu0 0.0
        %6127 = vmatpush1.msra.mxu0 0.0
        %6128 = vmatprep.subr.mxu0 0.0
        %6129 = vmatpush1.msra.mxu0 0.0
        %6130 = vmatprep.subr.mxu0 0.0
        %6131 = vmatpush1.msra.mxu0 0.0
        %6132 = vmatprep.subr.mxu0 0.0
        %6133 = vmatpush1.msra.mxu0 0.0
        %6134 = vmatprep.subr.mxu0 0.0
        %6135 = vmatpush1.msra.mxu0 0.0
        %6136 = vmatprep.subr.mxu0 0.0
        %6137 = vmatpush1.msra.mxu0 0.0
        %6138 = vmatprep.subr.mxu0 0.0
        %6139 = vmatpush1.msra.mxu0 0.0
        %6140 = vmatprep.subr.mxu0 0.0
        %6141 = vmatpush1.msra.mxu0 0.0
        %6142 = vmatprep.subr.mxu0 0.0
        %6143 = vmatpush1.msra.mxu0 0.0
        %6144 = vmatprep.subr.mxu0 0.0
        %6145 = vmatpush1.msra.mxu0 0.0
        %6146 = vmatprep.subr.mxu0 0.0
        %6147 = vmatpush1.msra.mxu0 0.0
        %6148 = vmatprep.subr.mxu0 0.0
        %6149 = vmatpush1.msra.mxu0 0.0
        %6150 = vmatprep.subr.mxu0 0.0
        %6151 = vmatpush1.msra.mxu0 0.0
        %6152 = vmatprep.subr.mxu0 0.0
        %6153 = vmatpush1.msra.mxu0 0.0
        %6154 = vmatprep.subr.mxu0 0.0
        %6155 = vmatpush1.msra.mxu0 0.0
        %6156 = vmatprep.subr.mxu0 0.0
        %6157 = vmatpush1.msra.mxu0 0.0
        %6158 = vmatprep.subr.mxu0 0.0
        %6159 = vmatpush1.msra.mxu0 0.0
        %6160 = vmatprep.subr.mxu0 0.0
        %6161 = vmatpush1.msra.mxu0 0.0
        %6162 = vmatprep.subr.mxu0 0.0
        %6163 = vmatpush1.msra.mxu0 0.0
        %6164 = vmatprep.subr.mxu0 0.0
        %6165 = vmatpush1.msra.mxu0 0.0
        %6166 = vmatprep.subr.mxu0 0.0
        %6167 = vmatpush1.msra.mxu0 0.0
        %6168 = vmatprep.subr.mxu0 0.0
        %6169 = vmatpush1.msra.mxu0 0.0
        %6170 = vmatprep.subr.mxu0 0.0
        %6171 = vmatpush1.msra.mxu0 0.0
        %6172 = vmatprep.subr.mxu0 0.0
        %6173 = vmatpush1.msra.mxu0 0.0
        %6174 = vmatprep.mubr.f32.mxu0 0.0
        %6175 = vmatmul.mubr.f32.gmra.mrb[0].mxu0 %v6105
        %v6176 = vpop.f32.mrb[0].mxu0
        %v6177 = vadd.f32 %v6103, %v6176
        %v6178 = vpop.f32.mrb[0].mxu0
        %6179 = vmatprep.mubr.f32.mxu0 0.0
        %6180 = vmatmul.mubr.f32.gmra.mrb[0].mxu0 %v6108
        %v6181 = vpop.f32.mrb[0].mxu0
        %v6182 = vadd.f32 %v6103, %v6181
        %v6183 = vpop.f32.mrb[0].mxu0
        %6184 = vdwg.mxu0
        %v6185 = vlaneseq
        %v6186 = vshrl.u32 %v6185, 7
        %v6187 = vsub.s32 0, %v6186
        %v6188 = vrot.slane %v6091, %v6187
        %6189 = vmatprep.subr.mxu0 0.0
        %6190 = vmatpush1.msra.mxu0 %v6061
        %6191 = vmatprep.subr.mxu0 0.0
        %6192 = vmatpush1.msra.mxu0 %v6062
        %6193 = vmatprep.subr.mxu0 0.0
        %6194 = vmatpush1.msra.mxu0 %v6063
        %6195 = vmatprep.subr.mxu0 0.0
        %6196 = vmatpush1.msra.mxu0 %v6064
        %6197 = vmatprep.subr.mxu0 0.0
        %6198 = vmatpush1.msra.mxu0 0.0
        %6199 = vmatprep.subr.mxu0 0.0
        %6200 = vmatpush1.msra.mxu0 0.0
        %6201 = vmatprep.subr.mxu0 0.0
        %6202 = vmatpush1.msra.mxu0 0.0
        %6203 = vmatprep.subr.mxu0 0.0
        %6204 = vmatpush1.msra.mxu0 0.0
        %6205 = vmatprep.subr.mxu0 0.0
        %6206 = vmatpush1.msra.mxu0 0.0
        %6207 = vmatprep.subr.mxu0 0.0
        %6208 = vmatpush1.msra.mxu0 0.0
        %6209 = vmatprep.subr.mxu0 0.0
        %6210 = vmatpush1.msra.mxu0 0.0
        %6211 = vmatprep.subr.mxu0 0.0
        %6212 = vmatpush1.msra.mxu0 0.0
        %6213 = vmatprep.subr.mxu0 0.0
        %6214 = vmatpush1.msra.mxu0 0.0
        %6215 = vmatprep.subr.mxu0 0.0
        %6216 = vmatpush1.msra.mxu0 0.0
        %6217 = vmatprep.subr.mxu0 0.0
        %6218 = vmatpush1.msra.mxu0 0.0
        %6219 = vmatprep.subr.mxu0 0.0
        %6220 = vmatpush1.msra.mxu0 0.0
        %6221 = vmatprep.subr.mxu0 0.0
        %6222 = vmatpush1.msra.mxu0 0.0
        %6223 = vmatprep.subr.mxu0 0.0
        %6224 = vmatpush1.msra.mxu0 0.0
        %6225 = vmatprep.subr.mxu0 0.0
        %6226 = vmatpush1.msra.mxu0 0.0
        %6227 = vmatprep.subr.mxu0 0.0
        %6228 = vmatpush1.msra.mxu0 0.0
        %6229 = vmatprep.subr.mxu0 0.0
        %6230 = vmatpush1.msra.mxu0 0.0
        %6231 = vmatprep.subr.mxu0 0.0
        %6232 = vmatpush1.msra.mxu0 0.0
        %6233 = vmatprep.subr.mxu0 0.0
        %6234 = vmatpush1.msra.mxu0 0.0
        %6235 = vmatprep.subr.mxu0 0.0
        %6236 = vmatpush1.msra.mxu0 0.0
        %6237 = vmatprep.subr.mxu0 0.0
        %6238 = vmatpush1.msra.mxu0 0.0
        %6239 = vmatprep.subr.mxu0 0.0
        %6240 = vmatpush1.msra.mxu0 0.0
        %6241 = vmatprep.subr.mxu0 0.0
        %6242 = vmatpush1.msra.mxu0 0.0
        %6243 = vmatprep.subr.mxu0 0.0
        %6244 = vmatpush1.msra.mxu0 0.0
        %6245 = vmatprep.subr.mxu0 0.0
        %6246 = vmatpush1.msra.mxu0 0.0
        %6247 = vmatprep.subr.mxu0 0.0
        %6248 = vmatpush1.msra.mxu0 0.0
        %6249 = vmatprep.subr.mxu0 0.0
        %6250 = vmatpush1.msra.mxu0 0.0
        %6251 = vmatprep.subr.mxu0 0.0
        %6252 = vmatpush1.msra.mxu0 0.0
        %6253 = vmatprep.mubr.f32.mxu0 0.0
        %6254 = vmatmul.mubr.f32.gmra.mrb[0].mxu0 %v6105
        %v6255 = vpop.f32.mrb[0].mxu0
        %v6256 = vadd.f32 %v6188, %v6255
        %v6257 = vpop.f32.mrb[0].mxu0
        %6258 = vmatprep.mubr.f32.mxu0 0.0
        %6259 = vmatmul.mubr.f32.gmra.mrb[0].mxu0 %v6108
        %v6260 = vpop.f32.mrb[0].mxu0
        %v6261 = vadd.f32 %v6188, %v6260
        %v6262 = vpop.f32.mrb[0].mxu0
        %6263 = vdwg.mxu0
        %v6264 = vlaneseq
        %v6265 = vshrl.u32 %v6264, 7
        %v6266 = vsub.s32 0, %v6265
        %v6267 = vrot.slane %v6092, %v6266
        %6268 = vmatprep.subr.mxu0 0.0
        %6269 = vmatpush1.msra.mxu0 %v6066
        %6270 = vmatprep.subr.mxu0 0.0
        %6271 = vmatpush1.msra.mxu0 %v6067
        %6272 = vmatprep.subr.mxu0 0.0
        %6273 = vmatpush1.msra.mxu0 %v6068
        %6274 = vmatprep.subr.mxu0 0.0
        %6275 = vmatpush1.msra.mxu0 %v6069
        %6276 = vmatprep.subr.mxu0 0.0
        %6277 = vmatpush1.msra.mxu0 0.0
        %6278 = vmatprep.subr.mxu0 0.0
        %6279 = vmatpush1.msra.mxu0 0.0
        %6280 = vmatprep.subr.mxu0 0.0
        %6281 = vmatpush1.msra.mxu0 0.0
        %6282 = vmatprep.subr.mxu0 0.0
        %6283 = vmatpush1.msra.mxu0 0.0
        %6284 = vmatprep.subr.mxu0 0.0
        %6285 = vmatpush1.msra.mxu0 0.0
        %6286 = vmatprep.subr.mxu0 0.0
        %6287 = vmatpush1.msra.mxu0 0.0
        %6288 = vmatprep.subr.mxu0 0.0
        %6289 = vmatpush1.msra.mxu0 0.0
        %6290 = vmatprep.subr.mxu0 0.0
        %6291 = vmatpush1.msra.mxu0 0.0
        %6292 = vmatprep.subr.mxu0 0.0
        %6293 = vmatpush1.msra.mxu0 0.0
        %6294 = vmatprep.subr.mxu0 0.0
        %6295 = vmatpush1.msra.mxu0 0.0
        %6296 = vmatprep.subr.mxu0 0.0
        %6297 = vmatpush1.msra.mxu0 0.0
        %6298 = vmatprep.subr.mxu0 0.0
        %6299 = vmatpush1.msra.mxu0 0.0
        %6300 = vmatprep.subr.mxu0 0.0
        %6301 = vmatpush1.msra.mxu0 0.0
        %6302 = vmatprep.subr.mxu0 0.0
        %6303 = vmatpush1.msra.mxu0 0.0
        %6304 = vmatprep.subr.mxu0 0.0
        %6305 = vmatpush1.msra.mxu0 0.0
        %6306 = vmatprep.subr.mxu0 0.0
        %6307 = vmatpush1.msra.mxu0 0.0
        %6308 = vmatprep.subr.mxu0 0.0
        %6309 = vmatpush1.msra.mxu0 0.0
        %6310 = vmatprep.subr.mxu0 0.0
        %6311 = vmatpush1.msra.mxu0 0.0
        %6312 = vmatprep.subr.mxu0 0.0
        %6313 = vmatpush1.msra.mxu0 0.0
        %6314 = vmatprep.subr.mxu0 0.0
        %6315 = vmatpush1.msra.mxu0 0.0
        %6316 = vmatprep.subr.mxu0 0.0
        %6317 = vmatpush1.msra.mxu0 0.0
        %6318 = vmatprep.subr.mxu0 0.0
        %6319 = vmatpush1.msra.mxu0 0.0
        %6320 = vmatprep.subr.mxu0 0.0
        %6321 = vmatpush1.msra.mxu0 0.0
        %6322 = vmatprep.subr.mxu0 0.0
        %6323 = vmatpush1.msra.mxu0 0.0
        %6324 = vmatprep.subr.mxu0 0.0
        %6325 = vmatpush1.msra.mxu0 0.0
        %6326 = vmatprep.subr.mxu0 0.0
        %6327 = vmatpush1.msra.mxu0 0.0
        %6328 = vmatprep.subr.mxu0 0.0
        %6329 = vmatpush1.msra.mxu0 0.0
        %6330 = vmatprep.subr.mxu0 0.0
        %6331 = vmatpush1.msra.mxu0 0.0
        %6332 = vmatprep.mubr.f32.mxu0 0.0
        %6333 = vmatmul.mubr.f32.gmra.mrb[0].mxu0 %v6105
        %v6334 = vpop.f32.mrb[0].mxu0
        %v6335 = vadd.f32 %v6267, %v6334
        %v6336 = vpop.f32.mrb[0].mxu0
        %6337 = vmatprep.mubr.f32.mxu0 0.0
        %6338 = vmatmul.mubr.f32.gmra.mrb[0].mxu0 %v6108
        %v6339 = vpop.f32.mrb[0].mxu0
        %v6340 = vadd.f32 %v6267, %v6339
        %v6341 = vpop.f32.mrb[0].mxu0
        %6342 = vdwg.mxu0
        %v6344 = vsel %vm381, %v6177, 0
        %v6347 = vsel %vm381, %v6182, 0
        %v6350 = vsel %vm381, %v6256, 0
        %v6353 = vsel %vm381, %v6261, 0
        %6355 = vmatprep.subr.mxu0 0.0
        %6356 = vmatpush1.xpose.msra.mxu0 %v6350
        %6357 = vmatprep.subr.mxu0 0.0
        %6358 = vmatpush1.xpose.msra.mxu0 %v6353
        %6359 = vmatprep.subr.mxu0 0.0
        %6360 = vmatpush1.xpose.msra.mxu0 0.0
        %6361 = vmatprep.subr.mxu0 0.0
        %6362 = vmatpush1.xpose.msra.mxu0 0.0
        %6363 = vmatprep.subr.mxu0 0.0
        %6364 = vmatpush1.xpose.msra.mxu0 0.0
        %6365 = vmatprep.subr.mxu0 0.0
        %6366 = vmatpush1.xpose.msra.mxu0 0.0
        %6367 = vmatprep.subr.mxu0 0.0
        %6368 = vmatpush1.xpose.msra.mxu0 0.0
        %6369 = vmatprep.subr.mxu0 0.0
        %6370 = vmatpush1.xpose.msra.mxu0 0.0
        %6371 = vmatprep.subr.mxu0 0.0
        %6372 = vmatpush1.xpose.msra.mxu0 0.0
        %6373 = vmatprep.subr.mxu0 0.0
        %6374 = vmatpush1.xpose.msra.mxu0 0.0
        %6375 = vmatprep.subr.mxu0 0.0
        %6376 = vmatpush1.xpose.msra.mxu0 0.0
        %6377 = vmatprep.subr.mxu0 0.0
        %6378 = vmatpush1.xpose.msra.mxu0 0.0
        %6379 = vmatprep.subr.mxu0 0.0
        %6380 = vmatpush1.xpose.msra.mxu0 0.0
        %6381 = vmatprep.subr.mxu0 0.0
        %6382 = vmatpush1.xpose.msra.mxu0 0.0
        %6383 = vmatprep.subr.mxu0 0.0
        %6384 = vmatpush1.xpose.msra.mxu0 0.0
        %6385 = vmatprep.subr.mxu0 0.0
        %6386 = vmatpush1.xpose.msra.mxu0 0.0
        %6387 = vmatprep.subr.mxu0 0.0
        %6388 = vmatpush1.xpose.msra.mxu0 0.0
        %6389 = vmatprep.subr.mxu0 0.0
        %6390 = vmatpush1.xpose.msra.mxu0 0.0
        %6391 = vmatprep.subr.mxu0 0.0
        %6392 = vmatpush1.xpose.msra.mxu0 0.0
        %6393 = vmatprep.subr.mxu0 0.0
        %6394 = vmatpush1.xpose.msra.mxu0 0.0
        %6395 = vmatprep.subr.mxu0 0.0
        %6396 = vmatpush1.xpose.msra.mxu0 0.0
        %6397 = vmatprep.subr.mxu0 0.0
        %6398 = vmatpush1.xpose.msra.mxu0 0.0
        %6399 = vmatprep.subr.mxu0 0.0
        %6400 = vmatpush1.xpose.msra.mxu0 0.0
        %6401 = vmatprep.subr.mxu0 0.0
        %6402 = vmatpush1.xpose.msra.mxu0 0.0
        %6403 = vmatprep.subr.mxu0 0.0
        %6404 = vmatpush1.xpose.msra.mxu0 0.0
        %6405 = vmatprep.subr.mxu0 0.0
        %6406 = vmatpush1.xpose.msra.mxu0 0.0
        %6407 = vmatprep.subr.mxu0 0.0
        %6408 = vmatpush1.xpose.msra.mxu0 0.0
        %6409 = vmatprep.subr.mxu0 0.0
        %6410 = vmatpush1.xpose.msra.mxu0 0.0
        %6411 = vmatprep.subr.mxu0 0.0
        %6412 = vmatpush1.xpose.msra.mxu0 0.0
        %6413 = vmatprep.subr.mxu0 0.0
        %6414 = vmatpush1.xpose.msra.mxu0 0.0
        %6415 = vmatprep.subr.mxu0 0.0
        %6416 = vmatpush1.xpose.msra.mxu0 0.0
        %6417 = vmatprep.subr.mxu0 0.0
        %6418 = vmatpush1.xpose.msra.mxu0 0.0
        %6419 = vmatprep.mubr.f32.mxu0 0.0
        %6420 = vmatmul.mubr.f32.gmra.mrb[0].mxu0 %v6344
        %v6421 = vpop.f32.mrb[0].mxu0
        %v6422 = vadd.f32 0.0, %v6421
        %v6423 = vpop.f32.mrb[0].mxu0
        %6424 = vmatprep.mubr.f32.mxu0 0.0
        %6425 = vmatmul.mubr.f32.gmra.mrb[0].mxu0 %v6347
        %v6426 = vpop.f32.mrb[0].mxu0
        %v6427 = vadd.f32 0.0, %v6426
        %v6428 = vpop.f32.mrb[0].mxu0
        %6429 = vdwg.mxu0
        %v6430 = vmul.f32 %v6422, 0.17677669
        %v6431 = vmul.f32 %v6427, 0.17677669
        %v6432 = vsel %vm710, %v6430, -inf
        %6433 = vmax.xlane.f32.xlu0 %v6432
        %v6434 = vpop.xlane.xlu0 %6433
        %v6435 = vsel %vm710, %v6431, -inf
        %6436 = vmax.xlane.f32.xlu0 %v6435
        %v6437 = vpop.xlane.xlu0 %6436
        %v6438 = vsub.f32 %v6430, %v6434
        %v6439 = vsub.f32 %v6431, %v6437
        %v6440 = vmul.f32 %v6438, 1.442695
        %v6441 = vpow.pop %v6440
        %v6442 = vmul.f32 %v6439, 1.442695
        %v6443 = vpow.pop %v6442
        %v6444 = vsel %vm710, %v6441, 0.0
        %6445 = vadd.xlane.f32.xlu0 %v6444
        %v6446 = vpop.xlane.xlu0 %6445
        %v6447 = vsel %vm710, %v6443, 0.0
        %6448 = vadd.xlane.f32.xlu0 %v6447
        %v6449 = vpop.xlane.xlu0 %6448
        %v6450 = vrcp.pop %v6446
        %v6451 = vrcp.pop %v6449
        %v6452 = vmul.f32 %v6441, %v6450
        %v6453 = vmul.f32 %v6443, %v6451
        %v6455 = vsel %vm710, %v6452, 0
        %v6458 = vsel %vm710, %v6453, 0
        %6460 = vmatprep.subr.mxu0 0.0
        %6461 = vmatpush1.msra.mxu0 %v6335
        %6462 = vmatprep.subr.mxu0 0.0
        %6463 = vmatpush1.msra.mxu0 %v6340
        %6464 = vmatprep.subr.mxu0 0.0
        %6465 = vmatpush1.msra.mxu0 0.0
        %6466 = vmatprep.subr.mxu0 0.0
        %6467 = vmatpush1.msra.mxu0 0.0
        %6468 = vmatprep.subr.mxu0 0.0
        %6469 = vmatpush1.msra.mxu0 0.0
        %6470 = vmatprep.subr.mxu0 0.0
        %6471 = vmatpush1.msra.mxu0 0.0
        %6472 = vmatprep.subr.mxu0 0.0
        %6473 = vmatpush1.msra.mxu0 0.0
        %6474 = vmatprep.subr.mxu0 0.0
        %6475 = vmatpush1.msra.mxu0 0.0
        %6476 = vmatprep.subr.mxu0 0.0
        %6477 = vmatpush1.msra.mxu0 0.0
        %6478 = vmatprep.subr.mxu0 0.0
        %6479 = vmatpush1.msra.mxu0 0.0
        %6480 = vmatprep.subr.mxu0 0.0
        %6481 = vmatpush1.msra.mxu0 0.0
        %6482 = vmatprep.subr.mxu0 0.0
        %6483 = vmatpush1.msra.mxu0 0.0
        %6484 = vmatprep.subr.mxu0 0.0
        %6485 = vmatpush1.msra.mxu0 0.0
        %6486 = vmatprep.subr.mxu0 0.0
        %6487 = vmatpush1.msra.mxu0 0.0
        %6488 = vmatprep.subr.mxu0 0.0
        %6489 = vmatpush1.msra.mxu0 0.0
        %6490 = vmatprep.subr.mxu0 0.0
        %6491 = vmatpush1.msra.mxu0 0.0
        %6492 = vmatprep.subr.mxu0 0.0
        %6493 = vmatpush1.msra.mxu0 0.0
        %6494 = vmatprep.subr.mxu0 0.0
        %6495 = vmatpush1.msra.mxu0 0.0
        %6496 = vmatprep.subr.mxu0 0.0
        %6497 = vmatpush1.msra.mxu0 0.0
        %6498 = vmatprep.subr.mxu0 0.0
        %6499 = vmatpush1.msra.mxu0 0.0
        %6500 = vmatprep.subr.mxu0 0.0
        %6501 = vmatpush1.msra.mxu0 0.0
        %6502 = vmatprep.subr.mxu0 0.0
        %6503 = vmatpush1.msra.mxu0 0.0
        %6504 = vmatprep.subr.mxu0 0.0
        %6505 = vmatpush1.msra.mxu0 0.0
        %6506 = vmatprep.subr.mxu0 0.0
        %6507 = vmatpush1.msra.mxu0 0.0
        %6508 = vmatprep.subr.mxu0 0.0
        %6509 = vmatpush1.msra.mxu0 0.0
        %6510 = vmatprep.subr.mxu0 0.0
        %6511 = vmatpush1.msra.mxu0 0.0
        %6512 = vmatprep.subr.mxu0 0.0
        %6513 = vmatpush1.msra.mxu0 0.0
        %6514 = vmatprep.subr.mxu0 0.0
        %6515 = vmatpush1.msra.mxu0 0.0
        %6516 = vmatprep.subr.mxu0 0.0
        %6517 = vmatpush1.msra.mxu0 0.0
        %6518 = vmatprep.subr.mxu0 0.0
        %6519 = vmatpush1.msra.mxu0 0.0
        %6520 = vmatprep.subr.mxu0 0.0
        %6521 = vmatpush1.msra.mxu0 0.0
        %6522 = vmatprep.subr.mxu0 0.0
        %6523 = vmatpush1.msra.mxu0 0.0
        %6524 = vmatprep.mubr.f32.mxu0 0.0
        %6525 = vmatmul.mubr.f32.gmra.mrb[0].mxu0 %v6455
        %v6526 = vpop.f32.mrb[0].mxu0
        %v6527 = vadd.f32 0.0, %v6526
        %v6528 = vpop.f32.mrb[0].mxu0
        %6529 = vmatprep.mubr.f32.mxu0 0.0
        %6530 = vmatmul.mubr.f32.gmra.mrb[0].mxu0 %v6458
        %v6531 = vpop.f32.mrb[0].mxu0
        %v6532 = vadd.f32 0.0, %v6531
        %v6533 = vpop.f32.mrb[0].mxu0
        %6534 = vdwg.mxu0
        %v6535 = vlaneseq
        %v6536 = vshrl.u32 %v6535, 7
        %v6537 = vsub.s32 0, %v6536
        %v6538 = vrot.slane %v6093, %v6537
        %v6540 = vsel %vm381, %v6527, 0
        %v6543 = vsel %vm381, %v6532, 0
        %6545 = vmatprep.subr.mxu0 0.0
        %6546 = vmatpush1.msra.mxu0 %v6071
        %6547 = vmatprep.subr.mxu0 0.0
        %6548 = vmatpush1.msra.mxu0 %v6072
        %6549 = vmatprep.subr.mxu0 0.0
        %6550 = vmatpush1.msra.mxu0 %v6073
        %6551 = vmatprep.subr.mxu0 0.0
        %6552 = vmatpush1.msra.mxu0 %v6074
        %6553 = vmatprep.subr.mxu0 0.0
        %6554 = vmatpush1.msra.mxu0 0.0
        %6555 = vmatprep.subr.mxu0 0.0
        %6556 = vmatpush1.msra.mxu0 0.0
        %6557 = vmatprep.subr.mxu0 0.0
        %6558 = vmatpush1.msra.mxu0 0.0
        %6559 = vmatprep.subr.mxu0 0.0
        %6560 = vmatpush1.msra.mxu0 0.0
        %6561 = vmatprep.subr.mxu0 0.0
        %6562 = vmatpush1.msra.mxu0 0.0
        %6563 = vmatprep.subr.mxu0 0.0
        %6564 = vmatpush1.msra.mxu0 0.0
        %6565 = vmatprep.subr.mxu0 0.0
        %6566 = vmatpush1.msra.mxu0 0.0
        %6567 = vmatprep.subr.mxu0 0.0
        %6568 = vmatpush1.msra.mxu0 0.0
        %6569 = vmatprep.subr.mxu0 0.0
        %6570 = vmatpush1.msra.mxu0 0.0
        %6571 = vmatprep.subr.mxu0 0.0
        %6572 = vmatpush1.msra.mxu0 0.0
        %6573 = vmatprep.subr.mxu0 0.0
        %6574 = vmatpush1.msra.mxu0 0.0
        %6575 = vmatprep.subr.mxu0 0.0
        %6576 = vmatpush1.msra.mxu0 0.0
        %6577 = vmatprep.subr.mxu0 0.0
        %6578 = vmatpush1.msra.mxu0 0.0
        %6579 = vmatprep.subr.mxu0 0.0
        %6580 = vmatpush1.msra.mxu0 0.0
        %6581 = vmatprep.subr.mxu0 0.0
        %6582 = vmatpush1.msra.mxu0 0.0
        %6583 = vmatprep.subr.mxu0 0.0
        %6584 = vmatpush1.msra.mxu0 0.0
        %6585 = vmatprep.subr.mxu0 0.0
        %6586 = vmatpush1.msra.mxu0 0.0
        %6587 = vmatprep.subr.mxu0 0.0
        %6588 = vmatpush1.msra.mxu0 0.0
        %6589 = vmatprep.subr.mxu0 0.0
        %6590 = vmatpush1.msra.mxu0 0.0
        %6591 = vmatprep.subr.mxu0 0.0
        %6592 = vmatpush1.msra.mxu0 0.0
        %6593 = vmatprep.subr.mxu0 0.0
        %6594 = vmatpush1.msra.mxu0 0.0
        %6595 = vmatprep.subr.mxu0 0.0
        %6596 = vmatpush1.msra.mxu0 0.0
        %6597 = vmatprep.subr.mxu0 0.0
        %6598 = vmatpush1.msra.mxu0 0.0
        %6599 = vmatprep.subr.mxu0 0.0
        %6600 = vmatpush1.msra.mxu0 0.0
        %6601 = vmatprep.subr.mxu0 0.0
        %6602 = vmatpush1.msra.mxu0 0.0
        %6603 = vmatprep.subr.mxu0 0.0
        %6604 = vmatpush1.msra.mxu0 0.0
        %6605 = vmatprep.subr.mxu0 0.0
        %6606 = vmatpush1.msra.mxu0 0.0
        %6607 = vmatprep.subr.mxu0 0.0
        %6608 = vmatpush1.msra.mxu0 0.0
        %6609 = vmatprep.mubr.f32.mxu0 0.0
        %6610 = vmatmul.mubr.f32.gmra.mrb[0].mxu0 %v6540
        %v6611 = vpop.f32.mrb[0].mxu0
        %v6612 = vadd.f32 %v6538, %v6611
        %v6613 = vpop.f32.mrb[0].mxu0
        %6614 = vmatprep.mubr.f32.mxu0 0.0
        %6615 = vmatmul.mubr.f32.gmra.mrb[0].mxu0 %v6543
        %v6616 = vpop.f32.mrb[0].mxu0
        %v6617 = vadd.f32 %v6538, %v6616
        %v6618 = vpop.f32.mrb[0].mxu0
        %6619 = vdwg.mxu0
        %v6620 = vadd.f32 %v6053, %v6612
        %v6621 = vadd.f32 %v6054, %v6617
        %v6622 = vsel %vm381, %v6620, 0.0
        %6623 = vadd.xlane.f32.xlu0 %v6622
        %v6624 = vpop.xlane.xlu0 %6623
        %v6625 = vsel %vm381, %v6621, 0.0
        %6626 = vadd.xlane.f32.xlu0 %v6625
        %v6627 = vpop.xlane.xlu0 %6626
        %v6628 = vmul.f32 %v6624, %v907
        %v6629 = vmul.f32 %v6627, %v907
        %v6630 = vsub.f32 %v6620, %v6628
        %v6631 = vsub.f32 %v6621, %v6629
        %v6632 = vmul.f32 %v6630, %v6630
        %v6633 = vmul.f32 %v6631, %v6631
        %v6634 = vsel %vm381, %v6632, 0.0
        %6635 = vadd.xlane.f32.xlu0 %v6634
        %v6636 = vpop.xlane.xlu0 %6635
        %v6637 = vsel %vm381, %v6633, 0.0
        %6638 = vadd.xlane.f32.xlu0 %v6637
        %v6639 = vpop.xlane.xlu0 %6638
        %v6640 = vmul.f32 %v6636, %v907
        %v6641 = vmul.f32 %v6639, %v907
        %v6642 = vadd.f32 %v6640, 1e-05
        %v6643 = vadd.f32 %v6641, 1e-05
        %v6644 = vrsqrt.pop %v6642
        %v6645 = vrsqrt.pop %v6643
        %v6646 = vmul.f32 %v6630, %v6644
        %v6647 = vmul.f32 %v6631, %v6645
        %v6648 = vlaneseq
        %v6649 = vshrl.u32 %v6648, 7
        %v6650 = vsub.s32 0, %v6649
        %v6651 = vrot.slane %v6096, %v6650
        %v6652 = vmul.f32 %v6646, %v6651
        %v6653 = vmul.f32 %v6647, %v6651
        %v6654 = vlaneseq
        %v6655 = vshrl.u32 %v6654, 7
        %v6656 = vsub.s32 0, %v6655
        %v6657 = vrot.slane %v6097, %v6656
        %v6658 = vadd.f32 %v6652, %v6657
        %v6659 = vadd.f32 %v6653, %v6657
        %v6660 = vlaneseq
        %v6661 = vshrl.u32 %v6660, 7
        %v6662 = vsub.s32 0, %v6661
        %v6663 = vrot.slane %v6094, %v6662
        %v6665 = vsel %vm381, %v6658, 0
        %v6668 = vsel %vm381, %v6659, 0
        %6670 = vmatprep.subr.mxu0 0.0
        %6671 = vmatpush1.msra.mxu0 %v6076
        %6672 = vmatprep.subr.mxu0 0.0
        %6673 = vmatpush1.msra.mxu0 %v6077
        %6674 = vmatprep.subr.mxu0 0.0
        %6675 = vmatpush1.msra.mxu0 %v6078
        %6676 = vmatprep.subr.mxu0 0.0
        %6677 = vmatpush1.msra.mxu0 %v6079
        %6678 = vmatprep.subr.mxu0 0.0
        %6679 = vmatpush1.msra.mxu0 0.0
        %6680 = vmatprep.subr.mxu0 0.0
        %6681 = vmatpush1.msra.mxu0 0.0
        %6682 = vmatprep.subr.mxu0 0.0
        %6683 = vmatpush1.msra.mxu0 0.0
        %6684 = vmatprep.subr.mxu0 0.0
        %6685 = vmatpush1.msra.mxu0 0.0
        %6686 = vmatprep.subr.mxu0 0.0
        %6687 = vmatpush1.msra.mxu0 0.0
        %6688 = vmatprep.subr.mxu0 0.0
        %6689 = vmatpush1.msra.mxu0 0.0
        %6690 = vmatprep.subr.mxu0 0.0
        %6691 = vmatpush1.msra.mxu0 0.0
        %6692 = vmatprep.subr.mxu0 0.0
        %6693 = vmatpush1.msra.mxu0 0.0
        %6694 = vmatprep.subr.mxu0 0.0
        %6695 = vmatpush1.msra.mxu0 0.0
        %6696 = vmatprep.subr.mxu0 0.0
        %6697 = vmatpush1.msra.mxu0 0.0
        %6698 = vmatprep.subr.mxu0 0.0
        %6699 = vmatpush1.msra.mxu0 0.0
        %6700 = vmatprep.subr.mxu0 0.0
        %6701 = vmatpush1.msra.mxu0 0.0
        %6702 = vmatprep.subr.mxu0 0.0
        %6703 = vmatpush1.msra.mxu0 0.0
        %6704 = vmatprep.subr.mxu0 0.0
        %6705 = vmatpush1.msra.mxu0 0.0
        %6706 = vmatprep.subr.mxu0 0.0
        %6707 = vmatpush1.msra.mxu0 0.0
        %6708 = vmatprep.subr.mxu0 0.0
        %6709 = vmatpush1.msra.mxu0 0.0
        %6710 = vmatprep.subr.mxu0 0.0
        %6711 = vmatpush1.msra.mxu0 0.0
        %6712 = vmatprep.subr.mxu0 0.0
        %6713 = vmatpush1.msra.mxu0 0.0
        %6714 = vmatprep.subr.mxu0 0.0
        %6715 = vmatpush1.msra.mxu0 0.0
        %6716 = vmatprep.subr.mxu0 0.0
        %6717 = vmatpush1.msra.mxu0 0.0
        %6718 = vmatprep.subr.mxu0 0.0
        %6719 = vmatpush1.msra.mxu0 0.0
        %6720 = vmatprep.subr.mxu0 0.0
        %6721 = vmatpush1.msra.mxu0 0.0
        %6722 = vmatprep.subr.mxu0 0.0
        %6723 = vmatpush1.msra.mxu0 0.0
        %6724 = vmatprep.subr.mxu0 0.0
        %6725 = vmatpush1.msra.mxu0 0.0
        %6726 = vmatprep.subr.mxu0 0.0
        %6727 = vmatpush1.msra.mxu0 0.0
        %6728 = vmatprep.subr.mxu0 0.0
        %6729 = vmatpush1.msra.mxu0 0.0
        %6730 = vmatprep.subr.mxu0 0.0
        %6731 = vmatpush1.msra.mxu0 0.0
        %6732 = vmatprep.subr.mxu0 0.0
        %6733 = vmatpush1.msra.mxu0 0.0
        %6734 = vmatprep.mubr.f32.mxu0 0.0
        %6735 = vmatmul.mubr.f32.gmra.mrb[0].mxu0 %v6665
        %v6736 = vpop.f32.mrb[0].mxu0
        %v6737 = vadd.f32 %v6663, %v6736
        %v6738 = vpop.f32.mrb[0].mxu0
        %6739 = vmatprep.mubr.f32.mxu0 0.0
        %6740 = vmatmul.mubr.f32.gmra.mrb[0].mxu0 %v6668
        %v6741 = vpop.f32.mrb[0].mxu0
        %v6742 = vadd.f32 %v6663, %v6741
        %v6743 = vpop.f32.mrb[0].mxu0
        %6744 = vdwg.mxu0
        %v6745 = vmax.f32 %v6737, 0.0
        %v6746 = vmax.f32 %v6742, 0.0
        %v6747 = vlaneseq
        %v6748 = vshrl.u32 %v6747, 7
        %v6749 = vsub.s32 0, %v6748
        %v6750 = vrot.slane %v6095, %v6749
        %v6752 = vsel %vm1031, %v6745, 0
        %v6755 = vsel %vm1031, %v6746, 0
        %6757 = vmatprep.subr.mxu0 0.0
        %6758 = vmatpush1.msra.mxu0 %v6081
        %6759 = vmatprep.subr.mxu0 0.0
        %6760 = vmatpush1.msra.mxu0 %v6082
        %6761 = vmatprep.subr.mxu0 0.0
        %6762 = vmatpush1.msra.mxu0 %v6083
        %6763 = vmatprep.subr.mxu0 0.0
        %6764 = vmatpush1.msra.mxu0 %v6084
        %6765 = vmatprep.subr.mxu0 0.0
        %6766 = vmatpush1.msra.mxu0 %v6085
        %6767 = vmatprep.subr.mxu0 0.0
        %6768 = vmatpush1.msra.mxu0 %v6086
        %6769 = vmatprep.subr.mxu0 0.0
        %6770 = vmatpush1.msra.mxu0 %v6087
        %6771 = vmatprep.subr.mxu0 0.0
        %6772 = vmatpush1.msra.mxu0 %v6088
        %6773 = vmatprep.subr.mxu0 0.0
        %6774 = vmatpush1.msra.mxu0 0.0
        %6775 = vmatprep.subr.mxu0 0.0
        %6776 = vmatpush1.msra.mxu0 0.0
        %6777 = vmatprep.subr.mxu0 0.0
        %6778 = vmatpush1.msra.mxu0 0.0
        %6779 = vmatprep.subr.mxu0 0.0
        %6780 = vmatpush1.msra.mxu0 0.0
        %6781 = vmatprep.subr.mxu0 0.0
        %6782 = vmatpush1.msra.mxu0 0.0
        %6783 = vmatprep.subr.mxu0 0.0
        %6784 = vmatpush1.msra.mxu0 0.0
        %6785 = vmatprep.subr.mxu0 0.0
        %6786 = vmatpush1.msra.mxu0 0.0
        %6787 = vmatprep.subr.mxu0 0.0
        %6788 = vmatpush1.msra.mxu0 0.0
        %6789 = vmatprep.subr.mxu0 0.0
        %6790 = vmatpush1.msra.mxu0 0.0
        %6791 = vmatprep.subr.mxu0 0.0
        %6792 = vmatpush1.msra.mxu0 0.0
        %6793 = vmatprep.subr.mxu0 0.0
        %6794 = vmatpush1.msra.mxu0 0.0
        %6795 = vmatprep.subr.mxu0 0.0
        %6796 = vmatpush1.msra.mxu0 0.0
        %6797 = vmatprep.subr.mxu0 0.0
        %6798 = vmatpush1.msra.mxu0 0.0
        %6799 = vmatprep.subr.mxu0 0.0
        %6800 = vmatpush1.msra.mxu0 0.0
        %6801 = vmatprep.subr.mxu0 0.0
        %6802 = vmatpush1.msra.mxu0 0.0
        %6803 = vmatprep.subr.mxu0 0.0
        %6804 = vmatpush1.msra.mxu0 0.0
        %6805 = vmatprep.subr.mxu0 0.0
        %6806 = vmatpush1.msra.mxu0 0.0
        %6807 = vmatprep.subr.mxu0 0.0
        %6808 = vmatpush1.msra.mxu0 0.0
        %6809 = vmatprep.subr.mxu0 0.0
        %6810 = vmatpush1.msra.mxu0 0.0
        %6811 = vmatprep.subr.mxu0 0.0
        %6812 = vmatpush1.msra.mxu0 0.0
        %6813 = vmatprep.subr.mxu0 0.0
        %6814 = vmatpush1.msra.mxu0 0.0
        %6815 = vmatprep.subr.mxu0 0.0
        %6816 = vmatpush1.msra.mxu0 0.0
        %6817 = vmatprep.subr.mxu0 0.0
        %6818 = vmatpush1.msra.mxu0 0.0
        %6819 = vmatprep.subr.mxu0 0.0
        %6820 = vmatpush1.msra.mxu0 0.0
        %6821 = vmatprep.mubr.f32.mxu0 0.0
        %6822 = vmatmul.mubr.f32.gmra.mrb[0].mxu0 %v6752
        %v6823 = vpop.f32.mrb[0].mxu0
        %v6824 = vadd.f32 %v6750, %v6823
        %v6825 = vpop.f32.mrb[0].mxu0
        %6826 = vmatprep.mubr.f32.mxu0 0.0
        %6827 = vmatmul.mubr.f32.gmra.mrb[0].mxu0 %v6755
        %v6828 = vpop.f32.mrb[0].mxu0
        %v6829 = vadd.f32 %v6750, %v6828
        %v6830 = vpop.f32.mrb[0].mxu0
        %6831 = vdwg.mxu0
        %v6832 = vadd.f32 %v6658, %v6824
        %v6833 = vadd.f32 %v6659, %v6829
        %v6834 = vsel %vm381, %v6832, 0.0
        %6835 = vadd.xlane.f32.xlu0 %v6834
        %v6836 = vpop.xlane.xlu0 %6835
        %v6837 = vsel %vm381, %v6833, 0.0
        %6838 = vadd.xlane.f32.xlu0 %v6837
        %v6839 = vpop.xlane.xlu0 %6838
        %v6840 = vmul.f32 %v6836, %v907
        %v6841 = vmul.f32 %v6839, %v907
        %v6842 = vsub.f32 %v6832, %v6840
        %v6843 = vsub.f32 %v6833, %v6841
        %v6844 = vmul.f32 %v6842, %v6842
        %v6845 = vmul.f32 %v6843, %v6843
        %v6846 = vsel %vm381, %v6844, 0.0
        %6847 = vadd.xlane.f32.xlu0 %v6846
        %v6848 = vpop.xlane.xlu0 %6847
        %v6849 = vsel %vm381, %v6845, 0.0
        %6850 = vadd.xlane.f32.xlu0 %v6849
        %v6851 = vpop.xlane.xlu0 %6850
        %v6852 = vmul.f32 %v6848, %v907
        %v6853 = vmul.f32 %v6851, %v907
        %v6854 = vadd.f32 %v6852, 1e-05
        %v6855 = vadd.f32 %v6853, 1e-05
        %v6856 = vrsqrt.pop %v6854
        %v6857 = vrsqrt.pop %v6855
        %v6858 = vmul.f32 %v6842, %v6856
        %v6859 = vmul.f32 %v6843, %v6857
        %v6860 = vlaneseq
        %v6861 = vshrl.u32 %v6860, 7
        %v6862 = vsub.s32 0, %v6861
        %v6863 = vrot.slane %v6098, %v6862
        %v6864 = vmul.f32 %v6858, %v6863
        %v6865 = vmul.f32 %v6859, %v6863
        %v6866 = vlaneseq
        %v6867 = vshrl.u32 %v6866, 7
        %v6868 = vsub.s32 0, %v6867
        %v6869 = vrot.slane %v6099, %v6868
        %v6870 = vadd.f32 %v6864, %v6869
        %v6871 = vadd.f32 %v6865, %v6869
        %s6872 = scalar_lea.vmem %s2, 256
        %v6873 = vld [vmem:[%s6872] sm:$0xff]
        %v6874 = vld [vmem:[%s6872 + $0x8] sm:$0xff]
        %v6875 = vld [vmem:[%s6872 + $0x10] sm:$0xff]
        %v6876 = vld [vmem:[%s6872 + $0x18] sm:$0xff]
        %s6877 = scalar_lea.vmem %s3, 256
        %v6878 = vld [vmem:[%s6877] sm:$0xff]
        %v6879 = vld [vmem:[%s6877 + $0x8] sm:$0xff]
        %v6880 = vld [vmem:[%s6877 + $0x10] sm:$0xff]
        %v6881 = vld [vmem:[%s6877 + $0x18] sm:$0xff]
        %s6882 = scalar_lea.vmem %s4, 256
        %v6883 = vld [vmem:[%s6882] sm:$0xff]
        %v6884 = vld [vmem:[%s6882 + $0x8] sm:$0xff]
        %v6885 = vld [vmem:[%s6882 + $0x10] sm:$0xff]
        %v6886 = vld [vmem:[%s6882 + $0x18] sm:$0xff]
        %s6887 = scalar_lea.vmem %s5, 256
        %v6888 = vld [vmem:[%s6887] sm:$0xff]
        %v6889 = vld [vmem:[%s6887 + $0x8] sm:$0xff]
        %v6890 = vld [vmem:[%s6887 + $0x10] sm:$0xff]
        %v6891 = vld [vmem:[%s6887 + $0x18] sm:$0xff]
        %s6892 = scalar_lea.vmem %s6, 256
        %v6893 = vld [vmem:[%s6892] sm:$0xff]
        %v6894 = vld [vmem:[%s6892 + $0x8] sm:$0xff]
        %v6895 = vld [vmem:[%s6892 + $0x10] sm:$0xff]
        %v6896 = vld [vmem:[%s6892 + $0x18] sm:$0xff]
        %s6897 = scalar_lea.vmem %s7, 512
        %v6898 = vld [vmem:[%s6897] sm:$0xff]
        %v6899 = vld [vmem:[%s6897 + $0x8] sm:$0xff]
        %v6900 = vld [vmem:[%s6897 + $0x10] sm:$0xff]
        %v6901 = vld [vmem:[%s6897 + $0x18] sm:$0xff]
        %v6902 = vld [vmem:[%s6897 + $0x20] sm:$0xff]
        %v6903 = vld [vmem:[%s6897 + $0x28] sm:$0xff]
        %v6904 = vld [vmem:[%s6897 + $0x30] sm:$0xff]
        %v6905 = vld [vmem:[%s6897 + $0x38] sm:$0xff]
        %s6906 = scalar_lea.vmem %s8, 128
        %v6907 = vld [vmem:[%s6906] sm:$0x1]
        %v6908 = vld [vmem:[%s6906 + $0x1] sm:$0x1]
        %v6909 = vld [vmem:[%s6906 + $0x2] sm:$0x1]
        %v6910 = vld [vmem:[%s6906 + $0x3] sm:$0x1]
        %v6911 = vld [vmem:[%s6906 + $0x4] sm:$0x1]
        %v6912 = vld [vmem:[%s6906 + $0x5] sm:$0x1]
        %v6913 = vld [vmem:[%s6906 + $0x6] sm:$0x1]
        %v6914 = vld [vmem:[%s6906 + $0x7] sm:$0x1]
        %v6915 = vld [vmem:[%s6906 + $0x8] sm:$0x1]
        %v6916 = vld [vmem:[%s6906 + $0x9] sm:$0x1]
        %v6917 = vlaneseq
        %v6918 = vshrl.u32 %v6917, 7
        %v6919 = vsub.s32 0, %v6918
        %v6920 = vrot.slane %v6907, %v6919
        %v6922 = vsel %vm381, %v6870, 0
        %v6925 = vsel %vm381, %v6871, 0
        %6927 = vmatprep.subr.mxu0 0.0
        %6928 = vmatpush1.msra.mxu0 %v6873
        %6929 = vmatprep.subr.mxu0 0.0
        %6930 = vmatpush1.msra.mxu0 %v6874
        %6931 = vmatprep.subr.mxu0 0.0
        %6932 = vmatpush1.msra.mxu0 %v6875
        %6933 = vmatprep.subr.mxu0 0.0
        %6934 = vmatpush1.msra.mxu0 %v6876
        %6935 = vmatprep.subr.mxu0 0.0
        %6936 = vmatpush1.msra.mxu0 0.0
        %6937 = vmatprep.subr.mxu0 0.0
        %6938 = vmatpush1.msra.mxu0 0.0
        %6939 = vmatprep.subr.mxu0 0.0
        %6940 = vmatpush1.msra.mxu0 0.0
        %6941 = vmatprep.subr.mxu0 0.0
        %6942 = vmatpush1.msra.mxu0 0.0
        %6943 = vmatprep.subr.mxu0 0.0
        %6944 = vmatpush1.msra.mxu0 0.0
        %6945 = vmatprep.subr.mxu0 0.0
        %6946 = vmatpush1.msra.mxu0 0.0
        %6947 = vmatprep.subr.mxu0 0.0
        %6948 = vmatpush1.msra.mxu0 0.0
        %6949 = vmatprep.subr.mxu0 0.0
        %6950 = vmatpush1.msra.mxu0 0.0
        %6951 = vmatprep.subr.mxu0 0.0
        %6952 = vmatpush1.msra.mxu0 0.0
        %6953 = vmatprep.subr.mxu0 0.0
        %6954 = vmatpush1.msra.mxu0 0.0
        %6955 = vmatprep.subr.mxu0 0.0
        %6956 = vmatpush1.msra.mxu0 0.0
        %6957 = vmatprep.subr.mxu0 0.0
        %6958 = vmatpush1.msra.mxu0 0.0
        %6959 = vmatprep.subr.mxu0 0.0
        %6960 = vmatpush1.msra.mxu0 0.0
        %6961 = vmatprep.subr.mxu0 0.0
        %6962 = vmatpush1.msra.mxu0 0.0
        %6963 = vmatprep.subr.mxu0 0.0
        %6964 = vmatpush1.msra.mxu0 0.0
        %6965 = vmatprep.subr.mxu0 0.0
        %6966 = vmatpush1.msra.mxu0 0.0
        %6967 = vmatprep.subr.mxu0 0.0
        %6968 = vmatpush1.msra.mxu0 0.0
        %6969 = vmatprep.subr.mxu0 0.0
        %6970 = vmatpush1.msra.mxu0 0.0
        %6971 = vmatprep.subr.mxu0 0.0
        %6972 = vmatpush1.msra.mxu0 0.0
        %6973 = vmatprep.subr.mxu0 0.0
        %6974 = vmatpush1.msra.mxu0 0.0
        %6975 = vmatprep.subr.mxu0 0.0
        %6976 = vmatpush1.msra.mxu0 0.0
        %6977 = vmatprep.subr.mxu0 0.0
        %6978 = vmatpush1.msra.mxu0 0.0
        %6979 = vmatprep.subr.mxu0 0.0
        %6980 = vmatpush1.msra.mxu0 0.0
        %6981 = vmatprep.subr.mxu0 0.0
        %6982 = vmatpush1.msra.mxu0 0.0
        %6983 = vmatprep.subr.mxu0 0.0
        %6984 = vmatpush1.msra.mxu0 0.0
        %6985 = vmatprep.subr.mxu0 0.0
        %6986 = vmatpush1.msra.mxu0 0.0
        %6987 = vmatprep.subr.mxu0 0.0
        %6988 = vmatpush1.msra.mxu0 0.0
        %6989 = vmatprep.subr.mxu0 0.0
        %6990 = vmatpush1.msra.mxu0 0.0
        %6991 = vmatprep.mubr.f32.mxu0 0.0
        %6992 = vmatmul.mubr.f32.gmra.mrb[0].mxu0 %v6922
        %v6993 = vpop.f32.mrb[0].mxu0
        %v6994 = vadd.f32 %v6920, %v6993
        %v6995 = vpop.f32.mrb[0].mxu0
        %6996 = vmatprep.mubr.f32.mxu0 0.0
        %6997 = vmatmul.mubr.f32.gmra.mrb[0].mxu0 %v6925
        %v6998 = vpop.f32.mrb[0].mxu0
        %v6999 = vadd.f32 %v6920, %v6998
        %v7000 = vpop.f32.mrb[0].mxu0
        %7001 = vdwg.mxu0
        %v7002 = vlaneseq
        %v7003 = vshrl.u32 %v7002, 7
        %v7004 = vsub.s32 0, %v7003
        %v7005 = vrot.slane %v6908, %v7004
        %7006 = vmatprep.subr.mxu0 0.0
        %7007 = vmatpush1.msra.mxu0 %v6878
        %7008 = vmatprep.subr.mxu0 0.0
        %7009 = vmatpush1.msra.mxu0 %v6879
        %7010 = vmatprep.subr.mxu0 0.0
        %7011 = vmatpush1.msra.mxu0 %v6880
        %7012 = vmatprep.subr.mxu0 0.0
        %7013 = vmatpush1.msra.mxu0 %v6881
        %7014 = vmatprep.subr.mxu0 0.0
        %7015 = vmatpush1.msra.mxu0 0.0
        %7016 = vmatprep.subr.mxu0 0.0
        %7017 = vmatpush1.msra.mxu0 0.0
        %7018 = vmatprep.subr.mxu0 0.0
        %7019 = vmatpush1.msra.mxu0 0.0
        %7020 = vmatprep.subr.mxu0 0.0
        %7021 = vmatpush1.msra.mxu0 0.0
        %7022 = vmatprep.subr.mxu0 0.0
        %7023 = vmatpush1.msra.mxu0 0.0
        %7024 = vmatprep.subr.mxu0 0.0
        %7025 = vmatpush1.msra.mxu0 0.0
        %7026 = vmatprep.subr.mxu0 0.0
        %7027 = vmatpush1.msra.mxu0 0.0
        %7028 = vmatprep.subr.mxu0 0.0
        %7029 = vmatpush1.msra.mxu0 0.0
        %7030 = vmatprep.subr.mxu0 0.0
        %7031 = vmatpush1.msra.mxu0 0.0
        %7032 = vmatprep.subr.mxu0 0.0
        %7033 = vmatpush1.msra.mxu0 0.0
        %7034 = vmatprep.subr.mxu0 0.0
        %7035 = vmatpush1.msra.mxu0 0.0
        %7036 = vmatprep.subr.mxu0 0.0
        %7037 = vmatpush1.msra.mxu0 0.0
        %7038 = vmatprep.subr.mxu0 0.0
        %7039 = vmatpush1.msra.mxu0 0.0
        %7040 = vmatprep.subr.mxu0 0.0
        %7041 = vmatpush1.msra.mxu0 0.0
        %7042 = vmatprep.subr.mxu0 0.0
        %7043 = vmatpush1.msra.mxu0 0.0
        %7044 = vmatprep.subr.mxu0 0.0
        %7045 = vmatpush1.msra.mxu0 0.0
        %7046 = vmatprep.subr.mxu0 0.0
        %7047 = vmatpush1.msra.mxu0 0.0
        %7048 = vmatprep.subr.mxu0 0.0
        %7049 = vmatpush1.msra.mxu0 0.0
        %7050 = vmatprep.subr.mxu0 0.0
        %7051 = vmatpush1.msra.mxu0 0.0
        %7052 = vmatprep.subr.mxu0 0.0
        %7053 = vmatpush1.msra.mxu0 0.0
        %7054 = vmatprep.subr.mxu0 0.0
        %7055 = vmatpush1.msra.mxu0 0.0
        %7056 = vmatprep.subr.mxu0 0.0
        %7057 = vmatpush1.msra.mxu0 0.0
        %7058 = vmatprep.subr.mxu0 0.0
        %7059 = vmatpush1.msra.mxu0 0.0
        %7060 = vmatprep.subr.mxu0 0.0
        %7061 = vmatpush1.msra.mxu0 0.0
        %7062 = vmatprep.subr.mxu0 0.0
        %7063 = vmatpush1.msra.mxu0 0.0
        %7064 = vmatprep.subr.mxu0 0.0
        %7065 = vmatpush1.msra.mxu0 0.0
        %7066 = vmatprep.subr.mxu0 0.0
        %7067 = vmatpush1.msra.mxu0 0.0
        %7068 = vmatprep.subr.mxu0 0.0
        %7069 = vmatpush1.msra.mxu0 0.0
        %7070 = vmatprep.mubr.f32.mxu0 0.0
        %7071 = vmatmul.mubr.f32.gmra.mrb[0].mxu0 %v6922
        %v7072 = vpop.f32.mrb[0].mxu0
        %v7073 = vadd.f32 %v7005, %v7072
        %v7074 = vpop.f32.mrb[0].mxu0
        %7075 = vmatprep.mubr.f32.mxu0 0.0
        %7076 = vmatmul.mubr.f32.gmra.mrb[0].mxu0 %v6925
        %v7077 = vpop.f32.mrb[0].mxu0
        %v7078 = vadd.f32 %v7005, %v7077
        %v7079 = vpop.f32.mrb[0].mxu0
        %7080 = vdwg.mxu0
        %v7081 = vlaneseq
        %v7082 = vshrl.u32 %v7081, 7
        %v7083 = vsub.s32 0, %v7082
        %v7084 = vrot.slane %v6909, %v7083
        %7085 = vmatprep.subr.mxu0 0.0
        %7086 = vmatpush1.msra.mxu0 %v6883
        %7087 = vmatprep.subr.mxu0 0.0
        %7088 = vmatpush1.msra.mxu0 %v6884
        %7089 = vmatprep.subr.mxu0 0.0
        %7090 = vmatpush1.msra.mxu0 %v6885
        %7091 = vmatprep.subr.mxu0 0.0
        %7092 = vmatpush1.msra.mxu0 %v6886
        %7093 = vmatprep.subr.mxu0 0.0
        %7094 = vmatpush1.msra.mxu0 0.0
        %7095 = vmatprep.subr.mxu0 0.0
        %7096 = vmatpush1.msra.mxu0 0.0
        %7097 = vmatprep.subr.mxu0 0.0
        %7098 = vmatpush1.msra.mxu0 0.0
        %7099 = vmatprep.subr.mxu0 0.0
        %7100 = vmatpush1.msra.mxu0 0.0
        %7101 = vmatprep.subr.mxu0 0.0
        %7102 = vmatpush1.msra.mxu0 0.0
        %7103 = vmatprep.subr.mxu0 0.0
        %7104 = vmatpush1.msra.mxu0 0.0
        %7105 = vmatprep.subr.mxu0 0.0
        %7106 = vmatpush1.msra.mxu0 0.0
        %7107 = vmatprep.subr.mxu0 0.0
        %7108 = vmatpush1.msra.mxu0 0.0
        %7109 = vmatprep.subr.mxu0 0.0
        %7110 = vmatpush1.msra.mxu0 0.0
        %7111 = vmatprep.subr.mxu0 0.0
        %7112 = vmatpush1.msra.mxu0 0.0
        %7113 = vmatprep.subr.mxu0 0.0
        %7114 = vmatpush1.msra.mxu0 0.0
        %7115 = vmatprep.subr.mxu0 0.0
        %7116 = vmatpush1.msra.mxu0 0.0
        %7117 = vmatprep.subr.mxu0 0.0
        %7118 = vmatpush1.msra.mxu0 0.0
        %7119 = vmatprep.subr.mxu0 0.0
        %7120 = vmatpush1.msra.mxu0 0.0
        %7121 = vmatprep.subr.mxu0 0.0
        %7122 = vmatpush1.msra.mxu0 0.0
        %7123 = vmatprep.subr.mxu0 0.0
        %7124 = vmatpush1.msra.mxu0 0.0
        %7125 = vmatprep.subr.mxu0 0.0
        %7126 = vmatpush1.msra.mxu0 0.0
        %7127 = vmatprep.subr.mxu0 0.0
        %7128 = vmatpush1.msra.mxu0 0.0
        %7129 = vmatprep.subr.mxu0 0.0
        %7130 = vmatpush1.msra.mxu0 0.0
        %7131 = vmatprep.subr.mxu0 0.0
        %7132 = vmatpush1.msra.mxu0 0.0
        %7133 = vmatprep.subr.mxu0 0.0
        %7134 = vmatpush1.msra.mxu0 0.0
        %7135 = vmatprep.subr.mxu0 0.0
        %7136 = vmatpush1.msra.mxu0 0.0
        %7137 = vmatprep.subr.mxu0 0.0
        %7138 = vmatpush1.msra.mxu0 0.0
        %7139 = vmatprep.subr.mxu0 0.0
        %7140 = vmatpush1.msra.mxu0 0.0
        %7141 = vmatprep.subr.mxu0 0.0
        %7142 = vmatpush1.msra.mxu0 0.0
        %7143 = vmatprep.subr.mxu0 0.0
        %7144 = vmatpush1.msra.mxu0 0.0
        %7145 = vmatprep.subr.mxu0 0.0
        %7146 = vmatpush1.msra.mxu0 0.0
        %7147 = vmatprep.subr.mxu0 0.0
        %7148 = vmatpush1.msra.mxu0 0.0
        %7149 = vmatprep.mubr.f32.mxu0 0.0
        %7150 = vmatmul.mubr.f32.gmra.mrb[0].mxu0 %v6922
        %v7151 = vpop.f32.mrb[0].mxu0
        %v7152 = vadd.f32 %v7084, %v7151
        %v7153 = vpop.f32.mrb[0].mxu0
        %7154 = vmatprep.mubr.f32.mxu0 0.0
        %7155 = vmatmul.mubr.f32.gmra.mrb[0].mxu0 %v6925
        %v7156 = vpop.f32.mrb[0].mxu0
        %v7157 = vadd.f32 %v7084, %v7156
        %v7158 = vpop.f32.mrb[0].mxu0
        %7159 = vdwg.mxu0
        %v7161 = vsel %vm381, %v6994, 0
        %v7164 = vsel %vm381, %v6999, 0
        %v7167 = vsel %vm381, %v7073, 0
        %v7170 = vsel %vm381, %v7078, 0
        %7172 = vmatprep.subr.mxu0 0.0
        %7173 = vmatpush1.xpose.msra.mxu0 %v7167
        %7174 = vmatprep.subr.mxu0 0.0
        %7175 = vmatpush1.xpose.msra.mxu0 %v7170
        %7176 = vmatprep.subr.mxu0 0.0
        %7177 = vmatpush1.xpose.msra.mxu0 0.0
        %7178 = vmatprep.subr.mxu0 0.0
        %7179 = vmatpush1.xpose.msra.mxu0 0.0
        %7180 = vmatprep.subr.mxu0 0.0
        %7181 = vmatpush1.xpose.msra.mxu0 0.0
        %7182 = vmatprep.subr.mxu0 0.0
        %7183 = vmatpush1.xpose.msra.mxu0 0.0
        %7184 = vmatprep.subr.mxu0 0.0
        %7185 = vmatpush1.xpose.msra.mxu0 0.0
        %7186 = vmatprep.subr.mxu0 0.0
        %7187 = vmatpush1.xpose.msra.mxu0 0.0
        %7188 = vmatprep.subr.mxu0 0.0
        %7189 = vmatpush1.xpose.msra.mxu0 0.0
        %7190 = vmatprep.subr.mxu0 0.0
        %7191 = vmatpush1.xpose.msra.mxu0 0.0
        %7192 = vmatprep.subr.mxu0 0.0
        %7193 = vmatpush1.xpose.msra.mxu0 0.0
        %7194 = vmatprep.subr.mxu0 0.0
        %7195 = vmatpush1.xpose.msra.mxu0 0.0
        %7196 = vmatprep.subr.mxu0 0.0
        %7197 = vmatpush1.xpose.msra.mxu0 0.0
        %7198 = vmatprep.subr.mxu0 0.0
        %7199 = vmatpush1.xpose.msra.mxu0 0.0
        %7200 = vmatprep.subr.mxu0 0.0
        %7201 = vmatpush1.xpose.msra.mxu0 0.0
        %7202 = vmatprep.subr.mxu0 0.0
        %7203 = vmatpush1.xpose.msra.mxu0 0.0
        %7204 = vmatprep.subr.mxu0 0.0
        %7205 = vmatpush1.xpose.msra.mxu0 0.0
        %7206 = vmatprep.subr.mxu0 0.0
        %7207 = vmatpush1.xpose.msra.mxu0 0.0
        %7208 = vmatprep.subr.mxu0 0.0
        %7209 = vmatpush1.xpose.msra.mxu0 0.0
        %7210 = vmatprep.subr.mxu0 0.0
        %7211 = vmatpush1.xpose.msra.mxu0 0.0
        %7212 = vmatprep.subr.mxu0 0.0
        %7213 = vmatpush1.xpose.msra.mxu0 0.0
        %7214 = vmatprep.subr.mxu0 0.0
        %7215 = vmatpush1.xpose.msra.mxu0 0.0
        %7216 = vmatprep.subr.mxu0 0.0
        %7217 = vmatpush1.xpose.msra.mxu0 0.0
        %7218 = vmatprep.subr.mxu0 0.0
        %7219 = vmatpush1.xpose.msra.mxu0 0.0
        %7220 = vmatprep.subr.mxu0 0.0
        %7221 = vmatpush1.xpose.msra.mxu0 0.0
        %7222 = vmatprep.subr.mxu0 0.0
        %7223 = vmatpush1.xpose.msra.mxu0 0.0
        %7224 = vmatprep.subr.mxu0 0.0
        %7225 = vmatpush1.xpose.msra.mxu0 0.0
        %7226 = vmatprep.subr.mxu0 0.0
        %7227 = vmatpush1.xpose.msra.mxu0 0.0
        %7228 = vmatprep.subr.mxu0 0.0
        %7229 = vmatpush1.xpose.msra.mxu0 0.0
        %7230 = vmatprep.subr.mxu0 0.0
        %7231 = vmatpush1.xpose.msra.mxu0 0.0
        %7232 = vmatprep.subr.mxu0 0.0
        %7233 = vmatpush1.xpose.msra.mxu0 0.0
        %7234 = vmatprep.subr.mxu0 0.0
        %7235 = vmatpush1.xpose.msra.mxu0 0.0
        %7236 = vmatprep.mubr.f32.mxu0 0.0
        %7237 = vmatmul.mubr.f32.gmra.mrb[0].mxu0 %v7161
        %v7238 = vpop.f32.mrb[0].mxu0
        %v7239 = vadd.f32 0.0, %v7238
        %v7240 = vpop.f32.mrb[0].mxu0
        %7241 = vmatprep.mubr.f32.mxu0 0.0
        %7242 = vmatmul.mubr.f32.gmra.mrb[0].mxu0 %v7164
        %v7243 = vpop.f32.mrb[0].mxu0
        %v7244 = vadd.f32 0.0, %v7243
        %v7245 = vpop.f32.mrb[0].mxu0
        %7246 = vdwg.mxu0
        %v7247 = vmul.f32 %v7239, 0.17677669
        %v7248 = vmul.f32 %v7244, 0.17677669
        %v7249 = vsel %vm710, %v7247, -inf
        %7250 = vmax.xlane.f32.xlu0 %v7249
        %v7251 = vpop.xlane.xlu0 %7250
        %v7252 = vsel %vm710, %v7248, -inf
        %7253 = vmax.xlane.f32.xlu0 %v7252
        %v7254 = vpop.xlane.xlu0 %7253
        %v7255 = vsub.f32 %v7247, %v7251
        %v7256 = vsub.f32 %v7248, %v7254
        %v7257 = vmul.f32 %v7255, 1.442695
        %v7258 = vpow.pop %v7257
        %v7259 = vmul.f32 %v7256, 1.442695
        %v7260 = vpow.pop %v7259
        %v7261 = vsel %vm710, %v7258, 0.0
        %7262 = vadd.xlane.f32.xlu0 %v7261
        %v7263 = vpop.xlane.xlu0 %7262
        %v7264 = vsel %vm710, %v7260, 0.0
        %7265 = vadd.xlane.f32.xlu0 %v7264
        %v7266 = vpop.xlane.xlu0 %7265
        %v7267 = vrcp.pop %v7263
        %v7268 = vrcp.pop %v7266
        %v7269 = vmul.f32 %v7258, %v7267
        %v7270 = vmul.f32 %v7260, %v7268
        %v7272 = vsel %vm710, %v7269, 0
        %v7275 = vsel %vm710, %v7270, 0
        %7277 = vmatprep.subr.mxu0 0.0
        %7278 = vmatpush1.msra.mxu0 %v7152
        %7279 = vmatprep.subr.mxu0 0.0
        %7280 = vmatpush1.msra.mxu0 %v7157
        %7281 = vmatprep.subr.mxu0 0.0
        %7282 = vmatpush1.msra.mxu0 0.0
        %7283 = vmatprep.subr.mxu0 0.0
        %7284 = vmatpush1.msra.mxu0 0.0
        %7285 = vmatprep.subr.mxu0 0.0
        %7286 = vmatpush1.msra.mxu0 0.0
        %7287 = vmatprep.subr.mxu0 0.0
        %7288 = vmatpush1.msra.mxu0 0.0
        %7289 = vmatprep.subr.mxu0 0.0
        %7290 = vmatpush1.msra.mxu0 0.0
        %7291 = vmatprep.subr.mxu0 0.0
        %7292 = vmatpush1.msra.mxu0 0.0
        %7293 = vmatprep.subr.mxu0 0.0
        %7294 = vmatpush1.msra.mxu0 0.0
        %7295 = vmatprep.subr.mxu0 0.0
        %7296 = vmatpush1.msra.mxu0 0.0
        %7297 = vmatprep.subr.mxu0 0.0
        %7298 = vmatpush1.msra.mxu0 0.0
        %7299 = vmatprep.subr.mxu0 0.0
        %7300 = vmatpush1.msra.mxu0 0.0
        %7301 = vmatprep.subr.mxu0 0.0
        %7302 = vmatpush1.msra.mxu0 0.0
        %7303 = vmatprep.subr.mxu0 0.0
        %7304 = vmatpush1.msra.mxu0 0.0
        %7305 = vmatprep.subr.mxu0 0.0
        %7306 = vmatpush1.msra.mxu0 0.0
        %7307 = vmatprep.subr.mxu0 0.0
        %7308 = vmatpush1.msra.mxu0 0.0
        %7309 = vmatprep.subr.mxu0 0.0
        %7310 = vmatpush1.msra.mxu0 0.0
        %7311 = vmatprep.subr.mxu0 0.0
        %7312 = vmatpush1.msra.mxu0 0.0
        %7313 = vmatprep.subr.mxu0 0.0
        %7314 = vmatpush1.msra.mxu0 0.0
        %7315 = vmatprep.subr.mxu0 0.0
        %7316 = vmatpush1.msra.mxu0 0.0
        %7317 = vmatprep.subr.mxu0 0.0
        %7318 = vmatpush1.msra.mxu0 0.0
        %7319 = vmatprep.subr.mxu0 0.0
        %7320 = vmatpush1.msra.mxu0 0.0
        %7321 = vmatprep.subr.mxu0 0.0
        %7322 = vmatpush1.msra.mxu0 0.0
        %7323 = vmatprep.subr.mxu0 0.0
        %7324 = vmatpush1.msra.mxu0 0.0
        %7325 = vmatprep.subr.mxu0 0.0
        %7326 = vmatpush1.msra.mxu0 0.0
        %7327 = vmatprep.subr.mxu0 0.0
        %7328 = vmatpush1.msra.mxu0 0.0
        %7329 = vmatprep.subr.mxu0 0.0
        %7330 = vmatpush1.msra.mxu0 0.0
        %7331 = vmatprep.subr.mxu0 0.0
        %7332 = vmatpush1.msra.mxu0 0.0
        %7333 = vmatprep.subr.mxu0 0.0
        %7334 = vmatpush1.msra.mxu0 0.0
        %7335 = vmatprep.subr.mxu0 0.0
        %7336 = vmatpush1.msra.mxu0 0.0
        %7337 = vmatprep.subr.mxu0 0.0
        %7338 = vmatpush1.msra.mxu0 0.0
        %7339 = vmatprep.subr.mxu0 0.0
        %7340 = vmatpush1.msra.mxu0 0.0
        %7341 = vmatprep.mubr.f32.mxu0 0.0
        %7342 = vmatmul.mubr.f32.gmra.mrb[0].mxu0 %v7272
        %v7343 = vpop.f32.mrb[0].mxu0
        %v7344 = vadd.f32 0.0, %v7343
        %v7345 = vpop.f32.mrb[0].mxu0
        %7346 = vmatprep.mubr.f32.mxu0 0.0
        %7347 = vmatmul.mubr.f32.gmra.mrb[0].mxu0 %v7275
        %v7348 = vpop.f32.mrb[0].mxu0
        %v7349 = vadd.f32 0.0, %v7348
        %v7350 = vpop.f32.mrb[0].mxu0
        %7351 = vdwg.mxu0
        %v7352 = vlaneseq
        %v7353 = vshrl.u32 %v7352, 7
        %v7354 = vsub.s32 0, %v7353
        %v7355 = vrot.slane %v6910, %v7354
        %v7357 = vsel %vm381, %v7344, 0
        %v7360 = vsel %vm381, %v7349, 0
        %7362 = vmatprep.subr.mxu0 0.0
        %7363 = vmatpush1.msra.mxu0 %v6888
        %7364 = vmatprep.subr.mxu0 0.0
        %7365 = vmatpush1.msra.mxu0 %v6889
        %7366 = vmatprep.subr.mxu0 0.0
        %7367 = vmatpush1.msra.mxu0 %v6890
        %7368 = vmatprep.subr.mxu0 0.0
        %7369 = vmatpush1.msra.mxu0 %v6891
        %7370 = vmatprep.subr.mxu0 0.0
        %7371 = vmatpush1.msra.mxu0 0.0
        %7372 = vmatprep.subr.mxu0 0.0
        %7373 = vmatpush1.msra.mxu0 0.0
        %7374 = vmatprep.subr.mxu0 0.0
        %7375 = vmatpush1.msra.mxu0 0.0
        %7376 = vmatprep.subr.mxu0 0.0
        %7377 = vmatpush1.msra.mxu0 0.0
        %7378 = vmatprep.subr.mxu0 0.0
        %7379 = vmatpush1.msra.mxu0 0.0
        %7380 = vmatprep.subr.mxu0 0.0
        %7381 = vmatpush1.msra.mxu0 0.0
        %7382 = vmatprep.subr.mxu0 0.0
        %7383 = vmatpush1.msra.mxu0 0.0
        %7384 = vmatprep.subr.mxu0 0.0
        %7385 = vmatpush1.msra.mxu0 0.0
        %7386 = vmatprep.subr.mxu0 0.0
        %7387 = vmatpush1.msra.mxu0 0.0
        %7388 = vmatprep.subr.mxu0 0.0
        %7389 = vmatpush1.msra.mxu0 0.0
        %7390 = vmatprep.subr.mxu0 0.0
        %7391 = vmatpush1.msra.mxu0 0.0
        %7392 = vmatprep.subr.mxu0 0.0
        %7393 = vmatpush1.msra.mxu0 0.0
        %7394 = vmatprep.subr.mxu0 0.0
        %7395 = vmatpush1.msra.mxu0 0.0
        %7396 = vmatprep.subr.mxu0 0.0
        %7397 = vmatpush1.msra.mxu0 0.0
        %7398 = vmatprep.subr.mxu0 0.0
        %7399 = vmatpush1.msra.mxu0 0.0
        %7400 = vmatprep.subr.mxu0 0.0
        %7401 = vmatpush1.msra.mxu0 0.0
        %7402 = vmatprep.subr.mxu0 0.0
        %7403 = vmatpush1.msra.mxu0 0.0
        %7404 = vmatprep.subr.mxu0 0.0
        %7405 = vmatpush1.msra.mxu0 0.0
        %7406 = vmatprep.subr.mxu0 0.0
        %7407 = vmatpush1.msra.mxu0 0.0
        %7408 = vmatprep.subr.mxu0 0.0
        %7409 = vmatpush1.msra.mxu0 0.0
        %7410 = vmatprep.subr.mxu0 0.0
        %7411 = vmatpush1.msra.mxu0 0.0
        %7412 = vmatprep.subr.mxu0 0.0
        %7413 = vmatpush1.msra.mxu0 0.0
        %7414 = vmatprep.subr.mxu0 0.0
        %7415 = vmatpush1.msra.mxu0 0.0
        %7416 = vmatprep.subr.mxu0 0.0
        %7417 = vmatpush1.msra.mxu0 0.0
        %7418 = vmatprep.subr.mxu0 0.0
        %7419 = vmatpush1.msra.mxu0 0.0
        %7420 = vmatprep.subr.mxu0 0.0
        %7421 = vmatpush1.msra.mxu0 0.0
        %7422 = vmatprep.subr.mxu0 0.0
        %7423 = vmatpush1.msra.mxu0 0.0
        %7424 = vmatprep.subr.mxu0 0.0
        %7425 = vmatpush1.msra.mxu0 0.0
        %7426 = vmatprep.mubr.f32.mxu0 0.0
        %7427 = vmatmul.mubr.f32.gmra.mrb[0].mxu0 %v7357
        %v7428 = vpop.f32.mrb[0].mxu0
        %v7429 = vadd.f32 %v7355, %v7428
        %v7430 = vpop.f32.mrb[0].mxu0
        %7431 = vmatprep.mubr.f32.mxu0 0.0
        %7432 = vmatmul.mubr.f32.gmra.mrb[0].mxu0 %v7360
        %v7433 = vpop.f32.mrb[0].mxu0
        %v7434 = vadd.f32 %v7355, %v7433
        %v7435 = vpop.f32.mrb[0].mxu0
        %7436 = vdwg.mxu0
        %v7437 = vadd.f32 %v6870, %v7429
        %v7438 = vadd.f32 %v6871, %v7434
        %v7439 = vsel %vm381, %v7437, 0.0
        %7440 = vadd.xlane.f32.xlu0 %v7439
        %v7441 = vpop.xlane.xlu0 %7440
        %v7442 = vsel %vm381, %v7438, 0.0
        %7443 = vadd.xlane.f32.xlu0 %v7442
        %v7444 = vpop.xlane.xlu0 %7443
        %v7445 = vmul.f32 %v7441, %v907
        %v7446 = vmul.f32 %v7444, %v907
        %v7447 = vsub.f32 %v7437, %v7445
        %v7448 = vsub.f32 %v7438, %v7446
        %v7449 = vmul.f32 %v7447, %v7447
        %v7450 = vmul.f32 %v7448, %v7448
        %v7451 = vsel %vm381, %v7449, 0.0
        %7452 = vadd.xlane.f32.xlu0 %v7451
        %v7453 = vpop.xlane.xlu0 %7452
        %v7454 = vsel %vm381, %v7450, 0.0
        %7455 = vadd.xlane.f32.xlu0 %v7454
        %v7456 = vpop.xlane.xlu0 %7455
        %v7457 = vmul.f32 %v7453, %v907
        %v7458 = vmul.f32 %v7456, %v907
        %v7459 = vadd.f32 %v7457, 1e-05
        %v7460 = vadd.f32 %v7458, 1e-05
        %v7461 = vrsqrt.pop %v7459
        %v7462 = vrsqrt.pop %v7460
        %v7463 = vmul.f32 %v7447, %v7461
        %v7464 = vmul.f32 %v7448, %v7462
        %v7465 = vlaneseq
        %v7466 = vshrl.u32 %v7465, 7
        %v7467 = vsub.s32 0, %v7466
        %v7468 = vrot.slane %v6913, %v7467
        %v7469 = vmul.f32 %v7463, %v7468
        %v7470 = vmul.f32 %v7464, %v7468
        %v7471 = vlaneseq
        %v7472 = vshrl.u32 %v7471, 7
        %v7473 = vsub.s32 0, %v7472
        %v7474 = vrot.slane %v6914, %v7473
        %v7475 = vadd.f32 %v7469, %v7474
        %v7476 = vadd.f32 %v7470, %v7474
        %v7477 = vlaneseq
        %v7478 = vshrl.u32 %v7477, 7
        %v7479 = vsub.s32 0, %v7478
        %v7480 = vrot.slane %v6911, %v7479
        %v7482 = vsel %vm381, %v7475, 0
        %v7485 = vsel %vm381, %v7476, 0
        %7487 = vmatprep.subr.mxu0 0.0
        %7488 = vmatpush1.msra.mxu0 %v6893
        %7489 = vmatprep.subr.mxu0 0.0
        %7490 = vmatpush1.msra.mxu0 %v6894
        %7491 = vmatprep.subr.mxu0 0.0
        %7492 = vmatpush1.msra.mxu0 %v6895
        %7493 = vmatprep.subr.mxu0 0.0
        %7494 = vmatpush1.msra.mxu0 %v6896
        %7495 = vmatprep.subr.mxu0 0.0
        %7496 = vmatpush1.msra.mxu0 0.0
        %7497 = vmatprep.subr.mxu0 0.0
        %7498 = vmatpush1.msra.mxu0 0.0
        %7499 = vmatprep.subr.mxu0 0.0
        %7500 = vmatpush1.msra.mxu0 0.0
        %7501 = vmatprep.subr.mxu0 0.0
        %7502 = vmatpush1.msra.mxu0 0.0
        %7503 = vmatprep.subr.mxu0 0.0
        %7504 = vmatpush1.msra.mxu0 0.0
        %7505 = vmatprep.subr.mxu0 0.0
        %7506 = vmatpush1.msra.mxu0 0.0
        %7507 = vmatprep.subr.mxu0 0.0
        %7508 = vmatpush1.msra.mxu0 0.0
        %7509 = vmatprep.subr.mxu0 0.0
        %7510 = vmatpush1.msra.mxu0 0.0
        %7511 = vmatprep.subr.mxu0 0.0
        %7512 = vmatpush1.msra.mxu0 0.0
        %7513 = vmatprep.subr.mxu0 0.0
        %7514 = vmatpush1.msra.mxu0 0.0
        %7515 = vmatprep.subr.mxu0 0.0
        %7516 = vmatpush1.msra.mxu0 0.0
        %7517 = vmatprep.subr.mxu0 0.0
        %7518 = vmatpush1.msra.mxu0 0.0
        %7519 = vmatprep.subr.mxu0 0.0
        %7520 = vmatpush1.msra.mxu0 0.0
        %7521 = vmatprep.subr.mxu0 0.0
        %7522 = vmatpush1.msra.mxu0 0.0
        %7523 = vmatprep.subr.mxu0 0.0
        %7524 = vmatpush1.msra.mxu0 0.0
        %7525 = vmatprep.subr.mxu0 0.0
        %7526 = vmatpush1.msra.mxu0 0.0
        %7527 = vmatprep.subr.mxu0 0.0
        %7528 = vmatpush1.msra.mxu0 0.0
        %7529 = vmatprep.subr.mxu0 0.0
        %7530 = vmatpush1.msra.mxu0 0.0
        %7531 = vmatprep.subr.mxu0 0.0
        %7532 = vmatpush1.msra.mxu0 0.0
        %7533 = vmatprep.subr.mxu0 0.0
        %7534 = vmatpush1.msra.mxu0 0.0
        %7535 = vmatprep.subr.mxu0 0.0
        %7536 = vmatpush1.msra.mxu0 0.0
        %7537 = vmatprep.subr.mxu0 0.0
        %7538 = vmatpush1.msra.mxu0 0.0
        %7539 = vmatprep.subr.mxu0 0.0
        %7540 = vmatpush1.msra.mxu0 0.0
        %7541 = vmatprep.subr.mxu0 0.0
        %7542 = vmatpush1.msra.mxu0 0.0
        %7543 = vmatprep.subr.mxu0 0.0
        %7544 = vmatpush1.msra.mxu0 0.0
        %7545 = vmatprep.subr.mxu0 0.0
        %7546 = vmatpush1.msra.mxu0 0.0
        %7547 = vmatprep.subr.mxu0 0.0
        %7548 = vmatpush1.msra.mxu0 0.0
        %7549 = vmatprep.subr.mxu0 0.0
        %7550 = vmatpush1.msra.mxu0 0.0
        %7551 = vmatprep.mubr.f32.mxu0 0.0
        %7552 = vmatmul.mubr.f32.gmra.mrb[0].mxu0 %v7482
        %v7553 = vpop.f32.mrb[0].mxu0
        %v7554 = vadd.f32 %v7480, %v7553
        %v7555 = vpop.f32.mrb[0].mxu0
        %7556 = vmatprep.mubr.f32.mxu0 0.0
        %7557 = vmatmul.mubr.f32.gmra.mrb[0].mxu0 %v7485
        %v7558 = vpop.f32.mrb[0].mxu0
        %v7559 = vadd.f32 %v7480, %v7558
        %v7560 = vpop.f32.mrb[0].mxu0
        %7561 = vdwg.mxu0
        %v7562 = vmax.f32 %v7554, 0.0
        %v7563 = vmax.f32 %v7559, 0.0
        %v7564 = vlaneseq
        %v7565 = vshrl.u32 %v7564, 7
        %v7566 = vsub.s32 0, %v7565
        %v7567 = vrot.slane %v6912, %v7566
        %v7569 = vsel %vm1031, %v7562, 0
        %v7572 = vsel %vm1031, %v7563, 0
        %7574 = vmatprep.subr.mxu0 0.0
        %7575 = vmatpush1.msra.mxu0 %v6898
        %7576 = vmatprep.subr.mxu0 0.0
        %7577 = vmatpush1.msra.mxu0 %v6899
        %7578 = vmatprep.subr.mxu0 0.0
        %7579 = vmatpush1.msra.mxu0 %v6900
        %7580 = vmatprep.subr.mxu0 0.0
        %7581 = vmatpush1.msra.mxu0 %v6901
        %7582 = vmatprep.subr.mxu0 0.0
        %7583 = vmatpush1.msra.mxu0 %v6902
        %7584 = vmatprep.subr.mxu0 0.0
        %7585 = vmatpush1.msra.mxu0 %v6903
        %7586 = vmatprep.subr.mxu0 0.0
        %7587 = vmatpush1.msra.mxu0 %v6904
        %7588 = vmatprep.subr.mxu0 0.0
        %7589 = vmatpush1.msra.mxu0 %v6905
        %7590 = vmatprep.subr.mxu0 0.0
        %7591 = vmatpush1.msra.mxu0 0.0
        %7592 = vmatprep.subr.mxu0 0.0
        %7593 = vmatpush1.msra.mxu0 0.0
        %7594 = vmatprep.subr.mxu0 0.0
        %7595 = vmatpush1.msra.mxu0 0.0
        %7596 = vmatprep.subr.mxu0 0.0
        %7597 = vmatpush1.msra.mxu0 0.0
        %7598 = vmatprep.subr.mxu0 0.0
        %7599 = vmatpush1.msra.mxu0 0.0
        %7600 = vmatprep.subr.mxu0 0.0
        %7601 = vmatpush1.msra.mxu0 0.0
        %7602 = vmatprep.subr.mxu0 0.0
        %7603 = vmatpush1.msra.mxu0 0.0
        %7604 = vmatprep.subr.mxu0 0.0
        %7605 = vmatpush1.msra.mxu0 0.0
        %7606 = vmatprep.subr.mxu0 0.0
        %7607 = vmatpush1.msra.mxu0 0.0
        %7608 = vmatprep.subr.mxu0 0.0
        %7609 = vmatpush1.msra.mxu0 0.0
        %7610 = vmatprep.subr.mxu0 0.0
        %7611 = vmatpush1.msra.mxu0 0.0
        %7612 = vmatprep.subr.mxu0 0.0
        %7613 = vmatpush1.msra.mxu0 0.0
        %7614 = vmatprep.subr.mxu0 0.0
        %7615 = vmatpush1.msra.mxu0 0.0
        %7616 = vmatprep.subr.mxu0 0.0
        %7617 = vmatpush1.msra.mxu0 0.0
        %7618 = vmatprep.subr.mxu0 0.0
        %7619 = vmatpush1.msra.mxu0 0.0
        %7620 = vmatprep.subr.mxu0 0.0
        %7621 = vmatpush1.msra.mxu0 0.0
        %7622 = vmatprep.subr.mxu0 0.0
        %7623 = vmatpush1.msra.mxu0 0.0
        %7624 = vmatprep.subr.mxu0 0.0
        %7625 = vmatpush1.msra.mxu0 0.0
        %7626 = vmatprep.subr.mxu0 0.0
        %7627 = vmatpush1.msra.mxu0 0.0
        %7628 = vmatprep.subr.mxu0 0.0
        %7629 = vmatpush1.msra.mxu0 0.0
        %7630 = vmatprep.subr.mxu0 0.0
        %7631 = vmatpush1.msra.mxu0 0.0
        %7632 = vmatprep.subr.mxu0 0.0
        %7633 = vmatpush1.msra.mxu0 0.0
        %7634 = vmatprep.subr.mxu0 0.0
        %7635 = vmatpush1.msra.mxu0 0.0
        %7636 = vmatprep.subr.mxu0 0.0
        %7637 = vmatpush1.msra.mxu0 0.0
        %7638 = vmatprep.mubr.f32.mxu0 0.0
        %7639 = vmatmul.mubr.f32.gmra.mrb[0].mxu0 %v7569
        %v7640 = vpop.f32.mrb[0].mxu0
        %v7641 = vadd.f32 %v7567, %v7640
        %v7642 = vpop.f32.mrb[0].mxu0
        %7643 = vmatprep.mubr.f32.mxu0 0.0
        %7644 = vmatmul.mubr.f32.gmra.mrb[0].mxu0 %v7572
        %v7645 = vpop.f32.mrb[0].mxu0
        %v7646 = vadd.f32 %v7567, %v7645
        %v7647 = vpop.f32.mrb[0].mxu0
        %7648 = vdwg.mxu0
        %v7649 = vadd.f32 %v7475, %v7641
        %v7650 = vadd.f32 %v7476, %v7646
        %v7651 = vsel %vm381, %v7649, 0.0
        %7652 = vadd.xlane.f32.xlu0 %v7651
        %v7653 = vpop.xlane.xlu0 %7652
        %v7654 = vsel %vm381, %v7650, 0.0
        %7655 = vadd.xlane.f32.xlu0 %v7654
        %v7656 = vpop.xlane.xlu0 %7655
        %v7657 = vmul.f32 %v7653, %v907
        %v7658 = vmul.f32 %v7656, %v907
        %v7659 = vsub.f32 %v7649, %v7657
        %v7660 = vsub.f32 %v7650, %v7658
        %v7661 = vmul.f32 %v7659, %v7659
        %v7662 = vmul.f32 %v7660, %v7660
        %v7663 = vsel %vm381, %v7661, 0.0
        %7664 = vadd.xlane.f32.xlu0 %v7663
        %v7665 = vpop.xlane.xlu0 %7664
        %v7666 = vsel %vm381, %v7662, 0.0
        %7667 = vadd.xlane.f32.xlu0 %v7666
        %v7668 = vpop.xlane.xlu0 %7667
        %v7669 = vmul.f32 %v7665, %v907
        %v7670 = vmul.f32 %v7668, %v907
        %v7671 = vadd.f32 %v7669, 1e-05
        %v7672 = vadd.f32 %v7670, 1e-05
        %v7673 = vrsqrt.pop %v7671
        %v7674 = vrsqrt.pop %v7672
        %v7675 = vmul.f32 %v7659, %v7673
        %v7676 = vmul.f32 %v7660, %v7674
        %v7677 = vlaneseq
        %v7678 = vshrl.u32 %v7677, 7
        %v7679 = vsub.s32 0, %v7678
        %v7680 = vrot.slane %v6915, %v7679
        %v7681 = vmul.f32 %v7675, %v7680
        %v7682 = vmul.f32 %v7676, %v7680
        %v7683 = vlaneseq
        %v7684 = vshrl.u32 %v7683, 7
        %v7685 = vsub.s32 0, %v7684
        %v7686 = vrot.slane %v6916, %v7685
        %v7687 = vadd.f32 %v7681, %v7686
        %v7688 = vadd.f32 %v7682, %v7686
        %s7689 = scalar_lea.vmem %s2, 288
        %v7690 = vld [vmem:[%s7689] sm:$0xff]
        %v7691 = vld [vmem:[%s7689 + $0x8] sm:$0xff]
        %v7692 = vld [vmem:[%s7689 + $0x10] sm:$0xff]
        %v7693 = vld [vmem:[%s7689 + $0x18] sm:$0xff]
        %s7694 = scalar_lea.vmem %s3, 288
        %v7695 = vld [vmem:[%s7694] sm:$0xff]
        %v7696 = vld [vmem:[%s7694 + $0x8] sm:$0xff]
        %v7697 = vld [vmem:[%s7694 + $0x10] sm:$0xff]
        %v7698 = vld [vmem:[%s7694 + $0x18] sm:$0xff]
        %s7699 = scalar_lea.vmem %s4, 288
        %v7700 = vld [vmem:[%s7699] sm:$0xff]
        %v7701 = vld [vmem:[%s7699 + $0x8] sm:$0xff]
        %v7702 = vld [vmem:[%s7699 + $0x10] sm:$0xff]
        %v7703 = vld [vmem:[%s7699 + $0x18] sm:$0xff]
        %s7704 = scalar_lea.vmem %s5, 288
        %v7705 = vld [vmem:[%s7704] sm:$0xff]
        %v7706 = vld [vmem:[%s7704 + $0x8] sm:$0xff]
        %v7707 = vld [vmem:[%s7704 + $0x10] sm:$0xff]
        %v7708 = vld [vmem:[%s7704 + $0x18] sm:$0xff]
        %s7709 = scalar_lea.vmem %s6, 288
        %v7710 = vld [vmem:[%s7709] sm:$0xff]
        %v7711 = vld [vmem:[%s7709 + $0x8] sm:$0xff]
        %v7712 = vld [vmem:[%s7709 + $0x10] sm:$0xff]
        %v7713 = vld [vmem:[%s7709 + $0x18] sm:$0xff]
        %s7714 = scalar_lea.vmem %s7, 576
        %v7715 = vld [vmem:[%s7714] sm:$0xff]
        %v7716 = vld [vmem:[%s7714 + $0x8] sm:$0xff]
        %v7717 = vld [vmem:[%s7714 + $0x10] sm:$0xff]
        %v7718 = vld [vmem:[%s7714 + $0x18] sm:$0xff]
        %v7719 = vld [vmem:[%s7714 + $0x20] sm:$0xff]
        %v7720 = vld [vmem:[%s7714 + $0x28] sm:$0xff]
        %v7721 = vld [vmem:[%s7714 + $0x30] sm:$0xff]
        %v7722 = vld [vmem:[%s7714 + $0x38] sm:$0xff]
        %s7723 = scalar_lea.vmem %s8, 144
        %v7724 = vld [vmem:[%s7723] sm:$0x1]
        %v7725 = vld [vmem:[%s7723 + $0x1] sm:$0x1]
        %v7726 = vld [vmem:[%s7723 + $0x2] sm:$0x1]
        %v7727 = vld [vmem:[%s7723 + $0x3] sm:$0x1]
        %v7728 = vld [vmem:[%s7723 + $0x4] sm:$0x1]
        %v7729 = vld [vmem:[%s7723 + $0x5] sm:$0x1]
        %v7730 = vld [vmem:[%s7723 + $0x6] sm:$0x1]
        %v7731 = vld [vmem:[%s7723 + $0x7] sm:$0x1]
        %v7732 = vld [vmem:[%s7723 + $0x8] sm:$0x1]
        %v7733 = vld [vmem:[%s7723 + $0x9] sm:$0x1]
        %v7734 = vlaneseq
        %v7735 = vshrl.u32 %v7734, 7
        %v7736 = vsub.s32 0, %v7735
        %v7737 = vrot.slane %v7724, %v7736
        %v7739 = vsel %vm381, %v7687, 0
        %v7742 = vsel %vm381, %v7688, 0
        %7744 = vmatprep.subr.mxu0 0.0
        %7745 = vmatpush1.msra.mxu0 %v7690
        %7746 = vmatprep.subr.mxu0 0.0
        %7747 = vmatpush1.msra.mxu0 %v7691
        %7748 = vmatprep.subr.mxu0 0.0
        %7749 = vmatpush1.msra.mxu0 %v7692
        %7750 = vmatprep.subr.mxu0 0.0
        %7751 = vmatpush1.msra.mxu0 %v7693
        %7752 = vmatprep.subr.mxu0 0.0
        %7753 = vmatpush1.msra.mxu0 0.0
        %7754 = vmatprep.subr.mxu0 0.0
        %7755 = vmatpush1.msra.mxu0 0.0
        %7756 = vmatprep.subr.mxu0 0.0
        %7757 = vmatpush1.msra.mxu0 0.0
        %7758 = vmatprep.subr.mxu0 0.0
        %7759 = vmatpush1.msra.mxu0 0.0
        %7760 = vmatprep.subr.mxu0 0.0
        %7761 = vmatpush1.msra.mxu0 0.0
        %7762 = vmatprep.subr.mxu0 0.0
        %7763 = vmatpush1.msra.mxu0 0.0
        %7764 = vmatprep.subr.mxu0 0.0
        %7765 = vmatpush1.msra.mxu0 0.0
        %7766 = vmatprep.subr.mxu0 0.0
        %7767 = vmatpush1.msra.mxu0 0.0
        %7768 = vmatprep.subr.mxu0 0.0
        %7769 = vmatpush1.msra.mxu0 0.0
        %7770 = vmatprep.subr.mxu0 0.0
        %7771 = vmatpush1.msra.mxu0 0.0
        %7772 = vmatprep.subr.mxu0 0.0
        %7773 = vmatpush1.msra.mxu0 0.0
        %7774 = vmatprep.subr.mxu0 0.0
        %7775 = vmatpush1.msra.mxu0 0.0
        %7776 = vmatprep.subr.mxu0 0.0
        %7777 = vmatpush1.msra.mxu0 0.0
        %7778 = vmatprep.subr.mxu0 0.0
        %7779 = vmatpush1.msra.mxu0 0.0
        %7780 = vmatprep.subr.mxu0 0.0
        %7781 = vmatpush1.msra.mxu0 0.0
        %7782 = vmatprep.subr.mxu0 0.0
        %7783 = vmatpush1.msra.mxu0 0.0
        %7784 = vmatprep.subr.mxu0 0.0
        %7785 = vmatpush1.msra.mxu0 0.0
        %7786 = vmatprep.subr.mxu0 0.0
        %7787 = vmatpush1.msra.mxu0 0.0
        %7788 = vmatprep.subr.mxu0 0.0
        %7789 = vmatpush1.msra.mxu0 0.0
        %7790 = vmatprep.subr.mxu0 0.0
        %7791 = vmatpush1.msra.mxu0 0.0
        %7792 = vmatprep.subr.mxu0 0.0
        %7793 = vmatpush1.msra.mxu0 0.0
        %7794 = vmatprep.subr.mxu0 0.0
        %7795 = vmatpush1.msra.mxu0 0.0
        %7796 = vmatprep.subr.mxu0 0.0
        %7797 = vmatpush1.msra.mxu0 0.0
        %7798 = vmatprep.subr.mxu0 0.0
        %7799 = vmatpush1.msra.mxu0 0.0
        %7800 = vmatprep.subr.mxu0 0.0
        %7801 = vmatpush1.msra.mxu0 0.0
        %7802 = vmatprep.subr.mxu0 0.0
        %7803 = vmatpush1.msra.mxu0 0.0
        %7804 = vmatprep.subr.mxu0 0.0
        %7805 = vmatpush1.msra.mxu0 0.0
        %7806 = vmatprep.subr.mxu0 0.0
        %7807 = vmatpush1.msra.mxu0 0.0
        %7808 = vmatprep.mubr.f32.mxu0 0.0
        %7809 = vmatmul.mubr.f32.gmra.mrb[0].mxu0 %v7739
        %v7810 = vpop.f32.mrb[0].mxu0
        %v7811 = vadd.f32 %v7737, %v7810
        %v7812 = vpop.f32.mrb[0].mxu0
        %7813 = vmatprep.mubr.f32.mxu0 0.0
        %7814 = vmatmul.mubr.f32.gmra.mrb[0].mxu0 %v7742
        %v7815 = vpop.f32.mrb[0].mxu0
        %v7816 = vadd.f32 %v7737, %v7815
        %v7817 = vpop.f32.mrb[0].mxu0
        %7818 = vdwg.mxu0
        %v7819 = vlaneseq
        %v7820 = vshrl.u32 %v7819, 7
        %v7821 = vsub.s32 0, %v7820
        %v7822 = vrot.slane %v7725, %v7821
        %7823 = vmatprep.subr.mxu0 0.0
        %7824 = vmatpush1.msra.mxu0 %v7695
        %7825 = vmatprep.subr.mxu0 0.0
        %7826 = vmatpush1.msra.mxu0 %v7696
        %7827 = vmatprep.subr.mxu0 0.0
        %7828 = vmatpush1.msra.mxu0 %v7697
        %7829 = vmatprep.subr.mxu0 0.0
        %7830 = vmatpush1.msra.mxu0 %v7698
        %7831 = vmatprep.subr.mxu0 0.0
        %7832 = vmatpush1.msra.mxu0 0.0
        %7833 = vmatprep.subr.mxu0 0.0
        %7834 = vmatpush1.msra.mxu0 0.0
        %7835 = vmatprep.subr.mxu0 0.0
        %7836 = vmatpush1.msra.mxu0 0.0
        %7837 = vmatprep.subr.mxu0 0.0
        %7838 = vmatpush1.msra.mxu0 0.0
        %7839 = vmatprep.subr.mxu0 0.0
        %7840 = vmatpush1.msra.mxu0 0.0
        %7841 = vmatprep.subr.mxu0 0.0
        %7842 = vmatpush1.msra.mxu0 0.0
        %7843 = vmatprep.subr.mxu0 0.0
        %7844 = vmatpush1.msra.mxu0 0.0
        %7845 = vmatprep.subr.mxu0 0.0
        %7846 = vmatpush1.msra.mxu0 0.0
        %7847 = vmatprep.subr.mxu0 0.0
        %7848 = vmatpush1.msra.mxu0 0.0
        %7849 = vmatprep.subr.mxu0 0.0
        %7850 = vmatpush1.msra.mxu0 0.0
        %7851 = vmatprep.subr.mxu0 0.0
        %7852 = vmatpush1.msra.mxu0 0.0
        %7853 = vmatprep.subr.mxu0 0.0
        %7854 = vmatpush1.msra.mxu0 0.0
        %7855 = vmatprep.subr.mxu0 0.0
        %7856 = vmatpush1.msra.mxu0 0.0
        %7857 = vmatprep.subr.mxu0 0.0
        %7858 = vmatpush1.msra.mxu0 0.0
        %7859 = vmatprep.subr.mxu0 0.0
        %7860 = vmatpush1.msra.mxu0 0.0
        %7861 = vmatprep.subr.mxu0 0.0
        %7862 = vmatpush1.msra.mxu0 0.0
        %7863 = vmatprep.subr.mxu0 0.0
        %7864 = vmatpush1.msra.mxu0 0.0
        %7865 = vmatprep.subr.mxu0 0.0
        %7866 = vmatpush1.msra.mxu0 0.0
        %7867 = vmatprep.subr.mxu0 0.0
        %7868 = vmatpush1.msra.mxu0 0.0
        %7869 = vmatprep.subr.mxu0 0.0
        %7870 = vmatpush1.msra.mxu0 0.0
        %7871 = vmatprep.subr.mxu0 0.0
        %7872 = vmatpush1.msra.mxu0 0.0
        %7873 = vmatprep.subr.mxu0 0.0
        %7874 = vmatpush1.msra.mxu0 0.0
        %7875 = vmatprep.subr.mxu0 0.0
        %7876 = vmatpush1.msra.mxu0 0.0
        %7877 = vmatprep.subr.mxu0 0.0
        %7878 = vmatpush1.msra.mxu0 0.0
        %7879 = vmatprep.subr.mxu0 0.0
        %7880 = vmatpush1.msra.mxu0 0.0
        %7881 = vmatprep.subr.mxu0 0.0
        %7882 = vmatpush1.msra.mxu0 0.0
        %7883 = vmatprep.subr.mxu0 0.0
        %7884 = vmatpush1.msra.mxu0 0.0
        %7885 = vmatprep.subr.mxu0 0.0
        %7886 = vmatpush1.msra.mxu0 0.0
        %7887 = vmatprep.mubr.f32.mxu0 0.0
        %7888 = vmatmul.mubr.f32.gmra.mrb[0].mxu0 %v7739
        %v7889 = vpop.f32.mrb[0].mxu0
        %v7890 = vadd.f32 %v7822, %v7889
        %v7891 = vpop.f32.mrb[0].mxu0
        %7892 = vmatprep.mubr.f32.mxu0 0.0
        %7893 = vmatmul.mubr.f32.gmra.mrb[0].mxu0 %v7742
        %v7894 = vpop.f32.mrb[0].mxu0
        %v7895 = vadd.f32 %v7822, %v7894
        %v7896 = vpop.f32.mrb[0].mxu0
        %7897 = vdwg.mxu0
        %v7898 = vlaneseq
        %v7899 = vshrl.u32 %v7898, 7
        %v7900 = vsub.s32 0, %v7899
        %v7901 = vrot.slane %v7726, %v7900
        %7902 = vmatprep.subr.mxu0 0.0
        %7903 = vmatpush1.msra.mxu0 %v7700
        %7904 = vmatprep.subr.mxu0 0.0
        %7905 = vmatpush1.msra.mxu0 %v7701
        %7906 = vmatprep.subr.mxu0 0.0
        %7907 = vmatpush1.msra.mxu0 %v7702
        %7908 = vmatprep.subr.mxu0 0.0
        %7909 = vmatpush1.msra.mxu0 %v7703
        %7910 = vmatprep.subr.mxu0 0.0
        %7911 = vmatpush1.msra.mxu0 0.0
        %7912 = vmatprep.subr.mxu0 0.0
        %7913 = vmatpush1.msra.mxu0 0.0
        %7914 = vmatprep.subr.mxu0 0.0
        %7915 = vmatpush1.msra.mxu0 0.0
        %7916 = vmatprep.subr.mxu0 0.0
        %7917 = vmatpush1.msra.mxu0 0.0
        %7918 = vmatprep.subr.mxu0 0.0
        %7919 = vmatpush1.msra.mxu0 0.0
        %7920 = vmatprep.subr.mxu0 0.0
        %7921 = vmatpush1.msra.mxu0 0.0
        %7922 = vmatprep.subr.mxu0 0.0
        %7923 = vmatpush1.msra.mxu0 0.0
        %7924 = vmatprep.subr.mxu0 0.0
        %7925 = vmatpush1.msra.mxu0 0.0
        %7926 = vmatprep.subr.mxu0 0.0
        %7927 = vmatpush1.msra.mxu0 0.0
        %7928 = vmatprep.subr.mxu0 0.0
        %7929 = vmatpush1.msra.mxu0 0.0
        %7930 = vmatprep.subr.mxu0 0.0
        %7931 = vmatpush1.msra.mxu0 0.0
        %7932 = vmatprep.subr.mxu0 0.0
        %7933 = vmatpush1.msra.mxu0 0.0
        %7934 = vmatprep.subr.mxu0 0.0
        %7935 = vmatpush1.msra.mxu0 0.0
        %7936 = vmatprep.subr.mxu0 0.0
        %7937 = vmatpush1.msra.mxu0 0.0
        %7938 = vmatprep.subr.mxu0 0.0
        %7939 = vmatpush1.msra.mxu0 0.0
        %7940 = vmatprep.subr.mxu0 0.0
        %7941 = vmatpush1.msra.mxu0 0.0
        %7942 = vmatprep.subr.mxu0 0.0
        %7943 = vmatpush1.msra.mxu0 0.0
        %7944 = vmatprep.subr.mxu0 0.0
        %7945 = vmatpush1.msra.mxu0 0.0
        %7946 = vmatprep.subr.mxu0 0.0
        %7947 = vmatpush1.msra.mxu0 0.0
        %7948 = vmatprep.subr.mxu0 0.0
        %7949 = vmatpush1.msra.mxu0 0.0
        %7950 = vmatprep.subr.mxu0 0.0
        %7951 = vmatpush1.msra.mxu0 0.0
        %7952 = vmatprep.subr.mxu0 0.0
        %7953 = vmatpush1.msra.mxu0 0.0
        %7954 = vmatprep.subr.mxu0 0.0
        %7955 = vmatpush1.msra.mxu0 0.0
        %7956 = vmatprep.subr.mxu0 0.0
        %7957 = vmatpush1.msra.mxu0 0.0
        %7958 = vmatprep.subr.mxu0 0.0
        %7959 = vmatpush1.msra.mxu0 0.0
        %7960 = vmatprep.subr.mxu0 0.0
        %7961 = vmatpush1.msra.mxu0 0.0
        %7962 = vmatprep.subr.mxu0 0.0
        %7963 = vmatpush1.msra.mxu0 0.0
        %7964 = vmatprep.subr.mxu0 0.0
        %7965 = vmatpush1.msra.mxu0 0.0
        %7966 = vmatprep.mubr.f32.mxu0 0.0
        %7967 = vmatmul.mubr.f32.gmra.mrb[0].mxu0 %v7739
        %v7968 = vpop.f32.mrb[0].mxu0
        %v7969 = vadd.f32 %v7901, %v7968
        %v7970 = vpop.f32.mrb[0].mxu0
        %7971 = vmatprep.mubr.f32.mxu0 0.0
        %7972 = vmatmul.mubr.f32.gmra.mrb[0].mxu0 %v7742
        %v7973 = vpop.f32.mrb[0].mxu0
        %v7974 = vadd.f32 %v7901, %v7973
        %v7975 = vpop.f32.mrb[0].mxu0
        %7976 = vdwg.mxu0
        %v7978 = vsel %vm381, %v7811, 0
        %v7981 = vsel %vm381, %v7816, 0
        %v7984 = vsel %vm381, %v7890, 0
        %v7987 = vsel %vm381, %v7895, 0
        %7989 = vmatprep.subr.mxu0 0.0
        %7990 = vmatpush1.xpose.msra.mxu0 %v7984
        %7991 = vmatprep.subr.mxu0 0.0
        %7992 = vmatpush1.xpose.msra.mxu0 %v7987
        %7993 = vmatprep.subr.mxu0 0.0
        %7994 = vmatpush1.xpose.msra.mxu0 0.0
        %7995 = vmatprep.subr.mxu0 0.0
        %7996 = vmatpush1.xpose.msra.mxu0 0.0
        %7997 = vmatprep.subr.mxu0 0.0
        %7998 = vmatpush1.xpose.msra.mxu0 0.0
        %7999 = vmatprep.subr.mxu0 0.0
        %8000 = vmatpush1.xpose.msra.mxu0 0.0
        %8001 = vmatprep.subr.mxu0 0.0
        %8002 = vmatpush1.xpose.msra.mxu0 0.0
        %8003 = vmatprep.subr.mxu0 0.0
        %8004 = vmatpush1.xpose.msra.mxu0 0.0
        %8005 = vmatprep.subr.mxu0 0.0
        %8006 = vmatpush1.xpose.msra.mxu0 0.0
        %8007 = vmatprep.subr.mxu0 0.0
        %8008 = vmatpush1.xpose.msra.mxu0 0.0
        %8009 = vmatprep.subr.mxu0 0.0
        %8010 = vmatpush1.xpose.msra.mxu0 0.0
        %8011 = vmatprep.subr.mxu0 0.0
        %8012 = vmatpush1.xpose.msra.mxu0 0.0
        %8013 = vmatprep.subr.mxu0 0.0
        %8014 = vmatpush1.xpose.msra.mxu0 0.0
        %8015 = vmatprep.subr.mxu0 0.0
        %8016 = vmatpush1.xpose.msra.mxu0 0.0
        %8017 = vmatprep.subr.mxu0 0.0
        %8018 = vmatpush1.xpose.msra.mxu0 0.0
        %8019 = vmatprep.subr.mxu0 0.0
        %8020 = vmatpush1.xpose.msra.mxu0 0.0
        %8021 = vmatprep.subr.mxu0 0.0
        %8022 = vmatpush1.xpose.msra.mxu0 0.0
        %8023 = vmatprep.subr.mxu0 0.0
        %8024 = vmatpush1.xpose.msra.mxu0 0.0
        %8025 = vmatprep.subr.mxu0 0.0
        %8026 = vmatpush1.xpose.msra.mxu0 0.0
        %8027 = vmatprep.subr.mxu0 0.0
        %8028 = vmatpush1.xpose.msra.mxu0 0.0
        %8029 = vmatprep.subr.mxu0 0.0
        %8030 = vmatpush1.xpose.msra.mxu0 0.0
        %8031 = vmatprep.subr.mxu0 0.0
        %8032 = vmatpush1.xpose.msra.mxu0 0.0
        %8033 = vmatprep.subr.mxu0 0.0
        %8034 = vmatpush1.xpose.msra.mxu0 0.0
        %8035 = vmatprep.subr.mxu0 0.0
        %8036 = vmatpush1.xpose.msra.mxu0 0.0
        %8037 = vmatprep.subr.mxu0 0.0
        %8038 = vmatpush1.xpose.msra.mxu0 0.0
        %8039 = vmatprep.subr.mxu0 0.0
        %8040 = vmatpush1.xpose.msra.mxu0 0.0
        %8041 = vmatprep.subr.mxu0 0.0
        %8042 = vmatpush1.xpose.msra.mxu0 0.0
        %8043 = vmatprep.subr.mxu0 0.0
        %8044 = vmatpush1.xpose.msra.mxu0 0.0
        %8045 = vmatprep.subr.mxu0 0.0
        %8046 = vmatpush1.xpose.msra.mxu0 0.0
        %8047 = vmatprep.subr.mxu0 0.0
        %8048 = vmatpush1.xpose.msra.mxu0 0.0
        %8049 = vmatprep.subr.mxu0 0.0
        %8050 = vmatpush1.xpose.msra.mxu0 0.0
        %8051 = vmatprep.subr.mxu0 0.0
        %8052 = vmatpush1.xpose.msra.mxu0 0.0
        %8053 = vmatprep.mubr.f32.mxu0 0.0
        %8054 = vmatmul.mubr.f32.gmra.mrb[0].mxu0 %v7978
        %v8055 = vpop.f32.mrb[0].mxu0
        %v8056 = vadd.f32 0.0, %v8055
        %v8057 = vpop.f32.mrb[0].mxu0
        %8058 = vmatprep.mubr.f32.mxu0 0.0
        %8059 = vmatmul.mubr.f32.gmra.mrb[0].mxu0 %v7981
        %v8060 = vpop.f32.mrb[0].mxu0
        %v8061 = vadd.f32 0.0, %v8060
        %v8062 = vpop.f32.mrb[0].mxu0
        %8063 = vdwg.mxu0
        %v8064 = vmul.f32 %v8056, 0.17677669
        %v8065 = vmul.f32 %v8061, 0.17677669
        %v8066 = vsel %vm710, %v8064, -inf
        %8067 = vmax.xlane.f32.xlu0 %v8066
        %v8068 = vpop.xlane.xlu0 %8067
        %v8069 = vsel %vm710, %v8065, -inf
        %8070 = vmax.xlane.f32.xlu0 %v8069
        %v8071 = vpop.xlane.xlu0 %8070
        %v8072 = vsub.f32 %v8064, %v8068
        %v8073 = vsub.f32 %v8065, %v8071
        %v8074 = vmul.f32 %v8072, 1.442695
        %v8075 = vpow.pop %v8074
        %v8076 = vmul.f32 %v8073, 1.442695
        %v8077 = vpow.pop %v8076
        %v8078 = vsel %vm710, %v8075, 0.0
        %8079 = vadd.xlane.f32.xlu0 %v8078
        %v8080 = vpop.xlane.xlu0 %8079
        %v8081 = vsel %vm710, %v8077, 0.0
        %8082 = vadd.xlane.f32.xlu0 %v8081
        %v8083 = vpop.xlane.xlu0 %8082
        %v8084 = vrcp.pop %v8080
        %v8085 = vrcp.pop %v8083
        %v8086 = vmul.f32 %v8075, %v8084
        %v8087 = vmul.f32 %v8077, %v8085
        %v8089 = vsel %vm710, %v8086, 0
        %v8092 = vsel %vm710, %v8087, 0
        %8094 = vmatprep.subr.mxu0 0.0
        %8095 = vmatpush1.msra.mxu0 %v7969
        %8096 = vmatprep.subr.mxu0 0.0
        %8097 = vmatpush1.msra.mxu0 %v7974
        %8098 = vmatprep.subr.mxu0 0.0
        %8099 = vmatpush1.msra.mxu0 0.0
        %8100 = vmatprep.subr.mxu0 0.0
        %8101 = vmatpush1.msra.mxu0 0.0
        %8102 = vmatprep.subr.mxu0 0.0
        %8103 = vmatpush1.msra.mxu0 0.0
        %8104 = vmatprep.subr.mxu0 0.0
        %8105 = vmatpush1.msra.mxu0 0.0
        %8106 = vmatprep.subr.mxu0 0.0
        %8107 = vmatpush1.msra.mxu0 0.0
        %8108 = vmatprep.subr.mxu0 0.0
        %8109 = vmatpush1.msra.mxu0 0.0
        %8110 = vmatprep.subr.mxu0 0.0
        %8111 = vmatpush1.msra.mxu0 0.0
        %8112 = vmatprep.subr.mxu0 0.0
        %8113 = vmatpush1.msra.mxu0 0.0
        %8114 = vmatprep.subr.mxu0 0.0
        %8115 = vmatpush1.msra.mxu0 0.0
        %8116 = vmatprep.subr.mxu0 0.0
        %8117 = vmatpush1.msra.mxu0 0.0
        %8118 = vmatprep.subr.mxu0 0.0
        %8119 = vmatpush1.msra.mxu0 0.0
        %8120 = vmatprep.subr.mxu0 0.0
        %8121 = vmatpush1.msra.mxu0 0.0
        %8122 = vmatprep.subr.mxu0 0.0
        %8123 = vmatpush1.msra.mxu0 0.0
        %8124 = vmatprep.subr.mxu0 0.0
        %8125 = vmatpush1.msra.mxu0 0.0
        %8126 = vmatprep.subr.mxu0 0.0
        %8127 = vmatpush1.msra.mxu0 0.0
        %8128 = vmatprep.subr.mxu0 0.0
        %8129 = vmatpush1.msra.mxu0 0.0
        %8130 = vmatprep.subr.mxu0 0.0
        %8131 = vmatpush1.msra.mxu0 0.0
        %8132 = vmatprep.subr.mxu0 0.0
        %8133 = vmatpush1.msra.mxu0 0.0
        %8134 = vmatprep.subr.mxu0 0.0
        %8135 = vmatpush1.msra.mxu0 0.0
        %8136 = vmatprep.subr.mxu0 0.0
        %8137 = vmatpush1.msra.mxu0 0.0
        %8138 = vmatprep.subr.mxu0 0.0
        %8139 = vmatpush1.msra.mxu0 0.0
        %8140 = vmatprep.subr.mxu0 0.0
        %8141 = vmatpush1.msra.mxu0 0.0
        %8142 = vmatprep.subr.mxu0 0.0
        %8143 = vmatpush1.msra.mxu0 0.0
        %8144 = vmatprep.subr.mxu0 0.0
        %8145 = vmatpush1.msra.mxu0 0.0
        %8146 = vmatprep.subr.mxu0 0.0
        %8147 = vmatpush1.msra.mxu0 0.0
        %8148 = vmatprep.subr.mxu0 0.0
        %8149 = vmatpush1.msra.mxu0 0.0
        %8150 = vmatprep.subr.mxu0 0.0
        %8151 = vmatpush1.msra.mxu0 0.0
        %8152 = vmatprep.subr.mxu0 0.0
        %8153 = vmatpush1.msra.mxu0 0.0
        %8154 = vmatprep.subr.mxu0 0.0
        %8155 = vmatpush1.msra.mxu0 0.0
        %8156 = vmatprep.subr.mxu0 0.0
        %8157 = vmatpush1.msra.mxu0 0.0
        %8158 = vmatprep.mubr.f32.mxu0 0.0
        %8159 = vmatmul.mubr.f32.gmra.mrb[0].mxu0 %v8089
        %v8160 = vpop.f32.mrb[0].mxu0
        %v8161 = vadd.f32 0.0, %v8160
        %v8162 = vpop.f32.mrb[0].mxu0
        %8163 = vmatprep.mubr.f32.mxu0 0.0
        %8164 = vmatmul.mubr.f32.gmra.mrb[0].mxu0 %v8092
        %v8165 = vpop.f32.mrb[0].mxu0
        %v8166 = vadd.f32 0.0, %v8165
        %v8167 = vpop.f32.mrb[0].mxu0
        %8168 = vdwg.mxu0
        %v8169 = vlaneseq
        %v8170 = vshrl.u32 %v8169, 7
        %v8171 = vsub.s32 0, %v8170
        %v8172 = vrot.slane %v7727, %v8171
        %v8174 = vsel %vm381, %v8161, 0
        %v8177 = vsel %vm381, %v8166, 0
        %8179 = vmatprep.subr.mxu0 0.0
        %8180 = vmatpush1.msra.mxu0 %v7705
        %8181 = vmatprep.subr.mxu0 0.0
        %8182 = vmatpush1.msra.mxu0 %v7706
        %8183 = vmatprep.subr.mxu0 0.0
        %8184 = vmatpush1.msra.mxu0 %v7707
        %8185 = vmatprep.subr.mxu0 0.0
        %8186 = vmatpush1.msra.mxu0 %v7708
        %8187 = vmatprep.subr.mxu0 0.0
        %8188 = vmatpush1.msra.mxu0 0.0
        %8189 = vmatprep.subr.mxu0 0.0
        %8190 = vmatpush1.msra.mxu0 0.0
        %8191 = vmatprep.subr.mxu0 0.0
        %8192 = vmatpush1.msra.mxu0 0.0
        %8193 = vmatprep.subr.mxu0 0.0
        %8194 = vmatpush1.msra.mxu0 0.0
        %8195 = vmatprep.subr.mxu0 0.0
        %8196 = vmatpush1.msra.mxu0 0.0
        %8197 = vmatprep.subr.mxu0 0.0
        %8198 = vmatpush1.msra.mxu0 0.0
        %8199 = vmatprep.subr.mxu0 0.0
        %8200 = vmatpush1.msra.mxu0 0.0
        %8201 = vmatprep.subr.mxu0 0.0
        %8202 = vmatpush1.msra.mxu0 0.0
        %8203 = vmatprep.subr.mxu0 0.0
        %8204 = vmatpush1.msra.mxu0 0.0
        %8205 = vmatprep.subr.mxu0 0.0
        %8206 = vmatpush1.msra.mxu0 0.0
        %8207 = vmatprep.subr.mxu0 0.0
        %8208 = vmatpush1.msra.mxu0 0.0
        %8209 = vmatprep.subr.mxu0 0.0
        %8210 = vmatpush1.msra.mxu0 0.0
        %8211 = vmatprep.subr.mxu0 0.0
        %8212 = vmatpush1.msra.mxu0 0.0
        %8213 = vmatprep.subr.mxu0 0.0
        %8214 = vmatpush1.msra.mxu0 0.0
        %8215 = vmatprep.subr.mxu0 0.0
        %8216 = vmatpush1.msra.mxu0 0.0
        %8217 = vmatprep.subr.mxu0 0.0
        %8218 = vmatpush1.msra.mxu0 0.0
        %8219 = vmatprep.subr.mxu0 0.0
        %8220 = vmatpush1.msra.mxu0 0.0
        %8221 = vmatprep.subr.mxu0 0.0
        %8222 = vmatpush1.msra.mxu0 0.0
        %8223 = vmatprep.subr.mxu0 0.0
        %8224 = vmatpush1.msra.mxu0 0.0
        %8225 = vmatprep.subr.mxu0 0.0
        %8226 = vmatpush1.msra.mxu0 0.0
        %8227 = vmatprep.subr.mxu0 0.0
        %8228 = vmatpush1.msra.mxu0 0.0
        %8229 = vmatprep.subr.mxu0 0.0
        %8230 = vmatpush1.msra.mxu0 0.0
        %8231 = vmatprep.subr.mxu0 0.0
        %8232 = vmatpush1.msra.mxu0 0.0
        %8233 = vmatprep.subr.mxu0 0.0
        %8234 = vmatpush1.msra.mxu0 0.0
        %8235 = vmatprep.subr.mxu0 0.0
        %8236 = vmatpush1.msra.mxu0 0.0
        %8237 = vmatprep.subr.mxu0 0.0
        %8238 = vmatpush1.msra.mxu0 0.0
        %8239 = vmatprep.subr.mxu0 0.0
        %8240 = vmatpush1.msra.mxu0 0.0
        %8241 = vmatprep.subr.mxu0 0.0
        %8242 = vmatpush1.msra.mxu0 0.0
        %8243 = vmatprep.mubr.f32.mxu0 0.0
        %8244 = vmatmul.mubr.f32.gmra.mrb[0].mxu0 %v8174
        %v8245 = vpop.f32.mrb[0].mxu0
        %v8246 = vadd.f32 %v8172, %v8245
        %v8247 = vpop.f32.mrb[0].mxu0
        %8248 = vmatprep.mubr.f32.mxu0 0.0
        %8249 = vmatmul.mubr.f32.gmra.mrb[0].mxu0 %v8177
        %v8250 = vpop.f32.mrb[0].mxu0
        %v8251 = vadd.f32 %v8172, %v8250
        %v8252 = vpop.f32.mrb[0].mxu0
        %8253 = vdwg.mxu0
        %v8254 = vadd.f32 %v7687, %v8246
        %v8255 = vadd.f32 %v7688, %v8251
        %v8256 = vsel %vm381, %v8254, 0.0
        %8257 = vadd.xlane.f32.xlu0 %v8256
        %v8258 = vpop.xlane.xlu0 %8257
        %v8259 = vsel %vm381, %v8255, 0.0
        %8260 = vadd.xlane.f32.xlu0 %v8259
        %v8261 = vpop.xlane.xlu0 %8260
        %v8262 = vmul.f32 %v8258, %v907
        %v8263 = vmul.f32 %v8261, %v907
        %v8264 = vsub.f32 %v8254, %v8262
        %v8265 = vsub.f32 %v8255, %v8263
        %v8266 = vmul.f32 %v8264, %v8264
        %v8267 = vmul.f32 %v8265, %v8265
        %v8268 = vsel %vm381, %v8266, 0.0
        %8269 = vadd.xlane.f32.xlu0 %v8268
        %v8270 = vpop.xlane.xlu0 %8269
        %v8271 = vsel %vm381, %v8267, 0.0
        %8272 = vadd.xlane.f32.xlu0 %v8271
        %v8273 = vpop.xlane.xlu0 %8272
        %v8274 = vmul.f32 %v8270, %v907
        %v8275 = vmul.f32 %v8273, %v907
        %v8276 = vadd.f32 %v8274, 1e-05
        %v8277 = vadd.f32 %v8275, 1e-05
        %v8278 = vrsqrt.pop %v8276
        %v8279 = vrsqrt.pop %v8277
        %v8280 = vmul.f32 %v8264, %v8278
        %v8281 = vmul.f32 %v8265, %v8279
        %v8282 = vlaneseq
        %v8283 = vshrl.u32 %v8282, 7
        %v8284 = vsub.s32 0, %v8283
        %v8285 = vrot.slane %v7730, %v8284
        %v8286 = vmul.f32 %v8280, %v8285
        %v8287 = vmul.f32 %v8281, %v8285
        %v8288 = vlaneseq
        %v8289 = vshrl.u32 %v8288, 7
        %v8290 = vsub.s32 0, %v8289
        %v8291 = vrot.slane %v7731, %v8290
        %v8292 = vadd.f32 %v8286, %v8291
        %v8293 = vadd.f32 %v8287, %v8291
        %v8294 = vlaneseq
        %v8295 = vshrl.u32 %v8294, 7
        %v8296 = vsub.s32 0, %v8295
        %v8297 = vrot.slane %v7728, %v8296
        %v8299 = vsel %vm381, %v8292, 0
        %v8302 = vsel %vm381, %v8293, 0
        %8304 = vmatprep.subr.mxu0 0.0
        %8305 = vmatpush1.msra.mxu0 %v7710
        %8306 = vmatprep.subr.mxu0 0.0
        %8307 = vmatpush1.msra.mxu0 %v7711
        %8308 = vmatprep.subr.mxu0 0.0
        %8309 = vmatpush1.msra.mxu0 %v7712
        %8310 = vmatprep.subr.mxu0 0.0
        %8311 = vmatpush1.msra.mxu0 %v7713
        %8312 = vmatprep.subr.mxu0 0.0
        %8313 = vmatpush1.msra.mxu0 0.0
        %8314 = vmatprep.subr.mxu0 0.0
        %8315 = vmatpush1.msra.mxu0 0.0
        %8316 = vmatprep.subr.mxu0 0.0
        %8317 = vmatpush1.msra.mxu0 0.0
        %8318 = vmatprep.subr.mxu0 0.0
        %8319 = vmatpush1.msra.mxu0 0.0
        %8320 = vmatprep.subr.mxu0 0.0
        %8321 = vmatpush1.msra.mxu0 0.0
        %8322 = vmatprep.subr.mxu0 0.0
        %8323 = vmatpush1.msra.mxu0 0.0
        %8324 = vmatprep.subr.mxu0 0.0
        %8325 = vmatpush1.msra.mxu0 0.0
        %8326 = vmatprep.subr.mxu0 0.0
        %8327 = vmatpush1.msra.mxu0 0.0
        %8328 = vmatprep.subr.mxu0 0.0
        %8329 = vmatpush1.msra.mxu0 0.0
        %8330 = vmatprep.subr.mxu0 0.0
        %8331 = vmatpush1.msra.mxu0 0.0
        %8332 = vmatprep.subr.mxu0 0.0
        %8333 = vmatpush1.msra.mxu0 0.0
        %8334 = vmatprep.subr.mxu0 0.0
        %8335 = vmatpush1.msra.mxu0 0.0
        %8336 = vmatprep.subr.mxu0 0.0
        %8337 = vmatpush1.msra.mxu0 0.0
        %8338 = vmatprep.subr.mxu0 0.0
        %8339 = vmatpush1.msra.mxu0 0.0
        %8340 = vmatprep.subr.mxu0 0.0
        %8341 = vmatpush1.msra.mxu0 0.0
        %8342 = vmatprep.subr.mxu0 0.0
        %8343 = vmatpush1.msra.mxu0 0.0
        %8344 = vmatprep.subr.mxu0 0.0
        %8345 = vmatpush1.msra.mxu0 0.0
        %8346 = vmatprep.subr.mxu0 0.0
        %8347 = vmatpush1.msra.mxu0 0.0
        %8348 = vmatprep.subr.mxu0 0.0
        %8349 = vmatpush1.msra.mxu0 0.0
        %8350 = vmatprep.subr.mxu0 0.0
        %8351 = vmatpush1.msra.mxu0 0.0
        %8352 = vmatprep.subr.mxu0 0.0
        %8353 = vmatpush1.msra.mxu0 0.0
        %8354 = vmatprep.subr.mxu0 0.0
        %8355 = vmatpush1.msra.mxu0 0.0
        %8356 = vmatprep.subr.mxu0 0.0
        %8357 = vmatpush1.msra.mxu0 0.0
        %8358 = vmatprep.subr.mxu0 0.0
        %8359 = vmatpush1.msra.mxu0 0.0
        %8360 = vmatprep.subr.mxu0 0.0
        %8361 = vmatpush1.msra.mxu0 0.0
        %8362 = vmatprep.subr.mxu0 0.0
        %8363 = vmatpush1.msra.mxu0 0.0
        %8364 = vmatprep.subr.mxu0 0.0
        %8365 = vmatpush1.msra.mxu0 0.0
        %8366 = vmatprep.subr.mxu0 0.0
        %8367 = vmatpush1.msra.mxu0 0.0
        %8368 = vmatprep.mubr.f32.mxu0 0.0
        %8369 = vmatmul.mubr.f32.gmra.mrb[0].mxu0 %v8299
        %v8370 = vpop.f32.mrb[0].mxu0
        %v8371 = vadd.f32 %v8297, %v8370
        %v8372 = vpop.f32.mrb[0].mxu0
        %8373 = vmatprep.mubr.f32.mxu0 0.0
        %8374 = vmatmul.mubr.f32.gmra.mrb[0].mxu0 %v8302
        %v8375 = vpop.f32.mrb[0].mxu0
        %v8376 = vadd.f32 %v8297, %v8375
        %v8377 = vpop.f32.mrb[0].mxu0
        %8378 = vdwg.mxu0
        %v8379 = vmax.f32 %v8371, 0.0
        %v8380 = vmax.f32 %v8376, 0.0
        %v8381 = vlaneseq
        %v8382 = vshrl.u32 %v8381, 7
        %v8383 = vsub.s32 0, %v8382
        %v8384 = vrot.slane %v7729, %v8383
        %v8386 = vsel %vm1031, %v8379, 0
        %v8389 = vsel %vm1031, %v8380, 0
        %8391 = vmatprep.subr.mxu0 0.0
        %8392 = vmatpush1.msra.mxu0 %v7715
        %8393 = vmatprep.subr.mxu0 0.0
        %8394 = vmatpush1.msra.mxu0 %v7716
        %8395 = vmatprep.subr.mxu0 0.0
        %8396 = vmatpush1.msra.mxu0 %v7717
        %8397 = vmatprep.subr.mxu0 0.0
        %8398 = vmatpush1.msra.mxu0 %v7718
        %8399 = vmatprep.subr.mxu0 0.0
        %8400 = vmatpush1.msra.mxu0 %v7719
        %8401 = vmatprep.subr.mxu0 0.0
        %8402 = vmatpush1.msra.mxu0 %v7720
        %8403 = vmatprep.subr.mxu0 0.0
        %8404 = vmatpush1.msra.mxu0 %v7721
        %8405 = vmatprep.subr.mxu0 0.0
        %8406 = vmatpush1.msra.mxu0 %v7722
        %8407 = vmatprep.subr.mxu0 0.0
        %8408 = vmatpush1.msra.mxu0 0.0
        %8409 = vmatprep.subr.mxu0 0.0
        %8410 = vmatpush1.msra.mxu0 0.0
        %8411 = vmatprep.subr.mxu0 0.0
        %8412 = vmatpush1.msra.mxu0 0.0
        %8413 = vmatprep.subr.mxu0 0.0
        %8414 = vmatpush1.msra.mxu0 0.0
        %8415 = vmatprep.subr.mxu0 0.0
        %8416 = vmatpush1.msra.mxu0 0.0
        %8417 = vmatprep.subr.mxu0 0.0
        %8418 = vmatpush1.msra.mxu0 0.0
        %8419 = vmatprep.subr.mxu0 0.0
        %8420 = vmatpush1.msra.mxu0 0.0
        %8421 = vmatprep.subr.mxu0 0.0
        %8422 = vmatpush1.msra.mxu0 0.0
        %8423 = vmatprep.subr.mxu0 0.0
        %8424 = vmatpush1.msra.mxu0 0.0
        %8425 = vmatprep.subr.mxu0 0.0
        %8426 = vmatpush1.msra.mxu0 0.0
        %8427 = vmatprep.subr.mxu0 0.0
        %8428 = vmatpush1.msra.mxu0 0.0
        %8429 = vmatprep.subr.mxu0 0.0
        %8430 = vmatpush1.msra.mxu0 0.0
        %8431 = vmatprep.subr.mxu0 0.0
        %8432 = vmatpush1.msra.mxu0 0.0
        %8433 = vmatprep.subr.mxu0 0.0
        %8434 = vmatpush1.msra.mxu0 0.0
        %8435 = vmatprep.subr.mxu0 0.0
        %8436 = vmatpush1.msra.mxu0 0.0
        %8437 = vmatprep.subr.mxu0 0.0
        %8438 = vmatpush1.msra.mxu0 0.0
        %8439 = vmatprep.subr.mxu0 0.0
        %8440 = vmatpush1.msra.mxu0 0.0
        %8441 = vmatprep.subr.mxu0 0.0
        %8442 = vmatpush1.msra.mxu0 0.0
        %8443 = vmatprep.subr.mxu0 0.0
        %8444 = vmatpush1.msra.mxu0 0.0
        %8445 = vmatprep.subr.mxu0 0.0
        %8446 = vmatpush1.msra.mxu0 0.0
        %8447 = vmatprep.subr.mxu0 0.0
        %8448 = vmatpush1.msra.mxu0 0.0
        %8449 = vmatprep.subr.mxu0 0.0
        %8450 = vmatpush1.msra.mxu0 0.0
        %8451 = vmatprep.subr.mxu0 0.0
        %8452 = vmatpush1.msra.mxu0 0.0
        %8453 = vmatprep.subr.mxu0 0.0
        %8454 = vmatpush1.msra.mxu0 0.0
        %8455 = vmatprep.mubr.f32.mxu0 0.0
        %8456 = vmatmul.mubr.f32.gmra.mrb[0].mxu0 %v8386
        %v8457 = vpop.f32.mrb[0].mxu0
        %v8458 = vadd.f32 %v8384, %v8457
        %v8459 = vpop.f32.mrb[0].mxu0
        %8460 = vmatprep.mubr.f32.mxu0 0.0
        %8461 = vmatmul.mubr.f32.gmra.mrb[0].mxu0 %v8389
        %v8462 = vpop.f32.mrb[0].mxu0
        %v8463 = vadd.f32 %v8384, %v8462
        %v8464 = vpop.f32.mrb[0].mxu0
        %8465 = vdwg.mxu0
        %v8466 = vadd.f32 %v8292, %v8458
        %v8467 = vadd.f32 %v8293, %v8463
        %v8468 = vsel %vm381, %v8466, 0.0
        %8469 = vadd.xlane.f32.xlu0 %v8468
        %v8470 = vpop.xlane.xlu0 %8469
        %v8471 = vsel %vm381, %v8467, 0.0
        %8472 = vadd.xlane.f32.xlu0 %v8471
        %v8473 = vpop.xlane.xlu0 %8472
        %v8474 = vmul.f32 %v8470, %v907
        %v8475 = vmul.f32 %v8473, %v907
        %v8476 = vsub.f32 %v8466, %v8474
        %v8477 = vsub.f32 %v8467, %v8475
        %v8478 = vmul.f32 %v8476, %v8476
        %v8479 = vmul.f32 %v8477, %v8477
        %v8480 = vsel %vm381, %v8478, 0.0
        %8481 = vadd.xlane.f32.xlu0 %v8480
        %v8482 = vpop.xlane.xlu0 %8481
        %v8483 = vsel %vm381, %v8479, 0.0
        %8484 = vadd.xlane.f32.xlu0 %v8483
        %v8485 = vpop.xlane.xlu0 %8484
        %v8486 = vmul.f32 %v8482, %v907
        %v8487 = vmul.f32 %v8485, %v907
        %v8488 = vadd.f32 %v8486, 1e-05
        %v8489 = vadd.f32 %v8487, 1e-05
        %v8490 = vrsqrt.pop %v8488
        %v8491 = vrsqrt.pop %v8489
        %v8492 = vmul.f32 %v8476, %v8490
        %v8493 = vmul.f32 %v8477, %v8491
        %v8494 = vlaneseq
        %v8495 = vshrl.u32 %v8494, 7
        %v8496 = vsub.s32 0, %v8495
        %v8497 = vrot.slane %v7732, %v8496
        %v8498 = vmul.f32 %v8492, %v8497
        %v8499 = vmul.f32 %v8493, %v8497
        %v8500 = vlaneseq
        %v8501 = vshrl.u32 %v8500, 7
        %v8502 = vsub.s32 0, %v8501
        %v8503 = vrot.slane %v7733, %v8502
        %v8504 = vadd.f32 %v8498, %v8503
        %v8505 = vadd.f32 %v8499, %v8503
        %8506 = vst.msk [vmem:[%s325] sm:$0xff] %vm381, %v8504
        %8507 = vst.msk [vmem:[%s325 + $0x8] sm:$0xff] %vm381, %v8505
        %s8508 = sand.u32 %s225, 1
        %s8509 = scalar_lea.sflag [#allocation3], %s8508
        %s8510 = sand.u32 %s225, 1
        %s8511 = smul.addr %s8510, 16
        %s8512 = scalar_lea.vmem [#allocation2], %s8511
        // Predicated region
        $region57: #{transformer_forward.1} parent=55 // pred_check
          %p8513 = pneg %p235
        $region58: #{transformer_forward.1} parent=55 // pred_check_branch
          %8515 = sbr.rel (%p8513) target = $region60
        $region59: #{transformer_forward.1} parent=55 // pred_region
          %s8517 = ssub.s32 256, 256
          %8518 = vsyncadd %s8509, %s8517
          %s8519 = smul.addr %s23, 2
          %s8520 = smul.addr %s8519, 128
          %s8521 = scalar_lea.hbm %s9, %s8520
          %s8522 = sshll.u32 %s8512, 4
          %s8523 = int_to_ptr.vmem [resolvable:$true] %s8522
          %8528 = dma.vmem_to_hbm [thread:$0]  %s8523, 256, %s8521, %s8509, 128, 128, 8
        $region60: #{transformer_forward.1} parent=55 // pred_fallthru
          _
      $region56: #{transformer_forward.1} parent=5 // pred_fallthru
        _
      %p8529 = scmp.le.s32.totalorder 2, %s18
      // Predicated region
      $region61: #{transformer_forward.1} parent=5 // pred_check
        %p8530 = pneg %p8529
      $region62: #{transformer_forward.1} parent=5 // pred_check_branch
        %8532 = sbr.rel (%p8530) target = $region64
      $region63: #{transformer_forward.1} parent=5 // pred_region
        %s8533 = ssub.s32 %s18, 2
        // Predicated region
        $region65: #{transformer_forward.1} parent=63 // pred_check
          %p8534 = pneg %p241
        $region66: #{transformer_forward.1} parent=63 // pred_check_branch
          %8536 = sbr.rel (%p8534) target = $region68
        $region67: #{transformer_forward.1} parent=63 // pred_region
          %s8537 = sand.u32 %s226, 1
          %s8538 = scalar_lea.sflag [#allocation3], %s8537
          %s8539 = sand.u32 %s226, 1
          %s8540 = smul.addr %s8539, 16
          %s8541 = scalar_lea.vmem [#allocation2], %s8540
          %8542 = dma.done %s8538, 256
        $region68: #{transformer_forward.1} parent=63 // pred_fallthru
          _
      $region64: #{transformer_forward.1} parent=5 // pred_fallthru
        _
    $region6: #{transformer_forward.1} parent=1 // loop_footer
      %s22 = sadd.s32 1, %s18
    $region7: #{transformer_forward.1} parent=1 // loop_footer_branch
      %17 = sbr.rel target = $region3
    $region8: #{transformer_forward.1} parent=1 // loop_exit
      _
    %8543 = vsyncpa [#allocation3], 1
    %s8544 = scalar_lea.sflag [#allocation3], 1
    %8545 = vsyncpa %s8544, 1

</llo_original>
